<compile_context>
chip_gen: v5e
topology: v5e:2x2
jax: 0.10.0
libtpu: 0.0.40
codegen_flags: <defaults>
</compile_context>

<pallas_src>
import jax
import jax.numpy as jnp
from jax.experimental import pallas as pl
from jax.experimental.pallas import tpu as pltpu

HIDDEN = 512        # nn.LSTM hidden_size
SEQ = 4             # fixed by forward(): img.reshape((-1, 4, size_r*size_c))
OUT = 6             # nn.Linear(512*4, 6)
OUT_PAD = 128       # lane-dense output; wrapper slices [:, :OUT]
LANE = 128


def _round_up(x, m):
    return (x + m - 1) // m * m


def head_predict_kernel(x_ref, wih_ref, whh_ref, b_ref, wlin_ref, blin_ref, out_ref):
    """One batch tile of the full forward (input proj + LSTM recurrence + linear).

    x_ref:    (SEQ, TB, K_pad)   bf16  time-major input, zero-padded K
    wih_ref:  (K_pad, 4H)        bf16  weight_ih_l0.T (zero rows past inp_dim)
    whh_ref:  (H, 4H)            bf16  weight_hh_l0.T
    b_ref:    (1, 4H)            f32   bias_ih_l0 + bias_hh_l0
    wlin_ref: (4H, OUT_PAD)      bf16  linear.weight.T, zero-padded columns
    blin_ref: (1, OUT_PAD)       f32   zero-padded linear.bias
    out_ref:  (TB, OUT_PAD)      f32
    """
    H = HIDDEN
    seq, tb, kp = x_ref.shape

    # Hoisted input projection: all SEQ timesteps in a single MXU call
    # (M = SEQ*TB), with the fused LSTM bias broadcast exactly once.
    x_flat = x_ref[...].reshape(seq * tb, kp)
    gates_x = jnp.dot(x_flat, wih_ref[...], preferred_element_type=jnp.float32)
    gates_x = gates_x + b_ref[...]                                   # (SEQ*TB, 4H) f32

    h = jnp.zeros((tb, H), jnp.float32)
    c = jnp.zeros((tb, H), jnp.float32)
    hs = []
    for t in range(SEQ):                                             # static unroll (SEQ=4)
        gates = gates_x[t * tb:(t + 1) * tb, :]                      # (TB, 4H)
        if t > 0:  # h == 0 at t == 0, so the recurrent matmul vanishes there
            gates = gates + jnp.dot(h.astype(jnp.bfloat16), whh_ref[...],
                                    preferred_element_type=jnp.float32)
        i_g = jax.nn.sigmoid(gates[:, 0 * H:1 * H])
        f_g = jax.nn.sigmoid(gates[:, 1 * H:2 * H])
        g_g = jnp.tanh(gates[:, 2 * H:3 * H])
        o_g = jax.nn.sigmoid(gates[:, 3 * H:4 * H])
        c = f_g * c + i_g * g_g
        h = o_g * jnp.tanh(c)
        hs.append(h)

    # torch.flatten(x3.permute(1,0,2), 1) @ W_lin.T  ==  sum_t h_t @ W_lin.T[tH:(t+1)H]
    acc = jnp.dot(hs[0].astype(jnp.bfloat16), wlin_ref[0:H, :],
                  preferred_element_type=jnp.float32)
    for t in range(1, SEQ):
        acc = acc + jnp.dot(hs[t].astype(jnp.bfloat16),
                            wlin_ref[t * H:(t + 1) * H, :],
                            preferred_element_type=jnp.float32)
    out_ref[...] = acc + blin_ref[...]


def prepare_params(params, inp_dim):
    """One-time weight re-layout (transpose / pad / bf16) - off the per-call hot path."""
    k_pad = _round_up(inp_dim, LANE)
    w_ih_t = jnp.zeros((k_pad, 4 * HIDDEN), jnp.float32).at[:inp_dim, :].set(params["w_ih"].T)
    w_lin_t = jnp.zeros((4 * HIDDEN, OUT_PAD), jnp.float32).at[:, :OUT].set(params["w_lin"].T)
    b_lin = jnp.zeros((1, OUT_PAD), jnp.float32).at[0, :OUT].set(params["b_lin"])
    return {
        "w_ih": w_ih_t.astype(jnp.bfloat16),                         # (K_pad, 4H)
        "w_hh": params["w_hh"].T.astype(jnp.bfloat16),               # (H, 4H)
        "b": (params["b_ih"] + params["b_hh"]).reshape(1, -1).astype(jnp.float32),
        "w_lin": w_lin_t.astype(jnp.bfloat16),                       # (4H, OUT_PAD)
        "b_lin": b_lin,                                              # (1, OUT_PAD)
        "k_pad": k_pad,
    }


def head_predict_forward(img, his, prep, size_r, size_c, max_tile=256):
    """Build x, pad/cast, and invoke the batch-tiled Pallas kernel."""
    inp_dim = size_r * size_c + his.shape[-1]
    k_pad = prep["k_pad"]
    H4 = 4 * HIDDEN

    x1 = img.reshape((-1, SEQ, size_r * size_c)).astype(jnp.float32)
    x = jnp.concatenate((x1, his.astype(jnp.float32)), axis=-1)      # (B, SEQ, inp_dim)
    B = x.shape[0]

    # Batch tile: <= max_tile (sized for v7x's 64 MiB VMEM), multiple of 16 for
    # clean bf16 sublane packing; tiny batches use a single padded tile.
    TB = min(max_tile, _round_up(B, 16))
    B_pad = _round_up(B, TB)

    x = jnp.pad(x, ((0, B_pad - B), (0, 0), (0, k_pad - inp_dim)))
    x_tm = jnp.transpose(x, (1, 0, 2)).astype(jnp.bfloat16)          # (SEQ, B_pad, K_pad)

    grid = (B_pad // TB,)
    flops = 2 * B_pad * (SEQ * k_pad * H4 + (SEQ - 1) * HIDDEN * H4 + SEQ * HIDDEN * OUT_PAD)
    transcendentals = 5 * B_pad * SEQ * HIDDEN
    bytes_accessed = (x_tm.size * 2
                      + prep["w_ih"].size * 2 + prep["w_hh"].size * 2 + prep["w_lin"].size * 2
                      + prep["b"].size * 4 + prep["b_lin"].size * 4
                      + B_pad * OUT_PAD * 4)

    out = pl.pallas_call(
        head_predict_kernel,
        out_shape=jax.ShapeDtypeStruct((B_pad, OUT_PAD), jnp.float32),
        grid=grid,
        in_specs=[
            pl.BlockSpec((SEQ, TB, k_pad), lambda i: (0, i, 0)),     # x: streamed per tile
            pl.BlockSpec((k_pad, H4), lambda i: (0, 0)),             # weights: VMEM-resident
            pl.BlockSpec((HIDDEN, H4), lambda i: (0, 0)),
            pl.BlockSpec((1, H4), lambda i: (0, 0)),
            pl.BlockSpec((H4, OUT_PAD), lambda i: (0, 0)),
            pl.BlockSpec((1, OUT_PAD), lambda i: (0, 0)),
        ],
        out_specs=pl.BlockSpec((TB, OUT_PAD), lambda i: (i, 0)),
        compiler_params=pltpu.CompilerParams(
            dimension_semantics=("parallel",)),
        cost_estimate=pl.CostEstimate(
            flops=flops, transcendentals=transcendentals, bytes_accessed=bytes_accessed),
    )(x_tm, prep["w_ih"], prep["w_hh"], prep["b"], prep["w_lin"], prep["b_lin"])

    return out[:B, :OUT]


def reference_forward(img, his, params, size_r, size_c):
    """Pure-JAX f32 reference matching torch.nn.LSTM / Linear semantics."""
    x1 = img.reshape((-1, SEQ, size_r * size_c)).astype(jnp.float32)
    x = jnp.concatenate((x1, his.astype(jnp.float32)), axis=-1)
    B = x.shape[0]
    H = HIDDEN
    h = jnp.zeros((B, H), jnp.float32)
    c = jnp.zeros((B, H), jnp.float32)
    b = params["b_ih"] + params["b_hh"]
    hs = []
    for t in range(SEQ):
        gates = x[:, t, :] @ params["w_ih"].T + h @ params["w_hh"].T + b
        i = jax.nn.sigmoid(gates[:, :H])
        f = jax.nn.sigmoid(gates[:, H:2 * H])
        g = jnp.tanh(gates[:, 2 * H:3 * H])
        o = jax.nn.sigmoid(gates[:, 3 * H:])
        c = f * c + i * g
        h = o * jnp.tanh(c)
        hs.append(h)
    feat = jnp.concatenate(hs, axis=-1)
    return feat @ params["w_lin"].T + params["b_lin"]


if __name__ == "__main__":
    size_r, size_c = 8, 8
    B = 2
    inp_dim = size_r * size_c + 6

    key = jax.random.PRNGKey(0)
    k = jax.random.split(key, 8)
    scale = 1.0 / float(jnp.sqrt(jnp.float32(HIDDEN)))
    # Deterministic synthetic parameters (PyTorch shapes; uniform(-1/sqrt(H), 1/sqrt(H)))
    params = {
        "w_ih":  jax.random.uniform(k[0], (4 * HIDDEN, inp_dim), jnp.float32, -scale, scale),
        "w_hh":  jax.random.uniform(k[1], (4 * HIDDEN, HIDDEN),  jnp.float32, -scale, scale),
        "b_ih":  jax.random.uniform(k[2], (4 * HIDDEN,),         jnp.float32, -scale, scale),
        "b_hh":  jax.random.uniform(k[3], (4 * HIDDEN,),         jnp.float32, -scale, scale),
        "w_lin": jax.random.uniform(k[4], (OUT, 4 * HIDDEN),     jnp.float32, -scale, scale),
        "b_lin": jax.random.uniform(k[5], (OUT,),                jnp.float32, -scale, scale),
    }

    img = jax.random.normal(k[6], (B, SEQ, size_r, size_c), jnp.float32)
    his = jax.random.normal(k[7], (B, SEQ, 6), jnp.float32)

    prep = prepare_params(params, inp_dim)   # one-time weight re-layout
    out = jax.block_until_ready(head_predict_forward(img, his, prep, size_r, size_c))
    ref = reference_forward(img, his, params, size_r, size_c)

    assert out.shape == (B, OUT), out.shape
    # bf16 matmul operands with f32 accumulation -> tolerance relaxed vs pure f32.
    assert jnp.allclose(out, ref, atol=2e-2, rtol=2e-2), float(jnp.max(jnp.abs(out - ref)))
    print("KERNEL_OK")
</pallas_src>

<mosaic_0001>
module attributes {stable_mosaic.version = 11 : i64} {
  func.func @head_predict_kernel(%arg0: i32, %arg1: memref<4x16x128xbf16, #tpu.memory_space<vmem>>, %arg2: memref<128x2048xbf16, #tpu.memory_space<vmem>>, %arg3: memref<512x2048xbf16, #tpu.memory_space<vmem>>, %arg4: memref<1x2048xf32, #tpu.memory_space<vmem>>, %arg5: memref<2048x128xbf16, #tpu.memory_space<vmem>>, %arg6: memref<1x128xf32, #tpu.memory_space<vmem>>, %arg7: memref<16x128xf32, #tpu.memory_space<vmem>>) attributes {dimension_semantics = [#tpu.dimension_semantics<parallel>], iteration_bounds = array<i64: 1>, scalar_prefetch = 0 : i64, scratch_operands = 0 : i64, tpu.core_type = #tpu.core_type<tc>, window_params = [{transform_indices = @transform_0, window_bounds = array<i64: 4, 16, 128>}, {pipeline_mode = #tpu.pipeline_mode<synchronous>, transform_indices = @transform_1, window_bounds = array<i64: 128, 2048>}, {pipeline_mode = #tpu.pipeline_mode<synchronous>, transform_indices = @transform_2, window_bounds = array<i64: 512, 2048>}, {pipeline_mode = #tpu.pipeline_mode<synchronous>, transform_indices = @transform_3, window_bounds = array<i64: 1, 2048>}, {pipeline_mode = #tpu.pipeline_mode<synchronous>, transform_indices = @transform_4, window_bounds = array<i64: 2048, 128>}, {pipeline_mode = #tpu.pipeline_mode<synchronous>, transform_indices = @transform_5, window_bounds = array<i64: 1, 128>}, {transform_indices = @transform_6, window_bounds = array<i64: 16, 128>}]} {
    %c0 = arith.constant 0 : index
    %c0_0 = arith.constant 0 : index
    %c0_1 = arith.constant 0 : index
    %0 = vector.load %arg1[%c0, %c0_0, %c0_1] : memref<4x16x128xbf16, #tpu.memory_space<vmem>>, vector<4x16x128xbf16>
    %1 = vector.shape_cast %0 : vector<4x16x128xbf16> to vector<64x128xbf16>
    %c0_2 = arith.constant 0 : index
    %c0_3 = arith.constant 0 : index
    %2 = vector.load %arg2[%c0_2, %c0_3] : memref<128x2048xbf16, #tpu.memory_space<vmem>>, vector<128x2048xbf16>
    %cst = arith.constant dense<0.000000e+00> : vector<64x2048xf32>
    %3 = tpu.matmul %1, %2, %cst {dimension_numbers = #tpu.dot_dimension_numbers<[1], [0], [0], [1], [0, 0, 1, 1], [], []>} : vector<64x128xbf16>, vector<128x2048xbf16>, vector<64x2048xf32> -> vector<64x2048xf32>
    %c0_4 = arith.constant 0 : index
    %c0_5 = arith.constant 0 : index
    %4 = vector.load %arg4[%c0_4, %c0_5] : memref<1x2048xf32, #tpu.memory_space<vmem>>, vector<1x2048xf32>
    %5 = vector.broadcast %4 : vector<1x2048xf32> to vector<64x2048xf32>
    %6 = arith.addf %3, %5 : vector<64x2048xf32>
    %cst_6 = arith.constant 0.000000e+00 : f32
    %7 = vector.broadcast %cst_6 : f32 to vector<16x512xf32>
    %8 = vector.extract_strided_slice %6 {offsets = [0, 0], sizes = [16, 2048], strides = [1, 1]} : vector<64x2048xf32> to vector<16x2048xf32>
    %9 = vector.extract_strided_slice %8 {offsets = [0, 0], sizes = [16, 512], strides = [1, 1]} : vector<16x2048xf32> to vector<16x512xf32>
    %10 = arith.negf %9 : vector<16x512xf32>
    %11 = math.exp %10 : vector<16x512xf32>
    %cst_7 = arith.constant 1.000000e+00 : f32
    %12 = vector.broadcast %cst_7 : f32 to vector<16x512xf32>
    %13 = arith.addf %12, %11 : vector<16x512xf32>
    %14 = arith.divf %12, %13 : vector<16x512xf32>
    %15 = vector.extract_strided_slice %8 {offsets = [0, 512], sizes = [16, 512], strides = [1, 1]} : vector<16x2048xf32> to vector<16x512xf32>
    %16 = arith.negf %15 : vector<16x512xf32>
    %17 = math.exp %16 : vector<16x512xf32>
    %cst_8 = arith.constant 1.000000e+00 : f32
    %18 = vector.broadcast %cst_8 : f32 to vector<16x512xf32>
    %19 = arith.addf %18, %17 : vector<16x512xf32>
    %20 = arith.divf %18, %19 : vector<16x512xf32>
    %21 = vector.extract_strided_slice %8 {offsets = [0, 1024], sizes = [16, 512], strides = [1, 1]} : vector<16x2048xf32> to vector<16x512xf32>
    %22 = math.tanh %21 : vector<16x512xf32>
    %23 = vector.extract_strided_slice %8 {offsets = [0, 1536], sizes = [16, 512], strides = [1, 1]} : vector<16x2048xf32> to vector<16x512xf32>
    %24 = arith.negf %23 : vector<16x512xf32>
    %25 = math.exp %24 : vector<16x512xf32>
    %cst_9 = arith.constant 1.000000e+00 : f32
    %26 = vector.broadcast %cst_9 : f32 to vector<16x512xf32>
    %27 = arith.addf %26, %25 : vector<16x512xf32>
    %28 = arith.divf %26, %27 : vector<16x512xf32>
    %29 = arith.mulf %20, %7 : vector<16x512xf32>
    %30 = arith.mulf %14, %22 : vector<16x512xf32>
    %31 = arith.addf %29, %30 : vector<16x512xf32>
    %32 = math.tanh %31 : vector<16x512xf32>
    %33 = arith.mulf %28, %32 : vector<16x512xf32>
    %34 = vector.extract_strided_slice %6 {offsets = [16, 0], sizes = [16, 2048], strides = [1, 1]} : vector<64x2048xf32> to vector<16x2048xf32>
    %35 = arith.truncf %33 : vector<16x512xf32> to vector<16x512xbf16>
    %c0_10 = arith.constant 0 : index
    %c0_11 = arith.constant 0 : index
    %36 = vector.load %arg3[%c0_10, %c0_11] : memref<512x2048xbf16, #tpu.memory_space<vmem>>, vector<512x2048xbf16>
    %cst_12 = arith.constant dense<0.000000e+00> : vector<16x2048xf32>
    %37 = tpu.matmul %35, %36, %cst_12 {dimension_numbers = #tpu.dot_dimension_numbers<[1], [0], [0], [1], [0, 0, 1, 1], [], []>} : vector<16x512xbf16>, vector<512x2048xbf16>, vector<16x2048xf32> -> vector<16x2048xf32>
    %38 = arith.addf %34, %37 : vector<16x2048xf32>
    %39 = vector.extract_strided_slice %38 {offsets = [0, 0], sizes = [16, 512], strides = [1, 1]} : vector<16x2048xf32> to vector<16x512xf32>
    %40 = arith.negf %39 : vector<16x512xf32>
    %41 = math.exp %40 : vector<16x512xf32>
    %cst_13 = arith.constant 1.000000e+00 : f32
    %42 = vector.broadcast %cst_13 : f32 to vector<16x512xf32>
    %43 = arith.addf %42, %41 : vector<16x512xf32>
    %44 = arith.divf %42, %43 : vector<16x512xf32>
    %45 = vector.extract_strided_slice %38 {offsets = [0, 512], sizes = [16, 512], strides = [1, 1]} : vector<16x2048xf32> to vector<16x512xf32>
    %46 = arith.negf %45 : vector<16x512xf32>
    %47 = math.exp %46 : vector<16x512xf32>
    %cst_14 = arith.constant 1.000000e+00 : f32
    %48 = vector.broadcast %cst_14 : f32 to vector<16x512xf32>
    %49 = arith.addf %48, %47 : vector<16x512xf32>
    %50 = arith.divf %48, %49 : vector<16x512xf32>
    %51 = vector.extract_strided_slice %38 {offsets = [0, 1024], sizes = [16, 512], strides = [1, 1]} : vector<16x2048xf32> to vector<16x512xf32>
    %52 = math.tanh %51 : vector<16x512xf32>
    %53 = vector.extract_strided_slice %38 {offsets = [0, 1536], sizes = [16, 512], strides = [1, 1]} : vector<16x2048xf32> to vector<16x512xf32>
    %54 = arith.negf %53 : vector<16x512xf32>
    %55 = math.exp %54 : vector<16x512xf32>
    %cst_15 = arith.constant 1.000000e+00 : f32
    %56 = vector.broadcast %cst_15 : f32 to vector<16x512xf32>
    %57 = arith.addf %56, %55 : vector<16x512xf32>
    %58 = arith.divf %56, %57 : vector<16x512xf32>
    %59 = arith.mulf %50, %31 : vector<16x512xf32>
    %60 = arith.mulf %44, %52 : vector<16x512xf32>
    %61 = arith.addf %59, %60 : vector<16x512xf32>
    %62 = math.tanh %61 : vector<16x512xf32>
    %63 = arith.mulf %58, %62 : vector<16x512xf32>
    %64 = vector.extract_strided_slice %6 {offsets = [32, 0], sizes = [16, 2048], strides = [1, 1]} : vector<64x2048xf32> to vector<16x2048xf32>
    %65 = arith.truncf %63 : vector<16x512xf32> to vector<16x512xbf16>
    %c0_16 = arith.constant 0 : index
    %c0_17 = arith.constant 0 : index
    %66 = vector.load %arg3[%c0_16, %c0_17] : memref<512x2048xbf16, #tpu.memory_space<vmem>>, vector<512x2048xbf16>
    %cst_18 = arith.constant dense<0.000000e+00> : vector<16x2048xf32>
    %67 = tpu.matmul %65, %66, %cst_18 {dimension_numbers = #tpu.dot_dimension_numbers<[1], [0], [0], [1], [0, 0, 1, 1], [], []>} : vector<16x512xbf16>, vector<512x2048xbf16>, vector<16x2048xf32> -> vector<16x2048xf32>
    %68 = arith.addf %64, %67 : vector<16x2048xf32>
    %69 = vector.extract_strided_slice %68 {offsets = [0, 0], sizes = [16, 512], strides = [1, 1]} : vector<16x2048xf32> to vector<16x512xf32>
    %70 = arith.negf %69 : vector<16x512xf32>
    %71 = math.exp %70 : vector<16x512xf32>
    %cst_19 = arith.constant 1.000000e+00 : f32
    %72 = vector.broadcast %cst_19 : f32 to vector<16x512xf32>
    %73 = arith.addf %72, %71 : vector<16x512xf32>
    %74 = arith.divf %72, %73 : vector<16x512xf32>
    %75 = vector.extract_strided_slice %68 {offsets = [0, 512], sizes = [16, 512], strides = [1, 1]} : vector<16x2048xf32> to vector<16x512xf32>
    %76 = arith.negf %75 : vector<16x512xf32>
    %77 = math.exp %76 : vector<16x512xf32>
    %cst_20 = arith.constant 1.000000e+00 : f32
    %78 = vector.broadcast %cst_20 : f32 to vector<16x512xf32>
    %79 = arith.addf %78, %77 : vector<16x512xf32>
    %80 = arith.divf %78, %79 : vector<16x512xf32>
    %81 = vector.extract_strided_slice %68 {offsets = [0, 1024], sizes = [16, 512], strides = [1, 1]} : vector<16x2048xf32> to vector<16x512xf32>
    %82 = math.tanh %81 : vector<16x512xf32>
    %83 = vector.extract_strided_slice %68 {offsets = [0, 1536], sizes = [16, 512], strides = [1, 1]} : vector<16x2048xf32> to vector<16x512xf32>
    %84 = arith.negf %83 : vector<16x512xf32>
    %85 = math.exp %84 : vector<16x512xf32>
    %cst_21 = arith.constant 1.000000e+00 : f32
    %86 = vector.broadcast %cst_21 : f32 to vector<16x512xf32>
    %87 = arith.addf %86, %85 : vector<16x512xf32>
    %88 = arith.divf %86, %87 : vector<16x512xf32>
    %89 = arith.mulf %80, %61 : vector<16x512xf32>
    %90 = arith.mulf %74, %82 : vector<16x512xf32>
    %91 = arith.addf %89, %90 : vector<16x512xf32>
    %92 = math.tanh %91 : vector<16x512xf32>
    %93 = arith.mulf %88, %92 : vector<16x512xf32>
    %94 = vector.extract_strided_slice %6 {offsets = [48, 0], sizes = [16, 2048], strides = [1, 1]} : vector<64x2048xf32> to vector<16x2048xf32>
    %95 = arith.truncf %93 : vector<16x512xf32> to vector<16x512xbf16>
    %c0_22 = arith.constant 0 : index
    %c0_23 = arith.constant 0 : index
    %96 = vector.load %arg3[%c0_22, %c0_23] : memref<512x2048xbf16, #tpu.memory_space<vmem>>, vector<512x2048xbf16>
    %cst_24 = arith.constant dense<0.000000e+00> : vector<16x2048xf32>
    %97 = tpu.matmul %95, %96, %cst_24 {dimension_numbers = #tpu.dot_dimension_numbers<[1], [0], [0], [1], [0, 0, 1, 1], [], []>} : vector<16x512xbf16>, vector<512x2048xbf16>, vector<16x2048xf32> -> vector<16x2048xf32>
    %98 = arith.addf %94, %97 : vector<16x2048xf32>
    %99 = vector.extract_strided_slice %98 {offsets = [0, 0], sizes = [16, 512], strides = [1, 1]} : vector<16x2048xf32> to vector<16x512xf32>
    %100 = arith.negf %99 : vector<16x512xf32>
    %101 = math.exp %100 : vector<16x512xf32>
    %cst_25 = arith.constant 1.000000e+00 : f32
    %102 = vector.broadcast %cst_25 : f32 to vector<16x512xf32>
    %103 = arith.addf %102, %101 : vector<16x512xf32>
    %104 = arith.divf %102, %103 : vector<16x512xf32>
    %105 = vector.extract_strided_slice %98 {offsets = [0, 512], sizes = [16, 512], strides = [1, 1]} : vector<16x2048xf32> to vector<16x512xf32>
    %106 = arith.negf %105 : vector<16x512xf32>
    %107 = math.exp %106 : vector<16x512xf32>
    %cst_26 = arith.constant 1.000000e+00 : f32
    %108 = vector.broadcast %cst_26 : f32 to vector<16x512xf32>
    %109 = arith.addf %108, %107 : vector<16x512xf32>
    %110 = arith.divf %108, %109 : vector<16x512xf32>
    %111 = vector.extract_strided_slice %98 {offsets = [0, 1024], sizes = [16, 512], strides = [1, 1]} : vector<16x2048xf32> to vector<16x512xf32>
    %112 = math.tanh %111 : vector<16x512xf32>
    %113 = vector.extract_strided_slice %98 {offsets = [0, 1536], sizes = [16, 512], strides = [1, 1]} : vector<16x2048xf32> to vector<16x512xf32>
    %114 = arith.negf %113 : vector<16x512xf32>
    %115 = math.exp %114 : vector<16x512xf32>
    %cst_27 = arith.constant 1.000000e+00 : f32
    %116 = vector.broadcast %cst_27 : f32 to vector<16x512xf32>
    %117 = arith.addf %116, %115 : vector<16x512xf32>
    %118 = arith.divf %116, %117 : vector<16x512xf32>
    %119 = arith.mulf %110, %91 : vector<16x512xf32>
    %120 = arith.mulf %104, %112 : vector<16x512xf32>
    %121 = arith.addf %119, %120 : vector<16x512xf32>
    %122 = math.tanh %121 : vector<16x512xf32>
    %123 = arith.mulf %118, %122 : vector<16x512xf32>
    %124 = arith.truncf %33 : vector<16x512xf32> to vector<16x512xbf16>
    %c0_28 = arith.constant 0 : index
    %c0_29 = arith.constant 0 : index
    %125 = vector.load %arg5[%c0_28, %c0_29] : memref<2048x128xbf16, #tpu.memory_space<vmem>>, vector<512x128xbf16>
    %cst_30 = arith.constant dense<0.000000e+00> : vector<16x128xf32>
    %126 = tpu.matmul %124, %125, %cst_30 {dimension_numbers = #tpu.dot_dimension_numbers<[1], [0], [0], [1], [0, 0, 1, 1], [], []>} : vector<16x512xbf16>, vector<512x128xbf16>, vector<16x128xf32> -> vector<16x128xf32>
    %127 = arith.truncf %63 : vector<16x512xf32> to vector<16x512xbf16>
    %c512 = arith.constant 512 : index
    %c0_31 = arith.constant 0 : index
    %128 = vector.load %arg5[%c512, %c0_31] : memref<2048x128xbf16, #tpu.memory_space<vmem>>, vector<512x128xbf16>
    %cst_32 = arith.constant dense<0.000000e+00> : vector<16x128xf32>
    %129 = tpu.matmul %127, %128, %cst_32 {dimension_numbers = #tpu.dot_dimension_numbers<[1], [0], [0], [1], [0, 0, 1, 1], [], []>} : vector<16x512xbf16>, vector<512x128xbf16>, vector<16x128xf32> -> vector<16x128xf32>
    %130 = arith.addf %126, %129 : vector<16x128xf32>
    %131 = arith.truncf %93 : vector<16x512xf32> to vector<16x512xbf16>
    %c1024 = arith.constant 1024 : index
    %c0_33 = arith.constant 0 : index
    %132 = vector.load %arg5[%c1024, %c0_33] : memref<2048x128xbf16, #tpu.memory_space<vmem>>, vector<512x128xbf16>
    %cst_34 = arith.constant dense<0.000000e+00> : vector<16x128xf32>
    %133 = tpu.matmul %131, %132, %cst_34 {dimension_numbers = #tpu.dot_dimension_numbers<[1], [0], [0], [1], [0, 0, 1, 1], [], []>} : vector<16x512xbf16>, vector<512x128xbf16>, vector<16x128xf32> -> vector<16x128xf32>
    %134 = arith.addf %130, %133 : vector<16x128xf32>
    %135 = arith.truncf %123 : vector<16x512xf32> to vector<16x512xbf16>
    %c1536 = arith.constant 1536 : index
    %c0_35 = arith.constant 0 : index
    %136 = vector.load %arg5[%c1536, %c0_35] : memref<2048x128xbf16, #tpu.memory_space<vmem>>, vector<512x128xbf16>
    %cst_36 = arith.constant dense<0.000000e+00> : vector<16x128xf32>
    %137 = tpu.matmul %135, %136, %cst_36 {dimension_numbers = #tpu.dot_dimension_numbers<[1], [0], [0], [1], [0, 0, 1, 1], [], []>} : vector<16x512xbf16>, vector<512x128xbf16>, vector<16x128xf32> -> vector<16x128xf32>
    %138 = arith.addf %134, %137 : vector<16x128xf32>
    %c0_37 = arith.constant 0 : index
    %c0_38 = arith.constant 0 : index
    %139 = vector.load %arg6[%c0_37, %c0_38] : memref<1x128xf32, #tpu.memory_space<vmem>>, vector<1x128xf32>
    %140 = vector.broadcast %139 : vector<1x128xf32> to vector<16x128xf32>
    %141 = arith.addf %138, %140 : vector<16x128xf32>
    %c0_39 = arith.constant 0 : index
    %c0_40 = arith.constant 0 : index
    %142 = vector.load %arg7[%c0_39, %c0_40] : memref<16x128xf32, #tpu.memory_space<vmem>>, vector<16x128xf32>
    tpu.vector_store %arg7[%c0_39, %c0_40], %141 {strides = array<i32>} : memref<16x128xf32, #tpu.memory_space<vmem>>, vector<16x128xf32>,
    return
  }
  func.func @transform_0(%arg0: i32) -> (i32, i32, i32) {
    %c0_i32 = arith.constant 0 : i32
    %c0_i32_0 = arith.constant 0 : i32
    %c0_i32_1 = arith.constant 0 : i32
    return %c0_i32, %arg0, %c0_i32_0 : i32, i32, i32
  }
  func.func @transform_1(%arg0: i32) -> (i32, i32) {
    %c0_i32 = arith.constant 0 : i32
    %c0_i32_0 = arith.constant 0 : i32
    %c0_i32_1 = arith.constant 0 : i32
    return %c0_i32, %c0_i32_0 : i32, i32
  }
  func.func @transform_2(%arg0: i32) -> (i32, i32) {
    %c0_i32 = arith.constant 0 : i32
    %c0_i32_0 = arith.constant 0 : i32
    %c0_i32_1 = arith.constant 0 : i32
    return %c0_i32, %c0_i32_0 : i32, i32
  }
  func.func @transform_3(%arg0: i32) -> (i32, i32) {
    %c0_i32 = arith.constant 0 : i32
    %c0_i32_0 = arith.constant 0 : i32
    %c0_i32_1 = arith.constant 0 : i32
    return %c0_i32, %c0_i32_0 : i32, i32
  }
  func.func @transform_4(%arg0: i32) -> (i32, i32) {
    %c0_i32 = arith.constant 0 : i32
    %c0_i32_0 = arith.constant 0 : i32
    %c0_i32_1 = arith.constant 0 : i32
    return %c0_i32, %c0_i32_0 : i32, i32
  }
  func.func @transform_5(%arg0: i32) -> (i32, i32) {
    %c0_i32 = arith.constant 0 : i32
    %c0_i32_0 = arith.constant 0 : i32
    %c0_i32_1 = arith.constant 0 : i32
    return %c0_i32, %c0_i32_0 : i32, i32
  }
  func.func @transform_6(%arg0: i32) -> (i32, i32) {
    %c0_i32 = arith.constant 0 : i32
    %c0_i32_0 = arith.constant 0 : i32
    return %arg0, %c0_i32 : i32, i32
  }
}

</mosaic_0001>

<llo_original>
// kernel: tpu_custom_call.1
$region0: #{tpu_custom_call.1}
  #allocation0 [shape = 'u32[]', space=smem, size = 0x4, offset = 0x4, fixed_abs, tag = 'smem constant byte address 0x4 - core index']
  #allocation1 [shape = 'u32[72,128]{1,0:T(1,128)}', space=vmem, size = 0x9000, scoped, tag = 'internal scratch']
  %s0 = inlined_call_operand.hbm [shape: bf16[4,16,128], index: 0, kind: input, shape index: {}]
  %s1 = inlined_call_operand.hbm [shape: bf16[128,2048], index: 1, kind: input, shape index: {}]
  %s2 = inlined_call_operand.hbm [shape: bf16[512,2048], index: 2, kind: input, shape index: {}]
  %s3 = inlined_call_operand.hbm [shape: f32[1,2048], index: 3, kind: input, shape index: {}]
  %s4 = inlined_call_operand.hbm [shape: bf16[2048,128], index: 4, kind: input, shape index: {}]
  %s5 = inlined_call_operand.hbm [shape: f32[1,128], index: 5, kind: input, shape index: {}]
  %s6 = inlined_call_operand.hbm [shape: f32[16,128], index: 6, kind: output, shape index: {}]
  %s7 = sld [smem:[#allocation0]]
  $region58: #{tpu_custom_call.1} parent=0
    _
  %s9 = ssub.s32 1, %s7
  %s10 = scalar_select 0, %s9, %s7
  $region1: #{tpu_custom_call.1} parent=0
    #allocation2 [shape = 'u8[16384]{0}', space=vmem, size = 0x4000, scoped, tag = 'input window, operand 0, single buffered']
    #allocation3 [shape = 's32[1]{0}', space=sflag, size = 0x4, scoped, tag = 'scoped memory for tpu_custom_call.1']
    #allocation4 [shape = 's32[1]{0}', space=sflag, size = 0x4, scoped, tag = 'scoped memory for tpu_custom_call.1']
    #allocation5 [shape = 'u8[524288]{0}', space=vmem, size = 0x80000, scoped, tag = 'input window, operand 1, single buffered']
    #allocation6 [shape = 's32[1]{0}', space=sflag, size = 0x4, scoped, tag = 'scoped memory for tpu_custom_call.1']
    #allocation7 [shape = 'u8[2097152]{0}', space=vmem, size = 0x200000, scoped, tag = 'input window, operand 2, single buffered']
    #allocation8 [shape = 'u8[8192]{0}', space=vmem, size = 0x2000, scoped, tag = 'input window, operand 3, single buffered']
    #allocation9 [shape = 's32[1]{0}', space=sflag, size = 0x4, scoped, tag = 'scoped memory for tpu_custom_call.1']
    #allocation10 [shape = 'u8[524288]{0}', space=vmem, size = 0x80000, scoped, tag = 'input window, operand 4, single buffered']
    #allocation11 [shape = 'u8[512]{0}', space=vmem, size = 0x400, scoped, tag = 'input window, operand 5, single buffered']
    #allocation12 [shape = 's32[1]{0}', space=sflag, size = 0x4, scoped, tag = 'scoped memory for tpu_custom_call.1']
    #allocation13 [shape = 'u8[8192]{0}', space=vmem, size = 0x2000, scoped, tag = 'output window, operand 0, single buffered']
    %11 = vsyncpa [#allocation3], 0
    %12 = vsyncpa [#allocation6], 0
    %13 = vsyncpa [#allocation9], 0
    %14 = vsyncpa [#allocation12], 0
    %15 = vsyncpa [#allocation4], 0
    // Predicated region
    $region2: #{tpu_custom_call.1} parent=1 // pred_check
      _
    $region3: #{tpu_custom_call.1} parent=1 // pred_check_branch
      %17 = sbr.rel (0) target = $region5
    $region4: #{tpu_custom_call.1} parent=1 // pred_region
      %19 = vsyncadd [#allocation3], 0
      %s20 = sshll.u32 %s0, 4
      %s21 = int_to_ptr.hbm [resolvable:$true] %s20
      %s22 = sshll.u32 [#allocation2], 4
      %s23 = int_to_ptr.vmem [resolvable:$true] %s22
      %28 = dma.hbm_to_vmem [thread:$0]  %s21, 512, %s23, [#allocation3], 64, 64, 4
    $region5: #{tpu_custom_call.1} parent=1 // pred_fallthru
      _
    // Predicated region
    $region6: #{tpu_custom_call.1} parent=1 // pred_check
      _
    $region7: #{tpu_custom_call.1} parent=1 // pred_check_branch
      %30 = sbr.rel (0) target = $region9
    $region8: #{tpu_custom_call.1} parent=1 // pred_region
      %32 = vsyncadd [#allocation6], 0
      %s33 = sshll.u32 %s1, 4
      %s34 = int_to_ptr.hbm [resolvable:$true] %s33
      %s35 = sshll.u32 [#allocation5], 4
      %s36 = int_to_ptr.vmem [resolvable:$true] %s35
      %41 = dma.hbm_to_vmem [thread:$0]  %s34, 16384, %s36, [#allocation6], 1024, 1024, 64
    $region9: #{tpu_custom_call.1} parent=1 // pred_fallthru
      _
    // Predicated region
    $region10: #{tpu_custom_call.1} parent=1 // pred_check
      _
    $region11: #{tpu_custom_call.1} parent=1 // pred_check_branch
      %43 = sbr.rel (0) target = $region13
    $region12: #{tpu_custom_call.1} parent=1 // pred_region
      %45 = vsyncadd [#allocation6], 0
      %s46 = sshll.u32 %s2, 4
      %s47 = int_to_ptr.hbm [resolvable:$true] %s46
      %s48 = sshll.u32 [#allocation7], 4
      %s49 = int_to_ptr.vmem [resolvable:$true] %s48
      %54 = dma.hbm_to_vmem [thread:$0]  %s47, 65536, %s49, [#allocation6], 1024, 1024, 64
    $region13: #{tpu_custom_call.1} parent=1 // pred_fallthru
      _
    // Predicated region
    $region14: #{tpu_custom_call.1} parent=1 // pred_check
      _
    $region15: #{tpu_custom_call.1} parent=1 // pred_check_branch
      %56 = sbr.rel (0) target = $region17
    $region16: #{tpu_custom_call.1} parent=1 // pred_region
      %58 = vsyncadd [#allocation9], 0
      %s60 = sshll.u32 %s3, 4
      %s61 = int_to_ptr.hbm [resolvable:$true] %s60
      %s62 = sshll.u32 [#allocation8], 4
      %s63 = int_to_ptr.vmem [resolvable:$true] %s62
      %65 = dma.hbm_to_vmem [thread:$0]  %s61, 256, %s63, [#allocation9]
    $region17: #{tpu_custom_call.1} parent=1 // pred_fallthru
      _
    // Predicated region
    $region18: #{tpu_custom_call.1} parent=1 // pred_check
      _
    $region19: #{tpu_custom_call.1} parent=1 // pred_check_branch
      %67 = sbr.rel (0) target = $region21
    $region20: #{tpu_custom_call.1} parent=1 // pred_region
      %69 = vsyncadd [#allocation9], 0
      %s70 = sshll.u32 %s4, 4
      %s71 = int_to_ptr.hbm [resolvable:$true] %s70
      %s72 = sshll.u32 [#allocation10], 4
      %s73 = int_to_ptr.vmem [resolvable:$true] %s72
      %78 = dma.hbm_to_vmem [thread:$0]  %s71, 16384, %s73, [#allocation9], 64, 64, 4
    $region21: #{tpu_custom_call.1} parent=1 // pred_fallthru
      _
    // Predicated region
    $region22: #{tpu_custom_call.1} parent=1 // pred_check
      _
    $region23: #{tpu_custom_call.1} parent=1 // pred_check_branch
      %80 = sbr.rel (0) target = $region25
    $region24: #{tpu_custom_call.1} parent=1 // pred_region
      %82 = vsyncadd [#allocation12], 0
      %s84 = sshll.u32 %s5, 4
      %s85 = int_to_ptr.hbm [resolvable:$true] %s84
      %s86 = sshll.u32 [#allocation11], 4
      %s87 = int_to_ptr.vmem [resolvable:$true] %s86
      %89 = dma.hbm_to_vmem [thread:$0]  %s85, 16, %s87, [#allocation12]
    $region25: #{tpu_custom_call.1} parent=1 // pred_fallthru
      _
    // Predicated region
    $region26: #{tpu_custom_call.1} parent=1 // pred_check
      _
    $region27: #{tpu_custom_call.1} parent=1 // pred_check_branch
      %91 = sbr.rel (0) target = $region29
    $region28: #{tpu_custom_call.1} parent=1 // pred_region
      %93 = dma.done [#allocation3], 512
    $region29: #{tpu_custom_call.1} parent=1 // pred_fallthru
      _
    // Predicated region
    $region30: #{tpu_custom_call.1} parent=1 // pred_check
      _
    $region31: #{tpu_custom_call.1} parent=1 // pred_check_branch
      %95 = sbr.rel (0) target = $region33
    $region32: #{tpu_custom_call.1} parent=1 // pred_region
      %97 = dma.done [#allocation6], 16384
    $region33: #{tpu_custom_call.1} parent=1 // pred_fallthru
      _
    // Predicated region
    $region34: #{tpu_custom_call.1} parent=1 // pred_check
      _
    $region35: #{tpu_custom_call.1} parent=1 // pred_check_branch
      %99 = sbr.rel (0) target = $region37
    $region36: #{tpu_custom_call.1} parent=1 // pred_region
      %101 = dma.done [#allocation6], 65536
    $region37: #{tpu_custom_call.1} parent=1 // pred_fallthru
      _
    // Predicated region
    $region38: #{tpu_custom_call.1} parent=1 // pred_check
      _
    $region39: #{tpu_custom_call.1} parent=1 // pred_check_branch
      %103 = sbr.rel (0) target = $region41
    $region40: #{tpu_custom_call.1} parent=1 // pred_region
      %105 = dma.done [#allocation9], 256
    $region41: #{tpu_custom_call.1} parent=1 // pred_fallthru
      _
    // Predicated region
    $region42: #{tpu_custom_call.1} parent=1 // pred_check
      _
    $region43: #{tpu_custom_call.1} parent=1 // pred_check_branch
      %107 = sbr.rel (0) target = $region45
    $region44: #{tpu_custom_call.1} parent=1 // pred_region
      %109 = dma.done [#allocation9], 16384
    $region45: #{tpu_custom_call.1} parent=1 // pred_fallthru
      _
    // Predicated region
    $region46: #{tpu_custom_call.1} parent=1 // pred_check
      _
    $region47: #{tpu_custom_call.1} parent=1 // pred_check_branch
      %111 = sbr.rel (0) target = $region49
    $region48: #{tpu_custom_call.1} parent=1 // pred_region
      %113 = dma.done [#allocation12], 16
    $region49: #{tpu_custom_call.1} parent=1 // pred_fallthru
      _
    %v114 = vld [vmem:[#allocation2] sm:$0xf]
    %v115 = vld [vmem:[#allocation2 + $0x4] sm:$0xf]
    %v116 = vld [vmem:[#allocation2 + $0x8] sm:$0xf]
    %v117 = vld [vmem:[#allocation2 + $0xc] sm:$0xf]
    %v118 = vld [vmem:[#allocation2 + $0x10] sm:$0xf]
    %v119 = vld [vmem:[#allocation2 + $0x14] sm:$0xf]
    %v120 = vld [vmem:[#allocation2 + $0x18] sm:$0xf]
    %v121 = vld [vmem:[#allocation2 + $0x1c] sm:$0xf]
    %v122 = vld [vmem:[#allocation5] sm:$0xff]
    %v123 = vld [vmem:[#allocation5 + $0x8] sm:$0xff]
    %v124 = vld [vmem:[#allocation5 + $0x10] sm:$0xff]
    %v125 = vld [vmem:[#allocation5 + $0x18] sm:$0xff]
    %v126 = vld [vmem:[#allocation5 + $0x20] sm:$0xff]
    %v127 = vld [vmem:[#allocation5 + $0x28] sm:$0xff]
    %v128 = vld [vmem:[#allocation5 + $0x30] sm:$0xff]
    %v129 = vld [vmem:[#allocation5 + $0x38] sm:$0xff]
    %v130 = vld [vmem:[#allocation5 + $0x40] sm:$0xff]
    %v131 = vld [vmem:[#allocation5 + $0x48] sm:$0xff]
    %v132 = vld [vmem:[#allocation5 + $0x50] sm:$0xff]
    %v133 = vld [vmem:[#allocation5 + $0x58] sm:$0xff]
    %v134 = vld [vmem:[#allocation5 + $0x60] sm:$0xff]
    %v135 = vld [vmem:[#allocation5 + $0x68] sm:$0xff]
    %v136 = vld [vmem:[#allocation5 + $0x70] sm:$0xff]
    %v137 = vld [vmem:[#allocation5 + $0x78] sm:$0xff]
    %v138 = vld [vmem:[#allocation5 + $0x80] sm:$0xff]
    %v139 = vld [vmem:[#allocation5 + $0x88] sm:$0xff]
    %v140 = vld [vmem:[#allocation5 + $0x90] sm:$0xff]
    %v141 = vld [vmem:[#allocation5 + $0x98] sm:$0xff]
    %v142 = vld [vmem:[#allocation5 + $0xa0] sm:$0xff]
    %v143 = vld [vmem:[#allocation5 + $0xa8] sm:$0xff]
    %v144 = vld [vmem:[#allocation5 + $0xb0] sm:$0xff]
    %v145 = vld [vmem:[#allocation5 + $0xb8] sm:$0xff]
    %v146 = vld [vmem:[#allocation5 + $0xc0] sm:$0xff]
    %v147 = vld [vmem:[#allocation5 + $0xc8] sm:$0xff]
    %v148 = vld [vmem:[#allocation5 + $0xd0] sm:$0xff]
    %v149 = vld [vmem:[#allocation5 + $0xd8] sm:$0xff]
    %v150 = vld [vmem:[#allocation5 + $0xe0] sm:$0xff]
    %v151 = vld [vmem:[#allocation5 + $0xe8] sm:$0xff]
    %v152 = vld [vmem:[#allocation5 + $0xf0] sm:$0xff]
    %v153 = vld [vmem:[#allocation5 + $0xf8] sm:$0xff]
    %v154 = vld [vmem:[#allocation5 + $0x100] sm:$0xff]
    %v155 = vld [vmem:[#allocation5 + $0x108] sm:$0xff]
    %v156 = vld [vmem:[#allocation5 + $0x110] sm:$0xff]
    %v157 = vld [vmem:[#allocation5 + $0x118] sm:$0xff]
    %v158 = vld [vmem:[#allocation5 + $0x120] sm:$0xff]
    %v159 = vld [vmem:[#allocation5 + $0x128] sm:$0xff]
    %v160 = vld [vmem:[#allocation5 + $0x130] sm:$0xff]
    %v161 = vld [vmem:[#allocation5 + $0x138] sm:$0xff]
    %v162 = vld [vmem:[#allocation5 + $0x140] sm:$0xff]
    %v163 = vld [vmem:[#allocation5 + $0x148] sm:$0xff]
    %v164 = vld [vmem:[#allocation5 + $0x150] sm:$0xff]
    %v165 = vld [vmem:[#allocation5 + $0x158] sm:$0xff]
    %v166 = vld [vmem:[#allocation5 + $0x160] sm:$0xff]
    %v167 = vld [vmem:[#allocation5 + $0x168] sm:$0xff]
    %v168 = vld [vmem:[#allocation5 + $0x170] sm:$0xff]
    %v169 = vld [vmem:[#allocation5 + $0x178] sm:$0xff]
    %v170 = vld [vmem:[#allocation5 + $0x180] sm:$0xff]
    %v171 = vld [vmem:[#allocation5 + $0x188] sm:$0xff]
    %v172 = vld [vmem:[#allocation5 + $0x190] sm:$0xff]
    %v173 = vld [vmem:[#allocation5 + $0x198] sm:$0xff]
    %v174 = vld [vmem:[#allocation5 + $0x1a0] sm:$0xff]
    %v175 = vld [vmem:[#allocation5 + $0x1a8] sm:$0xff]
    %v176 = vld [vmem:[#allocation5 + $0x1b0] sm:$0xff]
    %v177 = vld [vmem:[#allocation5 + $0x1b8] sm:$0xff]
    %v178 = vld [vmem:[#allocation5 + $0x1c0] sm:$0xff]
    %v179 = vld [vmem:[#allocation5 + $0x1c8] sm:$0xff]
    %v180 = vld [vmem:[#allocation5 + $0x1d0] sm:$0xff]
    %v181 = vld [vmem:[#allocation5 + $0x1d8] sm:$0xff]
    %v182 = vld [vmem:[#allocation5 + $0x1e0] sm:$0xff]
    %v183 = vld [vmem:[#allocation5 + $0x1e8] sm:$0xff]
    %v184 = vld [vmem:[#allocation5 + $0x1f0] sm:$0xff]
    %v185 = vld [vmem:[#allocation5 + $0x1f8] sm:$0xff]
    %v186 = vld [vmem:[#allocation5 + $0x200] sm:$0xff]
    %v187 = vld [vmem:[#allocation5 + $0x208] sm:$0xff]
    %v188 = vld [vmem:[#allocation5 + $0x210] sm:$0xff]
    %v189 = vld [vmem:[#allocation5 + $0x218] sm:$0xff]
    %v190 = vld [vmem:[#allocation5 + $0x220] sm:$0xff]
    %v191 = vld [vmem:[#allocation5 + $0x228] sm:$0xff]
    %v192 = vld [vmem:[#allocation5 + $0x230] sm:$0xff]
    %v193 = vld [vmem:[#allocation5 + $0x238] sm:$0xff]
    %v194 = vld [vmem:[#allocation5 + $0x240] sm:$0xff]
    %v195 = vld [vmem:[#allocation5 + $0x248] sm:$0xff]
    %v196 = vld [vmem:[#allocation5 + $0x250] sm:$0xff]
    %v197 = vld [vmem:[#allocation5 + $0x258] sm:$0xff]
    %v198 = vld [vmem:[#allocation5 + $0x260] sm:$0xff]
    %v199 = vld [vmem:[#allocation5 + $0x268] sm:$0xff]
    %v200 = vld [vmem:[#allocation5 + $0x270] sm:$0xff]
    %v201 = vld [vmem:[#allocation5 + $0x278] sm:$0xff]
    %v202 = vld [vmem:[#allocation5 + $0x280] sm:$0xff]
    %v203 = vld [vmem:[#allocation5 + $0x288] sm:$0xff]
    %v204 = vld [vmem:[#allocation5 + $0x290] sm:$0xff]
    %v205 = vld [vmem:[#allocation5 + $0x298] sm:$0xff]
    %v206 = vld [vmem:[#allocation5 + $0x2a0] sm:$0xff]
    %v207 = vld [vmem:[#allocation5 + $0x2a8] sm:$0xff]
    %v208 = vld [vmem:[#allocation5 + $0x2b0] sm:$0xff]
    %v209 = vld [vmem:[#allocation5 + $0x2b8] sm:$0xff]
    %v210 = vld [vmem:[#allocation5 + $0x2c0] sm:$0xff]
    %v211 = vld [vmem:[#allocation5 + $0x2c8] sm:$0xff]
    %v212 = vld [vmem:[#allocation5 + $0x2d0] sm:$0xff]
    %v213 = vld [vmem:[#allocation5 + $0x2d8] sm:$0xff]
    %v214 = vld [vmem:[#allocation5 + $0x2e0] sm:$0xff]
    %v215 = vld [vmem:[#allocation5 + $0x2e8] sm:$0xff]
    %v216 = vld [vmem:[#allocation5 + $0x2f0] sm:$0xff]
    %v217 = vld [vmem:[#allocation5 + $0x2f8] sm:$0xff]
    %v218 = vld [vmem:[#allocation5 + $0x300] sm:$0xff]
    %v219 = vld [vmem:[#allocation5 + $0x308] sm:$0xff]
    %v220 = vld [vmem:[#allocation5 + $0x310] sm:$0xff]
    %v221 = vld [vmem:[#allocation5 + $0x318] sm:$0xff]
    %v222 = vld [vmem:[#allocation5 + $0x320] sm:$0xff]
    %v223 = vld [vmem:[#allocation5 + $0x328] sm:$0xff]
    %v224 = vld [vmem:[#allocation5 + $0x330] sm:$0xff]
    %v225 = vld [vmem:[#allocation5 + $0x338] sm:$0xff]
    %v226 = vld [vmem:[#allocation5 + $0x340] sm:$0xff]
    %v227 = vld [vmem:[#allocation5 + $0x348] sm:$0xff]
    %v228 = vld [vmem:[#allocation5 + $0x350] sm:$0xff]
    %v229 = vld [vmem:[#allocation5 + $0x358] sm:$0xff]
    %v230 = vld [vmem:[#allocation5 + $0x360] sm:$0xff]
    %v231 = vld [vmem:[#allocation5 + $0x368] sm:$0xff]
    %v232 = vld [vmem:[#allocation5 + $0x370] sm:$0xff]
    %v233 = vld [vmem:[#allocation5 + $0x378] sm:$0xff]
    %v234 = vld [vmem:[#allocation5 + $0x380] sm:$0xff]
    %v235 = vld [vmem:[#allocation5 + $0x388] sm:$0xff]
    %v236 = vld [vmem:[#allocation5 + $0x390] sm:$0xff]
    %v237 = vld [vmem:[#allocation5 + $0x398] sm:$0xff]
    %v238 = vld [vmem:[#allocation5 + $0x3a0] sm:$0xff]
    %v239 = vld [vmem:[#allocation5 + $0x3a8] sm:$0xff]
    %v240 = vld [vmem:[#allocation5 + $0x3b0] sm:$0xff]
    %v241 = vld [vmem:[#allocation5 + $0x3b8] sm:$0xff]
    %v242 = vld [vmem:[#allocation5 + $0x3c0] sm:$0xff]
    %v243 = vld [vmem:[#allocation5 + $0x3c8] sm:$0xff]
    %v244 = vld [vmem:[#allocation5 + $0x3d0] sm:$0xff]
    %v245 = vld [vmem:[#allocation5 + $0x3d8] sm:$0xff]
    %v246 = vld [vmem:[#allocation5 + $0x3e0] sm:$0xff]
    %v247 = vld [vmem:[#allocation5 + $0x3e8] sm:$0xff]
    %v248 = vld [vmem:[#allocation5 + $0x3f0] sm:$0xff]
    %v249 = vld [vmem:[#allocation5 + $0x3f8] sm:$0xff]
    %v250 = vld [vmem:[#allocation8] sm:$0xff]
    %v251 = vld [vmem:[#allocation8 + $0x8] sm:$0xff]
    %v254 = vperm.slane %v250, 0
    %v255 = vperm.slane %v250, 1
    %v256 = vperm.slane %v250, 2
    %v257 = vperm.slane %v250, 3
    %v258 = vperm.slane %v250, 4
    %v259 = vperm.slane %v250, 5
    %v260 = vperm.slane %v250, 6
    %v261 = vperm.slane %v250, 7
    %v262 = vperm.slane %v251, 0
    %v263 = vperm.slane %v251, 1
    %v264 = vperm.slane %v251, 2
    %v265 = vperm.slane %v251, 3
    %v266 = vperm.slane %v251, 4
    %v267 = vperm.slane %v251, 5
    %v268 = vperm.slane %v251, 6
    %v269 = vperm.slane %v251, 7
    %v294 = vunpack.c.l.b16 %v114
    %v295 = vunpack.c.l.b16 %v115
    %v296 = vunpack.c.l.b16 %v116
    %v297 = vunpack.c.l.b16 %v117
    %v298 = vunpack.c.l.b16 %v118
    %v299 = vunpack.c.l.b16 %v119
    %v300 = vunpack.c.l.b16 %v120
    %v301 = vunpack.c.l.b16 %v121
    %v302 = vpack.c.b16 %v295, %v294
    %v303 = vpack.c.b16 %v297, %v296
    %v304 = vpack.c.b16 %v299, %v298
    %v305 = vpack.c.b16 %v301, %v300
    %v438 = vunpack.c.l.b16 %v122
    %v439 = vunpack.c.h.b16 %v122
    %v440 = vunpack.c.l.b16 %v123
    %v441 = vunpack.c.h.b16 %v123
    %v442 = vunpack.c.l.b16 %v124
    %v443 = vunpack.c.h.b16 %v124
    %v444 = vunpack.c.l.b16 %v125
    %v445 = vunpack.c.h.b16 %v125
    %v446 = vunpack.c.l.b16 %v126
    %v447 = vunpack.c.h.b16 %v126
    %v448 = vunpack.c.l.b16 %v127
    %v449 = vunpack.c.h.b16 %v127
    %v450 = vunpack.c.l.b16 %v128
    %v451 = vunpack.c.h.b16 %v128
    %v452 = vunpack.c.l.b16 %v129
    %v453 = vunpack.c.h.b16 %v129
    %v454 = vunpack.c.l.b16 %v130
    %v455 = vunpack.c.h.b16 %v130
    %v456 = vunpack.c.l.b16 %v131
    %v457 = vunpack.c.h.b16 %v131
    %v458 = vunpack.c.l.b16 %v132
    %v459 = vunpack.c.h.b16 %v132
    %v460 = vunpack.c.l.b16 %v133
    %v461 = vunpack.c.h.b16 %v133
    %v462 = vunpack.c.l.b16 %v134
    %v463 = vunpack.c.h.b16 %v134
    %v464 = vunpack.c.l.b16 %v135
    %v465 = vunpack.c.h.b16 %v135
    %v466 = vunpack.c.l.b16 %v136
    %v467 = vunpack.c.h.b16 %v136
    %v468 = vunpack.c.l.b16 %v137
    %v469 = vunpack.c.h.b16 %v137
    %v470 = vunpack.c.l.b16 %v138
    %v471 = vunpack.c.h.b16 %v138
    %v472 = vunpack.c.l.b16 %v139
    %v473 = vunpack.c.h.b16 %v139
    %v474 = vunpack.c.l.b16 %v140
    %v475 = vunpack.c.h.b16 %v140
    %v476 = vunpack.c.l.b16 %v141
    %v477 = vunpack.c.h.b16 %v141
    %v478 = vunpack.c.l.b16 %v142
    %v479 = vunpack.c.h.b16 %v142
    %v480 = vunpack.c.l.b16 %v143
    %v481 = vunpack.c.h.b16 %v143
    %v482 = vunpack.c.l.b16 %v144
    %v483 = vunpack.c.h.b16 %v144
    %v484 = vunpack.c.l.b16 %v145
    %v485 = vunpack.c.h.b16 %v145
    %v486 = vunpack.c.l.b16 %v146
    %v487 = vunpack.c.h.b16 %v146
    %v488 = vunpack.c.l.b16 %v147
    %v489 = vunpack.c.h.b16 %v147
    %v490 = vunpack.c.l.b16 %v148
    %v491 = vunpack.c.h.b16 %v148
    %v492 = vunpack.c.l.b16 %v149
    %v493 = vunpack.c.h.b16 %v149
    %v494 = vunpack.c.l.b16 %v150
    %v495 = vunpack.c.h.b16 %v150
    %v496 = vunpack.c.l.b16 %v151
    %v497 = vunpack.c.h.b16 %v151
    %v498 = vunpack.c.l.b16 %v152
    %v499 = vunpack.c.h.b16 %v152
    %v500 = vunpack.c.l.b16 %v153
    %v501 = vunpack.c.h.b16 %v153
    %v502 = vunpack.c.l.b16 %v154
    %v503 = vunpack.c.h.b16 %v154
    %v504 = vunpack.c.l.b16 %v155
    %v505 = vunpack.c.h.b16 %v155
    %v506 = vunpack.c.l.b16 %v156
    %v507 = vunpack.c.h.b16 %v156
    %v508 = vunpack.c.l.b16 %v157
    %v509 = vunpack.c.h.b16 %v157
    %v510 = vunpack.c.l.b16 %v158
    %v511 = vunpack.c.h.b16 %v158
    %v512 = vunpack.c.l.b16 %v159
    %v513 = vunpack.c.h.b16 %v159
    %v514 = vunpack.c.l.b16 %v160
    %v515 = vunpack.c.h.b16 %v160
    %v516 = vunpack.c.l.b16 %v161
    %v517 = vunpack.c.h.b16 %v161
    %v518 = vunpack.c.l.b16 %v162
    %v519 = vunpack.c.h.b16 %v162
    %v520 = vunpack.c.l.b16 %v163
    %v521 = vunpack.c.h.b16 %v163
    %v522 = vunpack.c.l.b16 %v164
    %v523 = vunpack.c.h.b16 %v164
    %v524 = vunpack.c.l.b16 %v165
    %v525 = vunpack.c.h.b16 %v165
    %v526 = vunpack.c.l.b16 %v166
    %v527 = vunpack.c.h.b16 %v166
    %v528 = vunpack.c.l.b16 %v167
    %v529 = vunpack.c.h.b16 %v167
    %v530 = vunpack.c.l.b16 %v168
    %v531 = vunpack.c.h.b16 %v168
    %v532 = vunpack.c.l.b16 %v169
    %v533 = vunpack.c.h.b16 %v169
    %v534 = vunpack.c.l.b16 %v170
    %v535 = vunpack.c.h.b16 %v170
    %v536 = vunpack.c.l.b16 %v171
    %v537 = vunpack.c.h.b16 %v171
    %v538 = vunpack.c.l.b16 %v172
    %v539 = vunpack.c.h.b16 %v172
    %v540 = vunpack.c.l.b16 %v173
    %v541 = vunpack.c.h.b16 %v173
    %v542 = vunpack.c.l.b16 %v174
    %v543 = vunpack.c.h.b16 %v174
    %v544 = vunpack.c.l.b16 %v175
    %v545 = vunpack.c.h.b16 %v175
    %v546 = vunpack.c.l.b16 %v176
    %v547 = vunpack.c.h.b16 %v176
    %v548 = vunpack.c.l.b16 %v177
    %v549 = vunpack.c.h.b16 %v177
    %v550 = vunpack.c.l.b16 %v178
    %v551 = vunpack.c.h.b16 %v178
    %v552 = vunpack.c.l.b16 %v179
    %v553 = vunpack.c.h.b16 %v179
    %v554 = vunpack.c.l.b16 %v180
    %v555 = vunpack.c.h.b16 %v180
    %v556 = vunpack.c.l.b16 %v181
    %v557 = vunpack.c.h.b16 %v181
    %v558 = vunpack.c.l.b16 %v182
    %v559 = vunpack.c.h.b16 %v182
    %v560 = vunpack.c.l.b16 %v183
    %v561 = vunpack.c.h.b16 %v183
    %v562 = vunpack.c.l.b16 %v184
    %v563 = vunpack.c.h.b16 %v184
    %v564 = vunpack.c.l.b16 %v185
    %v565 = vunpack.c.h.b16 %v185
    %v566 = vunpack.c.l.b16 %v186
    %v567 = vunpack.c.h.b16 %v186
    %v568 = vunpack.c.l.b16 %v187
    %v569 = vunpack.c.h.b16 %v187
    %v570 = vunpack.c.l.b16 %v188
    %v571 = vunpack.c.h.b16 %v188
    %v572 = vunpack.c.l.b16 %v189
    %v573 = vunpack.c.h.b16 %v189
    %v574 = vunpack.c.l.b16 %v190
    %v575 = vunpack.c.h.b16 %v190
    %v576 = vunpack.c.l.b16 %v191
    %v577 = vunpack.c.h.b16 %v191
    %v578 = vunpack.c.l.b16 %v192
    %v579 = vunpack.c.h.b16 %v192
    %v580 = vunpack.c.l.b16 %v193
    %v581 = vunpack.c.h.b16 %v193
    %v582 = vunpack.c.l.b16 %v194
    %v583 = vunpack.c.h.b16 %v194
    %v584 = vunpack.c.l.b16 %v195
    %v585 = vunpack.c.h.b16 %v195
    %v586 = vunpack.c.l.b16 %v196
    %v587 = vunpack.c.h.b16 %v196
    %v588 = vunpack.c.l.b16 %v197
    %v589 = vunpack.c.h.b16 %v197
    %v590 = vunpack.c.l.b16 %v198
    %v591 = vunpack.c.h.b16 %v198
    %v592 = vunpack.c.l.b16 %v199
    %v593 = vunpack.c.h.b16 %v199
    %v594 = vunpack.c.l.b16 %v200
    %v595 = vunpack.c.h.b16 %v200
    %v596 = vunpack.c.l.b16 %v201
    %v597 = vunpack.c.h.b16 %v201
    %v598 = vunpack.c.l.b16 %v202
    %v599 = vunpack.c.h.b16 %v202
    %v600 = vunpack.c.l.b16 %v203
    %v601 = vunpack.c.h.b16 %v203
    %v602 = vunpack.c.l.b16 %v204
    %v603 = vunpack.c.h.b16 %v204
    %v604 = vunpack.c.l.b16 %v205
    %v605 = vunpack.c.h.b16 %v205
    %v606 = vunpack.c.l.b16 %v206
    %v607 = vunpack.c.h.b16 %v206
    %v608 = vunpack.c.l.b16 %v207
    %v609 = vunpack.c.h.b16 %v207
    %v610 = vunpack.c.l.b16 %v208
    %v611 = vunpack.c.h.b16 %v208
    %v612 = vunpack.c.l.b16 %v209
    %v613 = vunpack.c.h.b16 %v209
    %v614 = vunpack.c.l.b16 %v210
    %v615 = vunpack.c.h.b16 %v210
    %v616 = vunpack.c.l.b16 %v211
    %v617 = vunpack.c.h.b16 %v211
    %v618 = vunpack.c.l.b16 %v212
    %v619 = vunpack.c.h.b16 %v212
    %v620 = vunpack.c.l.b16 %v213
    %v621 = vunpack.c.h.b16 %v213
    %v622 = vunpack.c.l.b16 %v214
    %v623 = vunpack.c.h.b16 %v214
    %v624 = vunpack.c.l.b16 %v215
    %v625 = vunpack.c.h.b16 %v215
    %v626 = vunpack.c.l.b16 %v216
    %v627 = vunpack.c.h.b16 %v216
    %v628 = vunpack.c.l.b16 %v217
    %v629 = vunpack.c.h.b16 %v217
    %v630 = vunpack.c.l.b16 %v218
    %v631 = vunpack.c.h.b16 %v218
    %v632 = vunpack.c.l.b16 %v219
    %v633 = vunpack.c.h.b16 %v219
    %v634 = vunpack.c.l.b16 %v220
    %v635 = vunpack.c.h.b16 %v220
    %v636 = vunpack.c.l.b16 %v221
    %v637 = vunpack.c.h.b16 %v221
    %v638 = vunpack.c.l.b16 %v222
    %v639 = vunpack.c.h.b16 %v222
    %v640 = vunpack.c.l.b16 %v223
    %v641 = vunpack.c.h.b16 %v223
    %v642 = vunpack.c.l.b16 %v224
    %v643 = vunpack.c.h.b16 %v224
    %v644 = vunpack.c.l.b16 %v225
    %v645 = vunpack.c.h.b16 %v225
    %v646 = vunpack.c.l.b16 %v226
    %v647 = vunpack.c.h.b16 %v226
    %v648 = vunpack.c.l.b16 %v227
    %v649 = vunpack.c.h.b16 %v227
    %v650 = vunpack.c.l.b16 %v228
    %v651 = vunpack.c.h.b16 %v228
    %v652 = vunpack.c.l.b16 %v229
    %v653 = vunpack.c.h.b16 %v229
    %v654 = vunpack.c.l.b16 %v230
    %v655 = vunpack.c.h.b16 %v230
    %v656 = vunpack.c.l.b16 %v231
    %v657 = vunpack.c.h.b16 %v231
    %v658 = vunpack.c.l.b16 %v232
    %v659 = vunpack.c.h.b16 %v232
    %v660 = vunpack.c.l.b16 %v233
    %v661 = vunpack.c.h.b16 %v233
    %v662 = vunpack.c.l.b16 %v234
    %v663 = vunpack.c.h.b16 %v234
    %v664 = vunpack.c.l.b16 %v235
    %v665 = vunpack.c.h.b16 %v235
    %v666 = vunpack.c.l.b16 %v236
    %v667 = vunpack.c.h.b16 %v236
    %v668 = vunpack.c.l.b16 %v237
    %v669 = vunpack.c.h.b16 %v237
    %v670 = vunpack.c.l.b16 %v238
    %v671 = vunpack.c.h.b16 %v238
    %v672 = vunpack.c.l.b16 %v239
    %v673 = vunpack.c.h.b16 %v239
    %v674 = vunpack.c.l.b16 %v240
    %v675 = vunpack.c.h.b16 %v240
    %v676 = vunpack.c.l.b16 %v241
    %v677 = vunpack.c.h.b16 %v241
    %v678 = vunpack.c.l.b16 %v242
    %v679 = vunpack.c.h.b16 %v242
    %v680 = vunpack.c.l.b16 %v243
    %v681 = vunpack.c.h.b16 %v243
    %v682 = vunpack.c.l.b16 %v244
    %v683 = vunpack.c.h.b16 %v244
    %v684 = vunpack.c.l.b16 %v245
    %v685 = vunpack.c.h.b16 %v245
    %v686 = vunpack.c.l.b16 %v246
    %v687 = vunpack.c.h.b16 %v246
    %v688 = vunpack.c.l.b16 %v247
    %v689 = vunpack.c.h.b16 %v247
    %v690 = vunpack.c.l.b16 %v248
    %v691 = vunpack.c.h.b16 %v248
    %v692 = vunpack.c.l.b16 %v249
    %v693 = vunpack.c.h.b16 %v249
    %v694 = vpack.c.b16 %v454, %v438
    %v695 = vpack.c.b16 %v455, %v439
    %v696 = vpack.c.b16 %v456, %v440
    %v697 = vpack.c.b16 %v457, %v441
    %v698 = vpack.c.b16 %v458, %v442
    %v699 = vpack.c.b16 %v459, %v443
    %v700 = vpack.c.b16 %v460, %v444
    %v701 = vpack.c.b16 %v461, %v445
    %v702 = vpack.c.b16 %v462, %v446
    %v703 = vpack.c.b16 %v463, %v447
    %v704 = vpack.c.b16 %v464, %v448
    %v705 = vpack.c.b16 %v465, %v449
    %v706 = vpack.c.b16 %v466, %v450
    %v707 = vpack.c.b16 %v467, %v451
    %v708 = vpack.c.b16 %v468, %v452
    %v709 = vpack.c.b16 %v469, %v453
    %v710 = vpack.c.b16 %v486, %v470
    %v711 = vpack.c.b16 %v487, %v471
    %v712 = vpack.c.b16 %v488, %v472
    %v713 = vpack.c.b16 %v489, %v473
    %v714 = vpack.c.b16 %v490, %v474
    %v715 = vpack.c.b16 %v491, %v475
    %v716 = vpack.c.b16 %v492, %v476
    %v717 = vpack.c.b16 %v493, %v477
    %v718 = vpack.c.b16 %v494, %v478
    %v719 = vpack.c.b16 %v495, %v479
    %v720 = vpack.c.b16 %v496, %v480
    %v721 = vpack.c.b16 %v497, %v481
    %v722 = vpack.c.b16 %v498, %v482
    %v723 = vpack.c.b16 %v499, %v483
    %v724 = vpack.c.b16 %v500, %v484
    %v725 = vpack.c.b16 %v501, %v485
    %v726 = vpack.c.b16 %v518, %v502
    %v727 = vpack.c.b16 %v519, %v503
    %v728 = vpack.c.b16 %v520, %v504
    %v729 = vpack.c.b16 %v521, %v505
    %v730 = vpack.c.b16 %v522, %v506
    %v731 = vpack.c.b16 %v523, %v507
    %v732 = vpack.c.b16 %v524, %v508
    %v733 = vpack.c.b16 %v525, %v509
    %v734 = vpack.c.b16 %v526, %v510
    %v735 = vpack.c.b16 %v527, %v511
    %v736 = vpack.c.b16 %v528, %v512
    %v737 = vpack.c.b16 %v529, %v513
    %v738 = vpack.c.b16 %v530, %v514
    %v739 = vpack.c.b16 %v531, %v515
    %v740 = vpack.c.b16 %v532, %v516
    %v741 = vpack.c.b16 %v533, %v517
    %v742 = vpack.c.b16 %v550, %v534
    %v743 = vpack.c.b16 %v551, %v535
    %v744 = vpack.c.b16 %v552, %v536
    %v745 = vpack.c.b16 %v553, %v537
    %v746 = vpack.c.b16 %v554, %v538
    %v747 = vpack.c.b16 %v555, %v539
    %v748 = vpack.c.b16 %v556, %v540
    %v749 = vpack.c.b16 %v557, %v541
    %v750 = vpack.c.b16 %v558, %v542
    %v751 = vpack.c.b16 %v559, %v543
    %v752 = vpack.c.b16 %v560, %v544
    %v753 = vpack.c.b16 %v561, %v545
    %v754 = vpack.c.b16 %v562, %v546
    %v755 = vpack.c.b16 %v563, %v547
    %v756 = vpack.c.b16 %v564, %v548
    %v757 = vpack.c.b16 %v565, %v549
    %v758 = vpack.c.b16 %v582, %v566
    %v759 = vpack.c.b16 %v583, %v567
    %v760 = vpack.c.b16 %v584, %v568
    %v761 = vpack.c.b16 %v585, %v569
    %v762 = vpack.c.b16 %v586, %v570
    %v763 = vpack.c.b16 %v587, %v571
    %v764 = vpack.c.b16 %v588, %v572
    %v765 = vpack.c.b16 %v589, %v573
    %v766 = vpack.c.b16 %v590, %v574
    %v767 = vpack.c.b16 %v591, %v575
    %v768 = vpack.c.b16 %v592, %v576
    %v769 = vpack.c.b16 %v593, %v577
    %v770 = vpack.c.b16 %v594, %v578
    %v771 = vpack.c.b16 %v595, %v579
    %v772 = vpack.c.b16 %v596, %v580
    %v773 = vpack.c.b16 %v597, %v581
    %v774 = vpack.c.b16 %v614, %v598
    %v775 = vpack.c.b16 %v615, %v599
    %v776 = vpack.c.b16 %v616, %v600
    %v777 = vpack.c.b16 %v617, %v601
    %v778 = vpack.c.b16 %v618, %v602
    %v779 = vpack.c.b16 %v619, %v603
    %v780 = vpack.c.b16 %v620, %v604
    %v781 = vpack.c.b16 %v621, %v605
    %v782 = vpack.c.b16 %v622, %v606
    %v783 = vpack.c.b16 %v623, %v607
    %v784 = vpack.c.b16 %v624, %v608
    %v785 = vpack.c.b16 %v625, %v609
    %v786 = vpack.c.b16 %v626, %v610
    %v787 = vpack.c.b16 %v627, %v611
    %v788 = vpack.c.b16 %v628, %v612
    %v789 = vpack.c.b16 %v629, %v613
    %v790 = vpack.c.b16 %v646, %v630
    %v791 = vpack.c.b16 %v647, %v631
    %v792 = vpack.c.b16 %v648, %v632
    %v793 = vpack.c.b16 %v649, %v633
    %v794 = vpack.c.b16 %v650, %v634
    %v795 = vpack.c.b16 %v651, %v635
    %v796 = vpack.c.b16 %v652, %v636
    %v797 = vpack.c.b16 %v653, %v637
    %v798 = vpack.c.b16 %v654, %v638
    %v799 = vpack.c.b16 %v655, %v639
    %v800 = vpack.c.b16 %v656, %v640
    %v801 = vpack.c.b16 %v657, %v641
    %v802 = vpack.c.b16 %v658, %v642
    %v803 = vpack.c.b16 %v659, %v643
    %v804 = vpack.c.b16 %v660, %v644
    %v805 = vpack.c.b16 %v661, %v645
    %v806 = vpack.c.b16 %v678, %v662
    %v807 = vpack.c.b16 %v679, %v663
    %v808 = vpack.c.b16 %v680, %v664
    %v809 = vpack.c.b16 %v681, %v665
    %v810 = vpack.c.b16 %v682, %v666
    %v811 = vpack.c.b16 %v683, %v667
    %v812 = vpack.c.b16 %v684, %v668
    %v813 = vpack.c.b16 %v685, %v669
    %v814 = vpack.c.b16 %v686, %v670
    %v815 = vpack.c.b16 %v687, %v671
    %v816 = vpack.c.b16 %v688, %v672
    %v817 = vpack.c.b16 %v689, %v673
    %v818 = vpack.c.b16 %v690, %v674
    %v819 = vpack.c.b16 %v691, %v675
    %v820 = vpack.c.b16 %v692, %v676
    %v821 = vpack.c.b16 %v693, %v677
    %950 = vmatpush.bf16.msra.mxu0 %v806
    %951 = vmatpush.bf16.msra.mxu0 %v790
    %952 = vmatpush.bf16.msra.mxu0 %v774
    %953 = vmatpush.bf16.msra.mxu0 %v758
    %954 = vmatpush.bf16.msra.mxu0 %v742
    %955 = vmatpush.bf16.msra.mxu0 %v726
    %956 = vmatpush.bf16.msra.mxu0 %v710
    %957 = vmatpush.bf16.msra.mxu0 %v694
    %958 = vmatmul.bf16.gmra.mxu0 %v302
    %v959 = vpop.f32.mrf.mxu0
    %v960 = vadd.f32 %v254, %v959
    %v961 = vpop.f32.mrf.mxu0
    %v962 = vadd.f32 %v254, %v961
    %963 = vmatmul.bf16.gmra.mxu0 %v303
    %v964 = vpop.f32.mrf.mxu0
    %v965 = vadd.f32 %v254, %v964
    %v966 = vpop.f32.mrf.mxu0
    %v967 = vadd.f32 %v254, %v966
    %968 = vmatmul.bf16.gmra.mxu0 %v304
    %v969 = vpop.f32.mrf.mxu0
    %v970 = vadd.f32 %v254, %v969
    %v971 = vpop.f32.mrf.mxu0
    %v972 = vadd.f32 %v254, %v971
    %973 = vmatmul.bf16.gmra.mxu0 %v305
    %v974 = vpop.f32.mrf.mxu0
    %v975 = vadd.f32 %v254, %v974
    %v976 = vpop.f32.mrf.mxu0
    %v977 = vadd.f32 %v254, %v976
    %978 = vdwg.mxu0
    %979 = vmatpush.bf16.msra.mxu0 %v807
    %980 = vmatpush.bf16.msra.mxu0 %v791
    %981 = vmatpush.bf16.msra.mxu0 %v775
    %982 = vmatpush.bf16.msra.mxu0 %v759
    %983 = vmatpush.bf16.msra.mxu0 %v743
    %984 = vmatpush.bf16.msra.mxu0 %v727
    %985 = vmatpush.bf16.msra.mxu0 %v711
    %986 = vmatpush.bf16.msra.mxu0 %v695
    %987 = vmatmul.bf16.gmra.mxu0 %v302
    %v988 = vpop.f32.mrf.mxu0
    %v989 = vadd.f32 %v255, %v988
    %v990 = vpop.f32.mrf.mxu0
    %v991 = vadd.f32 %v255, %v990
    %992 = vmatmul.bf16.gmra.mxu0 %v303
    %v993 = vpop.f32.mrf.mxu0
    %v994 = vadd.f32 %v255, %v993
    %v995 = vpop.f32.mrf.mxu0
    %v996 = vadd.f32 %v255, %v995
    %997 = vmatmul.bf16.gmra.mxu0 %v304
    %v998 = vpop.f32.mrf.mxu0
    %v999 = vadd.f32 %v255, %v998
    %v1000 = vpop.f32.mrf.mxu0
    %v1001 = vadd.f32 %v255, %v1000
    %1002 = vmatmul.bf16.gmra.mxu0 %v305
    %v1003 = vpop.f32.mrf.mxu0
    %v1004 = vadd.f32 %v255, %v1003
    %v1005 = vpop.f32.mrf.mxu0
    %v1006 = vadd.f32 %v255, %v1005
    %1007 = vdwg.mxu0
    %1008 = vmatpush.bf16.msra.mxu0 %v808
    %1009 = vmatpush.bf16.msra.mxu0 %v792
    %1010 = vmatpush.bf16.msra.mxu0 %v776
    %1011 = vmatpush.bf16.msra.mxu0 %v760
    %1012 = vmatpush.bf16.msra.mxu0 %v744
    %1013 = vmatpush.bf16.msra.mxu0 %v728
    %1014 = vmatpush.bf16.msra.mxu0 %v712
    %1015 = vmatpush.bf16.msra.mxu0 %v696
    %1016 = vmatmul.bf16.gmra.mxu0 %v302
    %v1017 = vpop.f32.mrf.mxu0
    %v1018 = vadd.f32 %v256, %v1017
    %v1019 = vpop.f32.mrf.mxu0
    %v1020 = vadd.f32 %v256, %v1019
    %1021 = vmatmul.bf16.gmra.mxu0 %v303
    %v1022 = vpop.f32.mrf.mxu0
    %v1023 = vadd.f32 %v256, %v1022
    %v1024 = vpop.f32.mrf.mxu0
    %v1025 = vadd.f32 %v256, %v1024
    %1026 = vmatmul.bf16.gmra.mxu0 %v304
    %v1027 = vpop.f32.mrf.mxu0
    %v1028 = vadd.f32 %v256, %v1027
    %v1029 = vpop.f32.mrf.mxu0
    %v1030 = vadd.f32 %v256, %v1029
    %1031 = vmatmul.bf16.gmra.mxu0 %v305
    %v1032 = vpop.f32.mrf.mxu0
    %v1033 = vadd.f32 %v256, %v1032
    %v1034 = vpop.f32.mrf.mxu0
    %v1035 = vadd.f32 %v256, %v1034
    %1036 = vdwg.mxu0
    %1037 = vmatpush.bf16.msra.mxu0 %v809
    %1038 = vmatpush.bf16.msra.mxu0 %v793
    %1039 = vmatpush.bf16.msra.mxu0 %v777
    %1040 = vmatpush.bf16.msra.mxu0 %v761
    %1041 = vmatpush.bf16.msra.mxu0 %v745
    %1042 = vmatpush.bf16.msra.mxu0 %v729
    %1043 = vmatpush.bf16.msra.mxu0 %v713
    %1044 = vmatpush.bf16.msra.mxu0 %v697
    %1045 = vmatmul.bf16.gmra.mxu0 %v302
    %v1046 = vpop.f32.mrf.mxu0
    %v1047 = vadd.f32 %v257, %v1046
    %v1048 = vpop.f32.mrf.mxu0
    %v1049 = vadd.f32 %v257, %v1048
    %1050 = vmatmul.bf16.gmra.mxu0 %v303
    %v1051 = vpop.f32.mrf.mxu0
    %v1052 = vadd.f32 %v257, %v1051
    %v1053 = vpop.f32.mrf.mxu0
    %v1054 = vadd.f32 %v257, %v1053
    %1055 = vmatmul.bf16.gmra.mxu0 %v304
    %v1056 = vpop.f32.mrf.mxu0
    %v1057 = vadd.f32 %v257, %v1056
    %v1058 = vpop.f32.mrf.mxu0
    %v1059 = vadd.f32 %v257, %v1058
    %1060 = vmatmul.bf16.gmra.mxu0 %v305
    %v1061 = vpop.f32.mrf.mxu0
    %v1062 = vadd.f32 %v257, %v1061
    %v1063 = vpop.f32.mrf.mxu0
    %v1064 = vadd.f32 %v257, %v1063
    %1065 = vdwg.mxu0
    %1066 = vmatpush.bf16.msra.mxu0 %v810
    %1067 = vmatpush.bf16.msra.mxu0 %v794
    %1068 = vmatpush.bf16.msra.mxu0 %v778
    %1069 = vmatpush.bf16.msra.mxu0 %v762
    %1070 = vmatpush.bf16.msra.mxu0 %v746
    %1071 = vmatpush.bf16.msra.mxu0 %v730
    %1072 = vmatpush.bf16.msra.mxu0 %v714
    %1073 = vmatpush.bf16.msra.mxu0 %v698
    %1074 = vmatmul.bf16.gmra.mxu0 %v302
    %v1075 = vpop.f32.mrf.mxu0
    %v1076 = vadd.f32 %v258, %v1075
    %v1077 = vpop.f32.mrf.mxu0
    %v1078 = vadd.f32 %v258, %v1077
    %1079 = vmatmul.bf16.gmra.mxu0 %v303
    %v1080 = vpop.f32.mrf.mxu0
    %v1081 = vadd.f32 %v258, %v1080
    %v1082 = vpop.f32.mrf.mxu0
    %v1083 = vadd.f32 %v258, %v1082
    %1084 = vmatmul.bf16.gmra.mxu0 %v304
    %v1085 = vpop.f32.mrf.mxu0
    %v1086 = vadd.f32 %v258, %v1085
    %v1087 = vpop.f32.mrf.mxu0
    %v1088 = vadd.f32 %v258, %v1087
    %1089 = vmatmul.bf16.gmra.mxu0 %v305
    %v1090 = vpop.f32.mrf.mxu0
    %v1091 = vadd.f32 %v258, %v1090
    %v1092 = vpop.f32.mrf.mxu0
    %v1093 = vadd.f32 %v258, %v1092
    %1094 = vdwg.mxu0
    %1095 = vmatpush.bf16.msra.mxu0 %v811
    %1096 = vmatpush.bf16.msra.mxu0 %v795
    %1097 = vmatpush.bf16.msra.mxu0 %v779
    %1098 = vmatpush.bf16.msra.mxu0 %v763
    %1099 = vmatpush.bf16.msra.mxu0 %v747
    %1100 = vmatpush.bf16.msra.mxu0 %v731
    %1101 = vmatpush.bf16.msra.mxu0 %v715
    %1102 = vmatpush.bf16.msra.mxu0 %v699
    %1103 = vmatmul.bf16.gmra.mxu0 %v302
    %v1104 = vpop.f32.mrf.mxu0
    %v1105 = vadd.f32 %v259, %v1104
    %v1106 = vpop.f32.mrf.mxu0
    %v1107 = vadd.f32 %v259, %v1106
    %1108 = vmatmul.bf16.gmra.mxu0 %v303
    %v1109 = vpop.f32.mrf.mxu0
    %v1110 = vadd.f32 %v259, %v1109
    %v1111 = vpop.f32.mrf.mxu0
    %v1112 = vadd.f32 %v259, %v1111
    %1113 = vmatmul.bf16.gmra.mxu0 %v304
    %v1114 = vpop.f32.mrf.mxu0
    %v1115 = vadd.f32 %v259, %v1114
    %v1116 = vpop.f32.mrf.mxu0
    %v1117 = vadd.f32 %v259, %v1116
    %1118 = vmatmul.bf16.gmra.mxu0 %v305
    %v1119 = vpop.f32.mrf.mxu0
    %v1120 = vadd.f32 %v259, %v1119
    %v1121 = vpop.f32.mrf.mxu0
    %v1122 = vadd.f32 %v259, %v1121
    %1123 = vdwg.mxu0
    %1124 = vmatpush.bf16.msra.mxu0 %v812
    %1125 = vmatpush.bf16.msra.mxu0 %v796
    %1126 = vmatpush.bf16.msra.mxu0 %v780
    %1127 = vmatpush.bf16.msra.mxu0 %v764
    %1128 = vmatpush.bf16.msra.mxu0 %v748
    %1129 = vmatpush.bf16.msra.mxu0 %v732
    %1130 = vmatpush.bf16.msra.mxu0 %v716
    %1131 = vmatpush.bf16.msra.mxu0 %v700
    %1132 = vmatmul.bf16.gmra.mxu0 %v302
    %v1133 = vpop.f32.mrf.mxu0
    %v1134 = vadd.f32 %v260, %v1133
    %v1135 = vpop.f32.mrf.mxu0
    %v1136 = vadd.f32 %v260, %v1135
    %1137 = vmatmul.bf16.gmra.mxu0 %v303
    %v1138 = vpop.f32.mrf.mxu0
    %v1139 = vadd.f32 %v260, %v1138
    %v1140 = vpop.f32.mrf.mxu0
    %v1141 = vadd.f32 %v260, %v1140
    %1142 = vmatmul.bf16.gmra.mxu0 %v304
    %v1143 = vpop.f32.mrf.mxu0
    %v1144 = vadd.f32 %v260, %v1143
    %v1145 = vpop.f32.mrf.mxu0
    %v1146 = vadd.f32 %v260, %v1145
    %1147 = vmatmul.bf16.gmra.mxu0 %v305
    %v1148 = vpop.f32.mrf.mxu0
    %v1149 = vadd.f32 %v260, %v1148
    %v1150 = vpop.f32.mrf.mxu0
    %v1151 = vadd.f32 %v260, %v1150
    %1152 = vdwg.mxu0
    %1153 = vmatpush.bf16.msra.mxu0 %v813
    %1154 = vmatpush.bf16.msra.mxu0 %v797
    %1155 = vmatpush.bf16.msra.mxu0 %v781
    %1156 = vmatpush.bf16.msra.mxu0 %v765
    %1157 = vmatpush.bf16.msra.mxu0 %v749
    %1158 = vmatpush.bf16.msra.mxu0 %v733
    %1159 = vmatpush.bf16.msra.mxu0 %v717
    %1160 = vmatpush.bf16.msra.mxu0 %v701
    %1161 = vmatmul.bf16.gmra.mxu0 %v302
    %v1162 = vpop.f32.mrf.mxu0
    %v1163 = vadd.f32 %v261, %v1162
    %v1164 = vpop.f32.mrf.mxu0
    %v1165 = vadd.f32 %v261, %v1164
    %1166 = vmatmul.bf16.gmra.mxu0 %v303
    %v1167 = vpop.f32.mrf.mxu0
    %v1168 = vadd.f32 %v261, %v1167
    %v1169 = vpop.f32.mrf.mxu0
    %v1170 = vadd.f32 %v261, %v1169
    %1171 = vmatmul.bf16.gmra.mxu0 %v304
    %v1172 = vpop.f32.mrf.mxu0
    %v1173 = vadd.f32 %v261, %v1172
    %v1174 = vpop.f32.mrf.mxu0
    %v1175 = vadd.f32 %v261, %v1174
    %1176 = vmatmul.bf16.gmra.mxu0 %v305
    %v1177 = vpop.f32.mrf.mxu0
    %v1178 = vadd.f32 %v261, %v1177
    %v1179 = vpop.f32.mrf.mxu0
    %v1180 = vadd.f32 %v261, %v1179
    %1181 = vdwg.mxu0
    %1182 = vmatpush.bf16.msra.mxu0 %v814
    %1183 = vmatpush.bf16.msra.mxu0 %v798
    %1184 = vmatpush.bf16.msra.mxu0 %v782
    %1185 = vmatpush.bf16.msra.mxu0 %v766
    %1186 = vmatpush.bf16.msra.mxu0 %v750
    %1187 = vmatpush.bf16.msra.mxu0 %v734
    %1188 = vmatpush.bf16.msra.mxu0 %v718
    %1189 = vmatpush.bf16.msra.mxu0 %v702
    %1190 = vmatmul.bf16.gmra.mxu0 %v302
    %v1191 = vpop.f32.mrf.mxu0
    %v1192 = vadd.f32 %v262, %v1191
    %v1193 = vpop.f32.mrf.mxu0
    %v1194 = vadd.f32 %v262, %v1193
    %1195 = vmatmul.bf16.gmra.mxu0 %v303
    %v1196 = vpop.f32.mrf.mxu0
    %v1197 = vadd.f32 %v262, %v1196
    %v1198 = vpop.f32.mrf.mxu0
    %v1199 = vadd.f32 %v262, %v1198
    %1200 = vmatmul.bf16.gmra.mxu0 %v304
    %v1201 = vpop.f32.mrf.mxu0
    %v1202 = vadd.f32 %v262, %v1201
    %v1203 = vpop.f32.mrf.mxu0
    %v1204 = vadd.f32 %v262, %v1203
    %1205 = vmatmul.bf16.gmra.mxu0 %v305
    %v1206 = vpop.f32.mrf.mxu0
    %v1207 = vadd.f32 %v262, %v1206
    %v1208 = vpop.f32.mrf.mxu0
    %v1209 = vadd.f32 %v262, %v1208
    %1210 = vdwg.mxu0
    %1211 = vmatpush.bf16.msra.mxu0 %v815
    %1212 = vmatpush.bf16.msra.mxu0 %v799
    %1213 = vmatpush.bf16.msra.mxu0 %v783
    %1214 = vmatpush.bf16.msra.mxu0 %v767
    %1215 = vmatpush.bf16.msra.mxu0 %v751
    %1216 = vmatpush.bf16.msra.mxu0 %v735
    %1217 = vmatpush.bf16.msra.mxu0 %v719
    %1218 = vmatpush.bf16.msra.mxu0 %v703
    %1219 = vmatmul.bf16.gmra.mxu0 %v302
    %v1220 = vpop.f32.mrf.mxu0
    %v1221 = vadd.f32 %v263, %v1220
    %v1222 = vpop.f32.mrf.mxu0
    %v1223 = vadd.f32 %v263, %v1222
    %1224 = vmatmul.bf16.gmra.mxu0 %v303
    %v1225 = vpop.f32.mrf.mxu0
    %v1226 = vadd.f32 %v263, %v1225
    %v1227 = vpop.f32.mrf.mxu0
    %v1228 = vadd.f32 %v263, %v1227
    %1229 = vmatmul.bf16.gmra.mxu0 %v304
    %v1230 = vpop.f32.mrf.mxu0
    %v1231 = vadd.f32 %v263, %v1230
    %v1232 = vpop.f32.mrf.mxu0
    %v1233 = vadd.f32 %v263, %v1232
    %1234 = vmatmul.bf16.gmra.mxu0 %v305
    %v1235 = vpop.f32.mrf.mxu0
    %v1236 = vadd.f32 %v263, %v1235
    %v1237 = vpop.f32.mrf.mxu0
    %v1238 = vadd.f32 %v263, %v1237
    %1239 = vdwg.mxu0
    %1240 = vmatpush.bf16.msra.mxu0 %v816
    %1241 = vmatpush.bf16.msra.mxu0 %v800
    %1242 = vmatpush.bf16.msra.mxu0 %v784
    %1243 = vmatpush.bf16.msra.mxu0 %v768
    %1244 = vmatpush.bf16.msra.mxu0 %v752
    %1245 = vmatpush.bf16.msra.mxu0 %v736
    %1246 = vmatpush.bf16.msra.mxu0 %v720
    %1247 = vmatpush.bf16.msra.mxu0 %v704
    %1248 = vmatmul.bf16.gmra.mxu0 %v302
    %v1249 = vpop.f32.mrf.mxu0
    %v1250 = vadd.f32 %v264, %v1249
    %v1251 = vpop.f32.mrf.mxu0
    %v1252 = vadd.f32 %v264, %v1251
    %1253 = vmatmul.bf16.gmra.mxu0 %v303
    %v1254 = vpop.f32.mrf.mxu0
    %v1255 = vadd.f32 %v264, %v1254
    %v1256 = vpop.f32.mrf.mxu0
    %v1257 = vadd.f32 %v264, %v1256
    %1258 = vmatmul.bf16.gmra.mxu0 %v304
    %v1259 = vpop.f32.mrf.mxu0
    %v1260 = vadd.f32 %v264, %v1259
    %v1261 = vpop.f32.mrf.mxu0
    %v1262 = vadd.f32 %v264, %v1261
    %1263 = vmatmul.bf16.gmra.mxu0 %v305
    %v1264 = vpop.f32.mrf.mxu0
    %v1265 = vadd.f32 %v264, %v1264
    %v1266 = vpop.f32.mrf.mxu0
    %v1267 = vadd.f32 %v264, %v1266
    %1268 = vdwg.mxu0
    %1269 = vmatpush.bf16.msra.mxu0 %v817
    %1270 = vmatpush.bf16.msra.mxu0 %v801
    %1271 = vmatpush.bf16.msra.mxu0 %v785
    %1272 = vmatpush.bf16.msra.mxu0 %v769
    %1273 = vmatpush.bf16.msra.mxu0 %v753
    %1274 = vmatpush.bf16.msra.mxu0 %v737
    %1275 = vmatpush.bf16.msra.mxu0 %v721
    %1276 = vmatpush.bf16.msra.mxu0 %v705
    %1277 = vmatmul.bf16.gmra.mxu0 %v302
    %v1278 = vpop.f32.mrf.mxu0
    %v1279 = vadd.f32 %v265, %v1278
    %v1280 = vpop.f32.mrf.mxu0
    %v1281 = vadd.f32 %v265, %v1280
    %1282 = vmatmul.bf16.gmra.mxu0 %v303
    %v1283 = vpop.f32.mrf.mxu0
    %v1284 = vadd.f32 %v265, %v1283
    %v1285 = vpop.f32.mrf.mxu0
    %v1286 = vadd.f32 %v265, %v1285
    %1287 = vmatmul.bf16.gmra.mxu0 %v304
    %v1288 = vpop.f32.mrf.mxu0
    %v1289 = vadd.f32 %v265, %v1288
    %v1290 = vpop.f32.mrf.mxu0
    %v1291 = vadd.f32 %v265, %v1290
    %1292 = vmatmul.bf16.gmra.mxu0 %v305
    %v1293 = vpop.f32.mrf.mxu0
    %v1294 = vadd.f32 %v265, %v1293
    %v1295 = vpop.f32.mrf.mxu0
    %v1296 = vadd.f32 %v265, %v1295
    %1297 = vdwg.mxu0
    %1298 = vmatpush.bf16.msra.mxu0 %v818
    %1299 = vmatpush.bf16.msra.mxu0 %v802
    %1300 = vmatpush.bf16.msra.mxu0 %v786
    %1301 = vmatpush.bf16.msra.mxu0 %v770
    %1302 = vmatpush.bf16.msra.mxu0 %v754
    %1303 = vmatpush.bf16.msra.mxu0 %v738
    %1304 = vmatpush.bf16.msra.mxu0 %v722
    %1305 = vmatpush.bf16.msra.mxu0 %v706
    %1306 = vmatmul.bf16.gmra.mxu0 %v302
    %v1307 = vpop.f32.mrf.mxu0
    %v1308 = vadd.f32 %v266, %v1307
    %v1309 = vpop.f32.mrf.mxu0
    %v1310 = vadd.f32 %v266, %v1309
    %1311 = vmatmul.bf16.gmra.mxu0 %v303
    %v1312 = vpop.f32.mrf.mxu0
    %v1313 = vadd.f32 %v266, %v1312
    %v1314 = vpop.f32.mrf.mxu0
    %v1315 = vadd.f32 %v266, %v1314
    %1316 = vmatmul.bf16.gmra.mxu0 %v304
    %v1317 = vpop.f32.mrf.mxu0
    %v1318 = vadd.f32 %v266, %v1317
    %v1319 = vpop.f32.mrf.mxu0
    %v1320 = vadd.f32 %v266, %v1319
    %1321 = vmatmul.bf16.gmra.mxu0 %v305
    %v1322 = vpop.f32.mrf.mxu0
    %v1323 = vadd.f32 %v266, %v1322
    %v1324 = vpop.f32.mrf.mxu0
    %v1325 = vadd.f32 %v266, %v1324
    %1326 = vdwg.mxu0
    %1327 = vmatpush.bf16.msra.mxu0 %v819
    %1328 = vmatpush.bf16.msra.mxu0 %v803
    %1329 = vmatpush.bf16.msra.mxu0 %v787
    %1330 = vmatpush.bf16.msra.mxu0 %v771
    %1331 = vmatpush.bf16.msra.mxu0 %v755
    %1332 = vmatpush.bf16.msra.mxu0 %v739
    %1333 = vmatpush.bf16.msra.mxu0 %v723
    %1334 = vmatpush.bf16.msra.mxu0 %v707
    %1335 = vmatmul.bf16.gmra.mxu0 %v302
    %v1336 = vpop.f32.mrf.mxu0
    %v1337 = vadd.f32 %v267, %v1336
    %v1338 = vpop.f32.mrf.mxu0
    %v1339 = vadd.f32 %v267, %v1338
    %1340 = vmatmul.bf16.gmra.mxu0 %v303
    %v1341 = vpop.f32.mrf.mxu0
    %v1342 = vadd.f32 %v267, %v1341
    %v1343 = vpop.f32.mrf.mxu0
    %v1344 = vadd.f32 %v267, %v1343
    %1345 = vmatmul.bf16.gmra.mxu0 %v304
    %v1346 = vpop.f32.mrf.mxu0
    %v1347 = vadd.f32 %v267, %v1346
    %v1348 = vpop.f32.mrf.mxu0
    %v1349 = vadd.f32 %v267, %v1348
    %1350 = vmatmul.bf16.gmra.mxu0 %v305
    %v1351 = vpop.f32.mrf.mxu0
    %v1352 = vadd.f32 %v267, %v1351
    %v1353 = vpop.f32.mrf.mxu0
    %v1354 = vadd.f32 %v267, %v1353
    %1355 = vdwg.mxu0
    %1356 = vmatpush.bf16.msra.mxu0 %v820
    %1357 = vmatpush.bf16.msra.mxu0 %v804
    %1358 = vmatpush.bf16.msra.mxu0 %v788
    %1359 = vmatpush.bf16.msra.mxu0 %v772
    %1360 = vmatpush.bf16.msra.mxu0 %v756
    %1361 = vmatpush.bf16.msra.mxu0 %v740
    %1362 = vmatpush.bf16.msra.mxu0 %v724
    %1363 = vmatpush.bf16.msra.mxu0 %v708
    %1364 = vmatmul.bf16.gmra.mxu0 %v302
    %v1365 = vpop.f32.mrf.mxu0
    %v1366 = vadd.f32 %v268, %v1365
    %v1367 = vpop.f32.mrf.mxu0
    %v1368 = vadd.f32 %v268, %v1367
    %1369 = vmatmul.bf16.gmra.mxu0 %v303
    %v1370 = vpop.f32.mrf.mxu0
    %v1371 = vadd.f32 %v268, %v1370
    %v1372 = vpop.f32.mrf.mxu0
    %v1373 = vadd.f32 %v268, %v1372
    %1374 = vmatmul.bf16.gmra.mxu0 %v304
    %v1375 = vpop.f32.mrf.mxu0
    %v1376 = vadd.f32 %v268, %v1375
    %v1377 = vpop.f32.mrf.mxu0
    %v1378 = vadd.f32 %v268, %v1377
    %1379 = vmatmul.bf16.gmra.mxu0 %v305
    %v1380 = vpop.f32.mrf.mxu0
    %v1381 = vadd.f32 %v268, %v1380
    %v1382 = vpop.f32.mrf.mxu0
    %v1383 = vadd.f32 %v268, %v1382
    %1384 = vdwg.mxu0
    %1385 = vmatpush.bf16.msra.mxu0 %v821
    %1386 = vmatpush.bf16.msra.mxu0 %v805
    %1387 = vmatpush.bf16.msra.mxu0 %v789
    %1388 = vmatpush.bf16.msra.mxu0 %v773
    %1389 = vmatpush.bf16.msra.mxu0 %v757
    %1390 = vmatpush.bf16.msra.mxu0 %v741
    %1391 = vmatpush.bf16.msra.mxu0 %v725
    %1392 = vmatpush.bf16.msra.mxu0 %v709
    %1393 = vmatmul.bf16.gmra.mxu0 %v302
    %v1394 = vpop.f32.mrf.mxu0
    %v1395 = vadd.f32 %v269, %v1394
    %v1396 = vpop.f32.mrf.mxu0
    %v1397 = vadd.f32 %v269, %v1396
    %1398 = vmatmul.bf16.gmra.mxu0 %v303
    %v1399 = vpop.f32.mrf.mxu0
    %v1400 = vadd.f32 %v269, %v1399
    %v1401 = vpop.f32.mrf.mxu0
    %v1402 = vadd.f32 %v269, %v1401
    %1403 = vmatmul.bf16.gmra.mxu0 %v304
    %v1404 = vpop.f32.mrf.mxu0
    %v1405 = vadd.f32 %v269, %v1404
    %v1406 = vpop.f32.mrf.mxu0
    %v1407 = vadd.f32 %v269, %v1406
    %1408 = vmatmul.bf16.gmra.mxu0 %v305
    %v1409 = vpop.f32.mrf.mxu0
    %v1410 = vadd.f32 %v269, %v1409
    %v1411 = vpop.f32.mrf.mxu0
    %v1412 = vadd.f32 %v269, %v1411
    %1413 = vdwg.mxu0
    %v1414 = vxor.u32 %v960, 2147483648
    %v1415 = vxor.u32 %v989, 2147483648
    %v1416 = vxor.u32 %v1018, 2147483648
    %v1417 = vxor.u32 %v1047, 2147483648
    %v1418 = vxor.u32 %v962, 2147483648
    %v1419 = vxor.u32 %v991, 2147483648
    %v1420 = vxor.u32 %v1020, 2147483648
    %v1421 = vxor.u32 %v1049, 2147483648
    %v1422 = vmul.f32 %v1414, 1.442695
    %v1423 = vpow.pop %v1422
    %v1424 = vmul.f32 %v1415, 1.442695
    %v1425 = vpow.pop %v1424
    %v1426 = vmul.f32 %v1416, 1.442695
    %v1427 = vpow.pop %v1426
    %v1428 = vmul.f32 %v1417, 1.442695
    %v1429 = vpow.pop %v1428
    %v1430 = vmul.f32 %v1418, 1.442695
    %v1431 = vpow.pop %v1430
    %v1432 = vmul.f32 %v1419, 1.442695
    %v1433 = vpow.pop %v1432
    %v1434 = vmul.f32 %v1420, 1.442695
    %v1435 = vpow.pop %v1434
    %v1436 = vmul.f32 %v1421, 1.442695
    %v1437 = vpow.pop %v1436
    %v1438 = vadd.f32 %v1423, 1.0
    %v1439 = vadd.f32 %v1425, 1.0
    %v1440 = vadd.f32 %v1427, 1.0
    %v1441 = vadd.f32 %v1429, 1.0
    %v1442 = vadd.f32 %v1431, 1.0
    %v1443 = vadd.f32 %v1433, 1.0
    %v1444 = vadd.f32 %v1435, 1.0
    %v1445 = vadd.f32 %v1437, 1.0
    %v1446 = vrcp.pop %v1438
    %v1447 = vmul.f32 %v1438, %v1446
    %v1448 = vsub.f32 1.0, %v1447
    %v1449 = vmul.f32 %v1446, %v1448
    %v1450 = vadd.f32 %v1446, %v1449
    %vm1451 = vweird.f32 %v1438
    %vm1452 = vweird.f32 %v1446
    %vm1453 = vmor %vm1451, %vm1452
    %v1454 = vsel %vm1453, %v1446, %v1450
    %v1455 = vand.u32 2147483647, %v1438
    %vm1456 = vcmp.eq.f32.partialorder %v1455, 8.507059e+37
    %v1457 = vand.u32 %v1438, 2147483648
    %v1458 = vor.u32 1.1754944e-38, %v1457
    %v1459 = vsel %vm1456, %v1458, %v1454
    %v1460 = vmul.f32 1.0, %v1459
    %v1461 = vrcp.pop %v1439
    %v1462 = vmul.f32 %v1439, %v1461
    %v1463 = vsub.f32 1.0, %v1462
    %v1464 = vmul.f32 %v1461, %v1463
    %v1465 = vadd.f32 %v1461, %v1464
    %vm1466 = vweird.f32 %v1439
    %vm1467 = vweird.f32 %v1461
    %vm1468 = vmor %vm1466, %vm1467
    %v1469 = vsel %vm1468, %v1461, %v1465
    %v1470 = vand.u32 2147483647, %v1439
    %vm1471 = vcmp.eq.f32.partialorder %v1470, 8.507059e+37
    %v1472 = vand.u32 %v1439, 2147483648
    %v1473 = vor.u32 1.1754944e-38, %v1472
    %v1474 = vsel %vm1471, %v1473, %v1469
    %v1475 = vmul.f32 1.0, %v1474
    %v1476 = vrcp.pop %v1440
    %v1477 = vmul.f32 %v1440, %v1476
    %v1478 = vsub.f32 1.0, %v1477
    %v1479 = vmul.f32 %v1476, %v1478
    %v1480 = vadd.f32 %v1476, %v1479
    %vm1481 = vweird.f32 %v1440
    %vm1482 = vweird.f32 %v1476
    %vm1483 = vmor %vm1481, %vm1482
    %v1484 = vsel %vm1483, %v1476, %v1480
    %v1485 = vand.u32 2147483647, %v1440
    %vm1486 = vcmp.eq.f32.partialorder %v1485, 8.507059e+37
    %v1487 = vand.u32 %v1440, 2147483648
    %v1488 = vor.u32 1.1754944e-38, %v1487
    %v1489 = vsel %vm1486, %v1488, %v1484
    %v1490 = vmul.f32 1.0, %v1489
    %v1491 = vrcp.pop %v1441
    %v1492 = vmul.f32 %v1441, %v1491
    %v1493 = vsub.f32 1.0, %v1492
    %v1494 = vmul.f32 %v1491, %v1493
    %v1495 = vadd.f32 %v1491, %v1494
    %vm1496 = vweird.f32 %v1441
    %vm1497 = vweird.f32 %v1491
    %vm1498 = vmor %vm1496, %vm1497
    %v1499 = vsel %vm1498, %v1491, %v1495
    %v1500 = vand.u32 2147483647, %v1441
    %vm1501 = vcmp.eq.f32.partialorder %v1500, 8.507059e+37
    %v1502 = vand.u32 %v1441, 2147483648
    %v1503 = vor.u32 1.1754944e-38, %v1502
    %v1504 = vsel %vm1501, %v1503, %v1499
    %v1505 = vmul.f32 1.0, %v1504
    %v1506 = vrcp.pop %v1442
    %v1507 = vmul.f32 %v1442, %v1506
    %v1508 = vsub.f32 1.0, %v1507
    %v1509 = vmul.f32 %v1506, %v1508
    %v1510 = vadd.f32 %v1506, %v1509
    %vm1511 = vweird.f32 %v1442
    %vm1512 = vweird.f32 %v1506
    %vm1513 = vmor %vm1511, %vm1512
    %v1514 = vsel %vm1513, %v1506, %v1510
    %v1515 = vand.u32 2147483647, %v1442
    %vm1516 = vcmp.eq.f32.partialorder %v1515, 8.507059e+37
    %v1517 = vand.u32 %v1442, 2147483648
    %v1518 = vor.u32 1.1754944e-38, %v1517
    %v1519 = vsel %vm1516, %v1518, %v1514
    %v1520 = vmul.f32 1.0, %v1519
    %v1521 = vrcp.pop %v1443
    %v1522 = vmul.f32 %v1443, %v1521
    %v1523 = vsub.f32 1.0, %v1522
    %v1524 = vmul.f32 %v1521, %v1523
    %v1525 = vadd.f32 %v1521, %v1524
    %vm1526 = vweird.f32 %v1443
    %vm1527 = vweird.f32 %v1521
    %vm1528 = vmor %vm1526, %vm1527
    %v1529 = vsel %vm1528, %v1521, %v1525
    %v1530 = vand.u32 2147483647, %v1443
    %vm1531 = vcmp.eq.f32.partialorder %v1530, 8.507059e+37
    %v1532 = vand.u32 %v1443, 2147483648
    %v1533 = vor.u32 1.1754944e-38, %v1532
    %v1534 = vsel %vm1531, %v1533, %v1529
    %v1535 = vmul.f32 1.0, %v1534
    %v1536 = vrcp.pop %v1444
    %v1537 = vmul.f32 %v1444, %v1536
    %v1538 = vsub.f32 1.0, %v1537
    %v1539 = vmul.f32 %v1536, %v1538
    %v1540 = vadd.f32 %v1536, %v1539
    %vm1541 = vweird.f32 %v1444
    %vm1542 = vweird.f32 %v1536
    %vm1543 = vmor %vm1541, %vm1542
    %v1544 = vsel %vm1543, %v1536, %v1540
    %v1545 = vand.u32 2147483647, %v1444
    %vm1546 = vcmp.eq.f32.partialorder %v1545, 8.507059e+37
    %v1547 = vand.u32 %v1444, 2147483648
    %v1548 = vor.u32 1.1754944e-38, %v1547
    %v1549 = vsel %vm1546, %v1548, %v1544
    %v1550 = vmul.f32 1.0, %v1549
    %v1551 = vrcp.pop %v1445
    %v1552 = vmul.f32 %v1445, %v1551
    %v1553 = vsub.f32 1.0, %v1552
    %v1554 = vmul.f32 %v1551, %v1553
    %v1555 = vadd.f32 %v1551, %v1554
    %vm1556 = vweird.f32 %v1445
    %vm1557 = vweird.f32 %v1551
    %vm1558 = vmor %vm1556, %vm1557
    %v1559 = vsel %vm1558, %v1551, %v1555
    %v1560 = vand.u32 2147483647, %v1445
    %vm1561 = vcmp.eq.f32.partialorder %v1560, 8.507059e+37
    %v1562 = vand.u32 %v1445, 2147483648
    %v1563 = vor.u32 1.1754944e-38, %v1562
    %v1564 = vsel %vm1561, %v1563, %v1559
    %v1565 = vmul.f32 1.0, %v1564
    %v1566 = vxor.u32 %v1076, 2147483648
    %v1567 = vxor.u32 %v1105, 2147483648
    %v1568 = vxor.u32 %v1134, 2147483648
    %v1569 = vxor.u32 %v1163, 2147483648
    %v1570 = vxor.u32 %v1078, 2147483648
    %v1571 = vxor.u32 %v1107, 2147483648
    %v1572 = vxor.u32 %v1136, 2147483648
    %v1573 = vxor.u32 %v1165, 2147483648
    %v1574 = vmul.f32 %v1566, 1.442695
    %v1575 = vpow.pop %v1574
    %v1576 = vmul.f32 %v1567, 1.442695
    %v1577 = vpow.pop %v1576
    %v1578 = vmul.f32 %v1568, 1.442695
    %v1579 = vpow.pop %v1578
    %v1580 = vmul.f32 %v1569, 1.442695
    %v1581 = vpow.pop %v1580
    %v1582 = vmul.f32 %v1570, 1.442695
    %v1583 = vpow.pop %v1582
    %v1584 = vmul.f32 %v1571, 1.442695
    %v1585 = vpow.pop %v1584
    %v1586 = vmul.f32 %v1572, 1.442695
    %v1587 = vpow.pop %v1586
    %v1588 = vmul.f32 %v1573, 1.442695
    %v1589 = vpow.pop %v1588
    %v1590 = vadd.f32 %v1575, 1.0
    %v1591 = vadd.f32 %v1577, 1.0
    %v1592 = vadd.f32 %v1579, 1.0
    %v1593 = vadd.f32 %v1581, 1.0
    %v1594 = vadd.f32 %v1583, 1.0
    %v1595 = vadd.f32 %v1585, 1.0
    %v1596 = vadd.f32 %v1587, 1.0
    %v1597 = vadd.f32 %v1589, 1.0
    %v1598 = vrcp.pop %v1590
    %v1599 = vmul.f32 %v1590, %v1598
    %v1600 = vsub.f32 1.0, %v1599
    %v1601 = vmul.f32 %v1598, %v1600
    %v1602 = vadd.f32 %v1598, %v1601
    %vm1603 = vweird.f32 %v1590
    %vm1604 = vweird.f32 %v1598
    %vm1605 = vmor %vm1603, %vm1604
    %v1606 = vsel %vm1605, %v1598, %v1602
    %v1607 = vand.u32 2147483647, %v1590
    %vm1608 = vcmp.eq.f32.partialorder %v1607, 8.507059e+37
    %v1609 = vand.u32 %v1590, 2147483648
    %v1610 = vor.u32 1.1754944e-38, %v1609
    %v1611 = vsel %vm1608, %v1610, %v1606
    %v1612 = vmul.f32 1.0, %v1611
    %v1613 = vrcp.pop %v1591
    %v1614 = vmul.f32 %v1591, %v1613
    %v1615 = vsub.f32 1.0, %v1614
    %v1616 = vmul.f32 %v1613, %v1615
    %v1617 = vadd.f32 %v1613, %v1616
    %vm1618 = vweird.f32 %v1591
    %vm1619 = vweird.f32 %v1613
    %vm1620 = vmor %vm1618, %vm1619
    %v1621 = vsel %vm1620, %v1613, %v1617
    %v1622 = vand.u32 2147483647, %v1591
    %vm1623 = vcmp.eq.f32.partialorder %v1622, 8.507059e+37
    %v1624 = vand.u32 %v1591, 2147483648
    %v1625 = vor.u32 1.1754944e-38, %v1624
    %v1626 = vsel %vm1623, %v1625, %v1621
    %v1627 = vmul.f32 1.0, %v1626
    %v1628 = vrcp.pop %v1592
    %v1629 = vmul.f32 %v1592, %v1628
    %v1630 = vsub.f32 1.0, %v1629
    %v1631 = vmul.f32 %v1628, %v1630
    %v1632 = vadd.f32 %v1628, %v1631
    %vm1633 = vweird.f32 %v1592
    %vm1634 = vweird.f32 %v1628
    %vm1635 = vmor %vm1633, %vm1634
    %v1636 = vsel %vm1635, %v1628, %v1632
    %v1637 = vand.u32 2147483647, %v1592
    %vm1638 = vcmp.eq.f32.partialorder %v1637, 8.507059e+37
    %v1639 = vand.u32 %v1592, 2147483648
    %v1640 = vor.u32 1.1754944e-38, %v1639
    %v1641 = vsel %vm1638, %v1640, %v1636
    %v1642 = vmul.f32 1.0, %v1641
    %v1643 = vrcp.pop %v1593
    %v1644 = vmul.f32 %v1593, %v1643
    %v1645 = vsub.f32 1.0, %v1644
    %v1646 = vmul.f32 %v1643, %v1645
    %v1647 = vadd.f32 %v1643, %v1646
    %vm1648 = vweird.f32 %v1593
    %vm1649 = vweird.f32 %v1643
    %vm1650 = vmor %vm1648, %vm1649
    %v1651 = vsel %vm1650, %v1643, %v1647
    %v1652 = vand.u32 2147483647, %v1593
    %vm1653 = vcmp.eq.f32.partialorder %v1652, 8.507059e+37
    %v1654 = vand.u32 %v1593, 2147483648
    %v1655 = vor.u32 1.1754944e-38, %v1654
    %v1656 = vsel %vm1653, %v1655, %v1651
    %v1657 = vmul.f32 1.0, %v1656
    %v1658 = vrcp.pop %v1594
    %v1659 = vmul.f32 %v1594, %v1658
    %v1660 = vsub.f32 1.0, %v1659
    %v1661 = vmul.f32 %v1658, %v1660
    %v1662 = vadd.f32 %v1658, %v1661
    %vm1663 = vweird.f32 %v1594
    %vm1664 = vweird.f32 %v1658
    %vm1665 = vmor %vm1663, %vm1664
    %v1666 = vsel %vm1665, %v1658, %v1662
    %v1667 = vand.u32 2147483647, %v1594
    %vm1668 = vcmp.eq.f32.partialorder %v1667, 8.507059e+37
    %v1669 = vand.u32 %v1594, 2147483648
    %v1670 = vor.u32 1.1754944e-38, %v1669
    %v1671 = vsel %vm1668, %v1670, %v1666
    %v1672 = vmul.f32 1.0, %v1671
    %v1673 = vrcp.pop %v1595
    %v1674 = vmul.f32 %v1595, %v1673
    %v1675 = vsub.f32 1.0, %v1674
    %v1676 = vmul.f32 %v1673, %v1675
    %v1677 = vadd.f32 %v1673, %v1676
    %vm1678 = vweird.f32 %v1595
    %vm1679 = vweird.f32 %v1673
    %vm1680 = vmor %vm1678, %vm1679
    %v1681 = vsel %vm1680, %v1673, %v1677
    %v1682 = vand.u32 2147483647, %v1595
    %vm1683 = vcmp.eq.f32.partialorder %v1682, 8.507059e+37
    %v1684 = vand.u32 %v1595, 2147483648
    %v1685 = vor.u32 1.1754944e-38, %v1684
    %v1686 = vsel %vm1683, %v1685, %v1681
    %v1687 = vmul.f32 1.0, %v1686
    %v1688 = vrcp.pop %v1596
    %v1689 = vmul.f32 %v1596, %v1688
    %v1690 = vsub.f32 1.0, %v1689
    %v1691 = vmul.f32 %v1688, %v1690
    %v1692 = vadd.f32 %v1688, %v1691
    %vm1693 = vweird.f32 %v1596
    %vm1694 = vweird.f32 %v1688
    %vm1695 = vmor %vm1693, %vm1694
    %v1696 = vsel %vm1695, %v1688, %v1692
    %v1697 = vand.u32 2147483647, %v1596
    %vm1698 = vcmp.eq.f32.partialorder %v1697, 8.507059e+37
    %v1699 = vand.u32 %v1596, 2147483648
    %v1700 = vor.u32 1.1754944e-38, %v1699
    %v1701 = vsel %vm1698, %v1700, %v1696
    %v1702 = vmul.f32 1.0, %v1701
    %v1703 = vrcp.pop %v1597
    %v1704 = vmul.f32 %v1597, %v1703
    %v1705 = vsub.f32 1.0, %v1704
    %v1706 = vmul.f32 %v1703, %v1705
    %v1707 = vadd.f32 %v1703, %v1706
    %vm1708 = vweird.f32 %v1597
    %vm1709 = vweird.f32 %v1703
    %vm1710 = vmor %vm1708, %vm1709
    %v1711 = vsel %vm1710, %v1703, %v1707
    %v1712 = vand.u32 2147483647, %v1597
    %vm1713 = vcmp.eq.f32.partialorder %v1712, 8.507059e+37
    %v1714 = vand.u32 %v1597, 2147483648
    %v1715 = vor.u32 1.1754944e-38, %v1714
    %v1716 = vsel %vm1713, %v1715, %v1711
    %v1717 = vmul.f32 1.0, %v1716
    %v1718 = vtanh.pop %v1192
    %v1719 = vtanh.pop %v1221
    %v1720 = vtanh.pop %v1250
    %v1721 = vtanh.pop %v1279
    %v1722 = vtanh.pop %v1194
    %v1723 = vtanh.pop %v1223
    %v1724 = vtanh.pop %v1252
    %v1725 = vtanh.pop %v1281
    %v1726 = vxor.u32 %v1308, 2147483648
    %v1727 = vxor.u32 %v1337, 2147483648
    %v1728 = vxor.u32 %v1366, 2147483648
    %v1729 = vxor.u32 %v1395, 2147483648
    %v1730 = vxor.u32 %v1310, 2147483648
    %v1731 = vxor.u32 %v1339, 2147483648
    %v1732 = vxor.u32 %v1368, 2147483648
    %v1733 = vxor.u32 %v1397, 2147483648
    %v1734 = vmul.f32 %v1726, 1.442695
    %v1735 = vpow.pop %v1734
    %v1736 = vmul.f32 %v1727, 1.442695
    %v1737 = vpow.pop %v1736
    %v1738 = vmul.f32 %v1728, 1.442695
    %v1739 = vpow.pop %v1738
    %v1740 = vmul.f32 %v1729, 1.442695
    %v1741 = vpow.pop %v1740
    %v1742 = vmul.f32 %v1730, 1.442695
    %v1743 = vpow.pop %v1742
    %v1744 = vmul.f32 %v1731, 1.442695
    %v1745 = vpow.pop %v1744
    %v1746 = vmul.f32 %v1732, 1.442695
    %v1747 = vpow.pop %v1746
    %v1748 = vmul.f32 %v1733, 1.442695
    %v1749 = vpow.pop %v1748
    %v1750 = vadd.f32 %v1735, 1.0
    %v1751 = vadd.f32 %v1737, 1.0
    %v1752 = vadd.f32 %v1739, 1.0
    %v1753 = vadd.f32 %v1741, 1.0
    %v1754 = vadd.f32 %v1743, 1.0
    %v1755 = vadd.f32 %v1745, 1.0
    %v1756 = vadd.f32 %v1747, 1.0
    %v1757 = vadd.f32 %v1749, 1.0
    %v1758 = vrcp.pop %v1750
    %v1759 = vmul.f32 %v1750, %v1758
    %v1760 = vsub.f32 1.0, %v1759
    %v1761 = vmul.f32 %v1758, %v1760
    %v1762 = vadd.f32 %v1758, %v1761
    %vm1763 = vweird.f32 %v1750
    %vm1764 = vweird.f32 %v1758
    %vm1765 = vmor %vm1763, %vm1764
    %v1766 = vsel %vm1765, %v1758, %v1762
    %v1767 = vand.u32 2147483647, %v1750
    %vm1768 = vcmp.eq.f32.partialorder %v1767, 8.507059e+37
    %v1769 = vand.u32 %v1750, 2147483648
    %v1770 = vor.u32 1.1754944e-38, %v1769
    %v1771 = vsel %vm1768, %v1770, %v1766
    %v1772 = vmul.f32 1.0, %v1771
    %v1773 = vrcp.pop %v1751
    %v1774 = vmul.f32 %v1751, %v1773
    %v1775 = vsub.f32 1.0, %v1774
    %v1776 = vmul.f32 %v1773, %v1775
    %v1777 = vadd.f32 %v1773, %v1776
    %vm1778 = vweird.f32 %v1751
    %vm1779 = vweird.f32 %v1773
    %vm1780 = vmor %vm1778, %vm1779
    %v1781 = vsel %vm1780, %v1773, %v1777
    %v1782 = vand.u32 2147483647, %v1751
    %vm1783 = vcmp.eq.f32.partialorder %v1782, 8.507059e+37
    %v1784 = vand.u32 %v1751, 2147483648
    %v1785 = vor.u32 1.1754944e-38, %v1784
    %v1786 = vsel %vm1783, %v1785, %v1781
    %v1787 = vmul.f32 1.0, %v1786
    %v1788 = vrcp.pop %v1752
    %v1789 = vmul.f32 %v1752, %v1788
    %v1790 = vsub.f32 1.0, %v1789
    %v1791 = vmul.f32 %v1788, %v1790
    %v1792 = vadd.f32 %v1788, %v1791
    %vm1793 = vweird.f32 %v1752
    %vm1794 = vweird.f32 %v1788
    %vm1795 = vmor %vm1793, %vm1794
    %v1796 = vsel %vm1795, %v1788, %v1792
    %v1797 = vand.u32 2147483647, %v1752
    %vm1798 = vcmp.eq.f32.partialorder %v1797, 8.507059e+37
    %v1799 = vand.u32 %v1752, 2147483648
    %v1800 = vor.u32 1.1754944e-38, %v1799
    %v1801 = vsel %vm1798, %v1800, %v1796
    %v1802 = vmul.f32 1.0, %v1801
    %v1803 = vrcp.pop %v1753
    %v1804 = vmul.f32 %v1753, %v1803
    %v1805 = vsub.f32 1.0, %v1804
    %v1806 = vmul.f32 %v1803, %v1805
    %v1807 = vadd.f32 %v1803, %v1806
    %vm1808 = vweird.f32 %v1753
    %vm1809 = vweird.f32 %v1803
    %vm1810 = vmor %vm1808, %vm1809
    %v1811 = vsel %vm1810, %v1803, %v1807
    %v1812 = vand.u32 2147483647, %v1753
    %vm1813 = vcmp.eq.f32.partialorder %v1812, 8.507059e+37
    %v1814 = vand.u32 %v1753, 2147483648
    %v1815 = vor.u32 1.1754944e-38, %v1814
    %v1816 = vsel %vm1813, %v1815, %v1811
    %v1817 = vmul.f32 1.0, %v1816
    %v1818 = vrcp.pop %v1754
    %v1819 = vmul.f32 %v1754, %v1818
    %v1820 = vsub.f32 1.0, %v1819
    %v1821 = vmul.f32 %v1818, %v1820
    %v1822 = vadd.f32 %v1818, %v1821
    %vm1823 = vweird.f32 %v1754
    %vm1824 = vweird.f32 %v1818
    %vm1825 = vmor %vm1823, %vm1824
    %v1826 = vsel %vm1825, %v1818, %v1822
    %v1827 = vand.u32 2147483647, %v1754
    %vm1828 = vcmp.eq.f32.partialorder %v1827, 8.507059e+37
    %v1829 = vand.u32 %v1754, 2147483648
    %v1830 = vor.u32 1.1754944e-38, %v1829
    %v1831 = vsel %vm1828, %v1830, %v1826
    %v1832 = vmul.f32 1.0, %v1831
    %v1833 = vrcp.pop %v1755
    %v1834 = vmul.f32 %v1755, %v1833
    %v1835 = vsub.f32 1.0, %v1834
    %v1836 = vmul.f32 %v1833, %v1835
    %v1837 = vadd.f32 %v1833, %v1836
    %vm1838 = vweird.f32 %v1755
    %vm1839 = vweird.f32 %v1833
    %vm1840 = vmor %vm1838, %vm1839
    %v1841 = vsel %vm1840, %v1833, %v1837
    %v1842 = vand.u32 2147483647, %v1755
    %vm1843 = vcmp.eq.f32.partialorder %v1842, 8.507059e+37
    %v1844 = vand.u32 %v1755, 2147483648
    %v1845 = vor.u32 1.1754944e-38, %v1844
    %v1846 = vsel %vm1843, %v1845, %v1841
    %v1847 = vmul.f32 1.0, %v1846
    %v1848 = vrcp.pop %v1756
    %v1849 = vmul.f32 %v1756, %v1848
    %v1850 = vsub.f32 1.0, %v1849
    %v1851 = vmul.f32 %v1848, %v1850
    %v1852 = vadd.f32 %v1848, %v1851
    %vm1853 = vweird.f32 %v1756
    %vm1854 = vweird.f32 %v1848
    %vm1855 = vmor %vm1853, %vm1854
    %v1856 = vsel %vm1855, %v1848, %v1852
    %v1857 = vand.u32 2147483647, %v1756
    %vm1858 = vcmp.eq.f32.partialorder %v1857, 8.507059e+37
    %v1859 = vand.u32 %v1756, 2147483648
    %v1860 = vor.u32 1.1754944e-38, %v1859
    %v1861 = vsel %vm1858, %v1860, %v1856
    %v1862 = vmul.f32 1.0, %v1861
    %v1863 = vrcp.pop %v1757
    %v1864 = vmul.f32 %v1757, %v1863
    %v1865 = vsub.f32 1.0, %v1864
    %v1866 = vmul.f32 %v1863, %v1865
    %v1867 = vadd.f32 %v1863, %v1866
    %vm1868 = vweird.f32 %v1757
    %vm1869 = vweird.f32 %v1863
    %vm1870 = vmor %vm1868, %vm1869
    %v1871 = vsel %vm1870, %v1863, %v1867
    %v1872 = vand.u32 2147483647, %v1757
    %vm1873 = vcmp.eq.f32.partialorder %v1872, 8.507059e+37
    %v1874 = vand.u32 %v1757, 2147483648
    %v1875 = vor.u32 1.1754944e-38, %v1874
    %v1876 = vsel %vm1873, %v1875, %v1871
    %v1877 = vmul.f32 1.0, %v1876
    %v1878 = vmul.f32 %v1612, 0.0
    %v1879 = vmul.f32 %v1627, 0.0
    %v1880 = vmul.f32 %v1642, 0.0
    %v1881 = vmul.f32 %v1657, 0.0
    %v1882 = vmul.f32 %v1672, 0.0
    %v1883 = vmul.f32 %v1687, 0.0
    %v1884 = vmul.f32 %v1702, 0.0
    %v1885 = vmul.f32 %v1717, 0.0
    %v1886 = vmul.f32 %v1460, %v1718
    %v1887 = vmul.f32 %v1475, %v1719
    %v1888 = vmul.f32 %v1490, %v1720
    %v1889 = vmul.f32 %v1505, %v1721
    %v1890 = vmul.f32 %v1520, %v1722
    %v1891 = vmul.f32 %v1535, %v1723
    %v1892 = vmul.f32 %v1550, %v1724
    %v1893 = vmul.f32 %v1565, %v1725
    %v1894 = vadd.f32 %v1878, %v1886
    %v1895 = vadd.f32 %v1879, %v1887
    %v1896 = vadd.f32 %v1880, %v1888
    %v1897 = vadd.f32 %v1881, %v1889
    %v1898 = vadd.f32 %v1882, %v1890
    %v1899 = vadd.f32 %v1883, %v1891
    %v1900 = vadd.f32 %v1884, %v1892
    %v1901 = vadd.f32 %v1885, %v1893
    %v1902 = vtanh.pop %v1894
    %v1903 = vtanh.pop %v1895
    %v1904 = vtanh.pop %v1896
    %v1905 = vtanh.pop %v1897
    %v1906 = vtanh.pop %v1898
    %v1907 = vtanh.pop %v1899
    %v1908 = vtanh.pop %v1900
    %v1909 = vtanh.pop %v1901
    %v1910 = vmul.f32 %v1772, %v1902
    %v1911 = vmul.f32 %v1787, %v1903
    %v1912 = vmul.f32 %v1802, %v1904
    %v1913 = vmul.f32 %v1817, %v1905
    %v1914 = vmul.f32 %v1832, %v1906
    %v1915 = vmul.f32 %v1847, %v1907
    %v1916 = vmul.f32 %v1862, %v1908
    %v1917 = vmul.f32 %v1877, %v1909
    %v1918 = vpack.c.bf16 %v1914, %v1910
    %v1919 = vpack.c.bf16 %v1915, %v1911
    %v1920 = vpack.c.bf16 %v1916, %v1912
    %v1921 = vpack.c.bf16 %v1917, %v1913
    %v1922 = vld [vmem:[#allocation7] sm:$0xff]
    %v1923 = vld [vmem:[#allocation7 + $0x8] sm:$0xff]
    %v1924 = vld [vmem:[#allocation7 + $0x10] sm:$0xff]
    %v1925 = vld [vmem:[#allocation7 + $0x18] sm:$0xff]
    %v1926 = vld [vmem:[#allocation7 + $0x20] sm:$0xff]
    %v1927 = vld [vmem:[#allocation7 + $0x28] sm:$0xff]
    %v1928 = vld [vmem:[#allocation7 + $0x30] sm:$0xff]
    %v1929 = vld [vmem:[#allocation7 + $0x38] sm:$0xff]
    %v1930 = vld [vmem:[#allocation7 + $0x40] sm:$0xff]
    %v1931 = vld [vmem:[#allocation7 + $0x48] sm:$0xff]
    %v1932 = vld [vmem:[#allocation7 + $0x50] sm:$0xff]
    %v1933 = vld [vmem:[#allocation7 + $0x58] sm:$0xff]
    %v1934 = vld [vmem:[#allocation7 + $0x60] sm:$0xff]
    %v1935 = vld [vmem:[#allocation7 + $0x68] sm:$0xff]
    %v1936 = vld [vmem:[#allocation7 + $0x70] sm:$0xff]
    %v1937 = vld [vmem:[#allocation7 + $0x78] sm:$0xff]
    %v1938 = vld [vmem:[#allocation7 + $0x80] sm:$0xff]
    %v1939 = vld [vmem:[#allocation7 + $0x88] sm:$0xff]
    %v1940 = vld [vmem:[#allocation7 + $0x90] sm:$0xff]
    %v1941 = vld [vmem:[#allocation7 + $0x98] sm:$0xff]
    %v1942 = vld [vmem:[#allocation7 + $0xa0] sm:$0xff]
    %v1943 = vld [vmem:[#allocation7 + $0xa8] sm:$0xff]
    %v1944 = vld [vmem:[#allocation7 + $0xb0] sm:$0xff]
    %v1945 = vld [vmem:[#allocation7 + $0xb8] sm:$0xff]
    %v1946 = vld [vmem:[#allocation7 + $0xc0] sm:$0xff]
    %v1947 = vld [vmem:[#allocation7 + $0xc8] sm:$0xff]
    %v1948 = vld [vmem:[#allocation7 + $0xd0] sm:$0xff]
    %v1949 = vld [vmem:[#allocation7 + $0xd8] sm:$0xff]
    %v1950 = vld [vmem:[#allocation7 + $0xe0] sm:$0xff]
    %v1951 = vld [vmem:[#allocation7 + $0xe8] sm:$0xff]
    %v1952 = vld [vmem:[#allocation7 + $0xf0] sm:$0xff]
    %v1953 = vld [vmem:[#allocation7 + $0xf8] sm:$0xff]
    %v1954 = vld [vmem:[#allocation7 + $0x100] sm:$0xff]
    %v1955 = vld [vmem:[#allocation7 + $0x108] sm:$0xff]
    %v1956 = vld [vmem:[#allocation7 + $0x110] sm:$0xff]
    %v1957 = vld [vmem:[#allocation7 + $0x118] sm:$0xff]
    %v1958 = vld [vmem:[#allocation7 + $0x120] sm:$0xff]
    %v1959 = vld [vmem:[#allocation7 + $0x128] sm:$0xff]
    %v1960 = vld [vmem:[#allocation7 + $0x130] sm:$0xff]
    %v1961 = vld [vmem:[#allocation7 + $0x138] sm:$0xff]
    %v1962 = vld [vmem:[#allocation7 + $0x140] sm:$0xff]
    %v1963 = vld [vmem:[#allocation7 + $0x148] sm:$0xff]
    %v1964 = vld [vmem:[#allocation7 + $0x150] sm:$0xff]
    %v1965 = vld [vmem:[#allocation7 + $0x158] sm:$0xff]
    %v1966 = vld [vmem:[#allocation7 + $0x160] sm:$0xff]
    %v1967 = vld [vmem:[#allocation7 + $0x168] sm:$0xff]
    %v1968 = vld [vmem:[#allocation7 + $0x170] sm:$0xff]
    %v1969 = vld [vmem:[#allocation7 + $0x178] sm:$0xff]
    %v1970 = vld [vmem:[#allocation7 + $0x180] sm:$0xff]
    %v1971 = vld [vmem:[#allocation7 + $0x188] sm:$0xff]
    %v1972 = vld [vmem:[#allocation7 + $0x190] sm:$0xff]
    %v1973 = vld [vmem:[#allocation7 + $0x198] sm:$0xff]
    %v1974 = vld [vmem:[#allocation7 + $0x1a0] sm:$0xff]
    %v1975 = vld [vmem:[#allocation7 + $0x1a8] sm:$0xff]
    %v1976 = vld [vmem:[#allocation7 + $0x1b0] sm:$0xff]
    %v1977 = vld [vmem:[#allocation7 + $0x1b8] sm:$0xff]
    %v1978 = vld [vmem:[#allocation7 + $0x1c0] sm:$0xff]
    %v1979 = vld [vmem:[#allocation7 + $0x1c8] sm:$0xff]
    %v1980 = vld [vmem:[#allocation7 + $0x1d0] sm:$0xff]
    %v1981 = vld [vmem:[#allocation7 + $0x1d8] sm:$0xff]
    %v1982 = vld [vmem:[#allocation7 + $0x1e0] sm:$0xff]
    %v1983 = vld [vmem:[#allocation7 + $0x1e8] sm:$0xff]
    %v1984 = vld [vmem:[#allocation7 + $0x1f0] sm:$0xff]
    %v1985 = vld [vmem:[#allocation7 + $0x1f8] sm:$0xff]
    %v1986 = vld [vmem:[#allocation7 + $0x200] sm:$0xff]
    %v1987 = vld [vmem:[#allocation7 + $0x208] sm:$0xff]
    %v1988 = vld [vmem:[#allocation7 + $0x210] sm:$0xff]
    %v1989 = vld [vmem:[#allocation7 + $0x218] sm:$0xff]
    %v1990 = vld [vmem:[#allocation7 + $0x220] sm:$0xff]
    %v1991 = vld [vmem:[#allocation7 + $0x228] sm:$0xff]
    %v1992 = vld [vmem:[#allocation7 + $0x230] sm:$0xff]
    %v1993 = vld [vmem:[#allocation7 + $0x238] sm:$0xff]
    %v1994 = vld [vmem:[#allocation7 + $0x240] sm:$0xff]
    %v1995 = vld [vmem:[#allocation7 + $0x248] sm:$0xff]
    %v1996 = vld [vmem:[#allocation7 + $0x250] sm:$0xff]
    %v1997 = vld [vmem:[#allocation7 + $0x258] sm:$0xff]
    %v1998 = vld [vmem:[#allocation7 + $0x260] sm:$0xff]
    %v1999 = vld [vmem:[#allocation7 + $0x268] sm:$0xff]
    %v2000 = vld [vmem:[#allocation7 + $0x270] sm:$0xff]
    %v2001 = vld [vmem:[#allocation7 + $0x278] sm:$0xff]
    %v2002 = vld [vmem:[#allocation7 + $0x280] sm:$0xff]
    %v2003 = vld [vmem:[#allocation7 + $0x288] sm:$0xff]
    %v2004 = vld [vmem:[#allocation7 + $0x290] sm:$0xff]
    %v2005 = vld [vmem:[#allocation7 + $0x298] sm:$0xff]
    %v2006 = vld [vmem:[#allocation7 + $0x2a0] sm:$0xff]
    %v2007 = vld [vmem:[#allocation7 + $0x2a8] sm:$0xff]
    %v2008 = vld [vmem:[#allocation7 + $0x2b0] sm:$0xff]
    %v2009 = vld [vmem:[#allocation7 + $0x2b8] sm:$0xff]
    %v2010 = vld [vmem:[#allocation7 + $0x2c0] sm:$0xff]
    %v2011 = vld [vmem:[#allocation7 + $0x2c8] sm:$0xff]
    %v2012 = vld [vmem:[#allocation7 + $0x2d0] sm:$0xff]
    %v2013 = vld [vmem:[#allocation7 + $0x2d8] sm:$0xff]
    %v2014 = vld [vmem:[#allocation7 + $0x2e0] sm:$0xff]
    %v2015 = vld [vmem:[#allocation7 + $0x2e8] sm:$0xff]
    %v2016 = vld [vmem:[#allocation7 + $0x2f0] sm:$0xff]
    %v2017 = vld [vmem:[#allocation7 + $0x2f8] sm:$0xff]
    %v2018 = vld [vmem:[#allocation7 + $0x300] sm:$0xff]
    %v2019 = vld [vmem:[#allocation7 + $0x308] sm:$0xff]
    %v2020 = vld [vmem:[#allocation7 + $0x310] sm:$0xff]
    %v2021 = vld [vmem:[#allocation7 + $0x318] sm:$0xff]
    %v2022 = vld [vmem:[#allocation7 + $0x320] sm:$0xff]
    %v2023 = vld [vmem:[#allocation7 + $0x328] sm:$0xff]
    %v2024 = vld [vmem:[#allocation7 + $0x330] sm:$0xff]
    %v2025 = vld [vmem:[#allocation7 + $0x338] sm:$0xff]
    %v2026 = vld [vmem:[#allocation7 + $0x340] sm:$0xff]
    %v2027 = vld [vmem:[#allocation7 + $0x348] sm:$0xff]
    %v2028 = vld [vmem:[#allocation7 + $0x350] sm:$0xff]
    %v2029 = vld [vmem:[#allocation7 + $0x358] sm:$0xff]
    %v2030 = vld [vmem:[#allocation7 + $0x360] sm:$0xff]
    %v2031 = vld [vmem:[#allocation7 + $0x368] sm:$0xff]
    %v2032 = vld [vmem:[#allocation7 + $0x370] sm:$0xff]
    %v2033 = vld [vmem:[#allocation7 + $0x378] sm:$0xff]
    %v2034 = vld [vmem:[#allocation7 + $0x380] sm:$0xff]
    %v2035 = vld [vmem:[#allocation7 + $0x388] sm:$0xff]
    %v2036 = vld [vmem:[#allocation7 + $0x390] sm:$0xff]
    %v2037 = vld [vmem:[#allocation7 + $0x398] sm:$0xff]
    %v2038 = vld [vmem:[#allocation7 + $0x3a0] sm:$0xff]
    %v2039 = vld [vmem:[#allocation7 + $0x3a8] sm:$0xff]
    %v2040 = vld [vmem:[#allocation7 + $0x3b0] sm:$0xff]
    %v2041 = vld [vmem:[#allocation7 + $0x3b8] sm:$0xff]
    %v2042 = vld [vmem:[#allocation7 + $0x3c0] sm:$0xff]
    %v2043 = vld [vmem:[#allocation7 + $0x3c8] sm:$0xff]
    %v2044 = vld [vmem:[#allocation7 + $0x3d0] sm:$0xff]
    %v2045 = vld [vmem:[#allocation7 + $0x3d8] sm:$0xff]
    %v2046 = vld [vmem:[#allocation7 + $0x3e0] sm:$0xff]
    %v2047 = vld [vmem:[#allocation7 + $0x3e8] sm:$0xff]
    %v2048 = vld [vmem:[#allocation7 + $0x3f0] sm:$0xff]
    %v2049 = vld [vmem:[#allocation7 + $0x3f8] sm:$0xff]
    %v2050 = vld [vmem:[#allocation7 + $0x400] sm:$0xff]
    %v2051 = vld [vmem:[#allocation7 + $0x408] sm:$0xff]
    %v2052 = vld [vmem:[#allocation7 + $0x410] sm:$0xff]
    %v2053 = vld [vmem:[#allocation7 + $0x418] sm:$0xff]
    %v2054 = vld [vmem:[#allocation7 + $0x420] sm:$0xff]
    %v2055 = vld [vmem:[#allocation7 + $0x428] sm:$0xff]
    %v2056 = vld [vmem:[#allocation7 + $0x430] sm:$0xff]
    %v2057 = vld [vmem:[#allocation7 + $0x438] sm:$0xff]
    %v2058 = vld [vmem:[#allocation7 + $0x440] sm:$0xff]
    %v2059 = vld [vmem:[#allocation7 + $0x448] sm:$0xff]
    %v2060 = vld [vmem:[#allocation7 + $0x450] sm:$0xff]
    %v2061 = vld [vmem:[#allocation7 + $0x458] sm:$0xff]
    %v2062 = vld [vmem:[#allocation7 + $0x460] sm:$0xff]
    %v2063 = vld [vmem:[#allocation7 + $0x468] sm:$0xff]
    %v2064 = vld [vmem:[#allocation7 + $0x470] sm:$0xff]
    %v2065 = vld [vmem:[#allocation7 + $0x478] sm:$0xff]
    %v2066 = vld [vmem:[#allocation7 + $0x480] sm:$0xff]
    %v2067 = vld [vmem:[#allocation7 + $0x488] sm:$0xff]
    %v2068 = vld [vmem:[#allocation7 + $0x490] sm:$0xff]
    %v2069 = vld [vmem:[#allocation7 + $0x498] sm:$0xff]
    %v2070 = vld [vmem:[#allocation7 + $0x4a0] sm:$0xff]
    %v2071 = vld [vmem:[#allocation7 + $0x4a8] sm:$0xff]
    %v2072 = vld [vmem:[#allocation7 + $0x4b0] sm:$0xff]
    %v2073 = vld [vmem:[#allocation7 + $0x4b8] sm:$0xff]
    %v2074 = vld [vmem:[#allocation7 + $0x4c0] sm:$0xff]
    %v2075 = vld [vmem:[#allocation7 + $0x4c8] sm:$0xff]
    %v2076 = vld [vmem:[#allocation7 + $0x4d0] sm:$0xff]
    %v2077 = vld [vmem:[#allocation7 + $0x4d8] sm:$0xff]
    %v2078 = vld [vmem:[#allocation7 + $0x4e0] sm:$0xff]
    %v2079 = vld [vmem:[#allocation7 + $0x4e8] sm:$0xff]
    %v2080 = vld [vmem:[#allocation7 + $0x4f0] sm:$0xff]
    %v2081 = vld [vmem:[#allocation7 + $0x4f8] sm:$0xff]
    %v2082 = vld [vmem:[#allocation7 + $0x500] sm:$0xff]
    %v2083 = vld [vmem:[#allocation7 + $0x508] sm:$0xff]
    %v2084 = vld [vmem:[#allocation7 + $0x510] sm:$0xff]
    %v2085 = vld [vmem:[#allocation7 + $0x518] sm:$0xff]
    %v2086 = vld [vmem:[#allocation7 + $0x520] sm:$0xff]
    %v2087 = vld [vmem:[#allocation7 + $0x528] sm:$0xff]
    %v2088 = vld [vmem:[#allocation7 + $0x530] sm:$0xff]
    %v2089 = vld [vmem:[#allocation7 + $0x538] sm:$0xff]
    %v2090 = vld [vmem:[#allocation7 + $0x540] sm:$0xff]
    %v2091 = vld [vmem:[#allocation7 + $0x548] sm:$0xff]
    %v2092 = vld [vmem:[#allocation7 + $0x550] sm:$0xff]
    %v2093 = vld [vmem:[#allocation7 + $0x558] sm:$0xff]
    %v2094 = vld [vmem:[#allocation7 + $0x560] sm:$0xff]
    %v2095 = vld [vmem:[#allocation7 + $0x568] sm:$0xff]
    %v2096 = vld [vmem:[#allocation7 + $0x570] sm:$0xff]
    %v2097 = vld [vmem:[#allocation7 + $0x578] sm:$0xff]
    %v2098 = vld [vmem:[#allocation7 + $0x580] sm:$0xff]
    %v2099 = vld [vmem:[#allocation7 + $0x588] sm:$0xff]
    %v2100 = vld [vmem:[#allocation7 + $0x590] sm:$0xff]
    %v2101 = vld [vmem:[#allocation7 + $0x598] sm:$0xff]
    %v2102 = vld [vmem:[#allocation7 + $0x5a0] sm:$0xff]
    %v2103 = vld [vmem:[#allocation7 + $0x5a8] sm:$0xff]
    %v2104 = vld [vmem:[#allocation7 + $0x5b0] sm:$0xff]
    %v2105 = vld [vmem:[#allocation7 + $0x5b8] sm:$0xff]
    %v2106 = vld [vmem:[#allocation7 + $0x5c0] sm:$0xff]
    %v2107 = vld [vmem:[#allocation7 + $0x5c8] sm:$0xff]
    %v2108 = vld [vmem:[#allocation7 + $0x5d0] sm:$0xff]
    %v2109 = vld [vmem:[#allocation7 + $0x5d8] sm:$0xff]
    %v2110 = vld [vmem:[#allocation7 + $0x5e0] sm:$0xff]
    %v2111 = vld [vmem:[#allocation7 + $0x5e8] sm:$0xff]
    %v2112 = vld [vmem:[#allocation7 + $0x5f0] sm:$0xff]
    %v2113 = vld [vmem:[#allocation7 + $0x5f8] sm:$0xff]
    %v2114 = vld [vmem:[#allocation7 + $0x600] sm:$0xff]
    %v2115 = vld [vmem:[#allocation7 + $0x608] sm:$0xff]
    %v2116 = vld [vmem:[#allocation7 + $0x610] sm:$0xff]
    %v2117 = vld [vmem:[#allocation7 + $0x618] sm:$0xff]
    %v2118 = vld [vmem:[#allocation7 + $0x620] sm:$0xff]
    %v2119 = vld [vmem:[#allocation7 + $0x628] sm:$0xff]
    %v2120 = vld [vmem:[#allocation7 + $0x630] sm:$0xff]
    %v2121 = vld [vmem:[#allocation7 + $0x638] sm:$0xff]
    %v2122 = vld [vmem:[#allocation7 + $0x640] sm:$0xff]
    %v2123 = vld [vmem:[#allocation7 + $0x648] sm:$0xff]
    %v2124 = vld [vmem:[#allocation7 + $0x650] sm:$0xff]
    %v2125 = vld [vmem:[#allocation7 + $0x658] sm:$0xff]
    %v2126 = vld [vmem:[#allocation7 + $0x660] sm:$0xff]
    %v2127 = vld [vmem:[#allocation7 + $0x668] sm:$0xff]
    %v2128 = vld [vmem:[#allocation7 + $0x670] sm:$0xff]
    %v2129 = vld [vmem:[#allocation7 + $0x678] sm:$0xff]
    %v2130 = vld [vmem:[#allocation7 + $0x680] sm:$0xff]
    %v2131 = vld [vmem:[#allocation7 + $0x688] sm:$0xff]
    %v2132 = vld [vmem:[#allocation7 + $0x690] sm:$0xff]
    %v2133 = vld [vmem:[#allocation7 + $0x698] sm:$0xff]
    %v2134 = vld [vmem:[#allocation7 + $0x6a0] sm:$0xff]
    %v2135 = vld [vmem:[#allocation7 + $0x6a8] sm:$0xff]
    %v2136 = vld [vmem:[#allocation7 + $0x6b0] sm:$0xff]
    %v2137 = vld [vmem:[#allocation7 + $0x6b8] sm:$0xff]
    %v2138 = vld [vmem:[#allocation7 + $0x6c0] sm:$0xff]
    %v2139 = vld [vmem:[#allocation7 + $0x6c8] sm:$0xff]
    %v2140 = vld [vmem:[#allocation7 + $0x6d0] sm:$0xff]
    %v2141 = vld [vmem:[#allocation7 + $0x6d8] sm:$0xff]
    %v2142 = vld [vmem:[#allocation7 + $0x6e0] sm:$0xff]
    %v2143 = vld [vmem:[#allocation7 + $0x6e8] sm:$0xff]
    %v2144 = vld [vmem:[#allocation7 + $0x6f0] sm:$0xff]
    %v2145 = vld [vmem:[#allocation7 + $0x6f8] sm:$0xff]
    %v2146 = vld [vmem:[#allocation7 + $0x700] sm:$0xff]
    %v2147 = vld [vmem:[#allocation7 + $0x708] sm:$0xff]
    %v2148 = vld [vmem:[#allocation7 + $0x710] sm:$0xff]
    %v2149 = vld [vmem:[#allocation7 + $0x718] sm:$0xff]
    %v2150 = vld [vmem:[#allocation7 + $0x720] sm:$0xff]
    %v2151 = vld [vmem:[#allocation7 + $0x728] sm:$0xff]
    %v2152 = vld [vmem:[#allocation7 + $0x730] sm:$0xff]
    %v2153 = vld [vmem:[#allocation7 + $0x738] sm:$0xff]
    %v2154 = vld [vmem:[#allocation7 + $0x740] sm:$0xff]
    %v2155 = vld [vmem:[#allocation7 + $0x748] sm:$0xff]
    %v2156 = vld [vmem:[#allocation7 + $0x750] sm:$0xff]
    %v2157 = vld [vmem:[#allocation7 + $0x758] sm:$0xff]
    %v2158 = vld [vmem:[#allocation7 + $0x760] sm:$0xff]
    %v2159 = vld [vmem:[#allocation7 + $0x768] sm:$0xff]
    %v2160 = vld [vmem:[#allocation7 + $0x770] sm:$0xff]
    %v2161 = vld [vmem:[#allocation7 + $0x778] sm:$0xff]
    %v2162 = vld [vmem:[#allocation7 + $0x780] sm:$0xff]
    %v2163 = vld [vmem:[#allocation7 + $0x788] sm:$0xff]
    %v2164 = vld [vmem:[#allocation7 + $0x790] sm:$0xff]
    %v2165 = vld [vmem:[#allocation7 + $0x798] sm:$0xff]
    %v2166 = vld [vmem:[#allocation7 + $0x7a0] sm:$0xff]
    %v2167 = vld [vmem:[#allocation7 + $0x7a8] sm:$0xff]
    %v2168 = vld [vmem:[#allocation7 + $0x7b0] sm:$0xff]
    %v2169 = vld [vmem:[#allocation7 + $0x7b8] sm:$0xff]
    %v2170 = vld [vmem:[#allocation7 + $0x7c0] sm:$0xff]
    %v2171 = vld [vmem:[#allocation7 + $0x7c8] sm:$0xff]
    %v2172 = vld [vmem:[#allocation7 + $0x7d0] sm:$0xff]
    %v2173 = vld [vmem:[#allocation7 + $0x7d8] sm:$0xff]
    %v2174 = vld [vmem:[#allocation7 + $0x7e0] sm:$0xff]
    %v2175 = vld [vmem:[#allocation7 + $0x7e8] sm:$0xff]
    %v2176 = vld [vmem:[#allocation7 + $0x7f0] sm:$0xff]
    %v2177 = vld [vmem:[#allocation7 + $0x7f8] sm:$0xff]
    %v2178 = vld [vmem:[#allocation7 + $0x800] sm:$0xff]
    %v2179 = vld [vmem:[#allocation7 + $0x808] sm:$0xff]
    %v2180 = vld [vmem:[#allocation7 + $0x810] sm:$0xff]
    %v2181 = vld [vmem:[#allocation7 + $0x818] sm:$0xff]
    %v2182 = vld [vmem:[#allocation7 + $0x820] sm:$0xff]
    %v2183 = vld [vmem:[#allocation7 + $0x828] sm:$0xff]
    %v2184 = vld [vmem:[#allocation7 + $0x830] sm:$0xff]
    %v2185 = vld [vmem:[#allocation7 + $0x838] sm:$0xff]
    %v2186 = vld [vmem:[#allocation7 + $0x840] sm:$0xff]
    %v2187 = vld [vmem:[#allocation7 + $0x848] sm:$0xff]
    %v2188 = vld [vmem:[#allocation7 + $0x850] sm:$0xff]
    %v2189 = vld [vmem:[#allocation7 + $0x858] sm:$0xff]
    %v2190 = vld [vmem:[#allocation7 + $0x860] sm:$0xff]
    %v2191 = vld [vmem:[#allocation7 + $0x868] sm:$0xff]
    %v2192 = vld [vmem:[#allocation7 + $0x870] sm:$0xff]
    %v2193 = vld [vmem:[#allocation7 + $0x878] sm:$0xff]
    %v2194 = vld [vmem:[#allocation7 + $0x880] sm:$0xff]
    %v2195 = vld [vmem:[#allocation7 + $0x888] sm:$0xff]
    %v2196 = vld [vmem:[#allocation7 + $0x890] sm:$0xff]
    %v2197 = vld [vmem:[#allocation7 + $0x898] sm:$0xff]
    %v2198 = vld [vmem:[#allocation7 + $0x8a0] sm:$0xff]
    %v2199 = vld [vmem:[#allocation7 + $0x8a8] sm:$0xff]
    %v2200 = vld [vmem:[#allocation7 + $0x8b0] sm:$0xff]
    %v2201 = vld [vmem:[#allocation7 + $0x8b8] sm:$0xff]
    %v2202 = vld [vmem:[#allocation7 + $0x8c0] sm:$0xff]
    %v2203 = vld [vmem:[#allocation7 + $0x8c8] sm:$0xff]
    %v2204 = vld [vmem:[#allocation7 + $0x8d0] sm:$0xff]
    %v2205 = vld [vmem:[#allocation7 + $0x8d8] sm:$0xff]
    %v2206 = vld [vmem:[#allocation7 + $0x8e0] sm:$0xff]
    %v2207 = vld [vmem:[#allocation7 + $0x8e8] sm:$0xff]
    %v2208 = vld [vmem:[#allocation7 + $0x8f0] sm:$0xff]
    %v2209 = vld [vmem:[#allocation7 + $0x8f8] sm:$0xff]
    %v2210 = vld [vmem:[#allocation7 + $0x900] sm:$0xff]
    %v2211 = vld [vmem:[#allocation7 + $0x908] sm:$0xff]
    %v2212 = vld [vmem:[#allocation7 + $0x910] sm:$0xff]
    %v2213 = vld [vmem:[#allocation7 + $0x918] sm:$0xff]
    %v2214 = vld [vmem:[#allocation7 + $0x920] sm:$0xff]
    %v2215 = vld [vmem:[#allocation7 + $0x928] sm:$0xff]
    %v2216 = vld [vmem:[#allocation7 + $0x930] sm:$0xff]
    %v2217 = vld [vmem:[#allocation7 + $0x938] sm:$0xff]
    %v2218 = vld [vmem:[#allocation7 + $0x940] sm:$0xff]
    %v2219 = vld [vmem:[#allocation7 + $0x948] sm:$0xff]
    %v2220 = vld [vmem:[#allocation7 + $0x950] sm:$0xff]
    %v2221 = vld [vmem:[#allocation7 + $0x958] sm:$0xff]
    %v2222 = vld [vmem:[#allocation7 + $0x960] sm:$0xff]
    %v2223 = vld [vmem:[#allocation7 + $0x968] sm:$0xff]
    %v2224 = vld [vmem:[#allocation7 + $0x970] sm:$0xff]
    %v2225 = vld [vmem:[#allocation7 + $0x978] sm:$0xff]
    %v2226 = vld [vmem:[#allocation7 + $0x980] sm:$0xff]
    %v2227 = vld [vmem:[#allocation7 + $0x988] sm:$0xff]
    %v2228 = vld [vmem:[#allocation7 + $0x990] sm:$0xff]
    %v2229 = vld [vmem:[#allocation7 + $0x998] sm:$0xff]
    %v2230 = vld [vmem:[#allocation7 + $0x9a0] sm:$0xff]
    %v2231 = vld [vmem:[#allocation7 + $0x9a8] sm:$0xff]
    %v2232 = vld [vmem:[#allocation7 + $0x9b0] sm:$0xff]
    %v2233 = vld [vmem:[#allocation7 + $0x9b8] sm:$0xff]
    %v2234 = vld [vmem:[#allocation7 + $0x9c0] sm:$0xff]
    %v2235 = vld [vmem:[#allocation7 + $0x9c8] sm:$0xff]
    %v2236 = vld [vmem:[#allocation7 + $0x9d0] sm:$0xff]
    %v2237 = vld [vmem:[#allocation7 + $0x9d8] sm:$0xff]
    %v2238 = vld [vmem:[#allocation7 + $0x9e0] sm:$0xff]
    %v2239 = vld [vmem:[#allocation7 + $0x9e8] sm:$0xff]
    %v2240 = vld [vmem:[#allocation7 + $0x9f0] sm:$0xff]
    %v2241 = vld [vmem:[#allocation7 + $0x9f8] sm:$0xff]
    %v2242 = vld [vmem:[#allocation7 + $0xa00] sm:$0xff]
    %v2243 = vld [vmem:[#allocation7 + $0xa08] sm:$0xff]
    %v2244 = vld [vmem:[#allocation7 + $0xa10] sm:$0xff]
    %v2245 = vld [vmem:[#allocation7 + $0xa18] sm:$0xff]
    %v2246 = vld [vmem:[#allocation7 + $0xa20] sm:$0xff]
    %v2247 = vld [vmem:[#allocation7 + $0xa28] sm:$0xff]
    %v2248 = vld [vmem:[#allocation7 + $0xa30] sm:$0xff]
    %v2249 = vld [vmem:[#allocation7 + $0xa38] sm:$0xff]
    %v2250 = vld [vmem:[#allocation7 + $0xa40] sm:$0xff]
    %v2251 = vld [vmem:[#allocation7 + $0xa48] sm:$0xff]
    %v2252 = vld [vmem:[#allocation7 + $0xa50] sm:$0xff]
    %v2253 = vld [vmem:[#allocation7 + $0xa58] sm:$0xff]
    %v2254 = vld [vmem:[#allocation7 + $0xa60] sm:$0xff]
    %v2255 = vld [vmem:[#allocation7 + $0xa68] sm:$0xff]
    %v2256 = vld [vmem:[#allocation7 + $0xa70] sm:$0xff]
    %v2257 = vld [vmem:[#allocation7 + $0xa78] sm:$0xff]
    %v2258 = vld [vmem:[#allocation7 + $0xa80] sm:$0xff]
    %v2259 = vld [vmem:[#allocation7 + $0xa88] sm:$0xff]
    %v2260 = vld [vmem:[#allocation7 + $0xa90] sm:$0xff]
    %v2261 = vld [vmem:[#allocation7 + $0xa98] sm:$0xff]
    %v2262 = vld [vmem:[#allocation7 + $0xaa0] sm:$0xff]
    %v2263 = vld [vmem:[#allocation7 + $0xaa8] sm:$0xff]
    %v2264 = vld [vmem:[#allocation7 + $0xab0] sm:$0xff]
    %v2265 = vld [vmem:[#allocation7 + $0xab8] sm:$0xff]
    %v2266 = vld [vmem:[#allocation7 + $0xac0] sm:$0xff]
    %v2267 = vld [vmem:[#allocation7 + $0xac8] sm:$0xff]
    %v2268 = vld [vmem:[#allocation7 + $0xad0] sm:$0xff]
    %v2269 = vld [vmem:[#allocation7 + $0xad8] sm:$0xff]
    %v2270 = vld [vmem:[#allocation7 + $0xae0] sm:$0xff]
    %v2271 = vld [vmem:[#allocation7 + $0xae8] sm:$0xff]
    %v2272 = vld [vmem:[#allocation7 + $0xaf0] sm:$0xff]
    %v2273 = vld [vmem:[#allocation7 + $0xaf8] sm:$0xff]
    %v2274 = vld [vmem:[#allocation7 + $0xb00] sm:$0xff]
    %v2275 = vld [vmem:[#allocation7 + $0xb08] sm:$0xff]
    %v2276 = vld [vmem:[#allocation7 + $0xb10] sm:$0xff]
    %v2277 = vld [vmem:[#allocation7 + $0xb18] sm:$0xff]
    %v2278 = vld [vmem:[#allocation7 + $0xb20] sm:$0xff]
    %v2279 = vld [vmem:[#allocation7 + $0xb28] sm:$0xff]
    %v2280 = vld [vmem:[#allocation7 + $0xb30] sm:$0xff]
    %v2281 = vld [vmem:[#allocation7 + $0xb38] sm:$0xff]
    %v2282 = vld [vmem:[#allocation7 + $0xb40] sm:$0xff]
    %v2283 = vld [vmem:[#allocation7 + $0xb48] sm:$0xff]
    %v2284 = vld [vmem:[#allocation7 + $0xb50] sm:$0xff]
    %v2285 = vld [vmem:[#allocation7 + $0xb58] sm:$0xff]
    %v2286 = vld [vmem:[#allocation7 + $0xb60] sm:$0xff]
    %v2287 = vld [vmem:[#allocation7 + $0xb68] sm:$0xff]
    %v2288 = vld [vmem:[#allocation7 + $0xb70] sm:$0xff]
    %v2289 = vld [vmem:[#allocation7 + $0xb78] sm:$0xff]
    %v2290 = vld [vmem:[#allocation7 + $0xb80] sm:$0xff]
    %v2291 = vld [vmem:[#allocation7 + $0xb88] sm:$0xff]
    %v2292 = vld [vmem:[#allocation7 + $0xb90] sm:$0xff]
    %v2293 = vld [vmem:[#allocation7 + $0xb98] sm:$0xff]
    %v2294 = vld [vmem:[#allocation7 + $0xba0] sm:$0xff]
    %v2295 = vld [vmem:[#allocation7 + $0xba8] sm:$0xff]
    %v2296 = vld [vmem:[#allocation7 + $0xbb0] sm:$0xff]
    %v2297 = vld [vmem:[#allocation7 + $0xbb8] sm:$0xff]
    %v2298 = vld [vmem:[#allocation7 + $0xbc0] sm:$0xff]
    %v2299 = vld [vmem:[#allocation7 + $0xbc8] sm:$0xff]
    %v2300 = vld [vmem:[#allocation7 + $0xbd0] sm:$0xff]
    %v2301 = vld [vmem:[#allocation7 + $0xbd8] sm:$0xff]
    %v2302 = vld [vmem:[#allocation7 + $0xbe0] sm:$0xff]
    %v2303 = vld [vmem:[#allocation7 + $0xbe8] sm:$0xff]
    %v2304 = vld [vmem:[#allocation7 + $0xbf0] sm:$0xff]
    %v2305 = vld [vmem:[#allocation7 + $0xbf8] sm:$0xff]
    %v2306 = vld [vmem:[#allocation7 + $0xc00] sm:$0xff]
    %v2307 = vld [vmem:[#allocation7 + $0xc08] sm:$0xff]
    %v2308 = vld [vmem:[#allocation7 + $0xc10] sm:$0xff]
    %v2309 = vld [vmem:[#allocation7 + $0xc18] sm:$0xff]
    %v2310 = vld [vmem:[#allocation7 + $0xc20] sm:$0xff]
    %v2311 = vld [vmem:[#allocation7 + $0xc28] sm:$0xff]
    %v2312 = vld [vmem:[#allocation7 + $0xc30] sm:$0xff]
    %v2313 = vld [vmem:[#allocation7 + $0xc38] sm:$0xff]
    %v2314 = vld [vmem:[#allocation7 + $0xc40] sm:$0xff]
    %v2315 = vld [vmem:[#allocation7 + $0xc48] sm:$0xff]
    %v2316 = vld [vmem:[#allocation7 + $0xc50] sm:$0xff]
    %v2317 = vld [vmem:[#allocation7 + $0xc58] sm:$0xff]
    %v2318 = vld [vmem:[#allocation7 + $0xc60] sm:$0xff]
    %v2319 = vld [vmem:[#allocation7 + $0xc68] sm:$0xff]
    %v2320 = vld [vmem:[#allocation7 + $0xc70] sm:$0xff]
    %v2321 = vld [vmem:[#allocation7 + $0xc78] sm:$0xff]
    %v2322 = vld [vmem:[#allocation7 + $0xc80] sm:$0xff]
    %v2323 = vld [vmem:[#allocation7 + $0xc88] sm:$0xff]
    %v2324 = vld [vmem:[#allocation7 + $0xc90] sm:$0xff]
    %v2325 = vld [vmem:[#allocation7 + $0xc98] sm:$0xff]
    %v2326 = vld [vmem:[#allocation7 + $0xca0] sm:$0xff]
    %v2327 = vld [vmem:[#allocation7 + $0xca8] sm:$0xff]
    %v2328 = vld [vmem:[#allocation7 + $0xcb0] sm:$0xff]
    %v2329 = vld [vmem:[#allocation7 + $0xcb8] sm:$0xff]
    %v2330 = vld [vmem:[#allocation7 + $0xcc0] sm:$0xff]
    %v2331 = vld [vmem:[#allocation7 + $0xcc8] sm:$0xff]
    %v2332 = vld [vmem:[#allocation7 + $0xcd0] sm:$0xff]
    %v2333 = vld [vmem:[#allocation7 + $0xcd8] sm:$0xff]
    %v2334 = vld [vmem:[#allocation7 + $0xce0] sm:$0xff]
    %v2335 = vld [vmem:[#allocation7 + $0xce8] sm:$0xff]
    %v2336 = vld [vmem:[#allocation7 + $0xcf0] sm:$0xff]
    %v2337 = vld [vmem:[#allocation7 + $0xcf8] sm:$0xff]
    %v2338 = vld [vmem:[#allocation7 + $0xd00] sm:$0xff]
    %v2339 = vld [vmem:[#allocation7 + $0xd08] sm:$0xff]
    %v2340 = vld [vmem:[#allocation7 + $0xd10] sm:$0xff]
    %v2341 = vld [vmem:[#allocation7 + $0xd18] sm:$0xff]
    %v2342 = vld [vmem:[#allocation7 + $0xd20] sm:$0xff]
    %v2343 = vld [vmem:[#allocation7 + $0xd28] sm:$0xff]
    %v2344 = vld [vmem:[#allocation7 + $0xd30] sm:$0xff]
    %v2345 = vld [vmem:[#allocation7 + $0xd38] sm:$0xff]
    %v2346 = vld [vmem:[#allocation7 + $0xd40] sm:$0xff]
    %v2347 = vld [vmem:[#allocation7 + $0xd48] sm:$0xff]
    %v2348 = vld [vmem:[#allocation7 + $0xd50] sm:$0xff]
    %v2349 = vld [vmem:[#allocation7 + $0xd58] sm:$0xff]
    %v2350 = vld [vmem:[#allocation7 + $0xd60] sm:$0xff]
    %v2351 = vld [vmem:[#allocation7 + $0xd68] sm:$0xff]
    %v2352 = vld [vmem:[#allocation7 + $0xd70] sm:$0xff]
    %v2353 = vld [vmem:[#allocation7 + $0xd78] sm:$0xff]
    %v2354 = vld [vmem:[#allocation7 + $0xd80] sm:$0xff]
    %v2355 = vld [vmem:[#allocation7 + $0xd88] sm:$0xff]
    %v2356 = vld [vmem:[#allocation7 + $0xd90] sm:$0xff]
    %v2357 = vld [vmem:[#allocation7 + $0xd98] sm:$0xff]
    %v2358 = vld [vmem:[#allocation7 + $0xda0] sm:$0xff]
    %v2359 = vld [vmem:[#allocation7 + $0xda8] sm:$0xff]
    %v2360 = vld [vmem:[#allocation7 + $0xdb0] sm:$0xff]
    %v2361 = vld [vmem:[#allocation7 + $0xdb8] sm:$0xff]
    %v2362 = vld [vmem:[#allocation7 + $0xdc0] sm:$0xff]
    %v2363 = vld [vmem:[#allocation7 + $0xdc8] sm:$0xff]
    %v2364 = vld [vmem:[#allocation7 + $0xdd0] sm:$0xff]
    %v2365 = vld [vmem:[#allocation7 + $0xdd8] sm:$0xff]
    %v2366 = vld [vmem:[#allocation7 + $0xde0] sm:$0xff]
    %v2367 = vld [vmem:[#allocation7 + $0xde8] sm:$0xff]
    %v2368 = vld [vmem:[#allocation7 + $0xdf0] sm:$0xff]
    %v2369 = vld [vmem:[#allocation7 + $0xdf8] sm:$0xff]
    %v2370 = vld [vmem:[#allocation7 + $0xe00] sm:$0xff]
    %v2371 = vld [vmem:[#allocation7 + $0xe08] sm:$0xff]
    %v2372 = vld [vmem:[#allocation7 + $0xe10] sm:$0xff]
    %v2373 = vld [vmem:[#allocation7 + $0xe18] sm:$0xff]
    %v2374 = vld [vmem:[#allocation7 + $0xe20] sm:$0xff]
    %v2375 = vld [vmem:[#allocation7 + $0xe28] sm:$0xff]
    %v2376 = vld [vmem:[#allocation7 + $0xe30] sm:$0xff]
    %v2377 = vld [vmem:[#allocation7 + $0xe38] sm:$0xff]
    %v2378 = vld [vmem:[#allocation7 + $0xe40] sm:$0xff]
    %v2379 = vld [vmem:[#allocation7 + $0xe48] sm:$0xff]
    %v2380 = vld [vmem:[#allocation7 + $0xe50] sm:$0xff]
    %v2381 = vld [vmem:[#allocation7 + $0xe58] sm:$0xff]
    %v2382 = vld [vmem:[#allocation7 + $0xe60] sm:$0xff]
    %v2383 = vld [vmem:[#allocation7 + $0xe68] sm:$0xff]
    %v2384 = vld [vmem:[#allocation7 + $0xe70] sm:$0xff]
    %v2385 = vld [vmem:[#allocation7 + $0xe78] sm:$0xff]
    %v2386 = vld [vmem:[#allocation7 + $0xe80] sm:$0xff]
    %v2387 = vld [vmem:[#allocation7 + $0xe88] sm:$0xff]
    %v2388 = vld [vmem:[#allocation7 + $0xe90] sm:$0xff]
    %v2389 = vld [vmem:[#allocation7 + $0xe98] sm:$0xff]
    %v2390 = vld [vmem:[#allocation7 + $0xea0] sm:$0xff]
    %v2391 = vld [vmem:[#allocation7 + $0xea8] sm:$0xff]
    %v2392 = vld [vmem:[#allocation7 + $0xeb0] sm:$0xff]
    %v2393 = vld [vmem:[#allocation7 + $0xeb8] sm:$0xff]
    %v2394 = vld [vmem:[#allocation7 + $0xec0] sm:$0xff]
    %v2395 = vld [vmem:[#allocation7 + $0xec8] sm:$0xff]
    %v2396 = vld [vmem:[#allocation7 + $0xed0] sm:$0xff]
    %v2397 = vld [vmem:[#allocation7 + $0xed8] sm:$0xff]
    %v2398 = vld [vmem:[#allocation7 + $0xee0] sm:$0xff]
    %v2399 = vld [vmem:[#allocation7 + $0xee8] sm:$0xff]
    %v2400 = vld [vmem:[#allocation7 + $0xef0] sm:$0xff]
    %v2401 = vld [vmem:[#allocation7 + $0xef8] sm:$0xff]
    %v2402 = vld [vmem:[#allocation7 + $0xf00] sm:$0xff]
    %v2403 = vld [vmem:[#allocation7 + $0xf08] sm:$0xff]
    %v2404 = vld [vmem:[#allocation7 + $0xf10] sm:$0xff]
    %v2405 = vld [vmem:[#allocation7 + $0xf18] sm:$0xff]
    %v2406 = vld [vmem:[#allocation7 + $0xf20] sm:$0xff]
    %v2407 = vld [vmem:[#allocation7 + $0xf28] sm:$0xff]
    %v2408 = vld [vmem:[#allocation7 + $0xf30] sm:$0xff]
    %v2409 = vld [vmem:[#allocation7 + $0xf38] sm:$0xff]
    %v2410 = vld [vmem:[#allocation7 + $0xf40] sm:$0xff]
    %v2411 = vld [vmem:[#allocation7 + $0xf48] sm:$0xff]
    %v2412 = vld [vmem:[#allocation7 + $0xf50] sm:$0xff]
    %v2413 = vld [vmem:[#allocation7 + $0xf58] sm:$0xff]
    %v2414 = vld [vmem:[#allocation7 + $0xf60] sm:$0xff]
    %v2415 = vld [vmem:[#allocation7 + $0xf68] sm:$0xff]
    %v2416 = vld [vmem:[#allocation7 + $0xf70] sm:$0xff]
    %v2417 = vld [vmem:[#allocation7 + $0xf78] sm:$0xff]
    %v2418 = vld [vmem:[#allocation7 + $0xf80] sm:$0xff]
    %v2419 = vld [vmem:[#allocation7 + $0xf88] sm:$0xff]
    %v2420 = vld [vmem:[#allocation7 + $0xf90] sm:$0xff]
    %v2421 = vld [vmem:[#allocation7 + $0xf98] sm:$0xff]
    %v2422 = vld [vmem:[#allocation7 + $0xfa0] sm:$0xff]
    %v2423 = vld [vmem:[#allocation7 + $0xfa8] sm:$0xff]
    %v2424 = vld [vmem:[#allocation7 + $0xfb0] sm:$0xff]
    %v2425 = vld [vmem:[#allocation7 + $0xfb8] sm:$0xff]
    %v2426 = vld [vmem:[#allocation7 + $0xfc0] sm:$0xff]
    %v2427 = vld [vmem:[#allocation7 + $0xfc8] sm:$0xff]
    %v2428 = vld [vmem:[#allocation7 + $0xfd0] sm:$0xff]
    %v2429 = vld [vmem:[#allocation7 + $0xfd8] sm:$0xff]
    %v2430 = vld [vmem:[#allocation7 + $0xfe0] sm:$0xff]
    %v2431 = vld [vmem:[#allocation7 + $0xfe8] sm:$0xff]
    %v2432 = vld [vmem:[#allocation7 + $0xff0] sm:$0xff]
    %v2433 = vld [vmem:[#allocation7 + $0xff8] sm:$0xff]
    %v2946 = vunpack.c.l.b16 %v1922
    %v2947 = vunpack.c.h.b16 %v1922
    %v2948 = vunpack.c.l.b16 %v1923
    %v2949 = vunpack.c.h.b16 %v1923
    %v2950 = vunpack.c.l.b16 %v1924
    %v2951 = vunpack.c.h.b16 %v1924
    %v2952 = vunpack.c.l.b16 %v1925
    %v2953 = vunpack.c.h.b16 %v1925
    %v2954 = vunpack.c.l.b16 %v1926
    %v2955 = vunpack.c.h.b16 %v1926
    %v2956 = vunpack.c.l.b16 %v1927
    %v2957 = vunpack.c.h.b16 %v1927
    %v2958 = vunpack.c.l.b16 %v1928
    %v2959 = vunpack.c.h.b16 %v1928
    %v2960 = vunpack.c.l.b16 %v1929
    %v2961 = vunpack.c.h.b16 %v1929
    %v2962 = vunpack.c.l.b16 %v1930
    %v2963 = vunpack.c.h.b16 %v1930
    %v2964 = vunpack.c.l.b16 %v1931
    %v2965 = vunpack.c.h.b16 %v1931
    %v2966 = vunpack.c.l.b16 %v1932
    %v2967 = vunpack.c.h.b16 %v1932
    %v2968 = vunpack.c.l.b16 %v1933
    %v2969 = vunpack.c.h.b16 %v1933
    %v2970 = vunpack.c.l.b16 %v1934
    %v2971 = vunpack.c.h.b16 %v1934
    %v2972 = vunpack.c.l.b16 %v1935
    %v2973 = vunpack.c.h.b16 %v1935
    %v2974 = vunpack.c.l.b16 %v1936
    %v2975 = vunpack.c.h.b16 %v1936
    %v2976 = vunpack.c.l.b16 %v1937
    %v2977 = vunpack.c.h.b16 %v1937
    %v2978 = vunpack.c.l.b16 %v1938
    %v2979 = vunpack.c.h.b16 %v1938
    %v2980 = vunpack.c.l.b16 %v1939
    %v2981 = vunpack.c.h.b16 %v1939
    %v2982 = vunpack.c.l.b16 %v1940
    %v2983 = vunpack.c.h.b16 %v1940
    %v2984 = vunpack.c.l.b16 %v1941
    %v2985 = vunpack.c.h.b16 %v1941
    %v2986 = vunpack.c.l.b16 %v1942
    %v2987 = vunpack.c.h.b16 %v1942
    %v2988 = vunpack.c.l.b16 %v1943
    %v2989 = vunpack.c.h.b16 %v1943
    %v2990 = vunpack.c.l.b16 %v1944
    %v2991 = vunpack.c.h.b16 %v1944
    %v2992 = vunpack.c.l.b16 %v1945
    %v2993 = vunpack.c.h.b16 %v1945
    %v2994 = vunpack.c.l.b16 %v1946
    %v2995 = vunpack.c.h.b16 %v1946
    %v2996 = vunpack.c.l.b16 %v1947
    %v2997 = vunpack.c.h.b16 %v1947
    %v2998 = vunpack.c.l.b16 %v1948
    %v2999 = vunpack.c.h.b16 %v1948
    %v3000 = vunpack.c.l.b16 %v1949
    %v3001 = vunpack.c.h.b16 %v1949
    %v3002 = vunpack.c.l.b16 %v1950
    %v3003 = vunpack.c.h.b16 %v1950
    %v3004 = vunpack.c.l.b16 %v1951
    %v3005 = vunpack.c.h.b16 %v1951
    %v3006 = vunpack.c.l.b16 %v1952
    %v3007 = vunpack.c.h.b16 %v1952
    %v3008 = vunpack.c.l.b16 %v1953
    %v3009 = vunpack.c.h.b16 %v1953
    %v3010 = vunpack.c.l.b16 %v1954
    %v3011 = vunpack.c.h.b16 %v1954
    %v3012 = vunpack.c.l.b16 %v1955
    %v3013 = vunpack.c.h.b16 %v1955
    %v3014 = vunpack.c.l.b16 %v1956
    %v3015 = vunpack.c.h.b16 %v1956
    %v3016 = vunpack.c.l.b16 %v1957
    %v3017 = vunpack.c.h.b16 %v1957
    %v3018 = vunpack.c.l.b16 %v1958
    %v3019 = vunpack.c.h.b16 %v1958
    %v3020 = vunpack.c.l.b16 %v1959
    %v3021 = vunpack.c.h.b16 %v1959
    %v3022 = vunpack.c.l.b16 %v1960
    %v3023 = vunpack.c.h.b16 %v1960
    %v3024 = vunpack.c.l.b16 %v1961
    %v3025 = vunpack.c.h.b16 %v1961
    %v3026 = vunpack.c.l.b16 %v1962
    %v3027 = vunpack.c.h.b16 %v1962
    %v3028 = vunpack.c.l.b16 %v1963
    %v3029 = vunpack.c.h.b16 %v1963
    %v3030 = vunpack.c.l.b16 %v1964
    %v3031 = vunpack.c.h.b16 %v1964
    %v3032 = vunpack.c.l.b16 %v1965
    %v3033 = vunpack.c.h.b16 %v1965
    %v3034 = vunpack.c.l.b16 %v1966
    %v3035 = vunpack.c.h.b16 %v1966
    %v3036 = vunpack.c.l.b16 %v1967
    %v3037 = vunpack.c.h.b16 %v1967
    %v3038 = vunpack.c.l.b16 %v1968
    %v3039 = vunpack.c.h.b16 %v1968
    %v3040 = vunpack.c.l.b16 %v1969
    %v3041 = vunpack.c.h.b16 %v1969
    %v3042 = vunpack.c.l.b16 %v1970
    %v3043 = vunpack.c.h.b16 %v1970
    %v3044 = vunpack.c.l.b16 %v1971
    %v3045 = vunpack.c.h.b16 %v1971
    %v3046 = vunpack.c.l.b16 %v1972
    %v3047 = vunpack.c.h.b16 %v1972
    %v3048 = vunpack.c.l.b16 %v1973
    %v3049 = vunpack.c.h.b16 %v1973
    %v3050 = vunpack.c.l.b16 %v1974
    %v3051 = vunpack.c.h.b16 %v1974
    %v3052 = vunpack.c.l.b16 %v1975
    %v3053 = vunpack.c.h.b16 %v1975
    %v3054 = vunpack.c.l.b16 %v1976
    %v3055 = vunpack.c.h.b16 %v1976
    %v3056 = vunpack.c.l.b16 %v1977
    %v3057 = vunpack.c.h.b16 %v1977
    %v3058 = vunpack.c.l.b16 %v1978
    %v3059 = vunpack.c.h.b16 %v1978
    %v3060 = vunpack.c.l.b16 %v1979
    %v3061 = vunpack.c.h.b16 %v1979
    %v3062 = vunpack.c.l.b16 %v1980
    %v3063 = vunpack.c.h.b16 %v1980
    %v3064 = vunpack.c.l.b16 %v1981
    %v3065 = vunpack.c.h.b16 %v1981
    %v3066 = vunpack.c.l.b16 %v1982
    %v3067 = vunpack.c.h.b16 %v1982
    %v3068 = vunpack.c.l.b16 %v1983
    %v3069 = vunpack.c.h.b16 %v1983
    %v3070 = vunpack.c.l.b16 %v1984
    %v3071 = vunpack.c.h.b16 %v1984
    %v3072 = vunpack.c.l.b16 %v1985
    %v3073 = vunpack.c.h.b16 %v1985
    %v3074 = vunpack.c.l.b16 %v1986
    %v3075 = vunpack.c.h.b16 %v1986
    %v3076 = vunpack.c.l.b16 %v1987
    %v3077 = vunpack.c.h.b16 %v1987
    %v3078 = vunpack.c.l.b16 %v1988
    %v3079 = vunpack.c.h.b16 %v1988
    %v3080 = vunpack.c.l.b16 %v1989
    %v3081 = vunpack.c.h.b16 %v1989
    %v3082 = vunpack.c.l.b16 %v1990
    %v3083 = vunpack.c.h.b16 %v1990
    %v3084 = vunpack.c.l.b16 %v1991
    %v3085 = vunpack.c.h.b16 %v1991
    %v3086 = vunpack.c.l.b16 %v1992
    %v3087 = vunpack.c.h.b16 %v1992
    %v3088 = vunpack.c.l.b16 %v1993
    %v3089 = vunpack.c.h.b16 %v1993
    %v3090 = vunpack.c.l.b16 %v1994
    %v3091 = vunpack.c.h.b16 %v1994
    %v3092 = vunpack.c.l.b16 %v1995
    %v3093 = vunpack.c.h.b16 %v1995
    %v3094 = vunpack.c.l.b16 %v1996
    %v3095 = vunpack.c.h.b16 %v1996
    %v3096 = vunpack.c.l.b16 %v1997
    %v3097 = vunpack.c.h.b16 %v1997
    %v3098 = vunpack.c.l.b16 %v1998
    %v3099 = vunpack.c.h.b16 %v1998
    %v3100 = vunpack.c.l.b16 %v1999
    %v3101 = vunpack.c.h.b16 %v1999
    %v3102 = vunpack.c.l.b16 %v2000
    %v3103 = vunpack.c.h.b16 %v2000
    %v3104 = vunpack.c.l.b16 %v2001
    %v3105 = vunpack.c.h.b16 %v2001
    %v3106 = vunpack.c.l.b16 %v2002
    %v3107 = vunpack.c.h.b16 %v2002
    %v3108 = vunpack.c.l.b16 %v2003
    %v3109 = vunpack.c.h.b16 %v2003
    %v3110 = vunpack.c.l.b16 %v2004
    %v3111 = vunpack.c.h.b16 %v2004
    %v3112 = vunpack.c.l.b16 %v2005
    %v3113 = vunpack.c.h.b16 %v2005
    %v3114 = vunpack.c.l.b16 %v2006
    %v3115 = vunpack.c.h.b16 %v2006
    %v3116 = vunpack.c.l.b16 %v2007
    %v3117 = vunpack.c.h.b16 %v2007
    %v3118 = vunpack.c.l.b16 %v2008
    %v3119 = vunpack.c.h.b16 %v2008
    %v3120 = vunpack.c.l.b16 %v2009
    %v3121 = vunpack.c.h.b16 %v2009
    %v3122 = vunpack.c.l.b16 %v2010
    %v3123 = vunpack.c.h.b16 %v2010
    %v3124 = vunpack.c.l.b16 %v2011
    %v3125 = vunpack.c.h.b16 %v2011
    %v3126 = vunpack.c.l.b16 %v2012
    %v3127 = vunpack.c.h.b16 %v2012
    %v3128 = vunpack.c.l.b16 %v2013
    %v3129 = vunpack.c.h.b16 %v2013
    %v3130 = vunpack.c.l.b16 %v2014
    %v3131 = vunpack.c.h.b16 %v2014
    %v3132 = vunpack.c.l.b16 %v2015
    %v3133 = vunpack.c.h.b16 %v2015
    %v3134 = vunpack.c.l.b16 %v2016
    %v3135 = vunpack.c.h.b16 %v2016
    %v3136 = vunpack.c.l.b16 %v2017
    %v3137 = vunpack.c.h.b16 %v2017
    %v3138 = vunpack.c.l.b16 %v2018
    %v3139 = vunpack.c.h.b16 %v2018
    %v3140 = vunpack.c.l.b16 %v2019
    %v3141 = vunpack.c.h.b16 %v2019
    %v3142 = vunpack.c.l.b16 %v2020
    %v3143 = vunpack.c.h.b16 %v2020
    %v3144 = vunpack.c.l.b16 %v2021
    %v3145 = vunpack.c.h.b16 %v2021
    %v3146 = vunpack.c.l.b16 %v2022
    %v3147 = vunpack.c.h.b16 %v2022
    %v3148 = vunpack.c.l.b16 %v2023
    %v3149 = vunpack.c.h.b16 %v2023
    %v3150 = vunpack.c.l.b16 %v2024
    %v3151 = vunpack.c.h.b16 %v2024
    %v3152 = vunpack.c.l.b16 %v2025
    %v3153 = vunpack.c.h.b16 %v2025
    %v3154 = vunpack.c.l.b16 %v2026
    %v3155 = vunpack.c.h.b16 %v2026
    %v3156 = vunpack.c.l.b16 %v2027
    %v3157 = vunpack.c.h.b16 %v2027
    %v3158 = vunpack.c.l.b16 %v2028
    %v3159 = vunpack.c.h.b16 %v2028
    %v3160 = vunpack.c.l.b16 %v2029
    %v3161 = vunpack.c.h.b16 %v2029
    %v3162 = vunpack.c.l.b16 %v2030
    %v3163 = vunpack.c.h.b16 %v2030
    %v3164 = vunpack.c.l.b16 %v2031
    %v3165 = vunpack.c.h.b16 %v2031
    %v3166 = vunpack.c.l.b16 %v2032
    %v3167 = vunpack.c.h.b16 %v2032
    %v3168 = vunpack.c.l.b16 %v2033
    %v3169 = vunpack.c.h.b16 %v2033
    %v3170 = vunpack.c.l.b16 %v2034
    %v3171 = vunpack.c.h.b16 %v2034
    %v3172 = vunpack.c.l.b16 %v2035
    %v3173 = vunpack.c.h.b16 %v2035
    %v3174 = vunpack.c.l.b16 %v2036
    %v3175 = vunpack.c.h.b16 %v2036
    %v3176 = vunpack.c.l.b16 %v2037
    %v3177 = vunpack.c.h.b16 %v2037
    %v3178 = vunpack.c.l.b16 %v2038
    %v3179 = vunpack.c.h.b16 %v2038
    %v3180 = vunpack.c.l.b16 %v2039
    %v3181 = vunpack.c.h.b16 %v2039
    %v3182 = vunpack.c.l.b16 %v2040
    %v3183 = vunpack.c.h.b16 %v2040
    %v3184 = vunpack.c.l.b16 %v2041
    %v3185 = vunpack.c.h.b16 %v2041
    %v3186 = vunpack.c.l.b16 %v2042
    %v3187 = vunpack.c.h.b16 %v2042
    %v3188 = vunpack.c.l.b16 %v2043
    %v3189 = vunpack.c.h.b16 %v2043
    %v3190 = vunpack.c.l.b16 %v2044
    %v3191 = vunpack.c.h.b16 %v2044
    %v3192 = vunpack.c.l.b16 %v2045
    %v3193 = vunpack.c.h.b16 %v2045
    %v3194 = vunpack.c.l.b16 %v2046
    %v3195 = vunpack.c.h.b16 %v2046
    %v3196 = vunpack.c.l.b16 %v2047
    %v3197 = vunpack.c.h.b16 %v2047
    %v3198 = vunpack.c.l.b16 %v2048
    %v3199 = vunpack.c.h.b16 %v2048
    %v3200 = vunpack.c.l.b16 %v2049
    %v3201 = vunpack.c.h.b16 %v2049
    %v3202 = vunpack.c.l.b16 %v2050
    %v3203 = vunpack.c.h.b16 %v2050
    %v3204 = vunpack.c.l.b16 %v2051
    %v3205 = vunpack.c.h.b16 %v2051
    %v3206 = vunpack.c.l.b16 %v2052
    %v3207 = vunpack.c.h.b16 %v2052
    %v3208 = vunpack.c.l.b16 %v2053
    %v3209 = vunpack.c.h.b16 %v2053
    %v3210 = vunpack.c.l.b16 %v2054
    %v3211 = vunpack.c.h.b16 %v2054
    %v3212 = vunpack.c.l.b16 %v2055
    %v3213 = vunpack.c.h.b16 %v2055
    %v3214 = vunpack.c.l.b16 %v2056
    %v3215 = vunpack.c.h.b16 %v2056
    %v3216 = vunpack.c.l.b16 %v2057
    %v3217 = vunpack.c.h.b16 %v2057
    %v3218 = vunpack.c.l.b16 %v2058
    %v3219 = vunpack.c.h.b16 %v2058
    %v3220 = vunpack.c.l.b16 %v2059
    %v3221 = vunpack.c.h.b16 %v2059
    %v3222 = vunpack.c.l.b16 %v2060
    %v3223 = vunpack.c.h.b16 %v2060
    %v3224 = vunpack.c.l.b16 %v2061
    %v3225 = vunpack.c.h.b16 %v2061
    %v3226 = vunpack.c.l.b16 %v2062
    %v3227 = vunpack.c.h.b16 %v2062
    %v3228 = vunpack.c.l.b16 %v2063
    %v3229 = vunpack.c.h.b16 %v2063
    %v3230 = vunpack.c.l.b16 %v2064
    %v3231 = vunpack.c.h.b16 %v2064
    %v3232 = vunpack.c.l.b16 %v2065
    %v3233 = vunpack.c.h.b16 %v2065
    %v3234 = vunpack.c.l.b16 %v2066
    %v3235 = vunpack.c.h.b16 %v2066
    %v3236 = vunpack.c.l.b16 %v2067
    %v3237 = vunpack.c.h.b16 %v2067
    %v3238 = vunpack.c.l.b16 %v2068
    %v3239 = vunpack.c.h.b16 %v2068
    %v3240 = vunpack.c.l.b16 %v2069
    %v3241 = vunpack.c.h.b16 %v2069
    %v3242 = vunpack.c.l.b16 %v2070
    %v3243 = vunpack.c.h.b16 %v2070
    %v3244 = vunpack.c.l.b16 %v2071
    %v3245 = vunpack.c.h.b16 %v2071
    %v3246 = vunpack.c.l.b16 %v2072
    %v3247 = vunpack.c.h.b16 %v2072
    %v3248 = vunpack.c.l.b16 %v2073
    %v3249 = vunpack.c.h.b16 %v2073
    %v3250 = vunpack.c.l.b16 %v2074
    %v3251 = vunpack.c.h.b16 %v2074
    %v3252 = vunpack.c.l.b16 %v2075
    %v3253 = vunpack.c.h.b16 %v2075
    %v3254 = vunpack.c.l.b16 %v2076
    %v3255 = vunpack.c.h.b16 %v2076
    %v3256 = vunpack.c.l.b16 %v2077
    %v3257 = vunpack.c.h.b16 %v2077
    %v3258 = vunpack.c.l.b16 %v2078
    %v3259 = vunpack.c.h.b16 %v2078
    %v3260 = vunpack.c.l.b16 %v2079
    %v3261 = vunpack.c.h.b16 %v2079
    %v3262 = vunpack.c.l.b16 %v2080
    %v3263 = vunpack.c.h.b16 %v2080
    %v3264 = vunpack.c.l.b16 %v2081
    %v3265 = vunpack.c.h.b16 %v2081
    %v3266 = vunpack.c.l.b16 %v2082
    %v3267 = vunpack.c.h.b16 %v2082
    %v3268 = vunpack.c.l.b16 %v2083
    %v3269 = vunpack.c.h.b16 %v2083
    %v3270 = vunpack.c.l.b16 %v2084
    %v3271 = vunpack.c.h.b16 %v2084
    %v3272 = vunpack.c.l.b16 %v2085
    %v3273 = vunpack.c.h.b16 %v2085
    %v3274 = vunpack.c.l.b16 %v2086
    %v3275 = vunpack.c.h.b16 %v2086
    %v3276 = vunpack.c.l.b16 %v2087
    %v3277 = vunpack.c.h.b16 %v2087
    %v3278 = vunpack.c.l.b16 %v2088
    %v3279 = vunpack.c.h.b16 %v2088
    %v3280 = vunpack.c.l.b16 %v2089
    %v3281 = vunpack.c.h.b16 %v2089
    %v3282 = vunpack.c.l.b16 %v2090
    %v3283 = vunpack.c.h.b16 %v2090
    %v3284 = vunpack.c.l.b16 %v2091
    %v3285 = vunpack.c.h.b16 %v2091
    %v3286 = vunpack.c.l.b16 %v2092
    %v3287 = vunpack.c.h.b16 %v2092
    %v3288 = vunpack.c.l.b16 %v2093
    %v3289 = vunpack.c.h.b16 %v2093
    %v3290 = vunpack.c.l.b16 %v2094
    %v3291 = vunpack.c.h.b16 %v2094
    %v3292 = vunpack.c.l.b16 %v2095
    %v3293 = vunpack.c.h.b16 %v2095
    %v3294 = vunpack.c.l.b16 %v2096
    %v3295 = vunpack.c.h.b16 %v2096
    %v3296 = vunpack.c.l.b16 %v2097
    %v3297 = vunpack.c.h.b16 %v2097
    %v3298 = vunpack.c.l.b16 %v2098
    %v3299 = vunpack.c.h.b16 %v2098
    %v3300 = vunpack.c.l.b16 %v2099
    %v3301 = vunpack.c.h.b16 %v2099
    %v3302 = vunpack.c.l.b16 %v2100
    %v3303 = vunpack.c.h.b16 %v2100
    %v3304 = vunpack.c.l.b16 %v2101
    %v3305 = vunpack.c.h.b16 %v2101
    %v3306 = vunpack.c.l.b16 %v2102
    %v3307 = vunpack.c.h.b16 %v2102
    %v3308 = vunpack.c.l.b16 %v2103
    %v3309 = vunpack.c.h.b16 %v2103
    %v3310 = vunpack.c.l.b16 %v2104
    %v3311 = vunpack.c.h.b16 %v2104
    %v3312 = vunpack.c.l.b16 %v2105
    %v3313 = vunpack.c.h.b16 %v2105
    %v3314 = vunpack.c.l.b16 %v2106
    %v3315 = vunpack.c.h.b16 %v2106
    %v3316 = vunpack.c.l.b16 %v2107
    %v3317 = vunpack.c.h.b16 %v2107
    %v3318 = vunpack.c.l.b16 %v2108
    %v3319 = vunpack.c.h.b16 %v2108
    %v3320 = vunpack.c.l.b16 %v2109
    %v3321 = vunpack.c.h.b16 %v2109
    %v3322 = vunpack.c.l.b16 %v2110
    %v3323 = vunpack.c.h.b16 %v2110
    %v3324 = vunpack.c.l.b16 %v2111
    %v3325 = vunpack.c.h.b16 %v2111
    %v3326 = vunpack.c.l.b16 %v2112
    %v3327 = vunpack.c.h.b16 %v2112
    %v3328 = vunpack.c.l.b16 %v2113
    %v3329 = vunpack.c.h.b16 %v2113
    %v3330 = vunpack.c.l.b16 %v2114
    %v3331 = vunpack.c.h.b16 %v2114
    %v3332 = vunpack.c.l.b16 %v2115
    %v3333 = vunpack.c.h.b16 %v2115
    %v3334 = vunpack.c.l.b16 %v2116
    %v3335 = vunpack.c.h.b16 %v2116
    %v3336 = vunpack.c.l.b16 %v2117
    %v3337 = vunpack.c.h.b16 %v2117
    %v3338 = vunpack.c.l.b16 %v2118
    %v3339 = vunpack.c.h.b16 %v2118
    %v3340 = vunpack.c.l.b16 %v2119
    %v3341 = vunpack.c.h.b16 %v2119
    %v3342 = vunpack.c.l.b16 %v2120
    %v3343 = vunpack.c.h.b16 %v2120
    %v3344 = vunpack.c.l.b16 %v2121
    %v3345 = vunpack.c.h.b16 %v2121
    %v3346 = vunpack.c.l.b16 %v2122
    %v3347 = vunpack.c.h.b16 %v2122
    %v3348 = vunpack.c.l.b16 %v2123
    %v3349 = vunpack.c.h.b16 %v2123
    %v3350 = vunpack.c.l.b16 %v2124
    %v3351 = vunpack.c.h.b16 %v2124
    %v3352 = vunpack.c.l.b16 %v2125
    %v3353 = vunpack.c.h.b16 %v2125
    %v3354 = vunpack.c.l.b16 %v2126
    %v3355 = vunpack.c.h.b16 %v2126
    %v3356 = vunpack.c.l.b16 %v2127
    %v3357 = vunpack.c.h.b16 %v2127
    %v3358 = vunpack.c.l.b16 %v2128
    %v3359 = vunpack.c.h.b16 %v2128
    %v3360 = vunpack.c.l.b16 %v2129
    %v3361 = vunpack.c.h.b16 %v2129
    %v3362 = vunpack.c.l.b16 %v2130
    %v3363 = vunpack.c.h.b16 %v2130
    %v3364 = vunpack.c.l.b16 %v2131
    %v3365 = vunpack.c.h.b16 %v2131
    %v3366 = vunpack.c.l.b16 %v2132
    %v3367 = vunpack.c.h.b16 %v2132
    %v3368 = vunpack.c.l.b16 %v2133
    %v3369 = vunpack.c.h.b16 %v2133
    %v3370 = vunpack.c.l.b16 %v2134
    %v3371 = vunpack.c.h.b16 %v2134
    %v3372 = vunpack.c.l.b16 %v2135
    %v3373 = vunpack.c.h.b16 %v2135
    %v3374 = vunpack.c.l.b16 %v2136
    %v3375 = vunpack.c.h.b16 %v2136
    %v3376 = vunpack.c.l.b16 %v2137
    %v3377 = vunpack.c.h.b16 %v2137
    %v3378 = vunpack.c.l.b16 %v2138
    %v3379 = vunpack.c.h.b16 %v2138
    %v3380 = vunpack.c.l.b16 %v2139
    %v3381 = vunpack.c.h.b16 %v2139
    %v3382 = vunpack.c.l.b16 %v2140
    %v3383 = vunpack.c.h.b16 %v2140
    %v3384 = vunpack.c.l.b16 %v2141
    %v3385 = vunpack.c.h.b16 %v2141
    %v3386 = vunpack.c.l.b16 %v2142
    %v3387 = vunpack.c.h.b16 %v2142
    %v3388 = vunpack.c.l.b16 %v2143
    %v3389 = vunpack.c.h.b16 %v2143
    %v3390 = vunpack.c.l.b16 %v2144
    %v3391 = vunpack.c.h.b16 %v2144
    %v3392 = vunpack.c.l.b16 %v2145
    %v3393 = vunpack.c.h.b16 %v2145
    %v3394 = vunpack.c.l.b16 %v2146
    %v3395 = vunpack.c.h.b16 %v2146
    %v3396 = vunpack.c.l.b16 %v2147
    %v3397 = vunpack.c.h.b16 %v2147
    %v3398 = vunpack.c.l.b16 %v2148
    %v3399 = vunpack.c.h.b16 %v2148
    %v3400 = vunpack.c.l.b16 %v2149
    %v3401 = vunpack.c.h.b16 %v2149
    %v3402 = vunpack.c.l.b16 %v2150
    %v3403 = vunpack.c.h.b16 %v2150
    %v3404 = vunpack.c.l.b16 %v2151
    %v3405 = vunpack.c.h.b16 %v2151
    %v3406 = vunpack.c.l.b16 %v2152
    %v3407 = vunpack.c.h.b16 %v2152
    %v3408 = vunpack.c.l.b16 %v2153
    %v3409 = vunpack.c.h.b16 %v2153
    %v3410 = vunpack.c.l.b16 %v2154
    %v3411 = vunpack.c.h.b16 %v2154
    %v3412 = vunpack.c.l.b16 %v2155
    %v3413 = vunpack.c.h.b16 %v2155
    %v3414 = vunpack.c.l.b16 %v2156
    %v3415 = vunpack.c.h.b16 %v2156
    %v3416 = vunpack.c.l.b16 %v2157
    %v3417 = vunpack.c.h.b16 %v2157
    %v3418 = vunpack.c.l.b16 %v2158
    %v3419 = vunpack.c.h.b16 %v2158
    %v3420 = vunpack.c.l.b16 %v2159
    %v3421 = vunpack.c.h.b16 %v2159
    %v3422 = vunpack.c.l.b16 %v2160
    %v3423 = vunpack.c.h.b16 %v2160
    %v3424 = vunpack.c.l.b16 %v2161
    %v3425 = vunpack.c.h.b16 %v2161
    %v3426 = vunpack.c.l.b16 %v2162
    %v3427 = vunpack.c.h.b16 %v2162
    %v3428 = vunpack.c.l.b16 %v2163
    %v3429 = vunpack.c.h.b16 %v2163
    %v3430 = vunpack.c.l.b16 %v2164
    %v3431 = vunpack.c.h.b16 %v2164
    %v3432 = vunpack.c.l.b16 %v2165
    %v3433 = vunpack.c.h.b16 %v2165
    %v3434 = vunpack.c.l.b16 %v2166
    %v3435 = vunpack.c.h.b16 %v2166
    %v3436 = vunpack.c.l.b16 %v2167
    %v3437 = vunpack.c.h.b16 %v2167
    %v3438 = vunpack.c.l.b16 %v2168
    %v3439 = vunpack.c.h.b16 %v2168
    %v3440 = vunpack.c.l.b16 %v2169
    %v3441 = vunpack.c.h.b16 %v2169
    %v3442 = vunpack.c.l.b16 %v2170
    %v3443 = vunpack.c.h.b16 %v2170
    %v3444 = vunpack.c.l.b16 %v2171
    %v3445 = vunpack.c.h.b16 %v2171
    %v3446 = vunpack.c.l.b16 %v2172
    %v3447 = vunpack.c.h.b16 %v2172
    %v3448 = vunpack.c.l.b16 %v2173
    %v3449 = vunpack.c.h.b16 %v2173
    %v3450 = vunpack.c.l.b16 %v2174
    %v3451 = vunpack.c.h.b16 %v2174
    %v3452 = vunpack.c.l.b16 %v2175
    %v3453 = vunpack.c.h.b16 %v2175
    %v3454 = vunpack.c.l.b16 %v2176
    %v3455 = vunpack.c.h.b16 %v2176
    %v3456 = vunpack.c.l.b16 %v2177
    %v3457 = vunpack.c.h.b16 %v2177
    %v3458 = vunpack.c.l.b16 %v2178
    %v3459 = vunpack.c.h.b16 %v2178
    %v3460 = vunpack.c.l.b16 %v2179
    %v3461 = vunpack.c.h.b16 %v2179
    %v3462 = vunpack.c.l.b16 %v2180
    %v3463 = vunpack.c.h.b16 %v2180
    %v3464 = vunpack.c.l.b16 %v2181
    %v3465 = vunpack.c.h.b16 %v2181
    %v3466 = vunpack.c.l.b16 %v2182
    %v3467 = vunpack.c.h.b16 %v2182
    %v3468 = vunpack.c.l.b16 %v2183
    %v3469 = vunpack.c.h.b16 %v2183
    %v3470 = vunpack.c.l.b16 %v2184
    %v3471 = vunpack.c.h.b16 %v2184
    %v3472 = vunpack.c.l.b16 %v2185
    %v3473 = vunpack.c.h.b16 %v2185
    %v3474 = vunpack.c.l.b16 %v2186
    %v3475 = vunpack.c.h.b16 %v2186
    %v3476 = vunpack.c.l.b16 %v2187
    %v3477 = vunpack.c.h.b16 %v2187
    %v3478 = vunpack.c.l.b16 %v2188
    %v3479 = vunpack.c.h.b16 %v2188
    %v3480 = vunpack.c.l.b16 %v2189
    %v3481 = vunpack.c.h.b16 %v2189
    %v3482 = vunpack.c.l.b16 %v2190
    %v3483 = vunpack.c.h.b16 %v2190
    %v3484 = vunpack.c.l.b16 %v2191
    %v3485 = vunpack.c.h.b16 %v2191
    %v3486 = vunpack.c.l.b16 %v2192
    %v3487 = vunpack.c.h.b16 %v2192
    %v3488 = vunpack.c.l.b16 %v2193
    %v3489 = vunpack.c.h.b16 %v2193
    %v3490 = vunpack.c.l.b16 %v2194
    %v3491 = vunpack.c.h.b16 %v2194
    %v3492 = vunpack.c.l.b16 %v2195
    %v3493 = vunpack.c.h.b16 %v2195
    %v3494 = vunpack.c.l.b16 %v2196
    %v3495 = vunpack.c.h.b16 %v2196
    %v3496 = vunpack.c.l.b16 %v2197
    %v3497 = vunpack.c.h.b16 %v2197
    %v3498 = vunpack.c.l.b16 %v2198
    %v3499 = vunpack.c.h.b16 %v2198
    %v3500 = vunpack.c.l.b16 %v2199
    %v3501 = vunpack.c.h.b16 %v2199
    %v3502 = vunpack.c.l.b16 %v2200
    %v3503 = vunpack.c.h.b16 %v2200
    %v3504 = vunpack.c.l.b16 %v2201
    %v3505 = vunpack.c.h.b16 %v2201
    %v3506 = vunpack.c.l.b16 %v2202
    %v3507 = vunpack.c.h.b16 %v2202
    %v3508 = vunpack.c.l.b16 %v2203
    %v3509 = vunpack.c.h.b16 %v2203
    %v3510 = vunpack.c.l.b16 %v2204
    %v3511 = vunpack.c.h.b16 %v2204
    %v3512 = vunpack.c.l.b16 %v2205
    %v3513 = vunpack.c.h.b16 %v2205
    %v3514 = vunpack.c.l.b16 %v2206
    %v3515 = vunpack.c.h.b16 %v2206
    %v3516 = vunpack.c.l.b16 %v2207
    %v3517 = vunpack.c.h.b16 %v2207
    %v3518 = vunpack.c.l.b16 %v2208
    %v3519 = vunpack.c.h.b16 %v2208
    %v3520 = vunpack.c.l.b16 %v2209
    %v3521 = vunpack.c.h.b16 %v2209
    %v3522 = vunpack.c.l.b16 %v2210
    %v3523 = vunpack.c.h.b16 %v2210
    %v3524 = vunpack.c.l.b16 %v2211
    %v3525 = vunpack.c.h.b16 %v2211
    %v3526 = vunpack.c.l.b16 %v2212
    %v3527 = vunpack.c.h.b16 %v2212
    %v3528 = vunpack.c.l.b16 %v2213
    %v3529 = vunpack.c.h.b16 %v2213
    %v3530 = vunpack.c.l.b16 %v2214
    %v3531 = vunpack.c.h.b16 %v2214
    %v3532 = vunpack.c.l.b16 %v2215
    %v3533 = vunpack.c.h.b16 %v2215
    %v3534 = vunpack.c.l.b16 %v2216
    %v3535 = vunpack.c.h.b16 %v2216
    %v3536 = vunpack.c.l.b16 %v2217
    %v3537 = vunpack.c.h.b16 %v2217
    %v3538 = vunpack.c.l.b16 %v2218
    %v3539 = vunpack.c.h.b16 %v2218
    %v3540 = vunpack.c.l.b16 %v2219
    %v3541 = vunpack.c.h.b16 %v2219
    %v3542 = vunpack.c.l.b16 %v2220
    %v3543 = vunpack.c.h.b16 %v2220
    %v3544 = vunpack.c.l.b16 %v2221
    %v3545 = vunpack.c.h.b16 %v2221
    %v3546 = vunpack.c.l.b16 %v2222
    %v3547 = vunpack.c.h.b16 %v2222
    %v3548 = vunpack.c.l.b16 %v2223
    %v3549 = vunpack.c.h.b16 %v2223
    %v3550 = vunpack.c.l.b16 %v2224
    %v3551 = vunpack.c.h.b16 %v2224
    %v3552 = vunpack.c.l.b16 %v2225
    %v3553 = vunpack.c.h.b16 %v2225
    %v3554 = vunpack.c.l.b16 %v2226
    %v3555 = vunpack.c.h.b16 %v2226
    %v3556 = vunpack.c.l.b16 %v2227
    %v3557 = vunpack.c.h.b16 %v2227
    %v3558 = vunpack.c.l.b16 %v2228
    %v3559 = vunpack.c.h.b16 %v2228
    %v3560 = vunpack.c.l.b16 %v2229
    %v3561 = vunpack.c.h.b16 %v2229
    %v3562 = vunpack.c.l.b16 %v2230
    %v3563 = vunpack.c.h.b16 %v2230
    %v3564 = vunpack.c.l.b16 %v2231
    %v3565 = vunpack.c.h.b16 %v2231
    %v3566 = vunpack.c.l.b16 %v2232
    %v3567 = vunpack.c.h.b16 %v2232
    %v3568 = vunpack.c.l.b16 %v2233
    %v3569 = vunpack.c.h.b16 %v2233
    %v3570 = vunpack.c.l.b16 %v2234
    %v3571 = vunpack.c.h.b16 %v2234
    %v3572 = vunpack.c.l.b16 %v2235
    %v3573 = vunpack.c.h.b16 %v2235
    %v3574 = vunpack.c.l.b16 %v2236
    %v3575 = vunpack.c.h.b16 %v2236
    %v3576 = vunpack.c.l.b16 %v2237
    %v3577 = vunpack.c.h.b16 %v2237
    %v3578 = vunpack.c.l.b16 %v2238
    %v3579 = vunpack.c.h.b16 %v2238
    %v3580 = vunpack.c.l.b16 %v2239
    %v3581 = vunpack.c.h.b16 %v2239
    %v3582 = vunpack.c.l.b16 %v2240
    %v3583 = vunpack.c.h.b16 %v2240
    %v3584 = vunpack.c.l.b16 %v2241
    %v3585 = vunpack.c.h.b16 %v2241
    %v3586 = vunpack.c.l.b16 %v2242
    %v3587 = vunpack.c.h.b16 %v2242
    %v3588 = vunpack.c.l.b16 %v2243
    %v3589 = vunpack.c.h.b16 %v2243
    %v3590 = vunpack.c.l.b16 %v2244
    %v3591 = vunpack.c.h.b16 %v2244
    %v3592 = vunpack.c.l.b16 %v2245
    %v3593 = vunpack.c.h.b16 %v2245
    %v3594 = vunpack.c.l.b16 %v2246
    %v3595 = vunpack.c.h.b16 %v2246
    %v3596 = vunpack.c.l.b16 %v2247
    %v3597 = vunpack.c.h.b16 %v2247
    %v3598 = vunpack.c.l.b16 %v2248
    %v3599 = vunpack.c.h.b16 %v2248
    %v3600 = vunpack.c.l.b16 %v2249
    %v3601 = vunpack.c.h.b16 %v2249
    %v3602 = vunpack.c.l.b16 %v2250
    %v3603 = vunpack.c.h.b16 %v2250
    %v3604 = vunpack.c.l.b16 %v2251
    %v3605 = vunpack.c.h.b16 %v2251
    %v3606 = vunpack.c.l.b16 %v2252
    %v3607 = vunpack.c.h.b16 %v2252
    %v3608 = vunpack.c.l.b16 %v2253
    %v3609 = vunpack.c.h.b16 %v2253
    %v3610 = vunpack.c.l.b16 %v2254
    %v3611 = vunpack.c.h.b16 %v2254
    %v3612 = vunpack.c.l.b16 %v2255
    %v3613 = vunpack.c.h.b16 %v2255
    %v3614 = vunpack.c.l.b16 %v2256
    %v3615 = vunpack.c.h.b16 %v2256
    %v3616 = vunpack.c.l.b16 %v2257
    %v3617 = vunpack.c.h.b16 %v2257
    %v3618 = vunpack.c.l.b16 %v2258
    %v3619 = vunpack.c.h.b16 %v2258
    %v3620 = vunpack.c.l.b16 %v2259
    %v3621 = vunpack.c.h.b16 %v2259
    %v3622 = vunpack.c.l.b16 %v2260
    %v3623 = vunpack.c.h.b16 %v2260
    %v3624 = vunpack.c.l.b16 %v2261
    %v3625 = vunpack.c.h.b16 %v2261
    %v3626 = vunpack.c.l.b16 %v2262
    %v3627 = vunpack.c.h.b16 %v2262
    %v3628 = vunpack.c.l.b16 %v2263
    %v3629 = vunpack.c.h.b16 %v2263
    %v3630 = vunpack.c.l.b16 %v2264
    %v3631 = vunpack.c.h.b16 %v2264
    %v3632 = vunpack.c.l.b16 %v2265
    %v3633 = vunpack.c.h.b16 %v2265
    %v3634 = vunpack.c.l.b16 %v2266
    %v3635 = vunpack.c.h.b16 %v2266
    %v3636 = vunpack.c.l.b16 %v2267
    %v3637 = vunpack.c.h.b16 %v2267
    %v3638 = vunpack.c.l.b16 %v2268
    %v3639 = vunpack.c.h.b16 %v2268
    %v3640 = vunpack.c.l.b16 %v2269
    %v3641 = vunpack.c.h.b16 %v2269
    %v3642 = vunpack.c.l.b16 %v2270
    %v3643 = vunpack.c.h.b16 %v2270
    %v3644 = vunpack.c.l.b16 %v2271
    %v3645 = vunpack.c.h.b16 %v2271
    %v3646 = vunpack.c.l.b16 %v2272
    %v3647 = vunpack.c.h.b16 %v2272
    %v3648 = vunpack.c.l.b16 %v2273
    %v3649 = vunpack.c.h.b16 %v2273
    %v3650 = vunpack.c.l.b16 %v2274
    %v3651 = vunpack.c.h.b16 %v2274
    %v3652 = vunpack.c.l.b16 %v2275
    %v3653 = vunpack.c.h.b16 %v2275
    %v3654 = vunpack.c.l.b16 %v2276
    %v3655 = vunpack.c.h.b16 %v2276
    %v3656 = vunpack.c.l.b16 %v2277
    %v3657 = vunpack.c.h.b16 %v2277
    %v3658 = vunpack.c.l.b16 %v2278
    %v3659 = vunpack.c.h.b16 %v2278
    %v3660 = vunpack.c.l.b16 %v2279
    %v3661 = vunpack.c.h.b16 %v2279
    %v3662 = vunpack.c.l.b16 %v2280
    %v3663 = vunpack.c.h.b16 %v2280
    %v3664 = vunpack.c.l.b16 %v2281
    %v3665 = vunpack.c.h.b16 %v2281
    %v3666 = vunpack.c.l.b16 %v2282
    %v3667 = vunpack.c.h.b16 %v2282
    %v3668 = vunpack.c.l.b16 %v2283
    %v3669 = vunpack.c.h.b16 %v2283
    %v3670 = vunpack.c.l.b16 %v2284
    %v3671 = vunpack.c.h.b16 %v2284
    %v3672 = vunpack.c.l.b16 %v2285
    %v3673 = vunpack.c.h.b16 %v2285
    %v3674 = vunpack.c.l.b16 %v2286
    %v3675 = vunpack.c.h.b16 %v2286
    %v3676 = vunpack.c.l.b16 %v2287
    %v3677 = vunpack.c.h.b16 %v2287
    %v3678 = vunpack.c.l.b16 %v2288
    %v3679 = vunpack.c.h.b16 %v2288
    %v3680 = vunpack.c.l.b16 %v2289
    %v3681 = vunpack.c.h.b16 %v2289
    %v3682 = vunpack.c.l.b16 %v2290
    %v3683 = vunpack.c.h.b16 %v2290
    %v3684 = vunpack.c.l.b16 %v2291
    %v3685 = vunpack.c.h.b16 %v2291
    %v3686 = vunpack.c.l.b16 %v2292
    %v3687 = vunpack.c.h.b16 %v2292
    %v3688 = vunpack.c.l.b16 %v2293
    %v3689 = vunpack.c.h.b16 %v2293
    %v3690 = vunpack.c.l.b16 %v2294
    %v3691 = vunpack.c.h.b16 %v2294
    %v3692 = vunpack.c.l.b16 %v2295
    %v3693 = vunpack.c.h.b16 %v2295
    %v3694 = vunpack.c.l.b16 %v2296
    %v3695 = vunpack.c.h.b16 %v2296
    %v3696 = vunpack.c.l.b16 %v2297
    %v3697 = vunpack.c.h.b16 %v2297
    %v3698 = vunpack.c.l.b16 %v2298
    %v3699 = vunpack.c.h.b16 %v2298
    %v3700 = vunpack.c.l.b16 %v2299
    %v3701 = vunpack.c.h.b16 %v2299
    %v3702 = vunpack.c.l.b16 %v2300
    %v3703 = vunpack.c.h.b16 %v2300
    %v3704 = vunpack.c.l.b16 %v2301
    %v3705 = vunpack.c.h.b16 %v2301
    %v3706 = vunpack.c.l.b16 %v2302
    %v3707 = vunpack.c.h.b16 %v2302
    %v3708 = vunpack.c.l.b16 %v2303
    %v3709 = vunpack.c.h.b16 %v2303
    %v3710 = vunpack.c.l.b16 %v2304
    %v3711 = vunpack.c.h.b16 %v2304
    %v3712 = vunpack.c.l.b16 %v2305
    %v3713 = vunpack.c.h.b16 %v2305
    %v3714 = vunpack.c.l.b16 %v2306
    %v3715 = vunpack.c.h.b16 %v2306
    %v3716 = vunpack.c.l.b16 %v2307
    %v3717 = vunpack.c.h.b16 %v2307
    %v3718 = vunpack.c.l.b16 %v2308
    %v3719 = vunpack.c.h.b16 %v2308
    %v3720 = vunpack.c.l.b16 %v2309
    %v3721 = vunpack.c.h.b16 %v2309
    %v3722 = vunpack.c.l.b16 %v2310
    %v3723 = vunpack.c.h.b16 %v2310
    %v3724 = vunpack.c.l.b16 %v2311
    %v3725 = vunpack.c.h.b16 %v2311
    %v3726 = vunpack.c.l.b16 %v2312
    %v3727 = vunpack.c.h.b16 %v2312
    %v3728 = vunpack.c.l.b16 %v2313
    %v3729 = vunpack.c.h.b16 %v2313
    %v3730 = vunpack.c.l.b16 %v2314
    %v3731 = vunpack.c.h.b16 %v2314
    %v3732 = vunpack.c.l.b16 %v2315
    %v3733 = vunpack.c.h.b16 %v2315
    %v3734 = vunpack.c.l.b16 %v2316
    %v3735 = vunpack.c.h.b16 %v2316
    %v3736 = vunpack.c.l.b16 %v2317
    %v3737 = vunpack.c.h.b16 %v2317
    %v3738 = vunpack.c.l.b16 %v2318
    %v3739 = vunpack.c.h.b16 %v2318
    %v3740 = vunpack.c.l.b16 %v2319
    %v3741 = vunpack.c.h.b16 %v2319
    %v3742 = vunpack.c.l.b16 %v2320
    %v3743 = vunpack.c.h.b16 %v2320
    %v3744 = vunpack.c.l.b16 %v2321
    %v3745 = vunpack.c.h.b16 %v2321
    %v3746 = vunpack.c.l.b16 %v2322
    %v3747 = vunpack.c.h.b16 %v2322
    %v3748 = vunpack.c.l.b16 %v2323
    %v3749 = vunpack.c.h.b16 %v2323
    %v3750 = vunpack.c.l.b16 %v2324
    %v3751 = vunpack.c.h.b16 %v2324
    %v3752 = vunpack.c.l.b16 %v2325
    %v3753 = vunpack.c.h.b16 %v2325
    %v3754 = vunpack.c.l.b16 %v2326
    %v3755 = vunpack.c.h.b16 %v2326
    %v3756 = vunpack.c.l.b16 %v2327
    %v3757 = vunpack.c.h.b16 %v2327
    %v3758 = vunpack.c.l.b16 %v2328
    %v3759 = vunpack.c.h.b16 %v2328
    %v3760 = vunpack.c.l.b16 %v2329
    %v3761 = vunpack.c.h.b16 %v2329
    %v3762 = vunpack.c.l.b16 %v2330
    %v3763 = vunpack.c.h.b16 %v2330
    %v3764 = vunpack.c.l.b16 %v2331
    %v3765 = vunpack.c.h.b16 %v2331
    %v3766 = vunpack.c.l.b16 %v2332
    %v3767 = vunpack.c.h.b16 %v2332
    %v3768 = vunpack.c.l.b16 %v2333
    %v3769 = vunpack.c.h.b16 %v2333
    %v3770 = vunpack.c.l.b16 %v2334
    %v3771 = vunpack.c.h.b16 %v2334
    %v3772 = vunpack.c.l.b16 %v2335
    %v3773 = vunpack.c.h.b16 %v2335
    %v3774 = vunpack.c.l.b16 %v2336
    %v3775 = vunpack.c.h.b16 %v2336
    %v3776 = vunpack.c.l.b16 %v2337
    %v3777 = vunpack.c.h.b16 %v2337
    %v3778 = vunpack.c.l.b16 %v2338
    %v3779 = vunpack.c.h.b16 %v2338
    %v3780 = vunpack.c.l.b16 %v2339
    %v3781 = vunpack.c.h.b16 %v2339
    %v3782 = vunpack.c.l.b16 %v2340
    %v3783 = vunpack.c.h.b16 %v2340
    %v3784 = vunpack.c.l.b16 %v2341
    %v3785 = vunpack.c.h.b16 %v2341
    %v3786 = vunpack.c.l.b16 %v2342
    %v3787 = vunpack.c.h.b16 %v2342
    %v3788 = vunpack.c.l.b16 %v2343
    %v3789 = vunpack.c.h.b16 %v2343
    %v3790 = vunpack.c.l.b16 %v2344
    %v3791 = vunpack.c.h.b16 %v2344
    %v3792 = vunpack.c.l.b16 %v2345
    %v3793 = vunpack.c.h.b16 %v2345
    %v3794 = vunpack.c.l.b16 %v2346
    %v3795 = vunpack.c.h.b16 %v2346
    %v3796 = vunpack.c.l.b16 %v2347
    %v3797 = vunpack.c.h.b16 %v2347
    %v3798 = vunpack.c.l.b16 %v2348
    %v3799 = vunpack.c.h.b16 %v2348
    %v3800 = vunpack.c.l.b16 %v2349
    %v3801 = vunpack.c.h.b16 %v2349
    %v3802 = vunpack.c.l.b16 %v2350
    %v3803 = vunpack.c.h.b16 %v2350
    %v3804 = vunpack.c.l.b16 %v2351
    %v3805 = vunpack.c.h.b16 %v2351
    %v3806 = vunpack.c.l.b16 %v2352
    %v3807 = vunpack.c.h.b16 %v2352
    %v3808 = vunpack.c.l.b16 %v2353
    %v3809 = vunpack.c.h.b16 %v2353
    %v3810 = vunpack.c.l.b16 %v2354
    %v3811 = vunpack.c.h.b16 %v2354
    %v3812 = vunpack.c.l.b16 %v2355
    %v3813 = vunpack.c.h.b16 %v2355
    %v3814 = vunpack.c.l.b16 %v2356
    %v3815 = vunpack.c.h.b16 %v2356
    %v3816 = vunpack.c.l.b16 %v2357
    %v3817 = vunpack.c.h.b16 %v2357
    %v3818 = vunpack.c.l.b16 %v2358
    %v3819 = vunpack.c.h.b16 %v2358
    %v3820 = vunpack.c.l.b16 %v2359
    %v3821 = vunpack.c.h.b16 %v2359
    %v3822 = vunpack.c.l.b16 %v2360
    %v3823 = vunpack.c.h.b16 %v2360
    %v3824 = vunpack.c.l.b16 %v2361
    %v3825 = vunpack.c.h.b16 %v2361
    %v3826 = vunpack.c.l.b16 %v2362
    %v3827 = vunpack.c.h.b16 %v2362
    %v3828 = vunpack.c.l.b16 %v2363
    %v3829 = vunpack.c.h.b16 %v2363
    %v3830 = vunpack.c.l.b16 %v2364
    %v3831 = vunpack.c.h.b16 %v2364
    %v3832 = vunpack.c.l.b16 %v2365
    %v3833 = vunpack.c.h.b16 %v2365
    %v3834 = vunpack.c.l.b16 %v2366
    %v3835 = vunpack.c.h.b16 %v2366
    %v3836 = vunpack.c.l.b16 %v2367
    %v3837 = vunpack.c.h.b16 %v2367
    %v3838 = vunpack.c.l.b16 %v2368
    %v3839 = vunpack.c.h.b16 %v2368
    %v3840 = vunpack.c.l.b16 %v2369
    %v3841 = vunpack.c.h.b16 %v2369
    %v3842 = vunpack.c.l.b16 %v2370
    %v3843 = vunpack.c.h.b16 %v2370
    %v3844 = vunpack.c.l.b16 %v2371
    %v3845 = vunpack.c.h.b16 %v2371
    %v3846 = vunpack.c.l.b16 %v2372
    %v3847 = vunpack.c.h.b16 %v2372
    %v3848 = vunpack.c.l.b16 %v2373
    %v3849 = vunpack.c.h.b16 %v2373
    %v3850 = vunpack.c.l.b16 %v2374
    %v3851 = vunpack.c.h.b16 %v2374
    %v3852 = vunpack.c.l.b16 %v2375
    %v3853 = vunpack.c.h.b16 %v2375
    %v3854 = vunpack.c.l.b16 %v2376
    %v3855 = vunpack.c.h.b16 %v2376
    %v3856 = vunpack.c.l.b16 %v2377
    %v3857 = vunpack.c.h.b16 %v2377
    %v3858 = vunpack.c.l.b16 %v2378
    %v3859 = vunpack.c.h.b16 %v2378
    %v3860 = vunpack.c.l.b16 %v2379
    %v3861 = vunpack.c.h.b16 %v2379
    %v3862 = vunpack.c.l.b16 %v2380
    %v3863 = vunpack.c.h.b16 %v2380
    %v3864 = vunpack.c.l.b16 %v2381
    %v3865 = vunpack.c.h.b16 %v2381
    %v3866 = vunpack.c.l.b16 %v2382
    %v3867 = vunpack.c.h.b16 %v2382
    %v3868 = vunpack.c.l.b16 %v2383
    %v3869 = vunpack.c.h.b16 %v2383
    %v3870 = vunpack.c.l.b16 %v2384
    %v3871 = vunpack.c.h.b16 %v2384
    %v3872 = vunpack.c.l.b16 %v2385
    %v3873 = vunpack.c.h.b16 %v2385
    %v3874 = vunpack.c.l.b16 %v2386
    %v3875 = vunpack.c.h.b16 %v2386
    %v3876 = vunpack.c.l.b16 %v2387
    %v3877 = vunpack.c.h.b16 %v2387
    %v3878 = vunpack.c.l.b16 %v2388
    %v3879 = vunpack.c.h.b16 %v2388
    %v3880 = vunpack.c.l.b16 %v2389
    %v3881 = vunpack.c.h.b16 %v2389
    %v3882 = vunpack.c.l.b16 %v2390
    %v3883 = vunpack.c.h.b16 %v2390
    %v3884 = vunpack.c.l.b16 %v2391
    %v3885 = vunpack.c.h.b16 %v2391
    %v3886 = vunpack.c.l.b16 %v2392
    %v3887 = vunpack.c.h.b16 %v2392
    %v3888 = vunpack.c.l.b16 %v2393
    %v3889 = vunpack.c.h.b16 %v2393
    %v3890 = vunpack.c.l.b16 %v2394
    %v3891 = vunpack.c.h.b16 %v2394
    %v3892 = vunpack.c.l.b16 %v2395
    %v3893 = vunpack.c.h.b16 %v2395
    %v3894 = vunpack.c.l.b16 %v2396
    %v3895 = vunpack.c.h.b16 %v2396
    %v3896 = vunpack.c.l.b16 %v2397
    %v3897 = vunpack.c.h.b16 %v2397
    %v3898 = vunpack.c.l.b16 %v2398
    %v3899 = vunpack.c.h.b16 %v2398
    %v3900 = vunpack.c.l.b16 %v2399
    %v3901 = vunpack.c.h.b16 %v2399
    %v3902 = vunpack.c.l.b16 %v2400
    %v3903 = vunpack.c.h.b16 %v2400
    %v3904 = vunpack.c.l.b16 %v2401
    %v3905 = vunpack.c.h.b16 %v2401
    %v3906 = vunpack.c.l.b16 %v2402
    %v3907 = vunpack.c.h.b16 %v2402
    %v3908 = vunpack.c.l.b16 %v2403
    %v3909 = vunpack.c.h.b16 %v2403
    %v3910 = vunpack.c.l.b16 %v2404
    %v3911 = vunpack.c.h.b16 %v2404
    %v3912 = vunpack.c.l.b16 %v2405
    %v3913 = vunpack.c.h.b16 %v2405
    %v3914 = vunpack.c.l.b16 %v2406
    %v3915 = vunpack.c.h.b16 %v2406
    %v3916 = vunpack.c.l.b16 %v2407
    %v3917 = vunpack.c.h.b16 %v2407
    %v3918 = vunpack.c.l.b16 %v2408
    %v3919 = vunpack.c.h.b16 %v2408
    %v3920 = vunpack.c.l.b16 %v2409
    %v3921 = vunpack.c.h.b16 %v2409
    %v3922 = vunpack.c.l.b16 %v2410
    %v3923 = vunpack.c.h.b16 %v2410
    %v3924 = vunpack.c.l.b16 %v2411
    %v3925 = vunpack.c.h.b16 %v2411
    %v3926 = vunpack.c.l.b16 %v2412
    %v3927 = vunpack.c.h.b16 %v2412
    %v3928 = vunpack.c.l.b16 %v2413
    %v3929 = vunpack.c.h.b16 %v2413
    %v3930 = vunpack.c.l.b16 %v2414
    %v3931 = vunpack.c.h.b16 %v2414
    %v3932 = vunpack.c.l.b16 %v2415
    %v3933 = vunpack.c.h.b16 %v2415
    %v3934 = vunpack.c.l.b16 %v2416
    %v3935 = vunpack.c.h.b16 %v2416
    %v3936 = vunpack.c.l.b16 %v2417
    %v3937 = vunpack.c.h.b16 %v2417
    %v3938 = vunpack.c.l.b16 %v2418
    %v3939 = vunpack.c.h.b16 %v2418
    %v3940 = vunpack.c.l.b16 %v2419
    %v3941 = vunpack.c.h.b16 %v2419
    %v3942 = vunpack.c.l.b16 %v2420
    %v3943 = vunpack.c.h.b16 %v2420
    %v3944 = vunpack.c.l.b16 %v2421
    %v3945 = vunpack.c.h.b16 %v2421
    %v3946 = vunpack.c.l.b16 %v2422
    %v3947 = vunpack.c.h.b16 %v2422
    %v3948 = vunpack.c.l.b16 %v2423
    %v3949 = vunpack.c.h.b16 %v2423
    %v3950 = vunpack.c.l.b16 %v2424
    %v3951 = vunpack.c.h.b16 %v2424
    %v3952 = vunpack.c.l.b16 %v2425
    %v3953 = vunpack.c.h.b16 %v2425
    %v3954 = vunpack.c.l.b16 %v2426
    %v3955 = vunpack.c.h.b16 %v2426
    %v3956 = vunpack.c.l.b16 %v2427
    %v3957 = vunpack.c.h.b16 %v2427
    %v3958 = vunpack.c.l.b16 %v2428
    %v3959 = vunpack.c.h.b16 %v2428
    %v3960 = vunpack.c.l.b16 %v2429
    %v3961 = vunpack.c.h.b16 %v2429
    %v3962 = vunpack.c.l.b16 %v2430
    %v3963 = vunpack.c.h.b16 %v2430
    %v3964 = vunpack.c.l.b16 %v2431
    %v3965 = vunpack.c.h.b16 %v2431
    %v3966 = vunpack.c.l.b16 %v2432
    %v3967 = vunpack.c.h.b16 %v2432
    %v3968 = vunpack.c.l.b16 %v2433
    %v3969 = vunpack.c.h.b16 %v2433
    %v3970 = vpack.c.b16 %v2962, %v2946
    %v3971 = vpack.c.b16 %v2963, %v2947
    %v3972 = vpack.c.b16 %v2964, %v2948
    %v3973 = vpack.c.b16 %v2965, %v2949
    %v3974 = vpack.c.b16 %v2966, %v2950
    %v3975 = vpack.c.b16 %v2967, %v2951
    %v3976 = vpack.c.b16 %v2968, %v2952
    %v3977 = vpack.c.b16 %v2969, %v2953
    %v3978 = vpack.c.b16 %v2970, %v2954
    %v3979 = vpack.c.b16 %v2971, %v2955
    %v3980 = vpack.c.b16 %v2972, %v2956
    %v3981 = vpack.c.b16 %v2973, %v2957
    %v3982 = vpack.c.b16 %v2974, %v2958
    %v3983 = vpack.c.b16 %v2975, %v2959
    %v3984 = vpack.c.b16 %v2976, %v2960
    %v3985 = vpack.c.b16 %v2977, %v2961
    %v3986 = vpack.c.b16 %v2994, %v2978
    %v3987 = vpack.c.b16 %v2995, %v2979
    %v3988 = vpack.c.b16 %v2996, %v2980
    %v3989 = vpack.c.b16 %v2997, %v2981
    %v3990 = vpack.c.b16 %v2998, %v2982
    %v3991 = vpack.c.b16 %v2999, %v2983
    %v3992 = vpack.c.b16 %v3000, %v2984
    %v3993 = vpack.c.b16 %v3001, %v2985
    %v3994 = vpack.c.b16 %v3002, %v2986
    %v3995 = vpack.c.b16 %v3003, %v2987
    %v3996 = vpack.c.b16 %v3004, %v2988
    %v3997 = vpack.c.b16 %v3005, %v2989
    %v3998 = vpack.c.b16 %v3006, %v2990
    %v3999 = vpack.c.b16 %v3007, %v2991
    %v4000 = vpack.c.b16 %v3008, %v2992
    %v4001 = vpack.c.b16 %v3009, %v2993
    %v4002 = vpack.c.b16 %v3026, %v3010
    %v4003 = vpack.c.b16 %v3027, %v3011
    %v4004 = vpack.c.b16 %v3028, %v3012
    %v4005 = vpack.c.b16 %v3029, %v3013
    %v4006 = vpack.c.b16 %v3030, %v3014
    %v4007 = vpack.c.b16 %v3031, %v3015
    %v4008 = vpack.c.b16 %v3032, %v3016
    %v4009 = vpack.c.b16 %v3033, %v3017
    %v4010 = vpack.c.b16 %v3034, %v3018
    %v4011 = vpack.c.b16 %v3035, %v3019
    %v4012 = vpack.c.b16 %v3036, %v3020
    %v4013 = vpack.c.b16 %v3037, %v3021
    %v4014 = vpack.c.b16 %v3038, %v3022
    %v4015 = vpack.c.b16 %v3039, %v3023
    %v4016 = vpack.c.b16 %v3040, %v3024
    %v4017 = vpack.c.b16 %v3041, %v3025
    %v4018 = vpack.c.b16 %v3058, %v3042
    %v4019 = vpack.c.b16 %v3059, %v3043
    %v4020 = vpack.c.b16 %v3060, %v3044
    %v4021 = vpack.c.b16 %v3061, %v3045
    %v4022 = vpack.c.b16 %v3062, %v3046
    %v4023 = vpack.c.b16 %v3063, %v3047
    %v4024 = vpack.c.b16 %v3064, %v3048
    %v4025 = vpack.c.b16 %v3065, %v3049
    %v4026 = vpack.c.b16 %v3066, %v3050
    %v4027 = vpack.c.b16 %v3067, %v3051
    %v4028 = vpack.c.b16 %v3068, %v3052
    %v4029 = vpack.c.b16 %v3069, %v3053
    %v4030 = vpack.c.b16 %v3070, %v3054
    %v4031 = vpack.c.b16 %v3071, %v3055
    %v4032 = vpack.c.b16 %v3072, %v3056
    %v4033 = vpack.c.b16 %v3073, %v3057
    %v4034 = vpack.c.b16 %v3090, %v3074
    %v4035 = vpack.c.b16 %v3091, %v3075
    %v4036 = vpack.c.b16 %v3092, %v3076
    %v4037 = vpack.c.b16 %v3093, %v3077
    %v4038 = vpack.c.b16 %v3094, %v3078
    %v4039 = vpack.c.b16 %v3095, %v3079
    %v4040 = vpack.c.b16 %v3096, %v3080
    %v4041 = vpack.c.b16 %v3097, %v3081
    %v4042 = vpack.c.b16 %v3098, %v3082
    %v4043 = vpack.c.b16 %v3099, %v3083
    %v4044 = vpack.c.b16 %v3100, %v3084
    %v4045 = vpack.c.b16 %v3101, %v3085
    %v4046 = vpack.c.b16 %v3102, %v3086
    %v4047 = vpack.c.b16 %v3103, %v3087
    %v4048 = vpack.c.b16 %v3104, %v3088
    %v4049 = vpack.c.b16 %v3105, %v3089
    %v4050 = vpack.c.b16 %v3122, %v3106
    %v4051 = vpack.c.b16 %v3123, %v3107
    %v4052 = vpack.c.b16 %v3124, %v3108
    %v4053 = vpack.c.b16 %v3125, %v3109
    %v4054 = vpack.c.b16 %v3126, %v3110
    %v4055 = vpack.c.b16 %v3127, %v3111
    %v4056 = vpack.c.b16 %v3128, %v3112
    %v4057 = vpack.c.b16 %v3129, %v3113
    %v4058 = vpack.c.b16 %v3130, %v3114
    %v4059 = vpack.c.b16 %v3131, %v3115
    %v4060 = vpack.c.b16 %v3132, %v3116
    %v4061 = vpack.c.b16 %v3133, %v3117
    %v4062 = vpack.c.b16 %v3134, %v3118
    %v4063 = vpack.c.b16 %v3135, %v3119
    %v4064 = vpack.c.b16 %v3136, %v3120
    %v4065 = vpack.c.b16 %v3137, %v3121
    %v4066 = vpack.c.b16 %v3154, %v3138
    %v4067 = vpack.c.b16 %v3155, %v3139
    %v4068 = vpack.c.b16 %v3156, %v3140
    %v4069 = vpack.c.b16 %v3157, %v3141
    %v4070 = vpack.c.b16 %v3158, %v3142
    %v4071 = vpack.c.b16 %v3159, %v3143
    %v4072 = vpack.c.b16 %v3160, %v3144
    %v4073 = vpack.c.b16 %v3161, %v3145
    %v4074 = vpack.c.b16 %v3162, %v3146
    %v4075 = vpack.c.b16 %v3163, %v3147
    %v4076 = vpack.c.b16 %v3164, %v3148
    %v4077 = vpack.c.b16 %v3165, %v3149
    %v4078 = vpack.c.b16 %v3166, %v3150
    %v4079 = vpack.c.b16 %v3167, %v3151
    %v4080 = vpack.c.b16 %v3168, %v3152
    %v4081 = vpack.c.b16 %v3169, %v3153
    %v4082 = vpack.c.b16 %v3186, %v3170
    %v4083 = vpack.c.b16 %v3187, %v3171
    %v4084 = vpack.c.b16 %v3188, %v3172
    %v4085 = vpack.c.b16 %v3189, %v3173
    %v4086 = vpack.c.b16 %v3190, %v3174
    %v4087 = vpack.c.b16 %v3191, %v3175
    %v4088 = vpack.c.b16 %v3192, %v3176
    %v4089 = vpack.c.b16 %v3193, %v3177
    %v4090 = vpack.c.b16 %v3194, %v3178
    %v4091 = vpack.c.b16 %v3195, %v3179
    %v4092 = vpack.c.b16 %v3196, %v3180
    %v4093 = vpack.c.b16 %v3197, %v3181
    %v4094 = vpack.c.b16 %v3198, %v3182
    %v4095 = vpack.c.b16 %v3199, %v3183
    %v4096 = vpack.c.b16 %v3200, %v3184
    %v4097 = vpack.c.b16 %v3201, %v3185
    %v4098 = vpack.c.b16 %v3218, %v3202
    %v4099 = vpack.c.b16 %v3219, %v3203
    %v4100 = vpack.c.b16 %v3220, %v3204
    %v4101 = vpack.c.b16 %v3221, %v3205
    %v4102 = vpack.c.b16 %v3222, %v3206
    %v4103 = vpack.c.b16 %v3223, %v3207
    %v4104 = vpack.c.b16 %v3224, %v3208
    %v4105 = vpack.c.b16 %v3225, %v3209
    %v4106 = vpack.c.b16 %v3226, %v3210
    %v4107 = vpack.c.b16 %v3227, %v3211
    %v4108 = vpack.c.b16 %v3228, %v3212
    %v4109 = vpack.c.b16 %v3229, %v3213
    %v4110 = vpack.c.b16 %v3230, %v3214
    %v4111 = vpack.c.b16 %v3231, %v3215
    %v4112 = vpack.c.b16 %v3232, %v3216
    %v4113 = vpack.c.b16 %v3233, %v3217
    %v4114 = vpack.c.b16 %v3250, %v3234
    %v4115 = vpack.c.b16 %v3251, %v3235
    %v4116 = vpack.c.b16 %v3252, %v3236
    %v4117 = vpack.c.b16 %v3253, %v3237
    %v4118 = vpack.c.b16 %v3254, %v3238
    %v4119 = vpack.c.b16 %v3255, %v3239
    %v4120 = vpack.c.b16 %v3256, %v3240
    %v4121 = vpack.c.b16 %v3257, %v3241
    %v4122 = vpack.c.b16 %v3258, %v3242
    %v4123 = vpack.c.b16 %v3259, %v3243
    %v4124 = vpack.c.b16 %v3260, %v3244
    %v4125 = vpack.c.b16 %v3261, %v3245
    %v4126 = vpack.c.b16 %v3262, %v3246
    %v4127 = vpack.c.b16 %v3263, %v3247
    %v4128 = vpack.c.b16 %v3264, %v3248
    %v4129 = vpack.c.b16 %v3265, %v3249
    %v4130 = vpack.c.b16 %v3282, %v3266
    %v4131 = vpack.c.b16 %v3283, %v3267
    %v4132 = vpack.c.b16 %v3284, %v3268
    %v4133 = vpack.c.b16 %v3285, %v3269
    %v4134 = vpack.c.b16 %v3286, %v3270
    %v4135 = vpack.c.b16 %v3287, %v3271
    %v4136 = vpack.c.b16 %v3288, %v3272
    %v4137 = vpack.c.b16 %v3289, %v3273
    %v4138 = vpack.c.b16 %v3290, %v3274
    %v4139 = vpack.c.b16 %v3291, %v3275
    %v4140 = vpack.c.b16 %v3292, %v3276
    %v4141 = vpack.c.b16 %v3293, %v3277
    %v4142 = vpack.c.b16 %v3294, %v3278
    %v4143 = vpack.c.b16 %v3295, %v3279
    %v4144 = vpack.c.b16 %v3296, %v3280
    %v4145 = vpack.c.b16 %v3297, %v3281
    %v4146 = vpack.c.b16 %v3314, %v3298
    %v4147 = vpack.c.b16 %v3315, %v3299
    %v4148 = vpack.c.b16 %v3316, %v3300
    %v4149 = vpack.c.b16 %v3317, %v3301
    %v4150 = vpack.c.b16 %v3318, %v3302
    %v4151 = vpack.c.b16 %v3319, %v3303
    %v4152 = vpack.c.b16 %v3320, %v3304
    %v4153 = vpack.c.b16 %v3321, %v3305
    %v4154 = vpack.c.b16 %v3322, %v3306
    %v4155 = vpack.c.b16 %v3323, %v3307
    %v4156 = vpack.c.b16 %v3324, %v3308
    %v4157 = vpack.c.b16 %v3325, %v3309
    %v4158 = vpack.c.b16 %v3326, %v3310
    %v4159 = vpack.c.b16 %v3327, %v3311
    %v4160 = vpack.c.b16 %v3328, %v3312
    %v4161 = vpack.c.b16 %v3329, %v3313
    %v4162 = vpack.c.b16 %v3346, %v3330
    %v4163 = vpack.c.b16 %v3347, %v3331
    %v4164 = vpack.c.b16 %v3348, %v3332
    %v4165 = vpack.c.b16 %v3349, %v3333
    %v4166 = vpack.c.b16 %v3350, %v3334
    %v4167 = vpack.c.b16 %v3351, %v3335
    %v4168 = vpack.c.b16 %v3352, %v3336
    %v4169 = vpack.c.b16 %v3353, %v3337
    %v4170 = vpack.c.b16 %v3354, %v3338
    %v4171 = vpack.c.b16 %v3355, %v3339
    %v4172 = vpack.c.b16 %v3356, %v3340
    %v4173 = vpack.c.b16 %v3357, %v3341
    %v4174 = vpack.c.b16 %v3358, %v3342
    %v4175 = vpack.c.b16 %v3359, %v3343
    %v4176 = vpack.c.b16 %v3360, %v3344
    %v4177 = vpack.c.b16 %v3361, %v3345
    %v4178 = vpack.c.b16 %v3378, %v3362
    %v4179 = vpack.c.b16 %v3379, %v3363
    %v4180 = vpack.c.b16 %v3380, %v3364
    %v4181 = vpack.c.b16 %v3381, %v3365
    %v4182 = vpack.c.b16 %v3382, %v3366
    %v4183 = vpack.c.b16 %v3383, %v3367
    %v4184 = vpack.c.b16 %v3384, %v3368
    %v4185 = vpack.c.b16 %v3385, %v3369
    %v4186 = vpack.c.b16 %v3386, %v3370
    %v4187 = vpack.c.b16 %v3387, %v3371
    %v4188 = vpack.c.b16 %v3388, %v3372
    %v4189 = vpack.c.b16 %v3389, %v3373
    %v4190 = vpack.c.b16 %v3390, %v3374
    %v4191 = vpack.c.b16 %v3391, %v3375
    %v4192 = vpack.c.b16 %v3392, %v3376
    %v4193 = vpack.c.b16 %v3393, %v3377
    %v4194 = vpack.c.b16 %v3410, %v3394
    %v4195 = vpack.c.b16 %v3411, %v3395
    %v4196 = vpack.c.b16 %v3412, %v3396
    %v4197 = vpack.c.b16 %v3413, %v3397
    %v4198 = vpack.c.b16 %v3414, %v3398
    %v4199 = vpack.c.b16 %v3415, %v3399
    %v4200 = vpack.c.b16 %v3416, %v3400
    %v4201 = vpack.c.b16 %v3417, %v3401
    %v4202 = vpack.c.b16 %v3418, %v3402
    %v4203 = vpack.c.b16 %v3419, %v3403
    %v4204 = vpack.c.b16 %v3420, %v3404
    %v4205 = vpack.c.b16 %v3421, %v3405
    %v4206 = vpack.c.b16 %v3422, %v3406
    %v4207 = vpack.c.b16 %v3423, %v3407
    %v4208 = vpack.c.b16 %v3424, %v3408
    %v4209 = vpack.c.b16 %v3425, %v3409
    %v4210 = vpack.c.b16 %v3442, %v3426
    %v4211 = vpack.c.b16 %v3443, %v3427
    %v4212 = vpack.c.b16 %v3444, %v3428
    %v4213 = vpack.c.b16 %v3445, %v3429
    %v4214 = vpack.c.b16 %v3446, %v3430
    %v4215 = vpack.c.b16 %v3447, %v3431
    %v4216 = vpack.c.b16 %v3448, %v3432
    %v4217 = vpack.c.b16 %v3449, %v3433
    %v4218 = vpack.c.b16 %v3450, %v3434
    %v4219 = vpack.c.b16 %v3451, %v3435
    %v4220 = vpack.c.b16 %v3452, %v3436
    %v4221 = vpack.c.b16 %v3453, %v3437
    %v4222 = vpack.c.b16 %v3454, %v3438
    %v4223 = vpack.c.b16 %v3455, %v3439
    %v4224 = vpack.c.b16 %v3456, %v3440
    %v4225 = vpack.c.b16 %v3457, %v3441
    %v4226 = vpack.c.b16 %v3474, %v3458
    %v4227 = vpack.c.b16 %v3475, %v3459
    %v4228 = vpack.c.b16 %v3476, %v3460
    %v4229 = vpack.c.b16 %v3477, %v3461
    %v4230 = vpack.c.b16 %v3478, %v3462
    %v4231 = vpack.c.b16 %v3479, %v3463
    %v4232 = vpack.c.b16 %v3480, %v3464
    %v4233 = vpack.c.b16 %v3481, %v3465
    %v4234 = vpack.c.b16 %v3482, %v3466
    %v4235 = vpack.c.b16 %v3483, %v3467
    %v4236 = vpack.c.b16 %v3484, %v3468
    %v4237 = vpack.c.b16 %v3485, %v3469
    %v4238 = vpack.c.b16 %v3486, %v3470
    %v4239 = vpack.c.b16 %v3487, %v3471
    %v4240 = vpack.c.b16 %v3488, %v3472
    %v4241 = vpack.c.b16 %v3489, %v3473
    %v4242 = vpack.c.b16 %v3506, %v3490
    %v4243 = vpack.c.b16 %v3507, %v3491
    %v4244 = vpack.c.b16 %v3508, %v3492
    %v4245 = vpack.c.b16 %v3509, %v3493
    %v4246 = vpack.c.b16 %v3510, %v3494
    %v4247 = vpack.c.b16 %v3511, %v3495
    %v4248 = vpack.c.b16 %v3512, %v3496
    %v4249 = vpack.c.b16 %v3513, %v3497
    %v4250 = vpack.c.b16 %v3514, %v3498
    %v4251 = vpack.c.b16 %v3515, %v3499
    %v4252 = vpack.c.b16 %v3516, %v3500
    %v4253 = vpack.c.b16 %v3517, %v3501
    %v4254 = vpack.c.b16 %v3518, %v3502
    %v4255 = vpack.c.b16 %v3519, %v3503
    %v4256 = vpack.c.b16 %v3520, %v3504
    %v4257 = vpack.c.b16 %v3521, %v3505
    %v4258 = vpack.c.b16 %v3538, %v3522
    %v4259 = vpack.c.b16 %v3539, %v3523
    %v4260 = vpack.c.b16 %v3540, %v3524
    %v4261 = vpack.c.b16 %v3541, %v3525
    %v4262 = vpack.c.b16 %v3542, %v3526
    %v4263 = vpack.c.b16 %v3543, %v3527
    %v4264 = vpack.c.b16 %v3544, %v3528
    %v4265 = vpack.c.b16 %v3545, %v3529
    %v4266 = vpack.c.b16 %v3546, %v3530
    %v4267 = vpack.c.b16 %v3547, %v3531
    %v4268 = vpack.c.b16 %v3548, %v3532
    %v4269 = vpack.c.b16 %v3549, %v3533
    %v4270 = vpack.c.b16 %v3550, %v3534
    %v4271 = vpack.c.b16 %v3551, %v3535
    %v4272 = vpack.c.b16 %v3552, %v3536
    %v4273 = vpack.c.b16 %v3553, %v3537
    %v4274 = vpack.c.b16 %v3570, %v3554
    %v4275 = vpack.c.b16 %v3571, %v3555
    %v4276 = vpack.c.b16 %v3572, %v3556
    %v4277 = vpack.c.b16 %v3573, %v3557
    %v4278 = vpack.c.b16 %v3574, %v3558
    %v4279 = vpack.c.b16 %v3575, %v3559
    %v4280 = vpack.c.b16 %v3576, %v3560
    %v4281 = vpack.c.b16 %v3577, %v3561
    %v4282 = vpack.c.b16 %v3578, %v3562
    %v4283 = vpack.c.b16 %v3579, %v3563
    %v4284 = vpack.c.b16 %v3580, %v3564
    %v4285 = vpack.c.b16 %v3581, %v3565
    %v4286 = vpack.c.b16 %v3582, %v3566
    %v4287 = vpack.c.b16 %v3583, %v3567
    %v4288 = vpack.c.b16 %v3584, %v3568
    %v4289 = vpack.c.b16 %v3585, %v3569
    %v4290 = vpack.c.b16 %v3602, %v3586
    %v4291 = vpack.c.b16 %v3603, %v3587
    %v4292 = vpack.c.b16 %v3604, %v3588
    %v4293 = vpack.c.b16 %v3605, %v3589
    %v4294 = vpack.c.b16 %v3606, %v3590
    %v4295 = vpack.c.b16 %v3607, %v3591
    %v4296 = vpack.c.b16 %v3608, %v3592
    %v4297 = vpack.c.b16 %v3609, %v3593
    %v4298 = vpack.c.b16 %v3610, %v3594
    %v4299 = vpack.c.b16 %v3611, %v3595
    %v4300 = vpack.c.b16 %v3612, %v3596
    %v4301 = vpack.c.b16 %v3613, %v3597
    %v4302 = vpack.c.b16 %v3614, %v3598
    %v4303 = vpack.c.b16 %v3615, %v3599
    %v4304 = vpack.c.b16 %v3616, %v3600
    %v4305 = vpack.c.b16 %v3617, %v3601
    %v4306 = vpack.c.b16 %v3634, %v3618
    %v4307 = vpack.c.b16 %v3635, %v3619
    %v4308 = vpack.c.b16 %v3636, %v3620
    %v4309 = vpack.c.b16 %v3637, %v3621
    %v4310 = vpack.c.b16 %v3638, %v3622
    %v4311 = vpack.c.b16 %v3639, %v3623
    %v4312 = vpack.c.b16 %v3640, %v3624
    %v4313 = vpack.c.b16 %v3641, %v3625
    %v4314 = vpack.c.b16 %v3642, %v3626
    %v4315 = vpack.c.b16 %v3643, %v3627
    %v4316 = vpack.c.b16 %v3644, %v3628
    %v4317 = vpack.c.b16 %v3645, %v3629
    %v4318 = vpack.c.b16 %v3646, %v3630
    %v4319 = vpack.c.b16 %v3647, %v3631
    %v4320 = vpack.c.b16 %v3648, %v3632
    %v4321 = vpack.c.b16 %v3649, %v3633
    %v4322 = vpack.c.b16 %v3666, %v3650
    %v4323 = vpack.c.b16 %v3667, %v3651
    %v4324 = vpack.c.b16 %v3668, %v3652
    %v4325 = vpack.c.b16 %v3669, %v3653
    %v4326 = vpack.c.b16 %v3670, %v3654
    %v4327 = vpack.c.b16 %v3671, %v3655
    %v4328 = vpack.c.b16 %v3672, %v3656
    %v4329 = vpack.c.b16 %v3673, %v3657
    %v4330 = vpack.c.b16 %v3674, %v3658
    %v4331 = vpack.c.b16 %v3675, %v3659
    %v4332 = vpack.c.b16 %v3676, %v3660
    %v4333 = vpack.c.b16 %v3677, %v3661
    %v4334 = vpack.c.b16 %v3678, %v3662
    %v4335 = vpack.c.b16 %v3679, %v3663
    %v4336 = vpack.c.b16 %v3680, %v3664
    %v4337 = vpack.c.b16 %v3681, %v3665
    %v4338 = vpack.c.b16 %v3698, %v3682
    %v4339 = vpack.c.b16 %v3699, %v3683
    %v4340 = vpack.c.b16 %v3700, %v3684
    %v4341 = vpack.c.b16 %v3701, %v3685
    %v4342 = vpack.c.b16 %v3702, %v3686
    %v4343 = vpack.c.b16 %v3703, %v3687
    %v4344 = vpack.c.b16 %v3704, %v3688
    %v4345 = vpack.c.b16 %v3705, %v3689
    %v4346 = vpack.c.b16 %v3706, %v3690
    %v4347 = vpack.c.b16 %v3707, %v3691
    %v4348 = vpack.c.b16 %v3708, %v3692
    %v4349 = vpack.c.b16 %v3709, %v3693
    %v4350 = vpack.c.b16 %v3710, %v3694
    %v4351 = vpack.c.b16 %v3711, %v3695
    %v4352 = vpack.c.b16 %v3712, %v3696
    %v4353 = vpack.c.b16 %v3713, %v3697
    %v4354 = vpack.c.b16 %v3730, %v3714
    %v4355 = vpack.c.b16 %v3731, %v3715
    %v4356 = vpack.c.b16 %v3732, %v3716
    %v4357 = vpack.c.b16 %v3733, %v3717
    %v4358 = vpack.c.b16 %v3734, %v3718
    %v4359 = vpack.c.b16 %v3735, %v3719
    %v4360 = vpack.c.b16 %v3736, %v3720
    %v4361 = vpack.c.b16 %v3737, %v3721
    %v4362 = vpack.c.b16 %v3738, %v3722
    %v4363 = vpack.c.b16 %v3739, %v3723
    %v4364 = vpack.c.b16 %v3740, %v3724
    %v4365 = vpack.c.b16 %v3741, %v3725
    %v4366 = vpack.c.b16 %v3742, %v3726
    %v4367 = vpack.c.b16 %v3743, %v3727
    %v4368 = vpack.c.b16 %v3744, %v3728
    %v4369 = vpack.c.b16 %v3745, %v3729
    %v4370 = vpack.c.b16 %v3762, %v3746
    %v4371 = vpack.c.b16 %v3763, %v3747
    %v4372 = vpack.c.b16 %v3764, %v3748
    %v4373 = vpack.c.b16 %v3765, %v3749
    %v4374 = vpack.c.b16 %v3766, %v3750
    %v4375 = vpack.c.b16 %v3767, %v3751
    %v4376 = vpack.c.b16 %v3768, %v3752
    %v4377 = vpack.c.b16 %v3769, %v3753
    %v4378 = vpack.c.b16 %v3770, %v3754
    %v4379 = vpack.c.b16 %v3771, %v3755
    %v4380 = vpack.c.b16 %v3772, %v3756
    %v4381 = vpack.c.b16 %v3773, %v3757
    %v4382 = vpack.c.b16 %v3774, %v3758
    %v4383 = vpack.c.b16 %v3775, %v3759
    %v4384 = vpack.c.b16 %v3776, %v3760
    %v4385 = vpack.c.b16 %v3777, %v3761
    %v4386 = vpack.c.b16 %v3794, %v3778
    %v4387 = vpack.c.b16 %v3795, %v3779
    %v4388 = vpack.c.b16 %v3796, %v3780
    %v4389 = vpack.c.b16 %v3797, %v3781
    %v4390 = vpack.c.b16 %v3798, %v3782
    %v4391 = vpack.c.b16 %v3799, %v3783
    %v4392 = vpack.c.b16 %v3800, %v3784
    %v4393 = vpack.c.b16 %v3801, %v3785
    %v4394 = vpack.c.b16 %v3802, %v3786
    %v4395 = vpack.c.b16 %v3803, %v3787
    %v4396 = vpack.c.b16 %v3804, %v3788
    %v4397 = vpack.c.b16 %v3805, %v3789
    %v4398 = vpack.c.b16 %v3806, %v3790
    %v4399 = vpack.c.b16 %v3807, %v3791
    %v4400 = vpack.c.b16 %v3808, %v3792
    %v4401 = vpack.c.b16 %v3809, %v3793
    %v4402 = vpack.c.b16 %v3826, %v3810
    %v4403 = vpack.c.b16 %v3827, %v3811
    %v4404 = vpack.c.b16 %v3828, %v3812
    %v4405 = vpack.c.b16 %v3829, %v3813
    %v4406 = vpack.c.b16 %v3830, %v3814
    %v4407 = vpack.c.b16 %v3831, %v3815
    %v4408 = vpack.c.b16 %v3832, %v3816
    %v4409 = vpack.c.b16 %v3833, %v3817
    %v4410 = vpack.c.b16 %v3834, %v3818
    %v4411 = vpack.c.b16 %v3835, %v3819
    %v4412 = vpack.c.b16 %v3836, %v3820
    %v4413 = vpack.c.b16 %v3837, %v3821
    %v4414 = vpack.c.b16 %v3838, %v3822
    %v4415 = vpack.c.b16 %v3839, %v3823
    %v4416 = vpack.c.b16 %v3840, %v3824
    %v4417 = vpack.c.b16 %v3841, %v3825
    %v4418 = vpack.c.b16 %v3858, %v3842
    %v4419 = vpack.c.b16 %v3859, %v3843
    %v4420 = vpack.c.b16 %v3860, %v3844
    %v4421 = vpack.c.b16 %v3861, %v3845
    %v4422 = vpack.c.b16 %v3862, %v3846
    %v4423 = vpack.c.b16 %v3863, %v3847
    %v4424 = vpack.c.b16 %v3864, %v3848
    %v4425 = vpack.c.b16 %v3865, %v3849
    %v4426 = vpack.c.b16 %v3866, %v3850
    %v4427 = vpack.c.b16 %v3867, %v3851
    %v4428 = vpack.c.b16 %v3868, %v3852
    %v4429 = vpack.c.b16 %v3869, %v3853
    %v4430 = vpack.c.b16 %v3870, %v3854
    %v4431 = vpack.c.b16 %v3871, %v3855
    %v4432 = vpack.c.b16 %v3872, %v3856
    %v4433 = vpack.c.b16 %v3873, %v3857
    %v4434 = vpack.c.b16 %v3890, %v3874
    %v4435 = vpack.c.b16 %v3891, %v3875
    %v4436 = vpack.c.b16 %v3892, %v3876
    %v4437 = vpack.c.b16 %v3893, %v3877
    %v4438 = vpack.c.b16 %v3894, %v3878
    %v4439 = vpack.c.b16 %v3895, %v3879
    %v4440 = vpack.c.b16 %v3896, %v3880
    %v4441 = vpack.c.b16 %v3897, %v3881
    %v4442 = vpack.c.b16 %v3898, %v3882
    %v4443 = vpack.c.b16 %v3899, %v3883
    %v4444 = vpack.c.b16 %v3900, %v3884
    %v4445 = vpack.c.b16 %v3901, %v3885
    %v4446 = vpack.c.b16 %v3902, %v3886
    %v4447 = vpack.c.b16 %v3903, %v3887
    %v4448 = vpack.c.b16 %v3904, %v3888
    %v4449 = vpack.c.b16 %v3905, %v3889
    %v4450 = vpack.c.b16 %v3922, %v3906
    %v4451 = vpack.c.b16 %v3923, %v3907
    %v4452 = vpack.c.b16 %v3924, %v3908
    %v4453 = vpack.c.b16 %v3925, %v3909
    %v4454 = vpack.c.b16 %v3926, %v3910
    %v4455 = vpack.c.b16 %v3927, %v3911
    %v4456 = vpack.c.b16 %v3928, %v3912
    %v4457 = vpack.c.b16 %v3929, %v3913
    %v4458 = vpack.c.b16 %v3930, %v3914
    %v4459 = vpack.c.b16 %v3931, %v3915
    %v4460 = vpack.c.b16 %v3932, %v3916
    %v4461 = vpack.c.b16 %v3933, %v3917
    %v4462 = vpack.c.b16 %v3934, %v3918
    %v4463 = vpack.c.b16 %v3935, %v3919
    %v4464 = vpack.c.b16 %v3936, %v3920
    %v4465 = vpack.c.b16 %v3937, %v3921
    %v4466 = vpack.c.b16 %v3954, %v3938
    %v4467 = vpack.c.b16 %v3955, %v3939
    %v4468 = vpack.c.b16 %v3956, %v3940
    %v4469 = vpack.c.b16 %v3957, %v3941
    %v4470 = vpack.c.b16 %v3958, %v3942
    %v4471 = vpack.c.b16 %v3959, %v3943
    %v4472 = vpack.c.b16 %v3960, %v3944
    %v4473 = vpack.c.b16 %v3961, %v3945
    %v4474 = vpack.c.b16 %v3962, %v3946
    %v4475 = vpack.c.b16 %v3963, %v3947
    %v4476 = vpack.c.b16 %v3964, %v3948
    %v4477 = vpack.c.b16 %v3965, %v3949
    %v4478 = vpack.c.b16 %v3966, %v3950
    %v4479 = vpack.c.b16 %v3967, %v3951
    %v4480 = vpack.c.b16 %v3968, %v3952
    %v4481 = vpack.c.b16 %v3969, %v3953
    %4994 = vmatpush.bf16.msra.mxu0 %v4082
    %4995 = vmatpush.bf16.msra.mxu0 %v4066
    %4996 = vmatpush.bf16.msra.mxu0 %v4050
    %4997 = vmatpush.bf16.msra.mxu0 %v4034
    %4998 = vmatpush.bf16.msra.mxu0 %v4018
    %4999 = vmatpush.bf16.msra.mxu0 %v4002
    %5000 = vmatpush.bf16.msra.mxu0 %v3986
    %5001 = vmatpush.bf16.msra.mxu0 %v3970
    %5002 = vmatmul.bf16.gmra.mxu0 %v1918
    %v5003 = vpop.f32.mrf.mxu0
    %v5004 = vadd.f32 0.0, %v5003
    %v5005 = vpop.f32.mrf.mxu0
    %v5006 = vadd.f32 0.0, %v5005
    %5007 = vdwg.mxu0
    %5008 = vmatpush.bf16.msra.mxu0 %v4210
    %5009 = vmatpush.bf16.msra.mxu0 %v4194
    %5010 = vmatpush.bf16.msra.mxu0 %v4178
    %5011 = vmatpush.bf16.msra.mxu0 %v4162
    %5012 = vmatpush.bf16.msra.mxu0 %v4146
    %5013 = vmatpush.bf16.msra.mxu0 %v4130
    %5014 = vmatpush.bf16.msra.mxu0 %v4114
    %5015 = vmatpush.bf16.msra.mxu0 %v4098
    %5016 = vmatmul.bf16.gmra.mxu0 %v1919
    %v5017 = vpop.f32.mrf.mxu0
    %v5018 = vadd.f32 %v5004, %v5017
    %v5019 = vpop.f32.mrf.mxu0
    %v5020 = vadd.f32 %v5006, %v5019
    %5021 = vdwg.mxu0
    %5022 = vmatpush.bf16.msra.mxu0 %v4338
    %5023 = vmatpush.bf16.msra.mxu0 %v4322
    %5024 = vmatpush.bf16.msra.mxu0 %v4306
    %5025 = vmatpush.bf16.msra.mxu0 %v4290
    %5026 = vmatpush.bf16.msra.mxu0 %v4274
    %5027 = vmatpush.bf16.msra.mxu0 %v4258
    %5028 = vmatpush.bf16.msra.mxu0 %v4242
    %5029 = vmatpush.bf16.msra.mxu0 %v4226
    %5030 = vmatmul.bf16.gmra.mxu0 %v1920
    %v5031 = vpop.f32.mrf.mxu0
    %v5032 = vadd.f32 %v5018, %v5031
    %v5033 = vpop.f32.mrf.mxu0
    %v5034 = vadd.f32 %v5020, %v5033
    %5035 = vdwg.mxu0
    %5036 = vmatpush.bf16.msra.mxu0 %v4466
    %5037 = vmatpush.bf16.msra.mxu0 %v4450
    %5038 = vmatpush.bf16.msra.mxu0 %v4434
    %5039 = vmatpush.bf16.msra.mxu0 %v4418
    %5040 = vmatpush.bf16.msra.mxu0 %v4402
    %5041 = vmatpush.bf16.msra.mxu0 %v4386
    %5042 = vmatpush.bf16.msra.mxu0 %v4370
    %5043 = vmatpush.bf16.msra.mxu0 %v4354
    %5044 = vmatmul.bf16.gmra.mxu0 %v1921
    %v5045 = vpop.f32.mrf.mxu0
    %v5046 = vadd.f32 %v5032, %v5045
    %v5047 = vpop.f32.mrf.mxu0
    %v5048 = vadd.f32 %v5034, %v5047
    %5049 = vdwg.mxu0
    %5050 = vmatpush.bf16.msra.mxu0 %v4083
    %5051 = vmatpush.bf16.msra.mxu0 %v4067
    %5052 = vmatpush.bf16.msra.mxu0 %v4051
    %5053 = vmatpush.bf16.msra.mxu0 %v4035
    %5054 = vmatpush.bf16.msra.mxu0 %v4019
    %5055 = vmatpush.bf16.msra.mxu0 %v4003
    %5056 = vmatpush.bf16.msra.mxu0 %v3987
    %5057 = vmatpush.bf16.msra.mxu0 %v3971
    %5058 = vmatmul.bf16.gmra.mxu0 %v1918
    %v5059 = vpop.f32.mrf.mxu0
    %v5060 = vadd.f32 0.0, %v5059
    %v5061 = vpop.f32.mrf.mxu0
    %v5062 = vadd.f32 0.0, %v5061
    %5063 = vdwg.mxu0
    %5064 = vmatpush.bf16.msra.mxu0 %v4211
    %5065 = vmatpush.bf16.msra.mxu0 %v4195
    %5066 = vmatpush.bf16.msra.mxu0 %v4179
    %5067 = vmatpush.bf16.msra.mxu0 %v4163
    %5068 = vmatpush.bf16.msra.mxu0 %v4147
    %5069 = vmatpush.bf16.msra.mxu0 %v4131
    %5070 = vmatpush.bf16.msra.mxu0 %v4115
    %5071 = vmatpush.bf16.msra.mxu0 %v4099
    %5072 = vmatmul.bf16.gmra.mxu0 %v1919
    %v5073 = vpop.f32.mrf.mxu0
    %v5074 = vadd.f32 %v5060, %v5073
    %v5075 = vpop.f32.mrf.mxu0
    %v5076 = vadd.f32 %v5062, %v5075
    %5077 = vdwg.mxu0
    %5078 = vmatpush.bf16.msra.mxu0 %v4339
    %5079 = vmatpush.bf16.msra.mxu0 %v4323
    %5080 = vmatpush.bf16.msra.mxu0 %v4307
    %5081 = vmatpush.bf16.msra.mxu0 %v4291
    %5082 = vmatpush.bf16.msra.mxu0 %v4275
    %5083 = vmatpush.bf16.msra.mxu0 %v4259
    %5084 = vmatpush.bf16.msra.mxu0 %v4243
    %5085 = vmatpush.bf16.msra.mxu0 %v4227
    %5086 = vmatmul.bf16.gmra.mxu0 %v1920
    %v5087 = vpop.f32.mrf.mxu0
    %v5088 = vadd.f32 %v5074, %v5087
    %v5089 = vpop.f32.mrf.mxu0
    %v5090 = vadd.f32 %v5076, %v5089
    %5091 = vdwg.mxu0
    %5092 = vmatpush.bf16.msra.mxu0 %v4467
    %5093 = vmatpush.bf16.msra.mxu0 %v4451
    %5094 = vmatpush.bf16.msra.mxu0 %v4435
    %5095 = vmatpush.bf16.msra.mxu0 %v4419
    %5096 = vmatpush.bf16.msra.mxu0 %v4403
    %5097 = vmatpush.bf16.msra.mxu0 %v4387
    %5098 = vmatpush.bf16.msra.mxu0 %v4371
    %5099 = vmatpush.bf16.msra.mxu0 %v4355
    %5100 = vmatmul.bf16.gmra.mxu0 %v1921
    %v5101 = vpop.f32.mrf.mxu0
    %v5102 = vadd.f32 %v5088, %v5101
    %v5103 = vpop.f32.mrf.mxu0
    %v5104 = vadd.f32 %v5090, %v5103
    %5105 = vdwg.mxu0
    %5106 = vmatpush.bf16.msra.mxu0 %v4084
    %5107 = vmatpush.bf16.msra.mxu0 %v4068
    %5108 = vmatpush.bf16.msra.mxu0 %v4052
    %5109 = vmatpush.bf16.msra.mxu0 %v4036
    %5110 = vmatpush.bf16.msra.mxu0 %v4020
    %5111 = vmatpush.bf16.msra.mxu0 %v4004
    %5112 = vmatpush.bf16.msra.mxu0 %v3988
    %5113 = vmatpush.bf16.msra.mxu0 %v3972
    %5114 = vmatmul.bf16.gmra.mxu0 %v1918
    %v5115 = vpop.f32.mrf.mxu0
    %v5116 = vadd.f32 0.0, %v5115
    %v5117 = vpop.f32.mrf.mxu0
    %v5118 = vadd.f32 0.0, %v5117
    %5119 = vdwg.mxu0
    %5120 = vmatpush.bf16.msra.mxu0 %v4212
    %5121 = vmatpush.bf16.msra.mxu0 %v4196
    %5122 = vmatpush.bf16.msra.mxu0 %v4180
    %5123 = vmatpush.bf16.msra.mxu0 %v4164
    %5124 = vmatpush.bf16.msra.mxu0 %v4148
    %5125 = vmatpush.bf16.msra.mxu0 %v4132
    %5126 = vmatpush.bf16.msra.mxu0 %v4116
    %5127 = vmatpush.bf16.msra.mxu0 %v4100
    %5128 = vmatmul.bf16.gmra.mxu0 %v1919
    %v5129 = vpop.f32.mrf.mxu0
    %v5130 = vadd.f32 %v5116, %v5129
    %v5131 = vpop.f32.mrf.mxu0
    %v5132 = vadd.f32 %v5118, %v5131
    %5133 = vdwg.mxu0
    %5134 = vmatpush.bf16.msra.mxu0 %v4340
    %5135 = vmatpush.bf16.msra.mxu0 %v4324
    %5136 = vmatpush.bf16.msra.mxu0 %v4308
    %5137 = vmatpush.bf16.msra.mxu0 %v4292
    %5138 = vmatpush.bf16.msra.mxu0 %v4276
    %5139 = vmatpush.bf16.msra.mxu0 %v4260
    %5140 = vmatpush.bf16.msra.mxu0 %v4244
    %5141 = vmatpush.bf16.msra.mxu0 %v4228
    %5142 = vmatmul.bf16.gmra.mxu0 %v1920
    %v5143 = vpop.f32.mrf.mxu0
    %v5144 = vadd.f32 %v5130, %v5143
    %v5145 = vpop.f32.mrf.mxu0
    %v5146 = vadd.f32 %v5132, %v5145
    %5147 = vdwg.mxu0
    %5148 = vmatpush.bf16.msra.mxu0 %v4468
    %5149 = vmatpush.bf16.msra.mxu0 %v4452
    %5150 = vmatpush.bf16.msra.mxu0 %v4436
    %5151 = vmatpush.bf16.msra.mxu0 %v4420
    %5152 = vmatpush.bf16.msra.mxu0 %v4404
    %5153 = vmatpush.bf16.msra.mxu0 %v4388
    %5154 = vmatpush.bf16.msra.mxu0 %v4372
    %5155 = vmatpush.bf16.msra.mxu0 %v4356
    %5156 = vmatmul.bf16.gmra.mxu0 %v1921
    %v5157 = vpop.f32.mrf.mxu0
    %v5158 = vadd.f32 %v5144, %v5157
    %v5159 = vpop.f32.mrf.mxu0
    %v5160 = vadd.f32 %v5146, %v5159
    %5161 = vdwg.mxu0
    %5162 = vmatpush.bf16.msra.mxu0 %v4085
    %5163 = vmatpush.bf16.msra.mxu0 %v4069
    %5164 = vmatpush.bf16.msra.mxu0 %v4053
    %5165 = vmatpush.bf16.msra.mxu0 %v4037
    %5166 = vmatpush.bf16.msra.mxu0 %v4021
    %5167 = vmatpush.bf16.msra.mxu0 %v4005
    %5168 = vmatpush.bf16.msra.mxu0 %v3989
    %5169 = vmatpush.bf16.msra.mxu0 %v3973
    %5170 = vmatmul.bf16.gmra.mxu0 %v1918
    %v5171 = vpop.f32.mrf.mxu0
    %v5172 = vadd.f32 0.0, %v5171
    %v5173 = vpop.f32.mrf.mxu0
    %v5174 = vadd.f32 0.0, %v5173
    %5175 = vdwg.mxu0
    %5176 = vmatpush.bf16.msra.mxu0 %v4213
    %5177 = vmatpush.bf16.msra.mxu0 %v4197
    %5178 = vmatpush.bf16.msra.mxu0 %v4181
    %5179 = vmatpush.bf16.msra.mxu0 %v4165
    %5180 = vmatpush.bf16.msra.mxu0 %v4149
    %5181 = vmatpush.bf16.msra.mxu0 %v4133
    %5182 = vmatpush.bf16.msra.mxu0 %v4117
    %5183 = vmatpush.bf16.msra.mxu0 %v4101
    %5184 = vmatmul.bf16.gmra.mxu0 %v1919
    %v5185 = vpop.f32.mrf.mxu0
    %v5186 = vadd.f32 %v5172, %v5185
    %v5187 = vpop.f32.mrf.mxu0
    %v5188 = vadd.f32 %v5174, %v5187
    %5189 = vdwg.mxu0
    %5190 = vmatpush.bf16.msra.mxu0 %v4341
    %5191 = vmatpush.bf16.msra.mxu0 %v4325
    %5192 = vmatpush.bf16.msra.mxu0 %v4309
    %5193 = vmatpush.bf16.msra.mxu0 %v4293
    %5194 = vmatpush.bf16.msra.mxu0 %v4277
    %5195 = vmatpush.bf16.msra.mxu0 %v4261
    %5196 = vmatpush.bf16.msra.mxu0 %v4245
    %5197 = vmatpush.bf16.msra.mxu0 %v4229
    %5198 = vmatmul.bf16.gmra.mxu0 %v1920
    %v5199 = vpop.f32.mrf.mxu0
    %v5200 = vadd.f32 %v5186, %v5199
    %v5201 = vpop.f32.mrf.mxu0
    %v5202 = vadd.f32 %v5188, %v5201
    %5203 = vdwg.mxu0
    %5204 = vmatpush.bf16.msra.mxu0 %v4469
    %5205 = vmatpush.bf16.msra.mxu0 %v4453
    %5206 = vmatpush.bf16.msra.mxu0 %v4437
    %5207 = vmatpush.bf16.msra.mxu0 %v4421
    %5208 = vmatpush.bf16.msra.mxu0 %v4405
    %5209 = vmatpush.bf16.msra.mxu0 %v4389
    %5210 = vmatpush.bf16.msra.mxu0 %v4373
    %5211 = vmatpush.bf16.msra.mxu0 %v4357
    %5212 = vmatmul.bf16.gmra.mxu0 %v1921
    %v5213 = vpop.f32.mrf.mxu0
    %v5214 = vadd.f32 %v5200, %v5213
    %v5215 = vpop.f32.mrf.mxu0
    %v5216 = vadd.f32 %v5202, %v5215
    %5217 = vdwg.mxu0
    %5218 = vmatpush.bf16.msra.mxu0 %v4086
    %5219 = vmatpush.bf16.msra.mxu0 %v4070
    %5220 = vmatpush.bf16.msra.mxu0 %v4054
    %5221 = vmatpush.bf16.msra.mxu0 %v4038
    %5222 = vmatpush.bf16.msra.mxu0 %v4022
    %5223 = vmatpush.bf16.msra.mxu0 %v4006
    %5224 = vmatpush.bf16.msra.mxu0 %v3990
    %5225 = vmatpush.bf16.msra.mxu0 %v3974
    %5226 = vmatmul.bf16.gmra.mxu0 %v1918
    %v5227 = vpop.f32.mrf.mxu0
    %v5228 = vadd.f32 0.0, %v5227
    %v5229 = vpop.f32.mrf.mxu0
    %v5230 = vadd.f32 0.0, %v5229
    %5231 = vdwg.mxu0
    %5232 = vmatpush.bf16.msra.mxu0 %v4214
    %5233 = vmatpush.bf16.msra.mxu0 %v4198
    %5234 = vmatpush.bf16.msra.mxu0 %v4182
    %5235 = vmatpush.bf16.msra.mxu0 %v4166
    %5236 = vmatpush.bf16.msra.mxu0 %v4150
    %5237 = vmatpush.bf16.msra.mxu0 %v4134
    %5238 = vmatpush.bf16.msra.mxu0 %v4118
    %5239 = vmatpush.bf16.msra.mxu0 %v4102
    %5240 = vmatmul.bf16.gmra.mxu0 %v1919
    %v5241 = vpop.f32.mrf.mxu0
    %v5242 = vadd.f32 %v5228, %v5241
    %v5243 = vpop.f32.mrf.mxu0
    %v5244 = vadd.f32 %v5230, %v5243
    %5245 = vdwg.mxu0
    %5246 = vmatpush.bf16.msra.mxu0 %v4342
    %5247 = vmatpush.bf16.msra.mxu0 %v4326
    %5248 = vmatpush.bf16.msra.mxu0 %v4310
    %5249 = vmatpush.bf16.msra.mxu0 %v4294
    %5250 = vmatpush.bf16.msra.mxu0 %v4278
    %5251 = vmatpush.bf16.msra.mxu0 %v4262
    %5252 = vmatpush.bf16.msra.mxu0 %v4246
    %5253 = vmatpush.bf16.msra.mxu0 %v4230
    %5254 = vmatmul.bf16.gmra.mxu0 %v1920
    %v5255 = vpop.f32.mrf.mxu0
    %v5256 = vadd.f32 %v5242, %v5255
    %v5257 = vpop.f32.mrf.mxu0
    %v5258 = vadd.f32 %v5244, %v5257
    %5259 = vdwg.mxu0
    %5260 = vmatpush.bf16.msra.mxu0 %v4470
    %5261 = vmatpush.bf16.msra.mxu0 %v4454
    %5262 = vmatpush.bf16.msra.mxu0 %v4438
    %5263 = vmatpush.bf16.msra.mxu0 %v4422
    %5264 = vmatpush.bf16.msra.mxu0 %v4406
    %5265 = vmatpush.bf16.msra.mxu0 %v4390
    %5266 = vmatpush.bf16.msra.mxu0 %v4374
    %5267 = vmatpush.bf16.msra.mxu0 %v4358
    %5268 = vmatmul.bf16.gmra.mxu0 %v1921
    %v5269 = vpop.f32.mrf.mxu0
    %v5270 = vadd.f32 %v5256, %v5269
    %v5271 = vpop.f32.mrf.mxu0
    %v5272 = vadd.f32 %v5258, %v5271
    %5273 = vdwg.mxu0
    %5274 = vmatpush.bf16.msra.mxu0 %v4087
    %5275 = vmatpush.bf16.msra.mxu0 %v4071
    %5276 = vmatpush.bf16.msra.mxu0 %v4055
    %5277 = vmatpush.bf16.msra.mxu0 %v4039
    %5278 = vmatpush.bf16.msra.mxu0 %v4023
    %5279 = vmatpush.bf16.msra.mxu0 %v4007
    %5280 = vmatpush.bf16.msra.mxu0 %v3991
    %5281 = vmatpush.bf16.msra.mxu0 %v3975
    %5282 = vmatmul.bf16.gmra.mxu0 %v1918
    %v5283 = vpop.f32.mrf.mxu0
    %v5284 = vadd.f32 0.0, %v5283
    %v5285 = vpop.f32.mrf.mxu0
    %v5286 = vadd.f32 0.0, %v5285
    %5287 = vdwg.mxu0
    %5288 = vmatpush.bf16.msra.mxu0 %v4215
    %5289 = vmatpush.bf16.msra.mxu0 %v4199
    %5290 = vmatpush.bf16.msra.mxu0 %v4183
    %5291 = vmatpush.bf16.msra.mxu0 %v4167
    %5292 = vmatpush.bf16.msra.mxu0 %v4151
    %5293 = vmatpush.bf16.msra.mxu0 %v4135
    %5294 = vmatpush.bf16.msra.mxu0 %v4119
    %5295 = vmatpush.bf16.msra.mxu0 %v4103
    %5296 = vmatmul.bf16.gmra.mxu0 %v1919
    %v5297 = vpop.f32.mrf.mxu0
    %v5298 = vadd.f32 %v5284, %v5297
    %v5299 = vpop.f32.mrf.mxu0
    %v5300 = vadd.f32 %v5286, %v5299
    %5301 = vdwg.mxu0
    %5302 = vmatpush.bf16.msra.mxu0 %v4343
    %5303 = vmatpush.bf16.msra.mxu0 %v4327
    %5304 = vmatpush.bf16.msra.mxu0 %v4311
    %5305 = vmatpush.bf16.msra.mxu0 %v4295
    %5306 = vmatpush.bf16.msra.mxu0 %v4279
    %5307 = vmatpush.bf16.msra.mxu0 %v4263
    %5308 = vmatpush.bf16.msra.mxu0 %v4247
    %5309 = vmatpush.bf16.msra.mxu0 %v4231
    %5310 = vmatmul.bf16.gmra.mxu0 %v1920
    %v5311 = vpop.f32.mrf.mxu0
    %v5312 = vadd.f32 %v5298, %v5311
    %v5313 = vpop.f32.mrf.mxu0
    %v5314 = vadd.f32 %v5300, %v5313
    %5315 = vdwg.mxu0
    %5316 = vmatpush.bf16.msra.mxu0 %v4471
    %5317 = vmatpush.bf16.msra.mxu0 %v4455
    %5318 = vmatpush.bf16.msra.mxu0 %v4439
    %5319 = vmatpush.bf16.msra.mxu0 %v4423
    %5320 = vmatpush.bf16.msra.mxu0 %v4407
    %5321 = vmatpush.bf16.msra.mxu0 %v4391
    %5322 = vmatpush.bf16.msra.mxu0 %v4375
    %5323 = vmatpush.bf16.msra.mxu0 %v4359
    %5324 = vmatmul.bf16.gmra.mxu0 %v1921
    %v5325 = vpop.f32.mrf.mxu0
    %v5326 = vadd.f32 %v5312, %v5325
    %v5327 = vpop.f32.mrf.mxu0
    %v5328 = vadd.f32 %v5314, %v5327
    %5329 = vdwg.mxu0
    %5330 = vmatpush.bf16.msra.mxu0 %v4088
    %5331 = vmatpush.bf16.msra.mxu0 %v4072
    %5332 = vmatpush.bf16.msra.mxu0 %v4056
    %5333 = vmatpush.bf16.msra.mxu0 %v4040
    %5334 = vmatpush.bf16.msra.mxu0 %v4024
    %5335 = vmatpush.bf16.msra.mxu0 %v4008
    %5336 = vmatpush.bf16.msra.mxu0 %v3992
    %5337 = vmatpush.bf16.msra.mxu0 %v3976
    %5338 = vmatmul.bf16.gmra.mxu0 %v1918
    %v5339 = vpop.f32.mrf.mxu0
    %v5340 = vadd.f32 0.0, %v5339
    %v5341 = vpop.f32.mrf.mxu0
    %v5342 = vadd.f32 0.0, %v5341
    %5343 = vdwg.mxu0
    %5344 = vmatpush.bf16.msra.mxu0 %v4216
    %5345 = vmatpush.bf16.msra.mxu0 %v4200
    %5346 = vmatpush.bf16.msra.mxu0 %v4184
    %5347 = vmatpush.bf16.msra.mxu0 %v4168
    %5348 = vmatpush.bf16.msra.mxu0 %v4152
    %5349 = vmatpush.bf16.msra.mxu0 %v4136
    %5350 = vmatpush.bf16.msra.mxu0 %v4120
    %5351 = vmatpush.bf16.msra.mxu0 %v4104
    %5352 = vmatmul.bf16.gmra.mxu0 %v1919
    %v5353 = vpop.f32.mrf.mxu0
    %v5354 = vadd.f32 %v5340, %v5353
    %v5355 = vpop.f32.mrf.mxu0
    %v5356 = vadd.f32 %v5342, %v5355
    %5357 = vdwg.mxu0
    %5358 = vmatpush.bf16.msra.mxu0 %v4344
    %5359 = vmatpush.bf16.msra.mxu0 %v4328
    %5360 = vmatpush.bf16.msra.mxu0 %v4312
    %5361 = vmatpush.bf16.msra.mxu0 %v4296
    %5362 = vmatpush.bf16.msra.mxu0 %v4280
    %5363 = vmatpush.bf16.msra.mxu0 %v4264
    %5364 = vmatpush.bf16.msra.mxu0 %v4248
    %5365 = vmatpush.bf16.msra.mxu0 %v4232
    %5366 = vmatmul.bf16.gmra.mxu0 %v1920
    %v5367 = vpop.f32.mrf.mxu0
    %v5368 = vadd.f32 %v5354, %v5367
    %v5369 = vpop.f32.mrf.mxu0
    %v5370 = vadd.f32 %v5356, %v5369
    %5371 = vdwg.mxu0
    %5372 = vmatpush.bf16.msra.mxu0 %v4472
    %5373 = vmatpush.bf16.msra.mxu0 %v4456
    %5374 = vmatpush.bf16.msra.mxu0 %v4440
    %5375 = vmatpush.bf16.msra.mxu0 %v4424
    %5376 = vmatpush.bf16.msra.mxu0 %v4408
    %5377 = vmatpush.bf16.msra.mxu0 %v4392
    %5378 = vmatpush.bf16.msra.mxu0 %v4376
    %5379 = vmatpush.bf16.msra.mxu0 %v4360
    %5380 = vmatmul.bf16.gmra.mxu0 %v1921
    %v5381 = vpop.f32.mrf.mxu0
    %v5382 = vadd.f32 %v5368, %v5381
    %v5383 = vpop.f32.mrf.mxu0
    %v5384 = vadd.f32 %v5370, %v5383
    %5385 = vdwg.mxu0
    %5386 = vmatpush.bf16.msra.mxu0 %v4089
    %5387 = vmatpush.bf16.msra.mxu0 %v4073
    %5388 = vmatpush.bf16.msra.mxu0 %v4057
    %5389 = vmatpush.bf16.msra.mxu0 %v4041
    %5390 = vmatpush.bf16.msra.mxu0 %v4025
    %5391 = vmatpush.bf16.msra.mxu0 %v4009
    %5392 = vmatpush.bf16.msra.mxu0 %v3993
    %5393 = vmatpush.bf16.msra.mxu0 %v3977
    %5394 = vmatmul.bf16.gmra.mxu0 %v1918
    %v5395 = vpop.f32.mrf.mxu0
    %v5396 = vadd.f32 0.0, %v5395
    %v5397 = vpop.f32.mrf.mxu0
    %v5398 = vadd.f32 0.0, %v5397
    %5399 = vdwg.mxu0
    %5400 = vmatpush.bf16.msra.mxu0 %v4217
    %5401 = vmatpush.bf16.msra.mxu0 %v4201
    %5402 = vmatpush.bf16.msra.mxu0 %v4185
    %5403 = vmatpush.bf16.msra.mxu0 %v4169
    %5404 = vmatpush.bf16.msra.mxu0 %v4153
    %5405 = vmatpush.bf16.msra.mxu0 %v4137
    %5406 = vmatpush.bf16.msra.mxu0 %v4121
    %5407 = vmatpush.bf16.msra.mxu0 %v4105
    %5408 = vmatmul.bf16.gmra.mxu0 %v1919
    %v5409 = vpop.f32.mrf.mxu0
    %v5410 = vadd.f32 %v5396, %v5409
    %v5411 = vpop.f32.mrf.mxu0
    %v5412 = vadd.f32 %v5398, %v5411
    %5413 = vdwg.mxu0
    %5414 = vmatpush.bf16.msra.mxu0 %v4345
    %5415 = vmatpush.bf16.msra.mxu0 %v4329
    %5416 = vmatpush.bf16.msra.mxu0 %v4313
    %5417 = vmatpush.bf16.msra.mxu0 %v4297
    %5418 = vmatpush.bf16.msra.mxu0 %v4281
    %5419 = vmatpush.bf16.msra.mxu0 %v4265
    %5420 = vmatpush.bf16.msra.mxu0 %v4249
    %5421 = vmatpush.bf16.msra.mxu0 %v4233
    %5422 = vmatmul.bf16.gmra.mxu0 %v1920
    %v5423 = vpop.f32.mrf.mxu0
    %v5424 = vadd.f32 %v5410, %v5423
    %v5425 = vpop.f32.mrf.mxu0
    %v5426 = vadd.f32 %v5412, %v5425
    %5427 = vdwg.mxu0
    %5428 = vmatpush.bf16.msra.mxu0 %v4473
    %5429 = vmatpush.bf16.msra.mxu0 %v4457
    %5430 = vmatpush.bf16.msra.mxu0 %v4441
    %5431 = vmatpush.bf16.msra.mxu0 %v4425
    %5432 = vmatpush.bf16.msra.mxu0 %v4409
    %5433 = vmatpush.bf16.msra.mxu0 %v4393
    %5434 = vmatpush.bf16.msra.mxu0 %v4377
    %5435 = vmatpush.bf16.msra.mxu0 %v4361
    %5436 = vmatmul.bf16.gmra.mxu0 %v1921
    %v5437 = vpop.f32.mrf.mxu0
    %v5438 = vadd.f32 %v5424, %v5437
    %v5439 = vpop.f32.mrf.mxu0
    %v5440 = vadd.f32 %v5426, %v5439
    %5441 = vdwg.mxu0
    %5442 = vmatpush.bf16.msra.mxu0 %v4090
    %5443 = vmatpush.bf16.msra.mxu0 %v4074
    %5444 = vmatpush.bf16.msra.mxu0 %v4058
    %5445 = vmatpush.bf16.msra.mxu0 %v4042
    %5446 = vmatpush.bf16.msra.mxu0 %v4026
    %5447 = vmatpush.bf16.msra.mxu0 %v4010
    %5448 = vmatpush.bf16.msra.mxu0 %v3994
    %5449 = vmatpush.bf16.msra.mxu0 %v3978
    %5450 = vmatmul.bf16.gmra.mxu0 %v1918
    %v5451 = vpop.f32.mrf.mxu0
    %v5452 = vadd.f32 0.0, %v5451
    %v5453 = vpop.f32.mrf.mxu0
    %v5454 = vadd.f32 0.0, %v5453
    %5455 = vdwg.mxu0
    %5456 = vmatpush.bf16.msra.mxu0 %v4218
    %5457 = vmatpush.bf16.msra.mxu0 %v4202
    %5458 = vmatpush.bf16.msra.mxu0 %v4186
    %5459 = vmatpush.bf16.msra.mxu0 %v4170
    %5460 = vmatpush.bf16.msra.mxu0 %v4154
    %5461 = vmatpush.bf16.msra.mxu0 %v4138
    %5462 = vmatpush.bf16.msra.mxu0 %v4122
    %5463 = vmatpush.bf16.msra.mxu0 %v4106
    %5464 = vmatmul.bf16.gmra.mxu0 %v1919
    %v5465 = vpop.f32.mrf.mxu0
    %v5466 = vadd.f32 %v5452, %v5465
    %v5467 = vpop.f32.mrf.mxu0
    %v5468 = vadd.f32 %v5454, %v5467
    %5469 = vdwg.mxu0
    %5470 = vmatpush.bf16.msra.mxu0 %v4346
    %5471 = vmatpush.bf16.msra.mxu0 %v4330
    %5472 = vmatpush.bf16.msra.mxu0 %v4314
    %5473 = vmatpush.bf16.msra.mxu0 %v4298
    %5474 = vmatpush.bf16.msra.mxu0 %v4282
    %5475 = vmatpush.bf16.msra.mxu0 %v4266
    %5476 = vmatpush.bf16.msra.mxu0 %v4250
    %5477 = vmatpush.bf16.msra.mxu0 %v4234
    %5478 = vmatmul.bf16.gmra.mxu0 %v1920
    %v5479 = vpop.f32.mrf.mxu0
    %v5480 = vadd.f32 %v5466, %v5479
    %v5481 = vpop.f32.mrf.mxu0
    %v5482 = vadd.f32 %v5468, %v5481
    %5483 = vdwg.mxu0
    %5484 = vmatpush.bf16.msra.mxu0 %v4474
    %5485 = vmatpush.bf16.msra.mxu0 %v4458
    %5486 = vmatpush.bf16.msra.mxu0 %v4442
    %5487 = vmatpush.bf16.msra.mxu0 %v4426
    %5488 = vmatpush.bf16.msra.mxu0 %v4410
    %5489 = vmatpush.bf16.msra.mxu0 %v4394
    %5490 = vmatpush.bf16.msra.mxu0 %v4378
    %5491 = vmatpush.bf16.msra.mxu0 %v4362
    %5492 = vmatmul.bf16.gmra.mxu0 %v1921
    %v5493 = vpop.f32.mrf.mxu0
    %v5494 = vadd.f32 %v5480, %v5493
    %v5495 = vpop.f32.mrf.mxu0
    %v5496 = vadd.f32 %v5482, %v5495
    %5497 = vdwg.mxu0
    %5498 = vmatpush.bf16.msra.mxu0 %v4091
    %5499 = vmatpush.bf16.msra.mxu0 %v4075
    %5500 = vmatpush.bf16.msra.mxu0 %v4059
    %5501 = vmatpush.bf16.msra.mxu0 %v4043
    %5502 = vmatpush.bf16.msra.mxu0 %v4027
    %5503 = vmatpush.bf16.msra.mxu0 %v4011
    %5504 = vmatpush.bf16.msra.mxu0 %v3995
    %5505 = vmatpush.bf16.msra.mxu0 %v3979
    %5506 = vmatmul.bf16.gmra.mxu0 %v1918
    %v5507 = vpop.f32.mrf.mxu0
    %v5508 = vadd.f32 0.0, %v5507
    %v5509 = vpop.f32.mrf.mxu0
    %v5510 = vadd.f32 0.0, %v5509
    %5511 = vdwg.mxu0
    %5512 = vmatpush.bf16.msra.mxu0 %v4219
    %5513 = vmatpush.bf16.msra.mxu0 %v4203
    %5514 = vmatpush.bf16.msra.mxu0 %v4187
    %5515 = vmatpush.bf16.msra.mxu0 %v4171
    %5516 = vmatpush.bf16.msra.mxu0 %v4155
    %5517 = vmatpush.bf16.msra.mxu0 %v4139
    %5518 = vmatpush.bf16.msra.mxu0 %v4123
    %5519 = vmatpush.bf16.msra.mxu0 %v4107
    %5520 = vmatmul.bf16.gmra.mxu0 %v1919
    %v5521 = vpop.f32.mrf.mxu0
    %v5522 = vadd.f32 %v5508, %v5521
    %v5523 = vpop.f32.mrf.mxu0
    %v5524 = vadd.f32 %v5510, %v5523
    %5525 = vdwg.mxu0
    %5526 = vmatpush.bf16.msra.mxu0 %v4347
    %5527 = vmatpush.bf16.msra.mxu0 %v4331
    %5528 = vmatpush.bf16.msra.mxu0 %v4315
    %5529 = vmatpush.bf16.msra.mxu0 %v4299
    %5530 = vmatpush.bf16.msra.mxu0 %v4283
    %5531 = vmatpush.bf16.msra.mxu0 %v4267
    %5532 = vmatpush.bf16.msra.mxu0 %v4251
    %5533 = vmatpush.bf16.msra.mxu0 %v4235
    %5534 = vmatmul.bf16.gmra.mxu0 %v1920
    %v5535 = vpop.f32.mrf.mxu0
    %v5536 = vadd.f32 %v5522, %v5535
    %v5537 = vpop.f32.mrf.mxu0
    %v5538 = vadd.f32 %v5524, %v5537
    %5539 = vdwg.mxu0
    %5540 = vmatpush.bf16.msra.mxu0 %v4475
    %5541 = vmatpush.bf16.msra.mxu0 %v4459
    %5542 = vmatpush.bf16.msra.mxu0 %v4443
    %5543 = vmatpush.bf16.msra.mxu0 %v4427
    %5544 = vmatpush.bf16.msra.mxu0 %v4411
    %5545 = vmatpush.bf16.msra.mxu0 %v4395
    %5546 = vmatpush.bf16.msra.mxu0 %v4379
    %5547 = vmatpush.bf16.msra.mxu0 %v4363
    %5548 = vmatmul.bf16.gmra.mxu0 %v1921
    %v5549 = vpop.f32.mrf.mxu0
    %v5550 = vadd.f32 %v5536, %v5549
    %v5551 = vpop.f32.mrf.mxu0
    %v5552 = vadd.f32 %v5538, %v5551
    %5553 = vdwg.mxu0
    %5554 = vmatpush.bf16.msra.mxu0 %v4092
    %5555 = vmatpush.bf16.msra.mxu0 %v4076
    %5556 = vmatpush.bf16.msra.mxu0 %v4060
    %5557 = vmatpush.bf16.msra.mxu0 %v4044
    %5558 = vmatpush.bf16.msra.mxu0 %v4028
    %5559 = vmatpush.bf16.msra.mxu0 %v4012
    %5560 = vmatpush.bf16.msra.mxu0 %v3996
    %5561 = vmatpush.bf16.msra.mxu0 %v3980
    %5562 = vmatmul.bf16.gmra.mxu0 %v1918
    %v5563 = vpop.f32.mrf.mxu0
    %v5564 = vadd.f32 0.0, %v5563
    %v5565 = vpop.f32.mrf.mxu0
    %v5566 = vadd.f32 0.0, %v5565
    %5567 = vdwg.mxu0
    %5568 = vmatpush.bf16.msra.mxu0 %v4220
    %5569 = vmatpush.bf16.msra.mxu0 %v4204
    %5570 = vmatpush.bf16.msra.mxu0 %v4188
    %5571 = vmatpush.bf16.msra.mxu0 %v4172
    %5572 = vmatpush.bf16.msra.mxu0 %v4156
    %5573 = vmatpush.bf16.msra.mxu0 %v4140
    %5574 = vmatpush.bf16.msra.mxu0 %v4124
    %5575 = vmatpush.bf16.msra.mxu0 %v4108
    %5576 = vmatmul.bf16.gmra.mxu0 %v1919
    %v5577 = vpop.f32.mrf.mxu0
    %v5578 = vadd.f32 %v5564, %v5577
    %v5579 = vpop.f32.mrf.mxu0
    %v5580 = vadd.f32 %v5566, %v5579
    %5581 = vdwg.mxu0
    %5582 = vmatpush.bf16.msra.mxu0 %v4348
    %5583 = vmatpush.bf16.msra.mxu0 %v4332
    %5584 = vmatpush.bf16.msra.mxu0 %v4316
    %5585 = vmatpush.bf16.msra.mxu0 %v4300
    %5586 = vmatpush.bf16.msra.mxu0 %v4284
    %5587 = vmatpush.bf16.msra.mxu0 %v4268
    %5588 = vmatpush.bf16.msra.mxu0 %v4252
    %5589 = vmatpush.bf16.msra.mxu0 %v4236
    %5590 = vmatmul.bf16.gmra.mxu0 %v1920
    %v5591 = vpop.f32.mrf.mxu0
    %v5592 = vadd.f32 %v5578, %v5591
    %v5593 = vpop.f32.mrf.mxu0
    %v5594 = vadd.f32 %v5580, %v5593
    %5595 = vdwg.mxu0
    %5596 = vmatpush.bf16.msra.mxu0 %v4476
    %5597 = vmatpush.bf16.msra.mxu0 %v4460
    %5598 = vmatpush.bf16.msra.mxu0 %v4444
    %5599 = vmatpush.bf16.msra.mxu0 %v4428
    %5600 = vmatpush.bf16.msra.mxu0 %v4412
    %5601 = vmatpush.bf16.msra.mxu0 %v4396
    %5602 = vmatpush.bf16.msra.mxu0 %v4380
    %5603 = vmatpush.bf16.msra.mxu0 %v4364
    %5604 = vmatmul.bf16.gmra.mxu0 %v1921
    %v5605 = vpop.f32.mrf.mxu0
    %v5606 = vadd.f32 %v5592, %v5605
    %v5607 = vpop.f32.mrf.mxu0
    %v5608 = vadd.f32 %v5594, %v5607
    %5609 = vdwg.mxu0
    %5610 = vmatpush.bf16.msra.mxu0 %v4093
    %5611 = vmatpush.bf16.msra.mxu0 %v4077
    %5612 = vmatpush.bf16.msra.mxu0 %v4061
    %5613 = vmatpush.bf16.msra.mxu0 %v4045
    %5614 = vmatpush.bf16.msra.mxu0 %v4029
    %5615 = vmatpush.bf16.msra.mxu0 %v4013
    %5616 = vmatpush.bf16.msra.mxu0 %v3997
    %5617 = vmatpush.bf16.msra.mxu0 %v3981
    %5618 = vmatmul.bf16.gmra.mxu0 %v1918
    %v5619 = vpop.f32.mrf.mxu0
    %v5620 = vadd.f32 0.0, %v5619
    %v5621 = vpop.f32.mrf.mxu0
    %v5622 = vadd.f32 0.0, %v5621
    %5623 = vdwg.mxu0
    %5624 = vmatpush.bf16.msra.mxu0 %v4221
    %5625 = vmatpush.bf16.msra.mxu0 %v4205
    %5626 = vmatpush.bf16.msra.mxu0 %v4189
    %5627 = vmatpush.bf16.msra.mxu0 %v4173
    %5628 = vmatpush.bf16.msra.mxu0 %v4157
    %5629 = vmatpush.bf16.msra.mxu0 %v4141
    %5630 = vmatpush.bf16.msra.mxu0 %v4125
    %5631 = vmatpush.bf16.msra.mxu0 %v4109
    %5632 = vmatmul.bf16.gmra.mxu0 %v1919
    %v5633 = vpop.f32.mrf.mxu0
    %v5634 = vadd.f32 %v5620, %v5633
    %v5635 = vpop.f32.mrf.mxu0
    %v5636 = vadd.f32 %v5622, %v5635
    %5637 = vdwg.mxu0
    %5638 = vmatpush.bf16.msra.mxu0 %v4349
    %5639 = vmatpush.bf16.msra.mxu0 %v4333
    %5640 = vmatpush.bf16.msra.mxu0 %v4317
    %5641 = vmatpush.bf16.msra.mxu0 %v4301
    %5642 = vmatpush.bf16.msra.mxu0 %v4285
    %5643 = vmatpush.bf16.msra.mxu0 %v4269
    %5644 = vmatpush.bf16.msra.mxu0 %v4253
    %5645 = vmatpush.bf16.msra.mxu0 %v4237
    %5646 = vmatmul.bf16.gmra.mxu0 %v1920
    %v5647 = vpop.f32.mrf.mxu0
    %v5648 = vadd.f32 %v5634, %v5647
    %v5649 = vpop.f32.mrf.mxu0
    %v5650 = vadd.f32 %v5636, %v5649
    %5651 = vdwg.mxu0
    %5652 = vmatpush.bf16.msra.mxu0 %v4477
    %5653 = vmatpush.bf16.msra.mxu0 %v4461
    %5654 = vmatpush.bf16.msra.mxu0 %v4445
    %5655 = vmatpush.bf16.msra.mxu0 %v4429
    %5656 = vmatpush.bf16.msra.mxu0 %v4413
    %5657 = vmatpush.bf16.msra.mxu0 %v4397
    %5658 = vmatpush.bf16.msra.mxu0 %v4381
    %5659 = vmatpush.bf16.msra.mxu0 %v4365
    %5660 = vmatmul.bf16.gmra.mxu0 %v1921
    %v5661 = vpop.f32.mrf.mxu0
    %v5662 = vadd.f32 %v5648, %v5661
    %v5663 = vpop.f32.mrf.mxu0
    %v5664 = vadd.f32 %v5650, %v5663
    %5665 = vdwg.mxu0
    %5666 = vmatpush.bf16.msra.mxu0 %v4094
    %5667 = vmatpush.bf16.msra.mxu0 %v4078
    %5668 = vmatpush.bf16.msra.mxu0 %v4062
    %5669 = vmatpush.bf16.msra.mxu0 %v4046
    %5670 = vmatpush.bf16.msra.mxu0 %v4030
    %5671 = vmatpush.bf16.msra.mxu0 %v4014
    %5672 = vmatpush.bf16.msra.mxu0 %v3998
    %5673 = vmatpush.bf16.msra.mxu0 %v3982
    %5674 = vmatmul.bf16.gmra.mxu0 %v1918
    %v5675 = vpop.f32.mrf.mxu0
    %v5676 = vadd.f32 0.0, %v5675
    %v5677 = vpop.f32.mrf.mxu0
    %v5678 = vadd.f32 0.0, %v5677
    %5679 = vdwg.mxu0
    %5680 = vmatpush.bf16.msra.mxu0 %v4222
    %5681 = vmatpush.bf16.msra.mxu0 %v4206
    %5682 = vmatpush.bf16.msra.mxu0 %v4190
    %5683 = vmatpush.bf16.msra.mxu0 %v4174
    %5684 = vmatpush.bf16.msra.mxu0 %v4158
    %5685 = vmatpush.bf16.msra.mxu0 %v4142
    %5686 = vmatpush.bf16.msra.mxu0 %v4126
    %5687 = vmatpush.bf16.msra.mxu0 %v4110
    %5688 = vmatmul.bf16.gmra.mxu0 %v1919
    %v5689 = vpop.f32.mrf.mxu0
    %v5690 = vadd.f32 %v5676, %v5689
    %v5691 = vpop.f32.mrf.mxu0
    %v5692 = vadd.f32 %v5678, %v5691
    %5693 = vdwg.mxu0
    %5694 = vmatpush.bf16.msra.mxu0 %v4350
    %5695 = vmatpush.bf16.msra.mxu0 %v4334
    %5696 = vmatpush.bf16.msra.mxu0 %v4318
    %5697 = vmatpush.bf16.msra.mxu0 %v4302
    %5698 = vmatpush.bf16.msra.mxu0 %v4286
    %5699 = vmatpush.bf16.msra.mxu0 %v4270
    %5700 = vmatpush.bf16.msra.mxu0 %v4254
    %5701 = vmatpush.bf16.msra.mxu0 %v4238
    %5702 = vmatmul.bf16.gmra.mxu0 %v1920
    %v5703 = vpop.f32.mrf.mxu0
    %v5704 = vadd.f32 %v5690, %v5703
    %v5705 = vpop.f32.mrf.mxu0
    %v5706 = vadd.f32 %v5692, %v5705
    %5707 = vdwg.mxu0
    %5708 = vmatpush.bf16.msra.mxu0 %v4478
    %5709 = vmatpush.bf16.msra.mxu0 %v4462
    %5710 = vmatpush.bf16.msra.mxu0 %v4446
    %5711 = vmatpush.bf16.msra.mxu0 %v4430
    %5712 = vmatpush.bf16.msra.mxu0 %v4414
    %5713 = vmatpush.bf16.msra.mxu0 %v4398
    %5714 = vmatpush.bf16.msra.mxu0 %v4382
    %5715 = vmatpush.bf16.msra.mxu0 %v4366
    %5716 = vmatmul.bf16.gmra.mxu0 %v1921
    %v5717 = vpop.f32.mrf.mxu0
    %v5718 = vadd.f32 %v5704, %v5717
    %v5719 = vpop.f32.mrf.mxu0
    %v5720 = vadd.f32 %v5706, %v5719
    %5721 = vdwg.mxu0
    %5722 = vmatpush.bf16.msra.mxu0 %v4095
    %5723 = vmatpush.bf16.msra.mxu0 %v4079
    %5724 = vmatpush.bf16.msra.mxu0 %v4063
    %5725 = vmatpush.bf16.msra.mxu0 %v4047
    %5726 = vmatpush.bf16.msra.mxu0 %v4031
    %5727 = vmatpush.bf16.msra.mxu0 %v4015
    %5728 = vmatpush.bf16.msra.mxu0 %v3999
    %5729 = vmatpush.bf16.msra.mxu0 %v3983
    %5730 = vmatmul.bf16.gmra.mxu0 %v1918
    %v5731 = vpop.f32.mrf.mxu0
    %v5732 = vadd.f32 0.0, %v5731
    %v5733 = vpop.f32.mrf.mxu0
    %v5734 = vadd.f32 0.0, %v5733
    %5735 = vdwg.mxu0
    %5736 = vmatpush.bf16.msra.mxu0 %v4223
    %5737 = vmatpush.bf16.msra.mxu0 %v4207
    %5738 = vmatpush.bf16.msra.mxu0 %v4191
    %5739 = vmatpush.bf16.msra.mxu0 %v4175
    %5740 = vmatpush.bf16.msra.mxu0 %v4159
    %5741 = vmatpush.bf16.msra.mxu0 %v4143
    %5742 = vmatpush.bf16.msra.mxu0 %v4127
    %5743 = vmatpush.bf16.msra.mxu0 %v4111
    %5744 = vmatmul.bf16.gmra.mxu0 %v1919
    %v5745 = vpop.f32.mrf.mxu0
    %v5746 = vadd.f32 %v5732, %v5745
    %v5747 = vpop.f32.mrf.mxu0
    %v5748 = vadd.f32 %v5734, %v5747
    %5749 = vdwg.mxu0
    %5750 = vmatpush.bf16.msra.mxu0 %v4351
    %5751 = vmatpush.bf16.msra.mxu0 %v4335
    %5752 = vmatpush.bf16.msra.mxu0 %v4319
    %5753 = vmatpush.bf16.msra.mxu0 %v4303
    %5754 = vmatpush.bf16.msra.mxu0 %v4287
    %5755 = vmatpush.bf16.msra.mxu0 %v4271
    %5756 = vmatpush.bf16.msra.mxu0 %v4255
    %5757 = vmatpush.bf16.msra.mxu0 %v4239
    %5758 = vmatmul.bf16.gmra.mxu0 %v1920
    %v5759 = vpop.f32.mrf.mxu0
    %v5760 = vadd.f32 %v5746, %v5759
    %v5761 = vpop.f32.mrf.mxu0
    %v5762 = vadd.f32 %v5748, %v5761
    %5763 = vdwg.mxu0
    %5764 = vmatpush.bf16.msra.mxu0 %v4479
    %5765 = vmatpush.bf16.msra.mxu0 %v4463
    %5766 = vmatpush.bf16.msra.mxu0 %v4447
    %5767 = vmatpush.bf16.msra.mxu0 %v4431
    %5768 = vmatpush.bf16.msra.mxu0 %v4415
    %5769 = vmatpush.bf16.msra.mxu0 %v4399
    %5770 = vmatpush.bf16.msra.mxu0 %v4383
    %5771 = vmatpush.bf16.msra.mxu0 %v4367
    %5772 = vmatmul.bf16.gmra.mxu0 %v1921
    %v5773 = vpop.f32.mrf.mxu0
    %v5774 = vadd.f32 %v5760, %v5773
    %v5775 = vpop.f32.mrf.mxu0
    %v5776 = vadd.f32 %v5762, %v5775
    %5777 = vdwg.mxu0
    %5778 = vmatpush.bf16.msra.mxu0 %v4096
    %5779 = vmatpush.bf16.msra.mxu0 %v4080
    %5780 = vmatpush.bf16.msra.mxu0 %v4064
    %5781 = vmatpush.bf16.msra.mxu0 %v4048
    %5782 = vmatpush.bf16.msra.mxu0 %v4032
    %5783 = vmatpush.bf16.msra.mxu0 %v4016
    %5784 = vmatpush.bf16.msra.mxu0 %v4000
    %5785 = vmatpush.bf16.msra.mxu0 %v3984
    %5786 = vmatmul.bf16.gmra.mxu0 %v1918
    %v5787 = vpop.f32.mrf.mxu0
    %v5788 = vadd.f32 0.0, %v5787
    %v5789 = vpop.f32.mrf.mxu0
    %v5790 = vadd.f32 0.0, %v5789
    %5791 = vdwg.mxu0
    %5792 = vmatpush.bf16.msra.mxu0 %v4224
    %5793 = vmatpush.bf16.msra.mxu0 %v4208
    %5794 = vmatpush.bf16.msra.mxu0 %v4192
    %5795 = vmatpush.bf16.msra.mxu0 %v4176
    %5796 = vmatpush.bf16.msra.mxu0 %v4160
    %5797 = vmatpush.bf16.msra.mxu0 %v4144
    %5798 = vmatpush.bf16.msra.mxu0 %v4128
    %5799 = vmatpush.bf16.msra.mxu0 %v4112
    %5800 = vmatmul.bf16.gmra.mxu0 %v1919
    %v5801 = vpop.f32.mrf.mxu0
    %v5802 = vadd.f32 %v5788, %v5801
    %v5803 = vpop.f32.mrf.mxu0
    %v5804 = vadd.f32 %v5790, %v5803
    %5805 = vdwg.mxu0
    %5806 = vmatpush.bf16.msra.mxu0 %v4352
    %5807 = vmatpush.bf16.msra.mxu0 %v4336
    %5808 = vmatpush.bf16.msra.mxu0 %v4320
    %5809 = vmatpush.bf16.msra.mxu0 %v4304
    %5810 = vmatpush.bf16.msra.mxu0 %v4288
    %5811 = vmatpush.bf16.msra.mxu0 %v4272
    %5812 = vmatpush.bf16.msra.mxu0 %v4256
    %5813 = vmatpush.bf16.msra.mxu0 %v4240
    %5814 = vmatmul.bf16.gmra.mxu0 %v1920
    %v5815 = vpop.f32.mrf.mxu0
    %v5816 = vadd.f32 %v5802, %v5815
    %v5817 = vpop.f32.mrf.mxu0
    %v5818 = vadd.f32 %v5804, %v5817
    %5819 = vdwg.mxu0
    %5820 = vmatpush.bf16.msra.mxu0 %v4480
    %5821 = vmatpush.bf16.msra.mxu0 %v4464
    %5822 = vmatpush.bf16.msra.mxu0 %v4448
    %5823 = vmatpush.bf16.msra.mxu0 %v4432
    %5824 = vmatpush.bf16.msra.mxu0 %v4416
    %5825 = vmatpush.bf16.msra.mxu0 %v4400
    %5826 = vmatpush.bf16.msra.mxu0 %v4384
    %5827 = vmatpush.bf16.msra.mxu0 %v4368
    %5828 = vmatmul.bf16.gmra.mxu0 %v1921
    %v5829 = vpop.f32.mrf.mxu0
    %v5830 = vadd.f32 %v5816, %v5829
    %v5831 = vpop.f32.mrf.mxu0
    %v5832 = vadd.f32 %v5818, %v5831
    %5833 = vdwg.mxu0
    %5834 = vmatpush.bf16.msra.mxu0 %v4097
    %5835 = vmatpush.bf16.msra.mxu0 %v4081
    %5836 = vmatpush.bf16.msra.mxu0 %v4065
    %5837 = vmatpush.bf16.msra.mxu0 %v4049
    %5838 = vmatpush.bf16.msra.mxu0 %v4033
    %5839 = vmatpush.bf16.msra.mxu0 %v4017
    %5840 = vmatpush.bf16.msra.mxu0 %v4001
    %5841 = vmatpush.bf16.msra.mxu0 %v3985
    %5842 = vmatmul.bf16.gmra.mxu0 %v1918
    %v5843 = vpop.f32.mrf.mxu0
    %v5844 = vadd.f32 0.0, %v5843
    %v5845 = vpop.f32.mrf.mxu0
    %v5846 = vadd.f32 0.0, %v5845
    %5847 = vdwg.mxu0
    %5848 = vmatpush.bf16.msra.mxu0 %v4225
    %5849 = vmatpush.bf16.msra.mxu0 %v4209
    %5850 = vmatpush.bf16.msra.mxu0 %v4193
    %5851 = vmatpush.bf16.msra.mxu0 %v4177
    %5852 = vmatpush.bf16.msra.mxu0 %v4161
    %5853 = vmatpush.bf16.msra.mxu0 %v4145
    %5854 = vmatpush.bf16.msra.mxu0 %v4129
    %5855 = vmatpush.bf16.msra.mxu0 %v4113
    %5856 = vmatmul.bf16.gmra.mxu0 %v1919
    %v5857 = vpop.f32.mrf.mxu0
    %v5858 = vadd.f32 %v5844, %v5857
    %v5859 = vpop.f32.mrf.mxu0
    %v5860 = vadd.f32 %v5846, %v5859
    %5861 = vdwg.mxu0
    %5862 = vmatpush.bf16.msra.mxu0 %v4353
    %5863 = vmatpush.bf16.msra.mxu0 %v4337
    %5864 = vmatpush.bf16.msra.mxu0 %v4321
    %5865 = vmatpush.bf16.msra.mxu0 %v4305
    %5866 = vmatpush.bf16.msra.mxu0 %v4289
    %5867 = vmatpush.bf16.msra.mxu0 %v4273
    %5868 = vmatpush.bf16.msra.mxu0 %v4257
    %5869 = vmatpush.bf16.msra.mxu0 %v4241
    %5870 = vmatmul.bf16.gmra.mxu0 %v1920
    %v5871 = vpop.f32.mrf.mxu0
    %v5872 = vadd.f32 %v5858, %v5871
    %v5873 = vpop.f32.mrf.mxu0
    %v5874 = vadd.f32 %v5860, %v5873
    %5875 = vdwg.mxu0
    %5876 = vmatpush.bf16.msra.mxu0 %v4481
    %5877 = vmatpush.bf16.msra.mxu0 %v4465
    %5878 = vmatpush.bf16.msra.mxu0 %v4449
    %5879 = vmatpush.bf16.msra.mxu0 %v4433
    %5880 = vmatpush.bf16.msra.mxu0 %v4417
    %5881 = vmatpush.bf16.msra.mxu0 %v4401
    %5882 = vmatpush.bf16.msra.mxu0 %v4385
    %5883 = vmatpush.bf16.msra.mxu0 %v4369
    %5884 = vmatmul.bf16.gmra.mxu0 %v1921
    %v5885 = vpop.f32.mrf.mxu0
    %v5886 = vadd.f32 %v5872, %v5885
    %v5887 = vpop.f32.mrf.mxu0
    %v5888 = vadd.f32 %v5874, %v5887
    %5889 = vdwg.mxu0
    %v5890 = vadd.f32 %v965, %v5046
    %v5891 = vadd.f32 %v994, %v5102
    %v5892 = vadd.f32 %v1023, %v5158
    %v5893 = vadd.f32 %v1052, %v5214
    %v5894 = vadd.f32 %v1081, %v5270
    %v5895 = vadd.f32 %v1110, %v5326
    %v5896 = vadd.f32 %v1139, %v5382
    %v5897 = vadd.f32 %v1168, %v5438
    %v5898 = vadd.f32 %v1197, %v5494
    %v5899 = vadd.f32 %v1226, %v5550
    %v5900 = vadd.f32 %v1255, %v5606
    %v5901 = vadd.f32 %v1284, %v5662
    %v5902 = vadd.f32 %v1313, %v5718
    %v5903 = vadd.f32 %v1342, %v5774
    %v5904 = vadd.f32 %v1371, %v5830
    %v5905 = vadd.f32 %v1400, %v5886
    %v5906 = vadd.f32 %v967, %v5048
    %v5907 = vadd.f32 %v996, %v5104
    %v5908 = vadd.f32 %v1025, %v5160
    %v5909 = vadd.f32 %v1054, %v5216
    %v5910 = vadd.f32 %v1083, %v5272
    %v5911 = vadd.f32 %v1112, %v5328
    %v5912 = vadd.f32 %v1141, %v5384
    %v5913 = vadd.f32 %v1170, %v5440
    %v5914 = vadd.f32 %v1199, %v5496
    %v5915 = vadd.f32 %v1228, %v5552
    %v5916 = vadd.f32 %v1257, %v5608
    %v5917 = vadd.f32 %v1286, %v5664
    %v5918 = vadd.f32 %v1315, %v5720
    %v5919 = vadd.f32 %v1344, %v5776
    %v5920 = vadd.f32 %v1373, %v5832
    %v5921 = vadd.f32 %v1402, %v5888
    %v5922 = vxor.u32 %v5890, 2147483648
    %v5923 = vxor.u32 %v5891, 2147483648
    %v5924 = vxor.u32 %v5892, 2147483648
    %v5925 = vxor.u32 %v5893, 2147483648
    %v5926 = vxor.u32 %v5906, 2147483648
    %v5927 = vxor.u32 %v5907, 2147483648
    %v5928 = vxor.u32 %v5908, 2147483648
    %v5929 = vxor.u32 %v5909, 2147483648
    %v5930 = vmul.f32 %v5922, 1.442695
    %v5931 = vpow.pop %v5930
    %v5932 = vmul.f32 %v5923, 1.442695
    %v5933 = vpow.pop %v5932
    %v5934 = vmul.f32 %v5924, 1.442695
    %v5935 = vpow.pop %v5934
    %v5936 = vmul.f32 %v5925, 1.442695
    %v5937 = vpow.pop %v5936
    %v5938 = vmul.f32 %v5926, 1.442695
    %v5939 = vpow.pop %v5938
    %v5940 = vmul.f32 %v5927, 1.442695
    %v5941 = vpow.pop %v5940
    %v5942 = vmul.f32 %v5928, 1.442695
    %v5943 = vpow.pop %v5942
    %v5944 = vmul.f32 %v5929, 1.442695
    %v5945 = vpow.pop %v5944
    %v5946 = vadd.f32 %v5931, 1.0
    %v5947 = vadd.f32 %v5933, 1.0
    %v5948 = vadd.f32 %v5935, 1.0
    %v5949 = vadd.f32 %v5937, 1.0
    %v5950 = vadd.f32 %v5939, 1.0
    %v5951 = vadd.f32 %v5941, 1.0
    %v5952 = vadd.f32 %v5943, 1.0
    %v5953 = vadd.f32 %v5945, 1.0
    %v5954 = vrcp.pop %v5946
    %v5955 = vmul.f32 %v5946, %v5954
    %v5956 = vsub.f32 1.0, %v5955
    %v5957 = vmul.f32 %v5954, %v5956
    %v5958 = vadd.f32 %v5954, %v5957
    %vm5959 = vweird.f32 %v5946
    %vm5960 = vweird.f32 %v5954
    %vm5961 = vmor %vm5959, %vm5960
    %v5962 = vsel %vm5961, %v5954, %v5958
    %v5963 = vand.u32 2147483647, %v5946
    %vm5964 = vcmp.eq.f32.partialorder %v5963, 8.507059e+37
    %v5965 = vand.u32 %v5946, 2147483648
    %v5966 = vor.u32 1.1754944e-38, %v5965
    %v5967 = vsel %vm5964, %v5966, %v5962
    %v5968 = vmul.f32 1.0, %v5967
    %v5969 = vrcp.pop %v5947
    %v5970 = vmul.f32 %v5947, %v5969
    %v5971 = vsub.f32 1.0, %v5970
    %v5972 = vmul.f32 %v5969, %v5971
    %v5973 = vadd.f32 %v5969, %v5972
    %vm5974 = vweird.f32 %v5947
    %vm5975 = vweird.f32 %v5969
    %vm5976 = vmor %vm5974, %vm5975
    %v5977 = vsel %vm5976, %v5969, %v5973
    %v5978 = vand.u32 2147483647, %v5947
    %vm5979 = vcmp.eq.f32.partialorder %v5978, 8.507059e+37
    %v5980 = vand.u32 %v5947, 2147483648
    %v5981 = vor.u32 1.1754944e-38, %v5980
    %v5982 = vsel %vm5979, %v5981, %v5977
    %v5983 = vmul.f32 1.0, %v5982
    %v5984 = vrcp.pop %v5948
    %v5985 = vmul.f32 %v5948, %v5984
    %v5986 = vsub.f32 1.0, %v5985
    %v5987 = vmul.f32 %v5984, %v5986
    %v5988 = vadd.f32 %v5984, %v5987
    %vm5989 = vweird.f32 %v5948
    %vm5990 = vweird.f32 %v5984
    %vm5991 = vmor %vm5989, %vm5990
    %v5992 = vsel %vm5991, %v5984, %v5988
    %v5993 = vand.u32 2147483647, %v5948
    %vm5994 = vcmp.eq.f32.partialorder %v5993, 8.507059e+37
    %v5995 = vand.u32 %v5948, 2147483648
    %v5996 = vor.u32 1.1754944e-38, %v5995
    %v5997 = vsel %vm5994, %v5996, %v5992
    %v5998 = vmul.f32 1.0, %v5997
    %v5999 = vrcp.pop %v5949
    %v6000 = vmul.f32 %v5949, %v5999
    %v6001 = vsub.f32 1.0, %v6000
    %v6002 = vmul.f32 %v5999, %v6001
    %v6003 = vadd.f32 %v5999, %v6002
    %vm6004 = vweird.f32 %v5949
    %vm6005 = vweird.f32 %v5999
    %vm6006 = vmor %vm6004, %vm6005
    %v6007 = vsel %vm6006, %v5999, %v6003
    %v6008 = vand.u32 2147483647, %v5949
    %vm6009 = vcmp.eq.f32.partialorder %v6008, 8.507059e+37
    %v6010 = vand.u32 %v5949, 2147483648
    %v6011 = vor.u32 1.1754944e-38, %v6010
    %v6012 = vsel %vm6009, %v6011, %v6007
    %v6013 = vmul.f32 1.0, %v6012
    %v6014 = vrcp.pop %v5950
    %v6015 = vmul.f32 %v5950, %v6014
    %v6016 = vsub.f32 1.0, %v6015
    %v6017 = vmul.f32 %v6014, %v6016
    %v6018 = vadd.f32 %v6014, %v6017
    %vm6019 = vweird.f32 %v5950
    %vm6020 = vweird.f32 %v6014
    %vm6021 = vmor %vm6019, %vm6020
    %v6022 = vsel %vm6021, %v6014, %v6018
    %v6023 = vand.u32 2147483647, %v5950
    %vm6024 = vcmp.eq.f32.partialorder %v6023, 8.507059e+37
    %v6025 = vand.u32 %v5950, 2147483648
    %v6026 = vor.u32 1.1754944e-38, %v6025
    %v6027 = vsel %vm6024, %v6026, %v6022
    %v6028 = vmul.f32 1.0, %v6027
    %v6029 = vrcp.pop %v5951
    %v6030 = vmul.f32 %v5951, %v6029
    %v6031 = vsub.f32 1.0, %v6030
    %v6032 = vmul.f32 %v6029, %v6031
    %v6033 = vadd.f32 %v6029, %v6032
    %vm6034 = vweird.f32 %v5951
    %vm6035 = vweird.f32 %v6029
    %vm6036 = vmor %vm6034, %vm6035
    %v6037 = vsel %vm6036, %v6029, %v6033
    %v6038 = vand.u32 2147483647, %v5951
    %vm6039 = vcmp.eq.f32.partialorder %v6038, 8.507059e+37
    %v6040 = vand.u32 %v5951, 2147483648
    %v6041 = vor.u32 1.1754944e-38, %v6040
    %v6042 = vsel %vm6039, %v6041, %v6037
    %v6043 = vmul.f32 1.0, %v6042
    %v6044 = vrcp.pop %v5952
    %v6045 = vmul.f32 %v5952, %v6044
    %v6046 = vsub.f32 1.0, %v6045
    %v6047 = vmul.f32 %v6044, %v6046
    %v6048 = vadd.f32 %v6044, %v6047
    %vm6049 = vweird.f32 %v5952
    %vm6050 = vweird.f32 %v6044
    %vm6051 = vmor %vm6049, %vm6050
    %v6052 = vsel %vm6051, %v6044, %v6048
    %v6053 = vand.u32 2147483647, %v5952
    %vm6054 = vcmp.eq.f32.partialorder %v6053, 8.507059e+37
    %v6055 = vand.u32 %v5952, 2147483648
    %v6056 = vor.u32 1.1754944e-38, %v6055
    %v6057 = vsel %vm6054, %v6056, %v6052
    %v6058 = vmul.f32 1.0, %v6057
    %v6059 = vrcp.pop %v5953
    %v6060 = vmul.f32 %v5953, %v6059
    %v6061 = vsub.f32 1.0, %v6060
    %v6062 = vmul.f32 %v6059, %v6061
    %v6063 = vadd.f32 %v6059, %v6062
    %vm6064 = vweird.f32 %v5953
    %vm6065 = vweird.f32 %v6059
    %vm6066 = vmor %vm6064, %vm6065
    %v6067 = vsel %vm6066, %v6059, %v6063
    %v6068 = vand.u32 2147483647, %v5953
    %vm6069 = vcmp.eq.f32.partialorder %v6068, 8.507059e+37
    %v6070 = vand.u32 %v5953, 2147483648
    %v6071 = vor.u32 1.1754944e-38, %v6070
    %v6072 = vsel %vm6069, %v6071, %v6067
    %v6073 = vmul.f32 1.0, %v6072
    %v6074 = vxor.u32 %v5894, 2147483648
    %v6075 = vxor.u32 %v5895, 2147483648
    %v6076 = vxor.u32 %v5896, 2147483648
    %v6077 = vxor.u32 %v5897, 2147483648
    %v6078 = vxor.u32 %v5910, 2147483648
    %v6079 = vxor.u32 %v5911, 2147483648
    %v6080 = vxor.u32 %v5912, 2147483648
    %v6081 = vxor.u32 %v5913, 2147483648
    %v6082 = vmul.f32 %v6074, 1.442695
    %v6083 = vpow.pop %v6082
    %v6084 = vmul.f32 %v6075, 1.442695
    %v6085 = vpow.pop %v6084
    %v6086 = vmul.f32 %v6076, 1.442695
    %v6087 = vpow.pop %v6086
    %v6088 = vmul.f32 %v6077, 1.442695
    %v6089 = vpow.pop %v6088
    %v6090 = vmul.f32 %v6078, 1.442695
    %v6091 = vpow.pop %v6090
    %v6092 = vmul.f32 %v6079, 1.442695
    %v6093 = vpow.pop %v6092
    %v6094 = vmul.f32 %v6080, 1.442695
    %v6095 = vpow.pop %v6094
    %v6096 = vmul.f32 %v6081, 1.442695
    %v6097 = vpow.pop %v6096
    %v6098 = vadd.f32 %v6083, 1.0
    %v6099 = vadd.f32 %v6085, 1.0
    %v6100 = vadd.f32 %v6087, 1.0
    %v6101 = vadd.f32 %v6089, 1.0
    %v6102 = vadd.f32 %v6091, 1.0
    %v6103 = vadd.f32 %v6093, 1.0
    %v6104 = vadd.f32 %v6095, 1.0
    %v6105 = vadd.f32 %v6097, 1.0
    %v6106 = vrcp.pop %v6098
    %v6107 = vmul.f32 %v6098, %v6106
    %v6108 = vsub.f32 1.0, %v6107
    %v6109 = vmul.f32 %v6106, %v6108
    %v6110 = vadd.f32 %v6106, %v6109
    %vm6111 = vweird.f32 %v6098
    %vm6112 = vweird.f32 %v6106
    %vm6113 = vmor %vm6111, %vm6112
    %v6114 = vsel %vm6113, %v6106, %v6110
    %v6115 = vand.u32 2147483647, %v6098
    %vm6116 = vcmp.eq.f32.partialorder %v6115, 8.507059e+37
    %v6117 = vand.u32 %v6098, 2147483648
    %v6118 = vor.u32 1.1754944e-38, %v6117
    %v6119 = vsel %vm6116, %v6118, %v6114
    %v6120 = vmul.f32 1.0, %v6119
    %v6121 = vrcp.pop %v6099
    %v6122 = vmul.f32 %v6099, %v6121
    %v6123 = vsub.f32 1.0, %v6122
    %v6124 = vmul.f32 %v6121, %v6123
    %v6125 = vadd.f32 %v6121, %v6124
    %vm6126 = vweird.f32 %v6099
    %vm6127 = vweird.f32 %v6121
    %vm6128 = vmor %vm6126, %vm6127
    %v6129 = vsel %vm6128, %v6121, %v6125
    %v6130 = vand.u32 2147483647, %v6099
    %vm6131 = vcmp.eq.f32.partialorder %v6130, 8.507059e+37
    %v6132 = vand.u32 %v6099, 2147483648
    %v6133 = vor.u32 1.1754944e-38, %v6132
    %v6134 = vsel %vm6131, %v6133, %v6129
    %v6135 = vmul.f32 1.0, %v6134
    %v6136 = vrcp.pop %v6100
    %v6137 = vmul.f32 %v6100, %v6136
    %v6138 = vsub.f32 1.0, %v6137
    %v6139 = vmul.f32 %v6136, %v6138
    %v6140 = vadd.f32 %v6136, %v6139
    %vm6141 = vweird.f32 %v6100
    %vm6142 = vweird.f32 %v6136
    %vm6143 = vmor %vm6141, %vm6142
    %v6144 = vsel %vm6143, %v6136, %v6140
    %v6145 = vand.u32 2147483647, %v6100
    %vm6146 = vcmp.eq.f32.partialorder %v6145, 8.507059e+37
    %v6147 = vand.u32 %v6100, 2147483648
    %v6148 = vor.u32 1.1754944e-38, %v6147
    %v6149 = vsel %vm6146, %v6148, %v6144
    %v6150 = vmul.f32 1.0, %v6149
    %v6151 = vrcp.pop %v6101
    %v6152 = vmul.f32 %v6101, %v6151
    %v6153 = vsub.f32 1.0, %v6152
    %v6154 = vmul.f32 %v6151, %v6153
    %v6155 = vadd.f32 %v6151, %v6154
    %vm6156 = vweird.f32 %v6101
    %vm6157 = vweird.f32 %v6151
    %vm6158 = vmor %vm6156, %vm6157
    %v6159 = vsel %vm6158, %v6151, %v6155
    %v6160 = vand.u32 2147483647, %v6101
    %vm6161 = vcmp.eq.f32.partialorder %v6160, 8.507059e+37
    %v6162 = vand.u32 %v6101, 2147483648
    %v6163 = vor.u32 1.1754944e-38, %v6162
    %v6164 = vsel %vm6161, %v6163, %v6159
    %v6165 = vmul.f32 1.0, %v6164
    %v6166 = vrcp.pop %v6102
    %v6167 = vmul.f32 %v6102, %v6166
    %v6168 = vsub.f32 1.0, %v6167
    %v6169 = vmul.f32 %v6166, %v6168
    %v6170 = vadd.f32 %v6166, %v6169
    %vm6171 = vweird.f32 %v6102
    %vm6172 = vweird.f32 %v6166
    %vm6173 = vmor %vm6171, %vm6172
    %v6174 = vsel %vm6173, %v6166, %v6170
    %v6175 = vand.u32 2147483647, %v6102
    %vm6176 = vcmp.eq.f32.partialorder %v6175, 8.507059e+37
    %v6177 = vand.u32 %v6102, 2147483648
    %v6178 = vor.u32 1.1754944e-38, %v6177
    %v6179 = vsel %vm6176, %v6178, %v6174
    %v6180 = vmul.f32 1.0, %v6179
    %v6181 = vrcp.pop %v6103
    %v6182 = vmul.f32 %v6103, %v6181
    %v6183 = vsub.f32 1.0, %v6182
    %v6184 = vmul.f32 %v6181, %v6183
    %v6185 = vadd.f32 %v6181, %v6184
    %vm6186 = vweird.f32 %v6103
    %vm6187 = vweird.f32 %v6181
    %vm6188 = vmor %vm6186, %vm6187
    %v6189 = vsel %vm6188, %v6181, %v6185
    %v6190 = vand.u32 2147483647, %v6103
    %vm6191 = vcmp.eq.f32.partialorder %v6190, 8.507059e+37
    %v6192 = vand.u32 %v6103, 2147483648
    %v6193 = vor.u32 1.1754944e-38, %v6192
    %v6194 = vsel %vm6191, %v6193, %v6189
    %v6195 = vmul.f32 1.0, %v6194
    %v6196 = vrcp.pop %v6104
    %v6197 = vmul.f32 %v6104, %v6196
    %v6198 = vsub.f32 1.0, %v6197
    %v6199 = vmul.f32 %v6196, %v6198
    %v6200 = vadd.f32 %v6196, %v6199
    %vm6201 = vweird.f32 %v6104
    %vm6202 = vweird.f32 %v6196
    %vm6203 = vmor %vm6201, %vm6202
    %v6204 = vsel %vm6203, %v6196, %v6200
    %v6205 = vand.u32 2147483647, %v6104
    %vm6206 = vcmp.eq.f32.partialorder %v6205, 8.507059e+37
    %v6207 = vand.u32 %v6104, 2147483648
    %v6208 = vor.u32 1.1754944e-38, %v6207
    %v6209 = vsel %vm6206, %v6208, %v6204
    %v6210 = vmul.f32 1.0, %v6209
    %v6211 = vrcp.pop %v6105
    %v6212 = vmul.f32 %v6105, %v6211
    %v6213 = vsub.f32 1.0, %v6212
    %v6214 = vmul.f32 %v6211, %v6213
    %v6215 = vadd.f32 %v6211, %v6214
    %vm6216 = vweird.f32 %v6105
    %vm6217 = vweird.f32 %v6211
    %vm6218 = vmor %vm6216, %vm6217
    %v6219 = vsel %vm6218, %v6211, %v6215
    %v6220 = vand.u32 2147483647, %v6105
    %vm6221 = vcmp.eq.f32.partialorder %v6220, 8.507059e+37
    %v6222 = vand.u32 %v6105, 2147483648
    %v6223 = vor.u32 1.1754944e-38, %v6222
    %v6224 = vsel %vm6221, %v6223, %v6219
    %v6225 = vmul.f32 1.0, %v6224
    %v6226 = vtanh.pop %v5898
    %v6227 = vtanh.pop %v5899
    %v6228 = vtanh.pop %v5900
    %v6229 = vtanh.pop %v5901
    %v6230 = vtanh.pop %v5914
    %v6231 = vtanh.pop %v5915
    %v6232 = vtanh.pop %v5916
    %v6233 = vtanh.pop %v5917
    %v6234 = vxor.u32 %v5902, 2147483648
    %v6235 = vxor.u32 %v5903, 2147483648
    %v6236 = vxor.u32 %v5904, 2147483648
    %v6237 = vxor.u32 %v5905, 2147483648
    %v6238 = vxor.u32 %v5918, 2147483648
    %v6239 = vxor.u32 %v5919, 2147483648
    %v6240 = vxor.u32 %v5920, 2147483648
    %v6241 = vxor.u32 %v5921, 2147483648
    %v6242 = vmul.f32 %v6234, 1.442695
    %v6243 = vpow.pop %v6242
    %v6244 = vmul.f32 %v6235, 1.442695
    %v6245 = vpow.pop %v6244
    %v6246 = vmul.f32 %v6236, 1.442695
    %v6247 = vpow.pop %v6246
    %v6248 = vmul.f32 %v6237, 1.442695
    %v6249 = vpow.pop %v6248
    %v6250 = vmul.f32 %v6238, 1.442695
    %v6251 = vpow.pop %v6250
    %v6252 = vmul.f32 %v6239, 1.442695
    %v6253 = vpow.pop %v6252
    %v6254 = vmul.f32 %v6240, 1.442695
    %v6255 = vpow.pop %v6254
    %v6256 = vmul.f32 %v6241, 1.442695
    %v6257 = vpow.pop %v6256
    %v6258 = vadd.f32 %v6243, 1.0
    %v6259 = vadd.f32 %v6245, 1.0
    %v6260 = vadd.f32 %v6247, 1.0
    %v6261 = vadd.f32 %v6249, 1.0
    %v6262 = vadd.f32 %v6251, 1.0
    %v6263 = vadd.f32 %v6253, 1.0
    %v6264 = vadd.f32 %v6255, 1.0
    %v6265 = vadd.f32 %v6257, 1.0
    %v6266 = vrcp.pop %v6258
    %v6267 = vmul.f32 %v6258, %v6266
    %v6268 = vsub.f32 1.0, %v6267
    %v6269 = vmul.f32 %v6266, %v6268
    %v6270 = vadd.f32 %v6266, %v6269
    %vm6271 = vweird.f32 %v6258
    %vm6272 = vweird.f32 %v6266
    %vm6273 = vmor %vm6271, %vm6272
    %v6274 = vsel %vm6273, %v6266, %v6270
    %v6275 = vand.u32 2147483647, %v6258
    %vm6276 = vcmp.eq.f32.partialorder %v6275, 8.507059e+37
    %v6277 = vand.u32 %v6258, 2147483648
    %v6278 = vor.u32 1.1754944e-38, %v6277
    %v6279 = vsel %vm6276, %v6278, %v6274
    %v6280 = vmul.f32 1.0, %v6279
    %v6281 = vrcp.pop %v6259
    %v6282 = vmul.f32 %v6259, %v6281
    %v6283 = vsub.f32 1.0, %v6282
    %v6284 = vmul.f32 %v6281, %v6283
    %v6285 = vadd.f32 %v6281, %v6284
    %vm6286 = vweird.f32 %v6259
    %vm6287 = vweird.f32 %v6281
    %vm6288 = vmor %vm6286, %vm6287
    %v6289 = vsel %vm6288, %v6281, %v6285
    %v6290 = vand.u32 2147483647, %v6259
    %vm6291 = vcmp.eq.f32.partialorder %v6290, 8.507059e+37
    %v6292 = vand.u32 %v6259, 2147483648
    %v6293 = vor.u32 1.1754944e-38, %v6292
    %v6294 = vsel %vm6291, %v6293, %v6289
    %v6295 = vmul.f32 1.0, %v6294
    %v6296 = vrcp.pop %v6260
    %v6297 = vmul.f32 %v6260, %v6296
    %v6298 = vsub.f32 1.0, %v6297
    %v6299 = vmul.f32 %v6296, %v6298
    %v6300 = vadd.f32 %v6296, %v6299
    %vm6301 = vweird.f32 %v6260
    %vm6302 = vweird.f32 %v6296
    %vm6303 = vmor %vm6301, %vm6302
    %v6304 = vsel %vm6303, %v6296, %v6300
    %v6305 = vand.u32 2147483647, %v6260
    %vm6306 = vcmp.eq.f32.partialorder %v6305, 8.507059e+37
    %v6307 = vand.u32 %v6260, 2147483648
    %v6308 = vor.u32 1.1754944e-38, %v6307
    %v6309 = vsel %vm6306, %v6308, %v6304
    %v6310 = vmul.f32 1.0, %v6309
    %v6311 = vrcp.pop %v6261
    %v6312 = vmul.f32 %v6261, %v6311
    %v6313 = vsub.f32 1.0, %v6312
    %v6314 = vmul.f32 %v6311, %v6313
    %v6315 = vadd.f32 %v6311, %v6314
    %vm6316 = vweird.f32 %v6261
    %vm6317 = vweird.f32 %v6311
    %vm6318 = vmor %vm6316, %vm6317
    %v6319 = vsel %vm6318, %v6311, %v6315
    %v6320 = vand.u32 2147483647, %v6261
    %vm6321 = vcmp.eq.f32.partialorder %v6320, 8.507059e+37
    %v6322 = vand.u32 %v6261, 2147483648
    %v6323 = vor.u32 1.1754944e-38, %v6322
    %v6324 = vsel %vm6321, %v6323, %v6319
    %v6325 = vmul.f32 1.0, %v6324
    %v6326 = vrcp.pop %v6262
    %v6327 = vmul.f32 %v6262, %v6326
    %v6328 = vsub.f32 1.0, %v6327
    %v6329 = vmul.f32 %v6326, %v6328
    %v6330 = vadd.f32 %v6326, %v6329
    %vm6331 = vweird.f32 %v6262
    %vm6332 = vweird.f32 %v6326
    %vm6333 = vmor %vm6331, %vm6332
    %v6334 = vsel %vm6333, %v6326, %v6330
    %v6335 = vand.u32 2147483647, %v6262
    %vm6336 = vcmp.eq.f32.partialorder %v6335, 8.507059e+37
    %v6337 = vand.u32 %v6262, 2147483648
    %v6338 = vor.u32 1.1754944e-38, %v6337
    %v6339 = vsel %vm6336, %v6338, %v6334
    %v6340 = vmul.f32 1.0, %v6339
    %v6341 = vrcp.pop %v6263
    %v6342 = vmul.f32 %v6263, %v6341
    %v6343 = vsub.f32 1.0, %v6342
    %v6344 = vmul.f32 %v6341, %v6343
    %v6345 = vadd.f32 %v6341, %v6344
    %vm6346 = vweird.f32 %v6263
    %vm6347 = vweird.f32 %v6341
    %vm6348 = vmor %vm6346, %vm6347
    %v6349 = vsel %vm6348, %v6341, %v6345
    %v6350 = vand.u32 2147483647, %v6263
    %vm6351 = vcmp.eq.f32.partialorder %v6350, 8.507059e+37
    %v6352 = vand.u32 %v6263, 2147483648
    %v6353 = vor.u32 1.1754944e-38, %v6352
    %v6354 = vsel %vm6351, %v6353, %v6349
    %v6355 = vmul.f32 1.0, %v6354
    %v6356 = vrcp.pop %v6264
    %v6357 = vmul.f32 %v6264, %v6356
    %v6358 = vsub.f32 1.0, %v6357
    %v6359 = vmul.f32 %v6356, %v6358
    %v6360 = vadd.f32 %v6356, %v6359
    %vm6361 = vweird.f32 %v6264
    %vm6362 = vweird.f32 %v6356
    %vm6363 = vmor %vm6361, %vm6362
    %v6364 = vsel %vm6363, %v6356, %v6360
    %v6365 = vand.u32 2147483647, %v6264
    %vm6366 = vcmp.eq.f32.partialorder %v6365, 8.507059e+37
    %v6367 = vand.u32 %v6264, 2147483648
    %v6368 = vor.u32 1.1754944e-38, %v6367
    %v6369 = vsel %vm6366, %v6368, %v6364
    %v6370 = vmul.f32 1.0, %v6369
    %v6371 = vrcp.pop %v6265
    %v6372 = vmul.f32 %v6265, %v6371
    %v6373 = vsub.f32 1.0, %v6372
    %v6374 = vmul.f32 %v6371, %v6373
    %v6375 = vadd.f32 %v6371, %v6374
    %vm6376 = vweird.f32 %v6265
    %vm6377 = vweird.f32 %v6371
    %vm6378 = vmor %vm6376, %vm6377
    %v6379 = vsel %vm6378, %v6371, %v6375
    %v6380 = vand.u32 2147483647, %v6265
    %vm6381 = vcmp.eq.f32.partialorder %v6380, 8.507059e+37
    %v6382 = vand.u32 %v6265, 2147483648
    %v6383 = vor.u32 1.1754944e-38, %v6382
    %v6384 = vsel %vm6381, %v6383, %v6379
    %v6385 = vmul.f32 1.0, %v6384
    %v6386 = vmul.f32 %v6120, %v1894
    %v6387 = vmul.f32 %v6135, %v1895
    %v6388 = vmul.f32 %v6150, %v1896
    %v6389 = vmul.f32 %v6165, %v1897
    %v6390 = vmul.f32 %v6180, %v1898
    %v6391 = vmul.f32 %v6195, %v1899
    %v6392 = vmul.f32 %v6210, %v1900
    %v6393 = vmul.f32 %v6225, %v1901
    %v6394 = vmul.f32 %v5968, %v6226
    %v6395 = vmul.f32 %v5983, %v6227
    %v6396 = vmul.f32 %v5998, %v6228
    %v6397 = vmul.f32 %v6013, %v6229
    %v6398 = vmul.f32 %v6028, %v6230
    %v6399 = vmul.f32 %v6043, %v6231
    %v6400 = vmul.f32 %v6058, %v6232
    %v6401 = vmul.f32 %v6073, %v6233
    %v6402 = vadd.f32 %v6386, %v6394
    %v6403 = vadd.f32 %v6387, %v6395
    %v6404 = vadd.f32 %v6388, %v6396
    %v6405 = vadd.f32 %v6389, %v6397
    %v6406 = vadd.f32 %v6390, %v6398
    %v6407 = vadd.f32 %v6391, %v6399
    %v6408 = vadd.f32 %v6392, %v6400
    %v6409 = vadd.f32 %v6393, %v6401
    %v6410 = vtanh.pop %v6402
    %v6411 = vtanh.pop %v6403
    %v6412 = vtanh.pop %v6404
    %v6413 = vtanh.pop %v6405
    %v6414 = vtanh.pop %v6406
    %v6415 = vtanh.pop %v6407
    %v6416 = vtanh.pop %v6408
    %v6417 = vtanh.pop %v6409
    %v6418 = vmul.f32 %v6280, %v6410
    %v6419 = vmul.f32 %v6295, %v6411
    %v6420 = vmul.f32 %v6310, %v6412
    %v6421 = vmul.f32 %v6325, %v6413
    %v6422 = vmul.f32 %v6340, %v6414
    %v6423 = vmul.f32 %v6355, %v6415
    %v6424 = vmul.f32 %v6370, %v6416
    %v6425 = vmul.f32 %v6385, %v6417
    %v6426 = vpack.c.bf16 %v6422, %v6418
    %v6427 = vpack.c.bf16 %v6423, %v6419
    %v6428 = vpack.c.bf16 %v6424, %v6420
    %v6429 = vpack.c.bf16 %v6425, %v6421
    %6430 = vmatpush.bf16.msra.mxu0 %v4082
    %6431 = vmatpush.bf16.msra.mxu0 %v4066
    %6432 = vmatpush.bf16.msra.mxu0 %v4050
    %6433 = vmatpush.bf16.msra.mxu0 %v4034
    %6434 = vmatpush.bf16.msra.mxu0 %v4018
    %6435 = vmatpush.bf16.msra.mxu0 %v4002
    %6436 = vmatpush.bf16.msra.mxu0 %v3986
    %6437 = vmatpush.bf16.msra.mxu0 %v3970
    %6438 = vmatmul.bf16.gmra.mxu0 %v6426
    %v6439 = vpop.f32.mrf.mxu0
    %v6440 = vadd.f32 0.0, %v6439
    %v6441 = vpop.f32.mrf.mxu0
    %v6442 = vadd.f32 0.0, %v6441
    %6443 = vdwg.mxu0
    %6444 = vmatpush.bf16.msra.mxu0 %v4210
    %6445 = vmatpush.bf16.msra.mxu0 %v4194
    %6446 = vmatpush.bf16.msra.mxu0 %v4178
    %6447 = vmatpush.bf16.msra.mxu0 %v4162
    %6448 = vmatpush.bf16.msra.mxu0 %v4146
    %6449 = vmatpush.bf16.msra.mxu0 %v4130
    %6450 = vmatpush.bf16.msra.mxu0 %v4114
    %6451 = vmatpush.bf16.msra.mxu0 %v4098
    %6452 = vmatmul.bf16.gmra.mxu0 %v6427
    %v6453 = vpop.f32.mrf.mxu0
    %v6454 = vadd.f32 %v6440, %v6453
    %v6455 = vpop.f32.mrf.mxu0
    %v6456 = vadd.f32 %v6442, %v6455
    %6457 = vdwg.mxu0
    %6458 = vmatpush.bf16.msra.mxu0 %v4338
    %6459 = vmatpush.bf16.msra.mxu0 %v4322
    %6460 = vmatpush.bf16.msra.mxu0 %v4306
    %6461 = vmatpush.bf16.msra.mxu0 %v4290
    %6462 = vmatpush.bf16.msra.mxu0 %v4274
    %6463 = vmatpush.bf16.msra.mxu0 %v4258
    %6464 = vmatpush.bf16.msra.mxu0 %v4242
    %6465 = vmatpush.bf16.msra.mxu0 %v4226
    %6466 = vmatmul.bf16.gmra.mxu0 %v6428
    %v6467 = vpop.f32.mrf.mxu0
    %v6468 = vadd.f32 %v6454, %v6467
    %v6469 = vpop.f32.mrf.mxu0
    %v6470 = vadd.f32 %v6456, %v6469
    %6471 = vdwg.mxu0
    %6472 = vmatpush.bf16.msra.mxu0 %v4466
    %6473 = vmatpush.bf16.msra.mxu0 %v4450
    %6474 = vmatpush.bf16.msra.mxu0 %v4434
    %6475 = vmatpush.bf16.msra.mxu0 %v4418
    %6476 = vmatpush.bf16.msra.mxu0 %v4402
    %6477 = vmatpush.bf16.msra.mxu0 %v4386
    %6478 = vmatpush.bf16.msra.mxu0 %v4370
    %6479 = vmatpush.bf16.msra.mxu0 %v4354
    %6480 = vmatmul.bf16.gmra.mxu0 %v6429
    %v6481 = vpop.f32.mrf.mxu0
    %v6482 = vadd.f32 %v6468, %v6481
    %v6483 = vpop.f32.mrf.mxu0
    %v6484 = vadd.f32 %v6470, %v6483
    %6485 = vdwg.mxu0
    %6486 = vmatpush.bf16.msra.mxu0 %v4083
    %6487 = vmatpush.bf16.msra.mxu0 %v4067
    %6488 = vmatpush.bf16.msra.mxu0 %v4051
    %6489 = vmatpush.bf16.msra.mxu0 %v4035
    %6490 = vmatpush.bf16.msra.mxu0 %v4019
    %6491 = vmatpush.bf16.msra.mxu0 %v4003
    %6492 = vmatpush.bf16.msra.mxu0 %v3987
    %6493 = vmatpush.bf16.msra.mxu0 %v3971
    %6494 = vmatmul.bf16.gmra.mxu0 %v6426
    %v6495 = vpop.f32.mrf.mxu0
    %v6496 = vadd.f32 0.0, %v6495
    %v6497 = vpop.f32.mrf.mxu0
    %v6498 = vadd.f32 0.0, %v6497
    %6499 = vdwg.mxu0
    %6500 = vmatpush.bf16.msra.mxu0 %v4211
    %6501 = vmatpush.bf16.msra.mxu0 %v4195
    %6502 = vmatpush.bf16.msra.mxu0 %v4179
    %6503 = vmatpush.bf16.msra.mxu0 %v4163
    %6504 = vmatpush.bf16.msra.mxu0 %v4147
    %6505 = vmatpush.bf16.msra.mxu0 %v4131
    %6506 = vmatpush.bf16.msra.mxu0 %v4115
    %6507 = vmatpush.bf16.msra.mxu0 %v4099
    %6508 = vmatmul.bf16.gmra.mxu0 %v6427
    %v6509 = vpop.f32.mrf.mxu0
    %v6510 = vadd.f32 %v6496, %v6509
    %v6511 = vpop.f32.mrf.mxu0
    %v6512 = vadd.f32 %v6498, %v6511
    %6513 = vdwg.mxu0
    %6514 = vmatpush.bf16.msra.mxu0 %v4339
    %6515 = vmatpush.bf16.msra.mxu0 %v4323
    %6516 = vmatpush.bf16.msra.mxu0 %v4307
    %6517 = vmatpush.bf16.msra.mxu0 %v4291
    %6518 = vmatpush.bf16.msra.mxu0 %v4275
    %6519 = vmatpush.bf16.msra.mxu0 %v4259
    %6520 = vmatpush.bf16.msra.mxu0 %v4243
    %6521 = vmatpush.bf16.msra.mxu0 %v4227
    %6522 = vmatmul.bf16.gmra.mxu0 %v6428
    %v6523 = vpop.f32.mrf.mxu0
    %v6524 = vadd.f32 %v6510, %v6523
    %v6525 = vpop.f32.mrf.mxu0
    %v6526 = vadd.f32 %v6512, %v6525
    %6527 = vdwg.mxu0
    %6528 = vmatpush.bf16.msra.mxu0 %v4467
    %6529 = vmatpush.bf16.msra.mxu0 %v4451
    %6530 = vmatpush.bf16.msra.mxu0 %v4435
    %6531 = vmatpush.bf16.msra.mxu0 %v4419
    %6532 = vmatpush.bf16.msra.mxu0 %v4403
    %6533 = vmatpush.bf16.msra.mxu0 %v4387
    %6534 = vmatpush.bf16.msra.mxu0 %v4371
    %6535 = vmatpush.bf16.msra.mxu0 %v4355
    %6536 = vmatmul.bf16.gmra.mxu0 %v6429
    %v6537 = vpop.f32.mrf.mxu0
    %v6538 = vadd.f32 %v6524, %v6537
    %v6539 = vpop.f32.mrf.mxu0
    %v6540 = vadd.f32 %v6526, %v6539
    %6541 = vdwg.mxu0
    %6542 = vmatpush.bf16.msra.mxu0 %v4084
    %6543 = vmatpush.bf16.msra.mxu0 %v4068
    %6544 = vmatpush.bf16.msra.mxu0 %v4052
    %6545 = vmatpush.bf16.msra.mxu0 %v4036
    %6546 = vmatpush.bf16.msra.mxu0 %v4020
    %6547 = vmatpush.bf16.msra.mxu0 %v4004
    %6548 = vmatpush.bf16.msra.mxu0 %v3988
    %6549 = vmatpush.bf16.msra.mxu0 %v3972
    %6550 = vmatmul.bf16.gmra.mxu0 %v6426
    %v6551 = vpop.f32.mrf.mxu0
    %v6552 = vadd.f32 0.0, %v6551
    %v6553 = vpop.f32.mrf.mxu0
    %v6554 = vadd.f32 0.0, %v6553
    %6555 = vdwg.mxu0
    %6556 = vmatpush.bf16.msra.mxu0 %v4212
    %6557 = vmatpush.bf16.msra.mxu0 %v4196
    %6558 = vmatpush.bf16.msra.mxu0 %v4180
    %6559 = vmatpush.bf16.msra.mxu0 %v4164
    %6560 = vmatpush.bf16.msra.mxu0 %v4148
    %6561 = vmatpush.bf16.msra.mxu0 %v4132
    %6562 = vmatpush.bf16.msra.mxu0 %v4116
    %6563 = vmatpush.bf16.msra.mxu0 %v4100
    %6564 = vmatmul.bf16.gmra.mxu0 %v6427
    %v6565 = vpop.f32.mrf.mxu0
    %v6566 = vadd.f32 %v6552, %v6565
    %v6567 = vpop.f32.mrf.mxu0
    %v6568 = vadd.f32 %v6554, %v6567
    %6569 = vdwg.mxu0
    %6570 = vmatpush.bf16.msra.mxu0 %v4340
    %6571 = vmatpush.bf16.msra.mxu0 %v4324
    %6572 = vmatpush.bf16.msra.mxu0 %v4308
    %6573 = vmatpush.bf16.msra.mxu0 %v4292
    %6574 = vmatpush.bf16.msra.mxu0 %v4276
    %6575 = vmatpush.bf16.msra.mxu0 %v4260
    %6576 = vmatpush.bf16.msra.mxu0 %v4244
    %6577 = vmatpush.bf16.msra.mxu0 %v4228
    %6578 = vmatmul.bf16.gmra.mxu0 %v6428
    %v6579 = vpop.f32.mrf.mxu0
    %v6580 = vadd.f32 %v6566, %v6579
    %v6581 = vpop.f32.mrf.mxu0
    %v6582 = vadd.f32 %v6568, %v6581
    %6583 = vdwg.mxu0
    %6584 = vmatpush.bf16.msra.mxu0 %v4468
    %6585 = vmatpush.bf16.msra.mxu0 %v4452
    %6586 = vmatpush.bf16.msra.mxu0 %v4436
    %6587 = vmatpush.bf16.msra.mxu0 %v4420
    %6588 = vmatpush.bf16.msra.mxu0 %v4404
    %6589 = vmatpush.bf16.msra.mxu0 %v4388
    %6590 = vmatpush.bf16.msra.mxu0 %v4372
    %6591 = vmatpush.bf16.msra.mxu0 %v4356
    %6592 = vmatmul.bf16.gmra.mxu0 %v6429
    %v6593 = vpop.f32.mrf.mxu0
    %v6594 = vadd.f32 %v6580, %v6593
    %v6595 = vpop.f32.mrf.mxu0
    %v6596 = vadd.f32 %v6582, %v6595
    %6597 = vdwg.mxu0
    %6598 = vmatpush.bf16.msra.mxu0 %v4085
    %6599 = vmatpush.bf16.msra.mxu0 %v4069
    %6600 = vmatpush.bf16.msra.mxu0 %v4053
    %6601 = vmatpush.bf16.msra.mxu0 %v4037
    %6602 = vmatpush.bf16.msra.mxu0 %v4021
    %6603 = vmatpush.bf16.msra.mxu0 %v4005
    %6604 = vmatpush.bf16.msra.mxu0 %v3989
    %6605 = vmatpush.bf16.msra.mxu0 %v3973
    %6606 = vmatmul.bf16.gmra.mxu0 %v6426
    %v6607 = vpop.f32.mrf.mxu0
    %v6608 = vadd.f32 0.0, %v6607
    %v6609 = vpop.f32.mrf.mxu0
    %v6610 = vadd.f32 0.0, %v6609
    %6611 = vdwg.mxu0
    %6612 = vmatpush.bf16.msra.mxu0 %v4213
    %6613 = vmatpush.bf16.msra.mxu0 %v4197
    %6614 = vmatpush.bf16.msra.mxu0 %v4181
    %6615 = vmatpush.bf16.msra.mxu0 %v4165
    %6616 = vmatpush.bf16.msra.mxu0 %v4149
    %6617 = vmatpush.bf16.msra.mxu0 %v4133
    %6618 = vmatpush.bf16.msra.mxu0 %v4117
    %6619 = vmatpush.bf16.msra.mxu0 %v4101
    %6620 = vmatmul.bf16.gmra.mxu0 %v6427
    %v6621 = vpop.f32.mrf.mxu0
    %v6622 = vadd.f32 %v6608, %v6621
    %v6623 = vpop.f32.mrf.mxu0
    %v6624 = vadd.f32 %v6610, %v6623
    %6625 = vdwg.mxu0
    %6626 = vmatpush.bf16.msra.mxu0 %v4341
    %6627 = vmatpush.bf16.msra.mxu0 %v4325
    %6628 = vmatpush.bf16.msra.mxu0 %v4309
    %6629 = vmatpush.bf16.msra.mxu0 %v4293
    %6630 = vmatpush.bf16.msra.mxu0 %v4277
    %6631 = vmatpush.bf16.msra.mxu0 %v4261
    %6632 = vmatpush.bf16.msra.mxu0 %v4245
    %6633 = vmatpush.bf16.msra.mxu0 %v4229
    %6634 = vmatmul.bf16.gmra.mxu0 %v6428
    %v6635 = vpop.f32.mrf.mxu0
    %v6636 = vadd.f32 %v6622, %v6635
    %v6637 = vpop.f32.mrf.mxu0
    %v6638 = vadd.f32 %v6624, %v6637
    %6639 = vdwg.mxu0
    %6640 = vmatpush.bf16.msra.mxu0 %v4469
    %6641 = vmatpush.bf16.msra.mxu0 %v4453
    %6642 = vmatpush.bf16.msra.mxu0 %v4437
    %6643 = vmatpush.bf16.msra.mxu0 %v4421
    %6644 = vmatpush.bf16.msra.mxu0 %v4405
    %6645 = vmatpush.bf16.msra.mxu0 %v4389
    %6646 = vmatpush.bf16.msra.mxu0 %v4373
    %6647 = vmatpush.bf16.msra.mxu0 %v4357
    %6648 = vmatmul.bf16.gmra.mxu0 %v6429
    %v6649 = vpop.f32.mrf.mxu0
    %v6650 = vadd.f32 %v6636, %v6649
    %v6651 = vpop.f32.mrf.mxu0
    %v6652 = vadd.f32 %v6638, %v6651
    %6653 = vdwg.mxu0
    %6654 = vmatpush.bf16.msra.mxu0 %v4086
    %6655 = vmatpush.bf16.msra.mxu0 %v4070
    %6656 = vmatpush.bf16.msra.mxu0 %v4054
    %6657 = vmatpush.bf16.msra.mxu0 %v4038
    %6658 = vmatpush.bf16.msra.mxu0 %v4022
    %6659 = vmatpush.bf16.msra.mxu0 %v4006
    %6660 = vmatpush.bf16.msra.mxu0 %v3990
    %6661 = vmatpush.bf16.msra.mxu0 %v3974
    %6662 = vmatmul.bf16.gmra.mxu0 %v6426
    %v6663 = vpop.f32.mrf.mxu0
    %v6664 = vadd.f32 0.0, %v6663
    %v6665 = vpop.f32.mrf.mxu0
    %v6666 = vadd.f32 0.0, %v6665
    %6667 = vdwg.mxu0
    %6668 = vmatpush.bf16.msra.mxu0 %v4214
    %6669 = vmatpush.bf16.msra.mxu0 %v4198
    %6670 = vmatpush.bf16.msra.mxu0 %v4182
    %6671 = vmatpush.bf16.msra.mxu0 %v4166
    %6672 = vmatpush.bf16.msra.mxu0 %v4150
    %6673 = vmatpush.bf16.msra.mxu0 %v4134
    %6674 = vmatpush.bf16.msra.mxu0 %v4118
    %6675 = vmatpush.bf16.msra.mxu0 %v4102
    %6676 = vmatmul.bf16.gmra.mxu0 %v6427
    %v6677 = vpop.f32.mrf.mxu0
    %v6678 = vadd.f32 %v6664, %v6677
    %v6679 = vpop.f32.mrf.mxu0
    %v6680 = vadd.f32 %v6666, %v6679
    %6681 = vdwg.mxu0
    %6682 = vmatpush.bf16.msra.mxu0 %v4342
    %6683 = vmatpush.bf16.msra.mxu0 %v4326
    %6684 = vmatpush.bf16.msra.mxu0 %v4310
    %6685 = vmatpush.bf16.msra.mxu0 %v4294
    %6686 = vmatpush.bf16.msra.mxu0 %v4278
    %6687 = vmatpush.bf16.msra.mxu0 %v4262
    %6688 = vmatpush.bf16.msra.mxu0 %v4246
    %6689 = vmatpush.bf16.msra.mxu0 %v4230
    %6690 = vmatmul.bf16.gmra.mxu0 %v6428
    %v6691 = vpop.f32.mrf.mxu0
    %v6692 = vadd.f32 %v6678, %v6691
    %v6693 = vpop.f32.mrf.mxu0
    %v6694 = vadd.f32 %v6680, %v6693
    %6695 = vdwg.mxu0
    %6696 = vmatpush.bf16.msra.mxu0 %v4470
    %6697 = vmatpush.bf16.msra.mxu0 %v4454
    %6698 = vmatpush.bf16.msra.mxu0 %v4438
    %6699 = vmatpush.bf16.msra.mxu0 %v4422
    %6700 = vmatpush.bf16.msra.mxu0 %v4406
    %6701 = vmatpush.bf16.msra.mxu0 %v4390
    %6702 = vmatpush.bf16.msra.mxu0 %v4374
    %6703 = vmatpush.bf16.msra.mxu0 %v4358
    %6704 = vmatmul.bf16.gmra.mxu0 %v6429
    %v6705 = vpop.f32.mrf.mxu0
    %v6706 = vadd.f32 %v6692, %v6705
    %v6707 = vpop.f32.mrf.mxu0
    %v6708 = vadd.f32 %v6694, %v6707
    %6709 = vdwg.mxu0
    %6710 = vmatpush.bf16.msra.mxu0 %v4087
    %6711 = vmatpush.bf16.msra.mxu0 %v4071
    %6712 = vmatpush.bf16.msra.mxu0 %v4055
    %6713 = vmatpush.bf16.msra.mxu0 %v4039
    %6714 = vmatpush.bf16.msra.mxu0 %v4023
    %6715 = vmatpush.bf16.msra.mxu0 %v4007
    %6716 = vmatpush.bf16.msra.mxu0 %v3991
    %6717 = vmatpush.bf16.msra.mxu0 %v3975
    %6718 = vmatmul.bf16.gmra.mxu0 %v6426
    %v6719 = vpop.f32.mrf.mxu0
    %v6720 = vadd.f32 0.0, %v6719
    %v6721 = vpop.f32.mrf.mxu0
    %v6722 = vadd.f32 0.0, %v6721
    %6723 = vdwg.mxu0
    %6724 = vmatpush.bf16.msra.mxu0 %v4215
    %6725 = vmatpush.bf16.msra.mxu0 %v4199
    %6726 = vmatpush.bf16.msra.mxu0 %v4183
    %6727 = vmatpush.bf16.msra.mxu0 %v4167
    %6728 = vmatpush.bf16.msra.mxu0 %v4151
    %6729 = vmatpush.bf16.msra.mxu0 %v4135
    %6730 = vmatpush.bf16.msra.mxu0 %v4119
    %6731 = vmatpush.bf16.msra.mxu0 %v4103
    %6732 = vmatmul.bf16.gmra.mxu0 %v6427
    %v6733 = vpop.f32.mrf.mxu0
    %v6734 = vadd.f32 %v6720, %v6733
    %v6735 = vpop.f32.mrf.mxu0
    %v6736 = vadd.f32 %v6722, %v6735
    %6737 = vdwg.mxu0
    %6738 = vmatpush.bf16.msra.mxu0 %v4343
    %6739 = vmatpush.bf16.msra.mxu0 %v4327
    %6740 = vmatpush.bf16.msra.mxu0 %v4311
    %6741 = vmatpush.bf16.msra.mxu0 %v4295
    %6742 = vmatpush.bf16.msra.mxu0 %v4279
    %6743 = vmatpush.bf16.msra.mxu0 %v4263
    %6744 = vmatpush.bf16.msra.mxu0 %v4247
    %6745 = vmatpush.bf16.msra.mxu0 %v4231
    %6746 = vmatmul.bf16.gmra.mxu0 %v6428
    %v6747 = vpop.f32.mrf.mxu0
    %v6748 = vadd.f32 %v6734, %v6747
    %v6749 = vpop.f32.mrf.mxu0
    %v6750 = vadd.f32 %v6736, %v6749
    %6751 = vdwg.mxu0
    %6752 = vmatpush.bf16.msra.mxu0 %v4471
    %6753 = vmatpush.bf16.msra.mxu0 %v4455
    %6754 = vmatpush.bf16.msra.mxu0 %v4439
    %6755 = vmatpush.bf16.msra.mxu0 %v4423
    %6756 = vmatpush.bf16.msra.mxu0 %v4407
    %6757 = vmatpush.bf16.msra.mxu0 %v4391
    %6758 = vmatpush.bf16.msra.mxu0 %v4375
    %6759 = vmatpush.bf16.msra.mxu0 %v4359
    %6760 = vmatmul.bf16.gmra.mxu0 %v6429
    %v6761 = vpop.f32.mrf.mxu0
    %v6762 = vadd.f32 %v6748, %v6761
    %v6763 = vpop.f32.mrf.mxu0
    %v6764 = vadd.f32 %v6750, %v6763
    %6765 = vdwg.mxu0
    %6766 = vmatpush.bf16.msra.mxu0 %v4088
    %6767 = vmatpush.bf16.msra.mxu0 %v4072
    %6768 = vmatpush.bf16.msra.mxu0 %v4056
    %6769 = vmatpush.bf16.msra.mxu0 %v4040
    %6770 = vmatpush.bf16.msra.mxu0 %v4024
    %6771 = vmatpush.bf16.msra.mxu0 %v4008
    %6772 = vmatpush.bf16.msra.mxu0 %v3992
    %6773 = vmatpush.bf16.msra.mxu0 %v3976
    %6774 = vmatmul.bf16.gmra.mxu0 %v6426
    %v6775 = vpop.f32.mrf.mxu0
    %v6776 = vadd.f32 0.0, %v6775
    %v6777 = vpop.f32.mrf.mxu0
    %v6778 = vadd.f32 0.0, %v6777
    %6779 = vdwg.mxu0
    %6780 = vmatpush.bf16.msra.mxu0 %v4216
    %6781 = vmatpush.bf16.msra.mxu0 %v4200
    %6782 = vmatpush.bf16.msra.mxu0 %v4184
    %6783 = vmatpush.bf16.msra.mxu0 %v4168
    %6784 = vmatpush.bf16.msra.mxu0 %v4152
    %6785 = vmatpush.bf16.msra.mxu0 %v4136
    %6786 = vmatpush.bf16.msra.mxu0 %v4120
    %6787 = vmatpush.bf16.msra.mxu0 %v4104
    %6788 = vmatmul.bf16.gmra.mxu0 %v6427
    %v6789 = vpop.f32.mrf.mxu0
    %v6790 = vadd.f32 %v6776, %v6789
    %v6791 = vpop.f32.mrf.mxu0
    %v6792 = vadd.f32 %v6778, %v6791
    %6793 = vdwg.mxu0
    %6794 = vmatpush.bf16.msra.mxu0 %v4344
    %6795 = vmatpush.bf16.msra.mxu0 %v4328
    %6796 = vmatpush.bf16.msra.mxu0 %v4312
    %6797 = vmatpush.bf16.msra.mxu0 %v4296
    %6798 = vmatpush.bf16.msra.mxu0 %v4280
    %6799 = vmatpush.bf16.msra.mxu0 %v4264
    %6800 = vmatpush.bf16.msra.mxu0 %v4248
    %6801 = vmatpush.bf16.msra.mxu0 %v4232
    %6802 = vmatmul.bf16.gmra.mxu0 %v6428
    %v6803 = vpop.f32.mrf.mxu0
    %v6804 = vadd.f32 %v6790, %v6803
    %v6805 = vpop.f32.mrf.mxu0
    %v6806 = vadd.f32 %v6792, %v6805
    %6807 = vdwg.mxu0
    %6808 = vmatpush.bf16.msra.mxu0 %v4472
    %6809 = vmatpush.bf16.msra.mxu0 %v4456
    %6810 = vmatpush.bf16.msra.mxu0 %v4440
    %6811 = vmatpush.bf16.msra.mxu0 %v4424
    %6812 = vmatpush.bf16.msra.mxu0 %v4408
    %6813 = vmatpush.bf16.msra.mxu0 %v4392
    %6814 = vmatpush.bf16.msra.mxu0 %v4376
    %6815 = vmatpush.bf16.msra.mxu0 %v4360
    %6816 = vmatmul.bf16.gmra.mxu0 %v6429
    %v6817 = vpop.f32.mrf.mxu0
    %v6818 = vadd.f32 %v6804, %v6817
    %v6819 = vpop.f32.mrf.mxu0
    %v6820 = vadd.f32 %v6806, %v6819
    %6821 = vdwg.mxu0
    %6822 = vmatpush.bf16.msra.mxu0 %v4089
    %6823 = vmatpush.bf16.msra.mxu0 %v4073
    %6824 = vmatpush.bf16.msra.mxu0 %v4057
    %6825 = vmatpush.bf16.msra.mxu0 %v4041
    %6826 = vmatpush.bf16.msra.mxu0 %v4025
    %6827 = vmatpush.bf16.msra.mxu0 %v4009
    %6828 = vmatpush.bf16.msra.mxu0 %v3993
    %6829 = vmatpush.bf16.msra.mxu0 %v3977
    %6830 = vmatmul.bf16.gmra.mxu0 %v6426
    %v6831 = vpop.f32.mrf.mxu0
    %v6832 = vadd.f32 0.0, %v6831
    %v6833 = vpop.f32.mrf.mxu0
    %v6834 = vadd.f32 0.0, %v6833
    %6835 = vdwg.mxu0
    %6836 = vmatpush.bf16.msra.mxu0 %v4217
    %6837 = vmatpush.bf16.msra.mxu0 %v4201
    %6838 = vmatpush.bf16.msra.mxu0 %v4185
    %6839 = vmatpush.bf16.msra.mxu0 %v4169
    %6840 = vmatpush.bf16.msra.mxu0 %v4153
    %6841 = vmatpush.bf16.msra.mxu0 %v4137
    %6842 = vmatpush.bf16.msra.mxu0 %v4121
    %6843 = vmatpush.bf16.msra.mxu0 %v4105
    %6844 = vmatmul.bf16.gmra.mxu0 %v6427
    %v6845 = vpop.f32.mrf.mxu0
    %v6846 = vadd.f32 %v6832, %v6845
    %v6847 = vpop.f32.mrf.mxu0
    %v6848 = vadd.f32 %v6834, %v6847
    %6849 = vdwg.mxu0
    %6850 = vmatpush.bf16.msra.mxu0 %v4345
    %6851 = vmatpush.bf16.msra.mxu0 %v4329
    %6852 = vmatpush.bf16.msra.mxu0 %v4313
    %6853 = vmatpush.bf16.msra.mxu0 %v4297
    %6854 = vmatpush.bf16.msra.mxu0 %v4281
    %6855 = vmatpush.bf16.msra.mxu0 %v4265
    %6856 = vmatpush.bf16.msra.mxu0 %v4249
    %6857 = vmatpush.bf16.msra.mxu0 %v4233
    %6858 = vmatmul.bf16.gmra.mxu0 %v6428
    %v6859 = vpop.f32.mrf.mxu0
    %v6860 = vadd.f32 %v6846, %v6859
    %v6861 = vpop.f32.mrf.mxu0
    %v6862 = vadd.f32 %v6848, %v6861
    %6863 = vdwg.mxu0
    %6864 = vmatpush.bf16.msra.mxu0 %v4473
    %6865 = vmatpush.bf16.msra.mxu0 %v4457
    %6866 = vmatpush.bf16.msra.mxu0 %v4441
    %6867 = vmatpush.bf16.msra.mxu0 %v4425
    %6868 = vmatpush.bf16.msra.mxu0 %v4409
    %6869 = vmatpush.bf16.msra.mxu0 %v4393
    %6870 = vmatpush.bf16.msra.mxu0 %v4377
    %6871 = vmatpush.bf16.msra.mxu0 %v4361
    %6872 = vmatmul.bf16.gmra.mxu0 %v6429
    %v6873 = vpop.f32.mrf.mxu0
    %v6874 = vadd.f32 %v6860, %v6873
    %v6875 = vpop.f32.mrf.mxu0
    %v6876 = vadd.f32 %v6862, %v6875
    %6877 = vdwg.mxu0
    %6878 = vmatpush.bf16.msra.mxu0 %v4090
    %6879 = vmatpush.bf16.msra.mxu0 %v4074
    %6880 = vmatpush.bf16.msra.mxu0 %v4058
    %6881 = vmatpush.bf16.msra.mxu0 %v4042
    %6882 = vmatpush.bf16.msra.mxu0 %v4026
    %6883 = vmatpush.bf16.msra.mxu0 %v4010
    %6884 = vmatpush.bf16.msra.mxu0 %v3994
    %6885 = vmatpush.bf16.msra.mxu0 %v3978
    %6886 = vmatmul.bf16.gmra.mxu0 %v6426
    %v6887 = vpop.f32.mrf.mxu0
    %v6888 = vadd.f32 0.0, %v6887
    %v6889 = vpop.f32.mrf.mxu0
    %v6890 = vadd.f32 0.0, %v6889
    %6891 = vdwg.mxu0
    %6892 = vmatpush.bf16.msra.mxu0 %v4218
    %6893 = vmatpush.bf16.msra.mxu0 %v4202
    %6894 = vmatpush.bf16.msra.mxu0 %v4186
    %6895 = vmatpush.bf16.msra.mxu0 %v4170
    %6896 = vmatpush.bf16.msra.mxu0 %v4154
    %6897 = vmatpush.bf16.msra.mxu0 %v4138
    %6898 = vmatpush.bf16.msra.mxu0 %v4122
    %6899 = vmatpush.bf16.msra.mxu0 %v4106
    %6900 = vmatmul.bf16.gmra.mxu0 %v6427
    %v6901 = vpop.f32.mrf.mxu0
    %v6902 = vadd.f32 %v6888, %v6901
    %v6903 = vpop.f32.mrf.mxu0
    %v6904 = vadd.f32 %v6890, %v6903
    %6905 = vdwg.mxu0
    %6906 = vmatpush.bf16.msra.mxu0 %v4346
    %6907 = vmatpush.bf16.msra.mxu0 %v4330
    %6908 = vmatpush.bf16.msra.mxu0 %v4314
    %6909 = vmatpush.bf16.msra.mxu0 %v4298
    %6910 = vmatpush.bf16.msra.mxu0 %v4282
    %6911 = vmatpush.bf16.msra.mxu0 %v4266
    %6912 = vmatpush.bf16.msra.mxu0 %v4250
    %6913 = vmatpush.bf16.msra.mxu0 %v4234
    %6914 = vmatmul.bf16.gmra.mxu0 %v6428
    %v6915 = vpop.f32.mrf.mxu0
    %v6916 = vadd.f32 %v6902, %v6915
    %v6917 = vpop.f32.mrf.mxu0
    %v6918 = vadd.f32 %v6904, %v6917
    %6919 = vdwg.mxu0
    %6920 = vmatpush.bf16.msra.mxu0 %v4474
    %6921 = vmatpush.bf16.msra.mxu0 %v4458
    %6922 = vmatpush.bf16.msra.mxu0 %v4442
    %6923 = vmatpush.bf16.msra.mxu0 %v4426
    %6924 = vmatpush.bf16.msra.mxu0 %v4410
    %6925 = vmatpush.bf16.msra.mxu0 %v4394
    %6926 = vmatpush.bf16.msra.mxu0 %v4378
    %6927 = vmatpush.bf16.msra.mxu0 %v4362
    %6928 = vmatmul.bf16.gmra.mxu0 %v6429
    %v6929 = vpop.f32.mrf.mxu0
    %v6930 = vadd.f32 %v6916, %v6929
    %v6931 = vpop.f32.mrf.mxu0
    %v6932 = vadd.f32 %v6918, %v6931
    %6933 = vdwg.mxu0
    %6934 = vmatpush.bf16.msra.mxu0 %v4091
    %6935 = vmatpush.bf16.msra.mxu0 %v4075
    %6936 = vmatpush.bf16.msra.mxu0 %v4059
    %6937 = vmatpush.bf16.msra.mxu0 %v4043
    %6938 = vmatpush.bf16.msra.mxu0 %v4027
    %6939 = vmatpush.bf16.msra.mxu0 %v4011
    %6940 = vmatpush.bf16.msra.mxu0 %v3995
    %6941 = vmatpush.bf16.msra.mxu0 %v3979
    %6942 = vmatmul.bf16.gmra.mxu0 %v6426
    %v6943 = vpop.f32.mrf.mxu0
    %v6944 = vadd.f32 0.0, %v6943
    %v6945 = vpop.f32.mrf.mxu0
    %v6946 = vadd.f32 0.0, %v6945
    %6947 = vdwg.mxu0
    %6948 = vmatpush.bf16.msra.mxu0 %v4219
    %6949 = vmatpush.bf16.msra.mxu0 %v4203
    %6950 = vmatpush.bf16.msra.mxu0 %v4187
    %6951 = vmatpush.bf16.msra.mxu0 %v4171
    %6952 = vmatpush.bf16.msra.mxu0 %v4155
    %6953 = vmatpush.bf16.msra.mxu0 %v4139
    %6954 = vmatpush.bf16.msra.mxu0 %v4123
    %6955 = vmatpush.bf16.msra.mxu0 %v4107
    %6956 = vmatmul.bf16.gmra.mxu0 %v6427
    %v6957 = vpop.f32.mrf.mxu0
    %v6958 = vadd.f32 %v6944, %v6957
    %v6959 = vpop.f32.mrf.mxu0
    %v6960 = vadd.f32 %v6946, %v6959
    %6961 = vdwg.mxu0
    %6962 = vmatpush.bf16.msra.mxu0 %v4347
    %6963 = vmatpush.bf16.msra.mxu0 %v4331
    %6964 = vmatpush.bf16.msra.mxu0 %v4315
    %6965 = vmatpush.bf16.msra.mxu0 %v4299
    %6966 = vmatpush.bf16.msra.mxu0 %v4283
    %6967 = vmatpush.bf16.msra.mxu0 %v4267
    %6968 = vmatpush.bf16.msra.mxu0 %v4251
    %6969 = vmatpush.bf16.msra.mxu0 %v4235
    %6970 = vmatmul.bf16.gmra.mxu0 %v6428
    %v6971 = vpop.f32.mrf.mxu0
    %v6972 = vadd.f32 %v6958, %v6971
    %v6973 = vpop.f32.mrf.mxu0
    %v6974 = vadd.f32 %v6960, %v6973
    %6975 = vdwg.mxu0
    %6976 = vmatpush.bf16.msra.mxu0 %v4475
    %6977 = vmatpush.bf16.msra.mxu0 %v4459
    %6978 = vmatpush.bf16.msra.mxu0 %v4443
    %6979 = vmatpush.bf16.msra.mxu0 %v4427
    %6980 = vmatpush.bf16.msra.mxu0 %v4411
    %6981 = vmatpush.bf16.msra.mxu0 %v4395
    %6982 = vmatpush.bf16.msra.mxu0 %v4379
    %6983 = vmatpush.bf16.msra.mxu0 %v4363
    %6984 = vmatmul.bf16.gmra.mxu0 %v6429
    %v6985 = vpop.f32.mrf.mxu0
    %v6986 = vadd.f32 %v6972, %v6985
    %v6987 = vpop.f32.mrf.mxu0
    %v6988 = vadd.f32 %v6974, %v6987
    %6989 = vdwg.mxu0
    %6990 = vmatpush.bf16.msra.mxu0 %v4092
    %6991 = vmatpush.bf16.msra.mxu0 %v4076
    %6992 = vmatpush.bf16.msra.mxu0 %v4060
    %6993 = vmatpush.bf16.msra.mxu0 %v4044
    %6994 = vmatpush.bf16.msra.mxu0 %v4028
    %6995 = vmatpush.bf16.msra.mxu0 %v4012
    %6996 = vmatpush.bf16.msra.mxu0 %v3996
    %6997 = vmatpush.bf16.msra.mxu0 %v3980
    %6998 = vmatmul.bf16.gmra.mxu0 %v6426
    %v6999 = vpop.f32.mrf.mxu0
    %v7000 = vadd.f32 0.0, %v6999
    %v7001 = vpop.f32.mrf.mxu0
    %v7002 = vadd.f32 0.0, %v7001
    %7003 = vdwg.mxu0
    %7004 = vmatpush.bf16.msra.mxu0 %v4220
    %7005 = vmatpush.bf16.msra.mxu0 %v4204
    %7006 = vmatpush.bf16.msra.mxu0 %v4188
    %7007 = vmatpush.bf16.msra.mxu0 %v4172
    %7008 = vmatpush.bf16.msra.mxu0 %v4156
    %7009 = vmatpush.bf16.msra.mxu0 %v4140
    %7010 = vmatpush.bf16.msra.mxu0 %v4124
    %7011 = vmatpush.bf16.msra.mxu0 %v4108
    %7012 = vmatmul.bf16.gmra.mxu0 %v6427
    %v7013 = vpop.f32.mrf.mxu0
    %v7014 = vadd.f32 %v7000, %v7013
    %v7015 = vpop.f32.mrf.mxu0
    %v7016 = vadd.f32 %v7002, %v7015
    %7017 = vdwg.mxu0
    %7018 = vmatpush.bf16.msra.mxu0 %v4348
    %7019 = vmatpush.bf16.msra.mxu0 %v4332
    %7020 = vmatpush.bf16.msra.mxu0 %v4316
    %7021 = vmatpush.bf16.msra.mxu0 %v4300
    %7022 = vmatpush.bf16.msra.mxu0 %v4284
    %7023 = vmatpush.bf16.msra.mxu0 %v4268
    %7024 = vmatpush.bf16.msra.mxu0 %v4252
    %7025 = vmatpush.bf16.msra.mxu0 %v4236
    %7026 = vmatmul.bf16.gmra.mxu0 %v6428
    %v7027 = vpop.f32.mrf.mxu0
    %v7028 = vadd.f32 %v7014, %v7027
    %v7029 = vpop.f32.mrf.mxu0
    %v7030 = vadd.f32 %v7016, %v7029
    %7031 = vdwg.mxu0
    %7032 = vmatpush.bf16.msra.mxu0 %v4476
    %7033 = vmatpush.bf16.msra.mxu0 %v4460
    %7034 = vmatpush.bf16.msra.mxu0 %v4444
    %7035 = vmatpush.bf16.msra.mxu0 %v4428
    %7036 = vmatpush.bf16.msra.mxu0 %v4412
    %7037 = vmatpush.bf16.msra.mxu0 %v4396
    %7038 = vmatpush.bf16.msra.mxu0 %v4380
    %7039 = vmatpush.bf16.msra.mxu0 %v4364
    %7040 = vmatmul.bf16.gmra.mxu0 %v6429
    %v7041 = vpop.f32.mrf.mxu0
    %v7042 = vadd.f32 %v7028, %v7041
    %v7043 = vpop.f32.mrf.mxu0
    %v7044 = vadd.f32 %v7030, %v7043
    %7045 = vdwg.mxu0
    %7046 = vmatpush.bf16.msra.mxu0 %v4093
    %7047 = vmatpush.bf16.msra.mxu0 %v4077
    %7048 = vmatpush.bf16.msra.mxu0 %v4061
    %7049 = vmatpush.bf16.msra.mxu0 %v4045
    %7050 = vmatpush.bf16.msra.mxu0 %v4029
    %7051 = vmatpush.bf16.msra.mxu0 %v4013
    %7052 = vmatpush.bf16.msra.mxu0 %v3997
    %7053 = vmatpush.bf16.msra.mxu0 %v3981
    %7054 = vmatmul.bf16.gmra.mxu0 %v6426
    %v7055 = vpop.f32.mrf.mxu0
    %v7056 = vadd.f32 0.0, %v7055
    %v7057 = vpop.f32.mrf.mxu0
    %v7058 = vadd.f32 0.0, %v7057
    %7059 = vdwg.mxu0
    %7060 = vmatpush.bf16.msra.mxu0 %v4221
    %7061 = vmatpush.bf16.msra.mxu0 %v4205
    %7062 = vmatpush.bf16.msra.mxu0 %v4189
    %7063 = vmatpush.bf16.msra.mxu0 %v4173
    %7064 = vmatpush.bf16.msra.mxu0 %v4157
    %7065 = vmatpush.bf16.msra.mxu0 %v4141
    %7066 = vmatpush.bf16.msra.mxu0 %v4125
    %7067 = vmatpush.bf16.msra.mxu0 %v4109
    %7068 = vmatmul.bf16.gmra.mxu0 %v6427
    %v7069 = vpop.f32.mrf.mxu0
    %v7070 = vadd.f32 %v7056, %v7069
    %v7071 = vpop.f32.mrf.mxu0
    %v7072 = vadd.f32 %v7058, %v7071
    %7073 = vdwg.mxu0
    %7074 = vmatpush.bf16.msra.mxu0 %v4349
    %7075 = vmatpush.bf16.msra.mxu0 %v4333
    %7076 = vmatpush.bf16.msra.mxu0 %v4317
    %7077 = vmatpush.bf16.msra.mxu0 %v4301
    %7078 = vmatpush.bf16.msra.mxu0 %v4285
    %7079 = vmatpush.bf16.msra.mxu0 %v4269
    %7080 = vmatpush.bf16.msra.mxu0 %v4253
    %7081 = vmatpush.bf16.msra.mxu0 %v4237
    %7082 = vmatmul.bf16.gmra.mxu0 %v6428
    %v7083 = vpop.f32.mrf.mxu0
    %v7084 = vadd.f32 %v7070, %v7083
    %v7085 = vpop.f32.mrf.mxu0
    %v7086 = vadd.f32 %v7072, %v7085
    %7087 = vdwg.mxu0
    %7088 = vmatpush.bf16.msra.mxu0 %v4477
    %7089 = vmatpush.bf16.msra.mxu0 %v4461
    %7090 = vmatpush.bf16.msra.mxu0 %v4445
    %7091 = vmatpush.bf16.msra.mxu0 %v4429
    %7092 = vmatpush.bf16.msra.mxu0 %v4413
    %7093 = vmatpush.bf16.msra.mxu0 %v4397
    %7094 = vmatpush.bf16.msra.mxu0 %v4381
    %7095 = vmatpush.bf16.msra.mxu0 %v4365
    %7096 = vmatmul.bf16.gmra.mxu0 %v6429
    %v7097 = vpop.f32.mrf.mxu0
    %v7098 = vadd.f32 %v7084, %v7097
    %v7099 = vpop.f32.mrf.mxu0
    %v7100 = vadd.f32 %v7086, %v7099
    %7101 = vdwg.mxu0
    %7102 = vmatpush.bf16.msra.mxu0 %v4094
    %7103 = vmatpush.bf16.msra.mxu0 %v4078
    %7104 = vmatpush.bf16.msra.mxu0 %v4062
    %7105 = vmatpush.bf16.msra.mxu0 %v4046
    %7106 = vmatpush.bf16.msra.mxu0 %v4030
    %7107 = vmatpush.bf16.msra.mxu0 %v4014
    %7108 = vmatpush.bf16.msra.mxu0 %v3998
    %7109 = vmatpush.bf16.msra.mxu0 %v3982
    %7110 = vmatmul.bf16.gmra.mxu0 %v6426
    %v7111 = vpop.f32.mrf.mxu0
    %v7112 = vadd.f32 0.0, %v7111
    %v7113 = vpop.f32.mrf.mxu0
    %v7114 = vadd.f32 0.0, %v7113
    %7115 = vdwg.mxu0
    %7116 = vmatpush.bf16.msra.mxu0 %v4222
    %7117 = vmatpush.bf16.msra.mxu0 %v4206
    %7118 = vmatpush.bf16.msra.mxu0 %v4190
    %7119 = vmatpush.bf16.msra.mxu0 %v4174
    %7120 = vmatpush.bf16.msra.mxu0 %v4158
    %7121 = vmatpush.bf16.msra.mxu0 %v4142
    %7122 = vmatpush.bf16.msra.mxu0 %v4126
    %7123 = vmatpush.bf16.msra.mxu0 %v4110
    %7124 = vmatmul.bf16.gmra.mxu0 %v6427
    %v7125 = vpop.f32.mrf.mxu0
    %v7126 = vadd.f32 %v7112, %v7125
    %v7127 = vpop.f32.mrf.mxu0
    %v7128 = vadd.f32 %v7114, %v7127
    %7129 = vdwg.mxu0
    %7130 = vmatpush.bf16.msra.mxu0 %v4350
    %7131 = vmatpush.bf16.msra.mxu0 %v4334
    %7132 = vmatpush.bf16.msra.mxu0 %v4318
    %7133 = vmatpush.bf16.msra.mxu0 %v4302
    %7134 = vmatpush.bf16.msra.mxu0 %v4286
    %7135 = vmatpush.bf16.msra.mxu0 %v4270
    %7136 = vmatpush.bf16.msra.mxu0 %v4254
    %7137 = vmatpush.bf16.msra.mxu0 %v4238
    %7138 = vmatmul.bf16.gmra.mxu0 %v6428
    %v7139 = vpop.f32.mrf.mxu0
    %v7140 = vadd.f32 %v7126, %v7139
    %v7141 = vpop.f32.mrf.mxu0
    %v7142 = vadd.f32 %v7128, %v7141
    %7143 = vdwg.mxu0
    %7144 = vmatpush.bf16.msra.mxu0 %v4478
    %7145 = vmatpush.bf16.msra.mxu0 %v4462
    %7146 = vmatpush.bf16.msra.mxu0 %v4446
    %7147 = vmatpush.bf16.msra.mxu0 %v4430
    %7148 = vmatpush.bf16.msra.mxu0 %v4414
    %7149 = vmatpush.bf16.msra.mxu0 %v4398
    %7150 = vmatpush.bf16.msra.mxu0 %v4382
    %7151 = vmatpush.bf16.msra.mxu0 %v4366
    %7152 = vmatmul.bf16.gmra.mxu0 %v6429
    %v7153 = vpop.f32.mrf.mxu0
    %v7154 = vadd.f32 %v7140, %v7153
    %v7155 = vpop.f32.mrf.mxu0
    %v7156 = vadd.f32 %v7142, %v7155
    %7157 = vdwg.mxu0
    %7158 = vmatpush.bf16.msra.mxu0 %v4095
    %7159 = vmatpush.bf16.msra.mxu0 %v4079
    %7160 = vmatpush.bf16.msra.mxu0 %v4063
    %7161 = vmatpush.bf16.msra.mxu0 %v4047
    %7162 = vmatpush.bf16.msra.mxu0 %v4031
    %7163 = vmatpush.bf16.msra.mxu0 %v4015
    %7164 = vmatpush.bf16.msra.mxu0 %v3999
    %7165 = vmatpush.bf16.msra.mxu0 %v3983
    %7166 = vmatmul.bf16.gmra.mxu0 %v6426
    %v7167 = vpop.f32.mrf.mxu0
    %v7168 = vadd.f32 0.0, %v7167
    %v7169 = vpop.f32.mrf.mxu0
    %v7170 = vadd.f32 0.0, %v7169
    %7171 = vdwg.mxu0
    %7172 = vmatpush.bf16.msra.mxu0 %v4223
    %7173 = vmatpush.bf16.msra.mxu0 %v4207
    %7174 = vmatpush.bf16.msra.mxu0 %v4191
    %7175 = vmatpush.bf16.msra.mxu0 %v4175
    %7176 = vmatpush.bf16.msra.mxu0 %v4159
    %7177 = vmatpush.bf16.msra.mxu0 %v4143
    %7178 = vmatpush.bf16.msra.mxu0 %v4127
    %7179 = vmatpush.bf16.msra.mxu0 %v4111
    %7180 = vmatmul.bf16.gmra.mxu0 %v6427
    %v7181 = vpop.f32.mrf.mxu0
    %v7182 = vadd.f32 %v7168, %v7181
    %v7183 = vpop.f32.mrf.mxu0
    %v7184 = vadd.f32 %v7170, %v7183
    %7185 = vdwg.mxu0
    %7186 = vmatpush.bf16.msra.mxu0 %v4351
    %7187 = vmatpush.bf16.msra.mxu0 %v4335
    %7188 = vmatpush.bf16.msra.mxu0 %v4319
    %7189 = vmatpush.bf16.msra.mxu0 %v4303
    %7190 = vmatpush.bf16.msra.mxu0 %v4287
    %7191 = vmatpush.bf16.msra.mxu0 %v4271
    %7192 = vmatpush.bf16.msra.mxu0 %v4255
    %7193 = vmatpush.bf16.msra.mxu0 %v4239
    %7194 = vmatmul.bf16.gmra.mxu0 %v6428
    %v7195 = vpop.f32.mrf.mxu0
    %v7196 = vadd.f32 %v7182, %v7195
    %v7197 = vpop.f32.mrf.mxu0
    %v7198 = vadd.f32 %v7184, %v7197
    %7199 = vdwg.mxu0
    %7200 = vmatpush.bf16.msra.mxu0 %v4479
    %7201 = vmatpush.bf16.msra.mxu0 %v4463
    %7202 = vmatpush.bf16.msra.mxu0 %v4447
    %7203 = vmatpush.bf16.msra.mxu0 %v4431
    %7204 = vmatpush.bf16.msra.mxu0 %v4415
    %7205 = vmatpush.bf16.msra.mxu0 %v4399
    %7206 = vmatpush.bf16.msra.mxu0 %v4383
    %7207 = vmatpush.bf16.msra.mxu0 %v4367
    %7208 = vmatmul.bf16.gmra.mxu0 %v6429
    %v7209 = vpop.f32.mrf.mxu0
    %v7210 = vadd.f32 %v7196, %v7209
    %v7211 = vpop.f32.mrf.mxu0
    %v7212 = vadd.f32 %v7198, %v7211
    %7213 = vdwg.mxu0
    %7214 = vmatpush.bf16.msra.mxu0 %v4096
    %7215 = vmatpush.bf16.msra.mxu0 %v4080
    %7216 = vmatpush.bf16.msra.mxu0 %v4064
    %7217 = vmatpush.bf16.msra.mxu0 %v4048
    %7218 = vmatpush.bf16.msra.mxu0 %v4032
    %7219 = vmatpush.bf16.msra.mxu0 %v4016
    %7220 = vmatpush.bf16.msra.mxu0 %v4000
    %7221 = vmatpush.bf16.msra.mxu0 %v3984
    %7222 = vmatmul.bf16.gmra.mxu0 %v6426
    %v7223 = vpop.f32.mrf.mxu0
    %v7224 = vadd.f32 0.0, %v7223
    %v7225 = vpop.f32.mrf.mxu0
    %v7226 = vadd.f32 0.0, %v7225
    %7227 = vdwg.mxu0
    %7228 = vmatpush.bf16.msra.mxu0 %v4224
    %7229 = vmatpush.bf16.msra.mxu0 %v4208
    %7230 = vmatpush.bf16.msra.mxu0 %v4192
    %7231 = vmatpush.bf16.msra.mxu0 %v4176
    %7232 = vmatpush.bf16.msra.mxu0 %v4160
    %7233 = vmatpush.bf16.msra.mxu0 %v4144
    %7234 = vmatpush.bf16.msra.mxu0 %v4128
    %7235 = vmatpush.bf16.msra.mxu0 %v4112
    %7236 = vmatmul.bf16.gmra.mxu0 %v6427
    %v7237 = vpop.f32.mrf.mxu0
    %v7238 = vadd.f32 %v7224, %v7237
    %v7239 = vpop.f32.mrf.mxu0
    %v7240 = vadd.f32 %v7226, %v7239
    %7241 = vdwg.mxu0
    %7242 = vmatpush.bf16.msra.mxu0 %v4352
    %7243 = vmatpush.bf16.msra.mxu0 %v4336
    %7244 = vmatpush.bf16.msra.mxu0 %v4320
    %7245 = vmatpush.bf16.msra.mxu0 %v4304
    %7246 = vmatpush.bf16.msra.mxu0 %v4288
    %7247 = vmatpush.bf16.msra.mxu0 %v4272
    %7248 = vmatpush.bf16.msra.mxu0 %v4256
    %7249 = vmatpush.bf16.msra.mxu0 %v4240
    %7250 = vmatmul.bf16.gmra.mxu0 %v6428
    %v7251 = vpop.f32.mrf.mxu0
    %v7252 = vadd.f32 %v7238, %v7251
    %v7253 = vpop.f32.mrf.mxu0
    %v7254 = vadd.f32 %v7240, %v7253
    %7255 = vdwg.mxu0
    %7256 = vmatpush.bf16.msra.mxu0 %v4480
    %7257 = vmatpush.bf16.msra.mxu0 %v4464
    %7258 = vmatpush.bf16.msra.mxu0 %v4448
    %7259 = vmatpush.bf16.msra.mxu0 %v4432
    %7260 = vmatpush.bf16.msra.mxu0 %v4416
    %7261 = vmatpush.bf16.msra.mxu0 %v4400
    %7262 = vmatpush.bf16.msra.mxu0 %v4384
    %7263 = vmatpush.bf16.msra.mxu0 %v4368
    %7264 = vmatmul.bf16.gmra.mxu0 %v6429
    %v7265 = vpop.f32.mrf.mxu0
    %v7266 = vadd.f32 %v7252, %v7265
    %v7267 = vpop.f32.mrf.mxu0
    %v7268 = vadd.f32 %v7254, %v7267
    %7269 = vdwg.mxu0
    %7270 = vmatpush.bf16.msra.mxu0 %v4097
    %7271 = vmatpush.bf16.msra.mxu0 %v4081
    %7272 = vmatpush.bf16.msra.mxu0 %v4065
    %7273 = vmatpush.bf16.msra.mxu0 %v4049
    %7274 = vmatpush.bf16.msra.mxu0 %v4033
    %7275 = vmatpush.bf16.msra.mxu0 %v4017
    %7276 = vmatpush.bf16.msra.mxu0 %v4001
    %7277 = vmatpush.bf16.msra.mxu0 %v3985
    %7278 = vmatmul.bf16.gmra.mxu0 %v6426
    %v7279 = vpop.f32.mrf.mxu0
    %v7280 = vadd.f32 0.0, %v7279
    %v7281 = vpop.f32.mrf.mxu0
    %v7282 = vadd.f32 0.0, %v7281
    %7283 = vdwg.mxu0
    %7284 = vmatpush.bf16.msra.mxu0 %v4225
    %7285 = vmatpush.bf16.msra.mxu0 %v4209
    %7286 = vmatpush.bf16.msra.mxu0 %v4193
    %7287 = vmatpush.bf16.msra.mxu0 %v4177
    %7288 = vmatpush.bf16.msra.mxu0 %v4161
    %7289 = vmatpush.bf16.msra.mxu0 %v4145
    %7290 = vmatpush.bf16.msra.mxu0 %v4129
    %7291 = vmatpush.bf16.msra.mxu0 %v4113
    %7292 = vmatmul.bf16.gmra.mxu0 %v6427
    %v7293 = vpop.f32.mrf.mxu0
    %v7294 = vadd.f32 %v7280, %v7293
    %v7295 = vpop.f32.mrf.mxu0
    %v7296 = vadd.f32 %v7282, %v7295
    %7297 = vdwg.mxu0
    %7298 = vmatpush.bf16.msra.mxu0 %v4353
    %7299 = vmatpush.bf16.msra.mxu0 %v4337
    %7300 = vmatpush.bf16.msra.mxu0 %v4321
    %7301 = vmatpush.bf16.msra.mxu0 %v4305
    %7302 = vmatpush.bf16.msra.mxu0 %v4289
    %7303 = vmatpush.bf16.msra.mxu0 %v4273
    %7304 = vmatpush.bf16.msra.mxu0 %v4257
    %7305 = vmatpush.bf16.msra.mxu0 %v4241
    %7306 = vmatmul.bf16.gmra.mxu0 %v6428
    %v7307 = vpop.f32.mrf.mxu0
    %v7308 = vadd.f32 %v7294, %v7307
    %v7309 = vpop.f32.mrf.mxu0
    %v7310 = vadd.f32 %v7296, %v7309
    %7311 = vdwg.mxu0
    %7312 = vmatpush.bf16.msra.mxu0 %v4481
    %7313 = vmatpush.bf16.msra.mxu0 %v4465
    %7314 = vmatpush.bf16.msra.mxu0 %v4449
    %7315 = vmatpush.bf16.msra.mxu0 %v4433
    %7316 = vmatpush.bf16.msra.mxu0 %v4417
    %7317 = vmatpush.bf16.msra.mxu0 %v4401
    %7318 = vmatpush.bf16.msra.mxu0 %v4385
    %7319 = vmatpush.bf16.msra.mxu0 %v4369
    %7320 = vmatmul.bf16.gmra.mxu0 %v6429
    %v7321 = vpop.f32.mrf.mxu0
    %v7322 = vadd.f32 %v7308, %v7321
    %v7323 = vpop.f32.mrf.mxu0
    %v7324 = vadd.f32 %v7310, %v7323
    %7325 = vdwg.mxu0
    %v7326 = vadd.f32 %v970, %v6482
    %v7327 = vadd.f32 %v999, %v6538
    %v7328 = vadd.f32 %v1028, %v6594
    %v7329 = vadd.f32 %v1057, %v6650
    %v7330 = vadd.f32 %v1086, %v6706
    %v7331 = vadd.f32 %v1115, %v6762
    %v7332 = vadd.f32 %v1144, %v6818
    %v7333 = vadd.f32 %v1173, %v6874
    %v7334 = vadd.f32 %v1202, %v6930
    %v7335 = vadd.f32 %v1231, %v6986
    %v7336 = vadd.f32 %v1260, %v7042
    %v7337 = vadd.f32 %v1289, %v7098
    %v7338 = vadd.f32 %v1318, %v7154
    %v7339 = vadd.f32 %v1347, %v7210
    %v7340 = vadd.f32 %v1376, %v7266
    %v7341 = vadd.f32 %v1405, %v7322
    %v7342 = vadd.f32 %v972, %v6484
    %v7343 = vadd.f32 %v1001, %v6540
    %v7344 = vadd.f32 %v1030, %v6596
    %v7345 = vadd.f32 %v1059, %v6652
    %v7346 = vadd.f32 %v1088, %v6708
    %v7347 = vadd.f32 %v1117, %v6764
    %v7348 = vadd.f32 %v1146, %v6820
    %v7349 = vadd.f32 %v1175, %v6876
    %v7350 = vadd.f32 %v1204, %v6932
    %v7351 = vadd.f32 %v1233, %v6988
    %v7352 = vadd.f32 %v1262, %v7044
    %v7353 = vadd.f32 %v1291, %v7100
    %v7354 = vadd.f32 %v1320, %v7156
    %v7355 = vadd.f32 %v1349, %v7212
    %v7356 = vadd.f32 %v1378, %v7268
    %v7357 = vadd.f32 %v1407, %v7324
    %v7358 = vxor.u32 %v7326, 2147483648
    %v7359 = vxor.u32 %v7327, 2147483648
    %v7360 = vxor.u32 %v7328, 2147483648
    %v7361 = vxor.u32 %v7329, 2147483648
    %v7362 = vxor.u32 %v7342, 2147483648
    %v7363 = vxor.u32 %v7343, 2147483648
    %v7364 = vxor.u32 %v7344, 2147483648
    %v7365 = vxor.u32 %v7345, 2147483648
    %v7366 = vmul.f32 %v7358, 1.442695
    %v7367 = vpow.pop %v7366
    %v7368 = vmul.f32 %v7359, 1.442695
    %v7369 = vpow.pop %v7368
    %v7370 = vmul.f32 %v7360, 1.442695
    %v7371 = vpow.pop %v7370
    %v7372 = vmul.f32 %v7361, 1.442695
    %v7373 = vpow.pop %v7372
    %v7374 = vmul.f32 %v7362, 1.442695
    %v7375 = vpow.pop %v7374
    %v7376 = vmul.f32 %v7363, 1.442695
    %v7377 = vpow.pop %v7376
    %v7378 = vmul.f32 %v7364, 1.442695
    %v7379 = vpow.pop %v7378
    %v7380 = vmul.f32 %v7365, 1.442695
    %v7381 = vpow.pop %v7380
    %v7382 = vadd.f32 %v7367, 1.0
    %v7383 = vadd.f32 %v7369, 1.0
    %v7384 = vadd.f32 %v7371, 1.0
    %v7385 = vadd.f32 %v7373, 1.0
    %v7386 = vadd.f32 %v7375, 1.0
    %v7387 = vadd.f32 %v7377, 1.0
    %v7388 = vadd.f32 %v7379, 1.0
    %v7389 = vadd.f32 %v7381, 1.0
    %v7390 = vrcp.pop %v7382
    %v7391 = vmul.f32 %v7382, %v7390
    %v7392 = vsub.f32 1.0, %v7391
    %v7393 = vmul.f32 %v7390, %v7392
    %v7394 = vadd.f32 %v7390, %v7393
    %vm7395 = vweird.f32 %v7382
    %vm7396 = vweird.f32 %v7390
    %vm7397 = vmor %vm7395, %vm7396
    %v7398 = vsel %vm7397, %v7390, %v7394
    %v7399 = vand.u32 2147483647, %v7382
    %vm7400 = vcmp.eq.f32.partialorder %v7399, 8.507059e+37
    %v7401 = vand.u32 %v7382, 2147483648
    %v7402 = vor.u32 1.1754944e-38, %v7401
    %v7403 = vsel %vm7400, %v7402, %v7398
    %v7404 = vmul.f32 1.0, %v7403
    %v7405 = vrcp.pop %v7383
    %v7406 = vmul.f32 %v7383, %v7405
    %v7407 = vsub.f32 1.0, %v7406
    %v7408 = vmul.f32 %v7405, %v7407
    %v7409 = vadd.f32 %v7405, %v7408
    %vm7410 = vweird.f32 %v7383
    %vm7411 = vweird.f32 %v7405
    %vm7412 = vmor %vm7410, %vm7411
    %v7413 = vsel %vm7412, %v7405, %v7409
    %v7414 = vand.u32 2147483647, %v7383
    %vm7415 = vcmp.eq.f32.partialorder %v7414, 8.507059e+37
    %v7416 = vand.u32 %v7383, 2147483648
    %v7417 = vor.u32 1.1754944e-38, %v7416
    %v7418 = vsel %vm7415, %v7417, %v7413
    %v7419 = vmul.f32 1.0, %v7418
    %v7420 = vrcp.pop %v7384
    %v7421 = vmul.f32 %v7384, %v7420
    %v7422 = vsub.f32 1.0, %v7421
    %v7423 = vmul.f32 %v7420, %v7422
    %v7424 = vadd.f32 %v7420, %v7423
    %vm7425 = vweird.f32 %v7384
    %vm7426 = vweird.f32 %v7420
    %vm7427 = vmor %vm7425, %vm7426
    %v7428 = vsel %vm7427, %v7420, %v7424
    %v7429 = vand.u32 2147483647, %v7384
    %vm7430 = vcmp.eq.f32.partialorder %v7429, 8.507059e+37
    %v7431 = vand.u32 %v7384, 2147483648
    %v7432 = vor.u32 1.1754944e-38, %v7431
    %v7433 = vsel %vm7430, %v7432, %v7428
    %v7434 = vmul.f32 1.0, %v7433
    %v7435 = vrcp.pop %v7385
    %v7436 = vmul.f32 %v7385, %v7435
    %v7437 = vsub.f32 1.0, %v7436
    %v7438 = vmul.f32 %v7435, %v7437
    %v7439 = vadd.f32 %v7435, %v7438
    %vm7440 = vweird.f32 %v7385
    %vm7441 = vweird.f32 %v7435
    %vm7442 = vmor %vm7440, %vm7441
    %v7443 = vsel %vm7442, %v7435, %v7439
    %v7444 = vand.u32 2147483647, %v7385
    %vm7445 = vcmp.eq.f32.partialorder %v7444, 8.507059e+37
    %v7446 = vand.u32 %v7385, 2147483648
    %v7447 = vor.u32 1.1754944e-38, %v7446
    %v7448 = vsel %vm7445, %v7447, %v7443
    %v7449 = vmul.f32 1.0, %v7448
    %v7450 = vrcp.pop %v7386
    %v7451 = vmul.f32 %v7386, %v7450
    %v7452 = vsub.f32 1.0, %v7451
    %v7453 = vmul.f32 %v7450, %v7452
    %v7454 = vadd.f32 %v7450, %v7453
    %vm7455 = vweird.f32 %v7386
    %vm7456 = vweird.f32 %v7450
    %vm7457 = vmor %vm7455, %vm7456
    %v7458 = vsel %vm7457, %v7450, %v7454
    %v7459 = vand.u32 2147483647, %v7386
    %vm7460 = vcmp.eq.f32.partialorder %v7459, 8.507059e+37
    %v7461 = vand.u32 %v7386, 2147483648
    %v7462 = vor.u32 1.1754944e-38, %v7461
    %v7463 = vsel %vm7460, %v7462, %v7458
    %v7464 = vmul.f32 1.0, %v7463
    %v7465 = vrcp.pop %v7387
    %v7466 = vmul.f32 %v7387, %v7465
    %v7467 = vsub.f32 1.0, %v7466
    %v7468 = vmul.f32 %v7465, %v7467
    %v7469 = vadd.f32 %v7465, %v7468
    %vm7470 = vweird.f32 %v7387
    %vm7471 = vweird.f32 %v7465
    %vm7472 = vmor %vm7470, %vm7471
    %v7473 = vsel %vm7472, %v7465, %v7469
    %v7474 = vand.u32 2147483647, %v7387
    %vm7475 = vcmp.eq.f32.partialorder %v7474, 8.507059e+37
    %v7476 = vand.u32 %v7387, 2147483648
    %v7477 = vor.u32 1.1754944e-38, %v7476
    %v7478 = vsel %vm7475, %v7477, %v7473
    %v7479 = vmul.f32 1.0, %v7478
    %v7480 = vrcp.pop %v7388
    %v7481 = vmul.f32 %v7388, %v7480
    %v7482 = vsub.f32 1.0, %v7481
    %v7483 = vmul.f32 %v7480, %v7482
    %v7484 = vadd.f32 %v7480, %v7483
    %vm7485 = vweird.f32 %v7388
    %vm7486 = vweird.f32 %v7480
    %vm7487 = vmor %vm7485, %vm7486
    %v7488 = vsel %vm7487, %v7480, %v7484
    %v7489 = vand.u32 2147483647, %v7388
    %vm7490 = vcmp.eq.f32.partialorder %v7489, 8.507059e+37
    %v7491 = vand.u32 %v7388, 2147483648
    %v7492 = vor.u32 1.1754944e-38, %v7491
    %v7493 = vsel %vm7490, %v7492, %v7488
    %v7494 = vmul.f32 1.0, %v7493
    %v7495 = vrcp.pop %v7389
    %v7496 = vmul.f32 %v7389, %v7495
    %v7497 = vsub.f32 1.0, %v7496
    %v7498 = vmul.f32 %v7495, %v7497
    %v7499 = vadd.f32 %v7495, %v7498
    %vm7500 = vweird.f32 %v7389
    %vm7501 = vweird.f32 %v7495
    %vm7502 = vmor %vm7500, %vm7501
    %v7503 = vsel %vm7502, %v7495, %v7499
    %v7504 = vand.u32 2147483647, %v7389
    %vm7505 = vcmp.eq.f32.partialorder %v7504, 8.507059e+37
    %v7506 = vand.u32 %v7389, 2147483648
    %v7507 = vor.u32 1.1754944e-38, %v7506
    %v7508 = vsel %vm7505, %v7507, %v7503
    %v7509 = vmul.f32 1.0, %v7508
    %v7510 = vxor.u32 %v7330, 2147483648
    %v7511 = vxor.u32 %v7331, 2147483648
    %v7512 = vxor.u32 %v7332, 2147483648
    %v7513 = vxor.u32 %v7333, 2147483648
    %v7514 = vxor.u32 %v7346, 2147483648
    %v7515 = vxor.u32 %v7347, 2147483648
    %v7516 = vxor.u32 %v7348, 2147483648
    %v7517 = vxor.u32 %v7349, 2147483648
    %v7518 = vmul.f32 %v7510, 1.442695
    %v7519 = vpow.pop %v7518
    %v7520 = vmul.f32 %v7511, 1.442695
    %v7521 = vpow.pop %v7520
    %v7522 = vmul.f32 %v7512, 1.442695
    %v7523 = vpow.pop %v7522
    %v7524 = vmul.f32 %v7513, 1.442695
    %v7525 = vpow.pop %v7524
    %v7526 = vmul.f32 %v7514, 1.442695
    %v7527 = vpow.pop %v7526
    %v7528 = vmul.f32 %v7515, 1.442695
    %v7529 = vpow.pop %v7528
    %v7530 = vmul.f32 %v7516, 1.442695
    %v7531 = vpow.pop %v7530
    %v7532 = vmul.f32 %v7517, 1.442695
    %v7533 = vpow.pop %v7532
    %v7534 = vadd.f32 %v7519, 1.0
    %v7535 = vadd.f32 %v7521, 1.0
    %v7536 = vadd.f32 %v7523, 1.0
    %v7537 = vadd.f32 %v7525, 1.0
    %v7538 = vadd.f32 %v7527, 1.0
    %v7539 = vadd.f32 %v7529, 1.0
    %v7540 = vadd.f32 %v7531, 1.0
    %v7541 = vadd.f32 %v7533, 1.0
    %v7542 = vrcp.pop %v7534
    %v7543 = vmul.f32 %v7534, %v7542
    %v7544 = vsub.f32 1.0, %v7543
    %v7545 = vmul.f32 %v7542, %v7544
    %v7546 = vadd.f32 %v7542, %v7545
    %vm7547 = vweird.f32 %v7534
    %vm7548 = vweird.f32 %v7542
    %vm7549 = vmor %vm7547, %vm7548
    %v7550 = vsel %vm7549, %v7542, %v7546
    %v7551 = vand.u32 2147483647, %v7534
    %vm7552 = vcmp.eq.f32.partialorder %v7551, 8.507059e+37
    %v7553 = vand.u32 %v7534, 2147483648
    %v7554 = vor.u32 1.1754944e-38, %v7553
    %v7555 = vsel %vm7552, %v7554, %v7550
    %v7556 = vmul.f32 1.0, %v7555
    %v7557 = vrcp.pop %v7535
    %v7558 = vmul.f32 %v7535, %v7557
    %v7559 = vsub.f32 1.0, %v7558
    %v7560 = vmul.f32 %v7557, %v7559
    %v7561 = vadd.f32 %v7557, %v7560
    %vm7562 = vweird.f32 %v7535
    %vm7563 = vweird.f32 %v7557
    %vm7564 = vmor %vm7562, %vm7563
    %v7565 = vsel %vm7564, %v7557, %v7561
    %v7566 = vand.u32 2147483647, %v7535
    %vm7567 = vcmp.eq.f32.partialorder %v7566, 8.507059e+37
    %v7568 = vand.u32 %v7535, 2147483648
    %v7569 = vor.u32 1.1754944e-38, %v7568
    %v7570 = vsel %vm7567, %v7569, %v7565
    %v7571 = vmul.f32 1.0, %v7570
    %v7572 = vrcp.pop %v7536
    %v7573 = vmul.f32 %v7536, %v7572
    %v7574 = vsub.f32 1.0, %v7573
    %v7575 = vmul.f32 %v7572, %v7574
    %v7576 = vadd.f32 %v7572, %v7575
    %vm7577 = vweird.f32 %v7536
    %vm7578 = vweird.f32 %v7572
    %vm7579 = vmor %vm7577, %vm7578
    %v7580 = vsel %vm7579, %v7572, %v7576
    %v7581 = vand.u32 2147483647, %v7536
    %vm7582 = vcmp.eq.f32.partialorder %v7581, 8.507059e+37
    %v7583 = vand.u32 %v7536, 2147483648
    %v7584 = vor.u32 1.1754944e-38, %v7583
    %v7585 = vsel %vm7582, %v7584, %v7580
    %v7586 = vmul.f32 1.0, %v7585
    %v7587 = vrcp.pop %v7537
    %v7588 = vmul.f32 %v7537, %v7587
    %v7589 = vsub.f32 1.0, %v7588
    %v7590 = vmul.f32 %v7587, %v7589
    %v7591 = vadd.f32 %v7587, %v7590
    %vm7592 = vweird.f32 %v7537
    %vm7593 = vweird.f32 %v7587
    %vm7594 = vmor %vm7592, %vm7593
    %v7595 = vsel %vm7594, %v7587, %v7591
    %v7596 = vand.u32 2147483647, %v7537
    %vm7597 = vcmp.eq.f32.partialorder %v7596, 8.507059e+37
    %v7598 = vand.u32 %v7537, 2147483648
    %v7599 = vor.u32 1.1754944e-38, %v7598
    %v7600 = vsel %vm7597, %v7599, %v7595
    %v7601 = vmul.f32 1.0, %v7600
    %v7602 = vrcp.pop %v7538
    %v7603 = vmul.f32 %v7538, %v7602
    %v7604 = vsub.f32 1.0, %v7603
    %v7605 = vmul.f32 %v7602, %v7604
    %v7606 = vadd.f32 %v7602, %v7605
    %vm7607 = vweird.f32 %v7538
    %vm7608 = vweird.f32 %v7602
    %vm7609 = vmor %vm7607, %vm7608
    %v7610 = vsel %vm7609, %v7602, %v7606
    %v7611 = vand.u32 2147483647, %v7538
    %vm7612 = vcmp.eq.f32.partialorder %v7611, 8.507059e+37
    %v7613 = vand.u32 %v7538, 2147483648
    %v7614 = vor.u32 1.1754944e-38, %v7613
    %v7615 = vsel %vm7612, %v7614, %v7610
    %v7616 = vmul.f32 1.0, %v7615
    %v7617 = vrcp.pop %v7539
    %v7618 = vmul.f32 %v7539, %v7617
    %v7619 = vsub.f32 1.0, %v7618
    %v7620 = vmul.f32 %v7617, %v7619
    %v7621 = vadd.f32 %v7617, %v7620
    %vm7622 = vweird.f32 %v7539
    %vm7623 = vweird.f32 %v7617
    %vm7624 = vmor %vm7622, %vm7623
    %v7625 = vsel %vm7624, %v7617, %v7621
    %v7626 = vand.u32 2147483647, %v7539
    %vm7627 = vcmp.eq.f32.partialorder %v7626, 8.507059e+37
    %v7628 = vand.u32 %v7539, 2147483648
    %v7629 = vor.u32 1.1754944e-38, %v7628
    %v7630 = vsel %vm7627, %v7629, %v7625
    %v7631 = vmul.f32 1.0, %v7630
    %v7632 = vrcp.pop %v7540
    %v7633 = vmul.f32 %v7540, %v7632
    %v7634 = vsub.f32 1.0, %v7633
    %v7635 = vmul.f32 %v7632, %v7634
    %v7636 = vadd.f32 %v7632, %v7635
    %vm7637 = vweird.f32 %v7540
    %vm7638 = vweird.f32 %v7632
    %vm7639 = vmor %vm7637, %vm7638
    %v7640 = vsel %vm7639, %v7632, %v7636
    %v7641 = vand.u32 2147483647, %v7540
    %vm7642 = vcmp.eq.f32.partialorder %v7641, 8.507059e+37
    %v7643 = vand.u32 %v7540, 2147483648
    %v7644 = vor.u32 1.1754944e-38, %v7643
    %v7645 = vsel %vm7642, %v7644, %v7640
    %v7646 = vmul.f32 1.0, %v7645
    %v7647 = vrcp.pop %v7541
    %v7648 = vmul.f32 %v7541, %v7647
    %v7649 = vsub.f32 1.0, %v7648
    %v7650 = vmul.f32 %v7647, %v7649
    %v7651 = vadd.f32 %v7647, %v7650
    %vm7652 = vweird.f32 %v7541
    %vm7653 = vweird.f32 %v7647
    %vm7654 = vmor %vm7652, %vm7653
    %v7655 = vsel %vm7654, %v7647, %v7651
    %v7656 = vand.u32 2147483647, %v7541
    %vm7657 = vcmp.eq.f32.partialorder %v7656, 8.507059e+37
    %v7658 = vand.u32 %v7541, 2147483648
    %v7659 = vor.u32 1.1754944e-38, %v7658
    %v7660 = vsel %vm7657, %v7659, %v7655
    %v7661 = vmul.f32 1.0, %v7660
    %v7662 = vtanh.pop %v7334
    %v7663 = vtanh.pop %v7335
    %v7664 = vtanh.pop %v7336
    %v7665 = vtanh.pop %v7337
    %v7666 = vtanh.pop %v7350
    %v7667 = vtanh.pop %v7351
    %v7668 = vtanh.pop %v7352
    %v7669 = vtanh.pop %v7353
    %v7670 = vxor.u32 %v7338, 2147483648
    %v7671 = vxor.u32 %v7339, 2147483648
    %v7672 = vxor.u32 %v7340, 2147483648
    %v7673 = vxor.u32 %v7341, 2147483648
    %v7674 = vxor.u32 %v7354, 2147483648
    %v7675 = vxor.u32 %v7355, 2147483648
    %v7676 = vxor.u32 %v7356, 2147483648
    %v7677 = vxor.u32 %v7357, 2147483648
    %v7678 = vmul.f32 %v7670, 1.442695
    %v7679 = vpow.pop %v7678
    %v7680 = vmul.f32 %v7671, 1.442695
    %v7681 = vpow.pop %v7680
    %v7682 = vmul.f32 %v7672, 1.442695
    %v7683 = vpow.pop %v7682
    %v7684 = vmul.f32 %v7673, 1.442695
    %v7685 = vpow.pop %v7684
    %v7686 = vmul.f32 %v7674, 1.442695
    %v7687 = vpow.pop %v7686
    %v7688 = vmul.f32 %v7675, 1.442695
    %v7689 = vpow.pop %v7688
    %v7690 = vmul.f32 %v7676, 1.442695
    %v7691 = vpow.pop %v7690
    %v7692 = vmul.f32 %v7677, 1.442695
    %v7693 = vpow.pop %v7692
    %v7694 = vadd.f32 %v7679, 1.0
    %v7695 = vadd.f32 %v7681, 1.0
    %v7696 = vadd.f32 %v7683, 1.0
    %v7697 = vadd.f32 %v7685, 1.0
    %v7698 = vadd.f32 %v7687, 1.0
    %v7699 = vadd.f32 %v7689, 1.0
    %v7700 = vadd.f32 %v7691, 1.0
    %v7701 = vadd.f32 %v7693, 1.0
    %v7702 = vrcp.pop %v7694
    %v7703 = vmul.f32 %v7694, %v7702
    %v7704 = vsub.f32 1.0, %v7703
    %v7705 = vmul.f32 %v7702, %v7704
    %v7706 = vadd.f32 %v7702, %v7705
    %vm7707 = vweird.f32 %v7694
    %vm7708 = vweird.f32 %v7702
    %vm7709 = vmor %vm7707, %vm7708
    %v7710 = vsel %vm7709, %v7702, %v7706
    %v7711 = vand.u32 2147483647, %v7694
    %vm7712 = vcmp.eq.f32.partialorder %v7711, 8.507059e+37
    %v7713 = vand.u32 %v7694, 2147483648
    %v7714 = vor.u32 1.1754944e-38, %v7713
    %v7715 = vsel %vm7712, %v7714, %v7710
    %v7716 = vmul.f32 1.0, %v7715
    %v7717 = vrcp.pop %v7695
    %v7718 = vmul.f32 %v7695, %v7717
    %v7719 = vsub.f32 1.0, %v7718
    %v7720 = vmul.f32 %v7717, %v7719
    %v7721 = vadd.f32 %v7717, %v7720
    %vm7722 = vweird.f32 %v7695
    %vm7723 = vweird.f32 %v7717
    %vm7724 = vmor %vm7722, %vm7723
    %v7725 = vsel %vm7724, %v7717, %v7721
    %v7726 = vand.u32 2147483647, %v7695
    %vm7727 = vcmp.eq.f32.partialorder %v7726, 8.507059e+37
    %v7728 = vand.u32 %v7695, 2147483648
    %v7729 = vor.u32 1.1754944e-38, %v7728
    %v7730 = vsel %vm7727, %v7729, %v7725
    %v7731 = vmul.f32 1.0, %v7730
    %v7732 = vrcp.pop %v7696
    %v7733 = vmul.f32 %v7696, %v7732
    %v7734 = vsub.f32 1.0, %v7733
    %v7735 = vmul.f32 %v7732, %v7734
    %v7736 = vadd.f32 %v7732, %v7735
    %vm7737 = vweird.f32 %v7696
    %vm7738 = vweird.f32 %v7732
    %vm7739 = vmor %vm7737, %vm7738
    %v7740 = vsel %vm7739, %v7732, %v7736
    %v7741 = vand.u32 2147483647, %v7696
    %vm7742 = vcmp.eq.f32.partialorder %v7741, 8.507059e+37
    %v7743 = vand.u32 %v7696, 2147483648
    %v7744 = vor.u32 1.1754944e-38, %v7743
    %v7745 = vsel %vm7742, %v7744, %v7740
    %v7746 = vmul.f32 1.0, %v7745
    %v7747 = vrcp.pop %v7697
    %v7748 = vmul.f32 %v7697, %v7747
    %v7749 = vsub.f32 1.0, %v7748
    %v7750 = vmul.f32 %v7747, %v7749
    %v7751 = vadd.f32 %v7747, %v7750
    %vm7752 = vweird.f32 %v7697
    %vm7753 = vweird.f32 %v7747
    %vm7754 = vmor %vm7752, %vm7753
    %v7755 = vsel %vm7754, %v7747, %v7751
    %v7756 = vand.u32 2147483647, %v7697
    %vm7757 = vcmp.eq.f32.partialorder %v7756, 8.507059e+37
    %v7758 = vand.u32 %v7697, 2147483648
    %v7759 = vor.u32 1.1754944e-38, %v7758
    %v7760 = vsel %vm7757, %v7759, %v7755
    %v7761 = vmul.f32 1.0, %v7760
    %v7762 = vrcp.pop %v7698
    %v7763 = vmul.f32 %v7698, %v7762
    %v7764 = vsub.f32 1.0, %v7763
    %v7765 = vmul.f32 %v7762, %v7764
    %v7766 = vadd.f32 %v7762, %v7765
    %vm7767 = vweird.f32 %v7698
    %vm7768 = vweird.f32 %v7762
    %vm7769 = vmor %vm7767, %vm7768
    %v7770 = vsel %vm7769, %v7762, %v7766
    %v7771 = vand.u32 2147483647, %v7698
    %vm7772 = vcmp.eq.f32.partialorder %v7771, 8.507059e+37
    %v7773 = vand.u32 %v7698, 2147483648
    %v7774 = vor.u32 1.1754944e-38, %v7773
    %v7775 = vsel %vm7772, %v7774, %v7770
    %v7776 = vmul.f32 1.0, %v7775
    %v7777 = vrcp.pop %v7699
    %v7778 = vmul.f32 %v7699, %v7777
    %v7779 = vsub.f32 1.0, %v7778
    %v7780 = vmul.f32 %v7777, %v7779
    %v7781 = vadd.f32 %v7777, %v7780
    %vm7782 = vweird.f32 %v7699
    %vm7783 = vweird.f32 %v7777
    %vm7784 = vmor %vm7782, %vm7783
    %v7785 = vsel %vm7784, %v7777, %v7781
    %v7786 = vand.u32 2147483647, %v7699
    %vm7787 = vcmp.eq.f32.partialorder %v7786, 8.507059e+37
    %v7788 = vand.u32 %v7699, 2147483648
    %v7789 = vor.u32 1.1754944e-38, %v7788
    %v7790 = vsel %vm7787, %v7789, %v7785
    %v7791 = vmul.f32 1.0, %v7790
    %v7792 = vrcp.pop %v7700
    %v7793 = vmul.f32 %v7700, %v7792
    %v7794 = vsub.f32 1.0, %v7793
    %v7795 = vmul.f32 %v7792, %v7794
    %v7796 = vadd.f32 %v7792, %v7795
    %vm7797 = vweird.f32 %v7700
    %vm7798 = vweird.f32 %v7792
    %vm7799 = vmor %vm7797, %vm7798
    %v7800 = vsel %vm7799, %v7792, %v7796
    %v7801 = vand.u32 2147483647, %v7700
    %vm7802 = vcmp.eq.f32.partialorder %v7801, 8.507059e+37
    %v7803 = vand.u32 %v7700, 2147483648
    %v7804 = vor.u32 1.1754944e-38, %v7803
    %v7805 = vsel %vm7802, %v7804, %v7800
    %v7806 = vmul.f32 1.0, %v7805
    %v7807 = vrcp.pop %v7701
    %v7808 = vmul.f32 %v7701, %v7807
    %v7809 = vsub.f32 1.0, %v7808
    %v7810 = vmul.f32 %v7807, %v7809
    %v7811 = vadd.f32 %v7807, %v7810
    %vm7812 = vweird.f32 %v7701
    %vm7813 = vweird.f32 %v7807
    %vm7814 = vmor %vm7812, %vm7813
    %v7815 = vsel %vm7814, %v7807, %v7811
    %v7816 = vand.u32 2147483647, %v7701
    %vm7817 = vcmp.eq.f32.partialorder %v7816, 8.507059e+37
    %v7818 = vand.u32 %v7701, 2147483648
    %v7819 = vor.u32 1.1754944e-38, %v7818
    %v7820 = vsel %vm7817, %v7819, %v7815
    %v7821 = vmul.f32 1.0, %v7820
    %v7822 = vmul.f32 %v7556, %v6402
    %v7823 = vmul.f32 %v7571, %v6403
    %v7824 = vmul.f32 %v7586, %v6404
    %v7825 = vmul.f32 %v7601, %v6405
    %v7826 = vmul.f32 %v7616, %v6406
    %v7827 = vmul.f32 %v7631, %v6407
    %v7828 = vmul.f32 %v7646, %v6408
    %v7829 = vmul.f32 %v7661, %v6409
    %v7830 = vmul.f32 %v7404, %v7662
    %v7831 = vmul.f32 %v7419, %v7663
    %v7832 = vmul.f32 %v7434, %v7664
    %v7833 = vmul.f32 %v7449, %v7665
    %v7834 = vmul.f32 %v7464, %v7666
    %v7835 = vmul.f32 %v7479, %v7667
    %v7836 = vmul.f32 %v7494, %v7668
    %v7837 = vmul.f32 %v7509, %v7669
    %v7838 = vadd.f32 %v7822, %v7830
    %v7839 = vadd.f32 %v7823, %v7831
    %v7840 = vadd.f32 %v7824, %v7832
    %v7841 = vadd.f32 %v7825, %v7833
    %v7842 = vadd.f32 %v7826, %v7834
    %v7843 = vadd.f32 %v7827, %v7835
    %v7844 = vadd.f32 %v7828, %v7836
    %v7845 = vadd.f32 %v7829, %v7837
    %v7846 = vtanh.pop %v7838
    %v7847 = vtanh.pop %v7839
    %v7848 = vtanh.pop %v7840
    %v7849 = vtanh.pop %v7841
    %v7850 = vtanh.pop %v7842
    %v7851 = vtanh.pop %v7843
    %v7852 = vtanh.pop %v7844
    %v7853 = vtanh.pop %v7845
    %v7854 = vmul.f32 %v7716, %v7846
    %v7855 = vmul.f32 %v7731, %v7847
    %v7856 = vmul.f32 %v7746, %v7848
    %v7857 = vmul.f32 %v7761, %v7849
    %v7858 = vmul.f32 %v7776, %v7850
    %v7859 = vmul.f32 %v7791, %v7851
    %v7860 = vmul.f32 %v7806, %v7852
    %v7861 = vmul.f32 %v7821, %v7853
    %v7862 = vpack.c.bf16 %v7858, %v7854
    %v7863 = vpack.c.bf16 %v7859, %v7855
    %v7864 = vpack.c.bf16 %v7860, %v7856
    %v7865 = vpack.c.bf16 %v7861, %v7857
    %7866 = vmatpush.bf16.msra.mxu0 %v4082
    %7867 = vmatpush.bf16.msra.mxu0 %v4066
    %7868 = vmatpush.bf16.msra.mxu0 %v4050
    %7869 = vmatpush.bf16.msra.mxu0 %v4034
    %7870 = vmatpush.bf16.msra.mxu0 %v4018
    %7871 = vmatpush.bf16.msra.mxu0 %v4002
    %7872 = vmatpush.bf16.msra.mxu0 %v3986
    %7873 = vmatpush.bf16.msra.mxu0 %v3970
    %7874 = vmatmul.bf16.gmra.mxu0 %v7862
    %v7875 = vpop.f32.mrf.mxu0
    %v7876 = vadd.f32 0.0, %v7875
    %v7877 = vpop.f32.mrf.mxu0
    %v7878 = vadd.f32 0.0, %v7877
    %7879 = vdwg.mxu0
    %7880 = vmatpush.bf16.msra.mxu0 %v4210
    %7881 = vmatpush.bf16.msra.mxu0 %v4194
    %7882 = vmatpush.bf16.msra.mxu0 %v4178
    %7883 = vmatpush.bf16.msra.mxu0 %v4162
    %7884 = vmatpush.bf16.msra.mxu0 %v4146
    %7885 = vmatpush.bf16.msra.mxu0 %v4130
    %7886 = vmatpush.bf16.msra.mxu0 %v4114
    %7887 = vmatpush.bf16.msra.mxu0 %v4098
    %7888 = vmatmul.bf16.gmra.mxu0 %v7863
    %v7889 = vpop.f32.mrf.mxu0
    %v7890 = vadd.f32 %v7876, %v7889
    %v7891 = vpop.f32.mrf.mxu0
    %v7892 = vadd.f32 %v7878, %v7891
    %7893 = vdwg.mxu0
    %7894 = vmatpush.bf16.msra.mxu0 %v4338
    %7895 = vmatpush.bf16.msra.mxu0 %v4322
    %7896 = vmatpush.bf16.msra.mxu0 %v4306
    %7897 = vmatpush.bf16.msra.mxu0 %v4290
    %7898 = vmatpush.bf16.msra.mxu0 %v4274
    %7899 = vmatpush.bf16.msra.mxu0 %v4258
    %7900 = vmatpush.bf16.msra.mxu0 %v4242
    %7901 = vmatpush.bf16.msra.mxu0 %v4226
    %7902 = vmatmul.bf16.gmra.mxu0 %v7864
    %v7903 = vpop.f32.mrf.mxu0
    %v7904 = vadd.f32 %v7890, %v7903
    %v7905 = vpop.f32.mrf.mxu0
    %v7906 = vadd.f32 %v7892, %v7905
    %7907 = vdwg.mxu0
    %7908 = vmatpush.bf16.msra.mxu0 %v4466
    %7909 = vmatpush.bf16.msra.mxu0 %v4450
    %7910 = vmatpush.bf16.msra.mxu0 %v4434
    %7911 = vmatpush.bf16.msra.mxu0 %v4418
    %7912 = vmatpush.bf16.msra.mxu0 %v4402
    %7913 = vmatpush.bf16.msra.mxu0 %v4386
    %7914 = vmatpush.bf16.msra.mxu0 %v4370
    %7915 = vmatpush.bf16.msra.mxu0 %v4354
    %7916 = vmatmul.bf16.gmra.mxu0 %v7865
    %v7917 = vpop.f32.mrf.mxu0
    %v7918 = vadd.f32 %v7904, %v7917
    %v7919 = vpop.f32.mrf.mxu0
    %v7920 = vadd.f32 %v7906, %v7919
    %7921 = vdwg.mxu0
    %7922 = vmatpush.bf16.msra.mxu0 %v4083
    %7923 = vmatpush.bf16.msra.mxu0 %v4067
    %7924 = vmatpush.bf16.msra.mxu0 %v4051
    %7925 = vmatpush.bf16.msra.mxu0 %v4035
    %7926 = vmatpush.bf16.msra.mxu0 %v4019
    %7927 = vmatpush.bf16.msra.mxu0 %v4003
    %7928 = vmatpush.bf16.msra.mxu0 %v3987
    %7929 = vmatpush.bf16.msra.mxu0 %v3971
    %7930 = vmatmul.bf16.gmra.mxu0 %v7862
    %v7931 = vpop.f32.mrf.mxu0
    %v7932 = vadd.f32 0.0, %v7931
    %v7933 = vpop.f32.mrf.mxu0
    %v7934 = vadd.f32 0.0, %v7933
    %7935 = vdwg.mxu0
    %7936 = vmatpush.bf16.msra.mxu0 %v4211
    %7937 = vmatpush.bf16.msra.mxu0 %v4195
    %7938 = vmatpush.bf16.msra.mxu0 %v4179
    %7939 = vmatpush.bf16.msra.mxu0 %v4163
    %7940 = vmatpush.bf16.msra.mxu0 %v4147
    %7941 = vmatpush.bf16.msra.mxu0 %v4131
    %7942 = vmatpush.bf16.msra.mxu0 %v4115
    %7943 = vmatpush.bf16.msra.mxu0 %v4099
    %7944 = vmatmul.bf16.gmra.mxu0 %v7863
    %v7945 = vpop.f32.mrf.mxu0
    %v7946 = vadd.f32 %v7932, %v7945
    %v7947 = vpop.f32.mrf.mxu0
    %v7948 = vadd.f32 %v7934, %v7947
    %7949 = vdwg.mxu0
    %7950 = vmatpush.bf16.msra.mxu0 %v4339
    %7951 = vmatpush.bf16.msra.mxu0 %v4323
    %7952 = vmatpush.bf16.msra.mxu0 %v4307
    %7953 = vmatpush.bf16.msra.mxu0 %v4291
    %7954 = vmatpush.bf16.msra.mxu0 %v4275
    %7955 = vmatpush.bf16.msra.mxu0 %v4259
    %7956 = vmatpush.bf16.msra.mxu0 %v4243
    %7957 = vmatpush.bf16.msra.mxu0 %v4227
    %7958 = vmatmul.bf16.gmra.mxu0 %v7864
    %v7959 = vpop.f32.mrf.mxu0
    %v7960 = vadd.f32 %v7946, %v7959
    %v7961 = vpop.f32.mrf.mxu0
    %v7962 = vadd.f32 %v7948, %v7961
    %7963 = vdwg.mxu0
    %7964 = vmatpush.bf16.msra.mxu0 %v4467
    %7965 = vmatpush.bf16.msra.mxu0 %v4451
    %7966 = vmatpush.bf16.msra.mxu0 %v4435
    %7967 = vmatpush.bf16.msra.mxu0 %v4419
    %7968 = vmatpush.bf16.msra.mxu0 %v4403
    %7969 = vmatpush.bf16.msra.mxu0 %v4387
    %7970 = vmatpush.bf16.msra.mxu0 %v4371
    %7971 = vmatpush.bf16.msra.mxu0 %v4355
    %7972 = vmatmul.bf16.gmra.mxu0 %v7865
    %v7973 = vpop.f32.mrf.mxu0
    %v7974 = vadd.f32 %v7960, %v7973
    %v7975 = vpop.f32.mrf.mxu0
    %v7976 = vadd.f32 %v7962, %v7975
    %7977 = vdwg.mxu0
    %7978 = vmatpush.bf16.msra.mxu0 %v4084
    %7979 = vmatpush.bf16.msra.mxu0 %v4068
    %7980 = vmatpush.bf16.msra.mxu0 %v4052
    %7981 = vmatpush.bf16.msra.mxu0 %v4036
    %7982 = vmatpush.bf16.msra.mxu0 %v4020
    %7983 = vmatpush.bf16.msra.mxu0 %v4004
    %7984 = vmatpush.bf16.msra.mxu0 %v3988
    %7985 = vmatpush.bf16.msra.mxu0 %v3972
    %7986 = vmatmul.bf16.gmra.mxu0 %v7862
    %v7987 = vpop.f32.mrf.mxu0
    %v7988 = vadd.f32 0.0, %v7987
    %v7989 = vpop.f32.mrf.mxu0
    %v7990 = vadd.f32 0.0, %v7989
    %7991 = vdwg.mxu0
    %7992 = vmatpush.bf16.msra.mxu0 %v4212
    %7993 = vmatpush.bf16.msra.mxu0 %v4196
    %7994 = vmatpush.bf16.msra.mxu0 %v4180
    %7995 = vmatpush.bf16.msra.mxu0 %v4164
    %7996 = vmatpush.bf16.msra.mxu0 %v4148
    %7997 = vmatpush.bf16.msra.mxu0 %v4132
    %7998 = vmatpush.bf16.msra.mxu0 %v4116
    %7999 = vmatpush.bf16.msra.mxu0 %v4100
    %8000 = vmatmul.bf16.gmra.mxu0 %v7863
    %v8001 = vpop.f32.mrf.mxu0
    %v8002 = vadd.f32 %v7988, %v8001
    %v8003 = vpop.f32.mrf.mxu0
    %v8004 = vadd.f32 %v7990, %v8003
    %8005 = vdwg.mxu0
    %8006 = vmatpush.bf16.msra.mxu0 %v4340
    %8007 = vmatpush.bf16.msra.mxu0 %v4324
    %8008 = vmatpush.bf16.msra.mxu0 %v4308
    %8009 = vmatpush.bf16.msra.mxu0 %v4292
    %8010 = vmatpush.bf16.msra.mxu0 %v4276
    %8011 = vmatpush.bf16.msra.mxu0 %v4260
    %8012 = vmatpush.bf16.msra.mxu0 %v4244
    %8013 = vmatpush.bf16.msra.mxu0 %v4228
    %8014 = vmatmul.bf16.gmra.mxu0 %v7864
    %v8015 = vpop.f32.mrf.mxu0
    %v8016 = vadd.f32 %v8002, %v8015
    %v8017 = vpop.f32.mrf.mxu0
    %v8018 = vadd.f32 %v8004, %v8017
    %8019 = vdwg.mxu0
    %8020 = vmatpush.bf16.msra.mxu0 %v4468
    %8021 = vmatpush.bf16.msra.mxu0 %v4452
    %8022 = vmatpush.bf16.msra.mxu0 %v4436
    %8023 = vmatpush.bf16.msra.mxu0 %v4420
    %8024 = vmatpush.bf16.msra.mxu0 %v4404
    %8025 = vmatpush.bf16.msra.mxu0 %v4388
    %8026 = vmatpush.bf16.msra.mxu0 %v4372
    %8027 = vmatpush.bf16.msra.mxu0 %v4356
    %8028 = vmatmul.bf16.gmra.mxu0 %v7865
    %v8029 = vpop.f32.mrf.mxu0
    %v8030 = vadd.f32 %v8016, %v8029
    %v8031 = vpop.f32.mrf.mxu0
    %v8032 = vadd.f32 %v8018, %v8031
    %8033 = vdwg.mxu0
    %8034 = vmatpush.bf16.msra.mxu0 %v4085
    %8035 = vmatpush.bf16.msra.mxu0 %v4069
    %8036 = vmatpush.bf16.msra.mxu0 %v4053
    %8037 = vmatpush.bf16.msra.mxu0 %v4037
    %8038 = vmatpush.bf16.msra.mxu0 %v4021
    %8039 = vmatpush.bf16.msra.mxu0 %v4005
    %8040 = vmatpush.bf16.msra.mxu0 %v3989
    %8041 = vmatpush.bf16.msra.mxu0 %v3973
    %8042 = vmatmul.bf16.gmra.mxu0 %v7862
    %v8043 = vpop.f32.mrf.mxu0
    %v8044 = vadd.f32 0.0, %v8043
    %v8045 = vpop.f32.mrf.mxu0
    %v8046 = vadd.f32 0.0, %v8045
    %8047 = vdwg.mxu0
    %8048 = vmatpush.bf16.msra.mxu0 %v4213
    %8049 = vmatpush.bf16.msra.mxu0 %v4197
    %8050 = vmatpush.bf16.msra.mxu0 %v4181
    %8051 = vmatpush.bf16.msra.mxu0 %v4165
    %8052 = vmatpush.bf16.msra.mxu0 %v4149
    %8053 = vmatpush.bf16.msra.mxu0 %v4133
    %8054 = vmatpush.bf16.msra.mxu0 %v4117
    %8055 = vmatpush.bf16.msra.mxu0 %v4101
    %8056 = vmatmul.bf16.gmra.mxu0 %v7863
    %v8057 = vpop.f32.mrf.mxu0
    %v8058 = vadd.f32 %v8044, %v8057
    %v8059 = vpop.f32.mrf.mxu0
    %v8060 = vadd.f32 %v8046, %v8059
    %8061 = vdwg.mxu0
    %8062 = vmatpush.bf16.msra.mxu0 %v4341
    %8063 = vmatpush.bf16.msra.mxu0 %v4325
    %8064 = vmatpush.bf16.msra.mxu0 %v4309
    %8065 = vmatpush.bf16.msra.mxu0 %v4293
    %8066 = vmatpush.bf16.msra.mxu0 %v4277
    %8067 = vmatpush.bf16.msra.mxu0 %v4261
    %8068 = vmatpush.bf16.msra.mxu0 %v4245
    %8069 = vmatpush.bf16.msra.mxu0 %v4229
    %8070 = vmatmul.bf16.gmra.mxu0 %v7864
    %v8071 = vpop.f32.mrf.mxu0
    %v8072 = vadd.f32 %v8058, %v8071
    %v8073 = vpop.f32.mrf.mxu0
    %v8074 = vadd.f32 %v8060, %v8073
    %8075 = vdwg.mxu0
    %8076 = vmatpush.bf16.msra.mxu0 %v4469
    %8077 = vmatpush.bf16.msra.mxu0 %v4453
    %8078 = vmatpush.bf16.msra.mxu0 %v4437
    %8079 = vmatpush.bf16.msra.mxu0 %v4421
    %8080 = vmatpush.bf16.msra.mxu0 %v4405
    %8081 = vmatpush.bf16.msra.mxu0 %v4389
    %8082 = vmatpush.bf16.msra.mxu0 %v4373
    %8083 = vmatpush.bf16.msra.mxu0 %v4357
    %8084 = vmatmul.bf16.gmra.mxu0 %v7865
    %v8085 = vpop.f32.mrf.mxu0
    %v8086 = vadd.f32 %v8072, %v8085
    %v8087 = vpop.f32.mrf.mxu0
    %v8088 = vadd.f32 %v8074, %v8087
    %8089 = vdwg.mxu0
    %8090 = vmatpush.bf16.msra.mxu0 %v4086
    %8091 = vmatpush.bf16.msra.mxu0 %v4070
    %8092 = vmatpush.bf16.msra.mxu0 %v4054
    %8093 = vmatpush.bf16.msra.mxu0 %v4038
    %8094 = vmatpush.bf16.msra.mxu0 %v4022
    %8095 = vmatpush.bf16.msra.mxu0 %v4006
    %8096 = vmatpush.bf16.msra.mxu0 %v3990
    %8097 = vmatpush.bf16.msra.mxu0 %v3974
    %8098 = vmatmul.bf16.gmra.mxu0 %v7862
    %v8099 = vpop.f32.mrf.mxu0
    %v8100 = vadd.f32 0.0, %v8099
    %v8101 = vpop.f32.mrf.mxu0
    %v8102 = vadd.f32 0.0, %v8101
    %8103 = vdwg.mxu0
    %8104 = vmatpush.bf16.msra.mxu0 %v4214
    %8105 = vmatpush.bf16.msra.mxu0 %v4198
    %8106 = vmatpush.bf16.msra.mxu0 %v4182
    %8107 = vmatpush.bf16.msra.mxu0 %v4166
    %8108 = vmatpush.bf16.msra.mxu0 %v4150
    %8109 = vmatpush.bf16.msra.mxu0 %v4134
    %8110 = vmatpush.bf16.msra.mxu0 %v4118
    %8111 = vmatpush.bf16.msra.mxu0 %v4102
    %8112 = vmatmul.bf16.gmra.mxu0 %v7863
    %v8113 = vpop.f32.mrf.mxu0
    %v8114 = vadd.f32 %v8100, %v8113
    %v8115 = vpop.f32.mrf.mxu0
    %v8116 = vadd.f32 %v8102, %v8115
    %8117 = vdwg.mxu0
    %8118 = vmatpush.bf16.msra.mxu0 %v4342
    %8119 = vmatpush.bf16.msra.mxu0 %v4326
    %8120 = vmatpush.bf16.msra.mxu0 %v4310
    %8121 = vmatpush.bf16.msra.mxu0 %v4294
    %8122 = vmatpush.bf16.msra.mxu0 %v4278
    %8123 = vmatpush.bf16.msra.mxu0 %v4262
    %8124 = vmatpush.bf16.msra.mxu0 %v4246
    %8125 = vmatpush.bf16.msra.mxu0 %v4230
    %8126 = vmatmul.bf16.gmra.mxu0 %v7864
    %v8127 = vpop.f32.mrf.mxu0
    %v8128 = vadd.f32 %v8114, %v8127
    %v8129 = vpop.f32.mrf.mxu0
    %v8130 = vadd.f32 %v8116, %v8129
    %8131 = vdwg.mxu0
    %8132 = vmatpush.bf16.msra.mxu0 %v4470
    %8133 = vmatpush.bf16.msra.mxu0 %v4454
    %8134 = vmatpush.bf16.msra.mxu0 %v4438
    %8135 = vmatpush.bf16.msra.mxu0 %v4422
    %8136 = vmatpush.bf16.msra.mxu0 %v4406
    %8137 = vmatpush.bf16.msra.mxu0 %v4390
    %8138 = vmatpush.bf16.msra.mxu0 %v4374
    %8139 = vmatpush.bf16.msra.mxu0 %v4358
    %8140 = vmatmul.bf16.gmra.mxu0 %v7865
    %v8141 = vpop.f32.mrf.mxu0
    %v8142 = vadd.f32 %v8128, %v8141
    %v8143 = vpop.f32.mrf.mxu0
    %v8144 = vadd.f32 %v8130, %v8143
    %8145 = vdwg.mxu0
    %8146 = vmatpush.bf16.msra.mxu0 %v4087
    %8147 = vmatpush.bf16.msra.mxu0 %v4071
    %8148 = vmatpush.bf16.msra.mxu0 %v4055
    %8149 = vmatpush.bf16.msra.mxu0 %v4039
    %8150 = vmatpush.bf16.msra.mxu0 %v4023
    %8151 = vmatpush.bf16.msra.mxu0 %v4007
    %8152 = vmatpush.bf16.msra.mxu0 %v3991
    %8153 = vmatpush.bf16.msra.mxu0 %v3975
    %8154 = vmatmul.bf16.gmra.mxu0 %v7862
    %v8155 = vpop.f32.mrf.mxu0
    %v8156 = vadd.f32 0.0, %v8155
    %v8157 = vpop.f32.mrf.mxu0
    %v8158 = vadd.f32 0.0, %v8157
    %8159 = vdwg.mxu0
    %8160 = vmatpush.bf16.msra.mxu0 %v4215
    %8161 = vmatpush.bf16.msra.mxu0 %v4199
    %8162 = vmatpush.bf16.msra.mxu0 %v4183
    %8163 = vmatpush.bf16.msra.mxu0 %v4167
    %8164 = vmatpush.bf16.msra.mxu0 %v4151
    %8165 = vmatpush.bf16.msra.mxu0 %v4135
    %8166 = vmatpush.bf16.msra.mxu0 %v4119
    %8167 = vmatpush.bf16.msra.mxu0 %v4103
    %8168 = vmatmul.bf16.gmra.mxu0 %v7863
    %v8169 = vpop.f32.mrf.mxu0
    %v8170 = vadd.f32 %v8156, %v8169
    %v8171 = vpop.f32.mrf.mxu0
    %v8172 = vadd.f32 %v8158, %v8171
    %8173 = vdwg.mxu0
    %8174 = vmatpush.bf16.msra.mxu0 %v4343
    %8175 = vmatpush.bf16.msra.mxu0 %v4327
    %8176 = vmatpush.bf16.msra.mxu0 %v4311
    %8177 = vmatpush.bf16.msra.mxu0 %v4295
    %8178 = vmatpush.bf16.msra.mxu0 %v4279
    %8179 = vmatpush.bf16.msra.mxu0 %v4263
    %8180 = vmatpush.bf16.msra.mxu0 %v4247
    %8181 = vmatpush.bf16.msra.mxu0 %v4231
    %8182 = vmatmul.bf16.gmra.mxu0 %v7864
    %v8183 = vpop.f32.mrf.mxu0
    %v8184 = vadd.f32 %v8170, %v8183
    %v8185 = vpop.f32.mrf.mxu0
    %v8186 = vadd.f32 %v8172, %v8185
    %8187 = vdwg.mxu0
    %8188 = vmatpush.bf16.msra.mxu0 %v4471
    %8189 = vmatpush.bf16.msra.mxu0 %v4455
    %8190 = vmatpush.bf16.msra.mxu0 %v4439
    %8191 = vmatpush.bf16.msra.mxu0 %v4423
    %8192 = vmatpush.bf16.msra.mxu0 %v4407
    %8193 = vmatpush.bf16.msra.mxu0 %v4391
    %8194 = vmatpush.bf16.msra.mxu0 %v4375
    %8195 = vmatpush.bf16.msra.mxu0 %v4359
    %8196 = vmatmul.bf16.gmra.mxu0 %v7865
    %v8197 = vpop.f32.mrf.mxu0
    %v8198 = vadd.f32 %v8184, %v8197
    %v8199 = vpop.f32.mrf.mxu0
    %v8200 = vadd.f32 %v8186, %v8199
    %8201 = vdwg.mxu0
    %8202 = vmatpush.bf16.msra.mxu0 %v4088
    %8203 = vmatpush.bf16.msra.mxu0 %v4072
    %8204 = vmatpush.bf16.msra.mxu0 %v4056
    %8205 = vmatpush.bf16.msra.mxu0 %v4040
    %8206 = vmatpush.bf16.msra.mxu0 %v4024
    %8207 = vmatpush.bf16.msra.mxu0 %v4008
    %8208 = vmatpush.bf16.msra.mxu0 %v3992
    %8209 = vmatpush.bf16.msra.mxu0 %v3976
    %8210 = vmatmul.bf16.gmra.mxu0 %v7862
    %v8211 = vpop.f32.mrf.mxu0
    %v8212 = vadd.f32 0.0, %v8211
    %v8213 = vpop.f32.mrf.mxu0
    %v8214 = vadd.f32 0.0, %v8213
    %8215 = vdwg.mxu0
    %8216 = vmatpush.bf16.msra.mxu0 %v4216
    %8217 = vmatpush.bf16.msra.mxu0 %v4200
    %8218 = vmatpush.bf16.msra.mxu0 %v4184
    %8219 = vmatpush.bf16.msra.mxu0 %v4168
    %8220 = vmatpush.bf16.msra.mxu0 %v4152
    %8221 = vmatpush.bf16.msra.mxu0 %v4136
    %8222 = vmatpush.bf16.msra.mxu0 %v4120
    %8223 = vmatpush.bf16.msra.mxu0 %v4104
    %8224 = vmatmul.bf16.gmra.mxu0 %v7863
    %v8225 = vpop.f32.mrf.mxu0
    %v8226 = vadd.f32 %v8212, %v8225
    %v8227 = vpop.f32.mrf.mxu0
    %v8228 = vadd.f32 %v8214, %v8227
    %8229 = vdwg.mxu0
    %8230 = vmatpush.bf16.msra.mxu0 %v4344
    %8231 = vmatpush.bf16.msra.mxu0 %v4328
    %8232 = vmatpush.bf16.msra.mxu0 %v4312
    %8233 = vmatpush.bf16.msra.mxu0 %v4296
    %8234 = vmatpush.bf16.msra.mxu0 %v4280
    %8235 = vmatpush.bf16.msra.mxu0 %v4264
    %8236 = vmatpush.bf16.msra.mxu0 %v4248
    %8237 = vmatpush.bf16.msra.mxu0 %v4232
    %8238 = vmatmul.bf16.gmra.mxu0 %v7864
    %v8239 = vpop.f32.mrf.mxu0
    %v8240 = vadd.f32 %v8226, %v8239
    %v8241 = vpop.f32.mrf.mxu0
    %v8242 = vadd.f32 %v8228, %v8241
    %8243 = vdwg.mxu0
    %8244 = vmatpush.bf16.msra.mxu0 %v4472
    %8245 = vmatpush.bf16.msra.mxu0 %v4456
    %8246 = vmatpush.bf16.msra.mxu0 %v4440
    %8247 = vmatpush.bf16.msra.mxu0 %v4424
    %8248 = vmatpush.bf16.msra.mxu0 %v4408
    %8249 = vmatpush.bf16.msra.mxu0 %v4392
    %8250 = vmatpush.bf16.msra.mxu0 %v4376
    %8251 = vmatpush.bf16.msra.mxu0 %v4360
    %8252 = vmatmul.bf16.gmra.mxu0 %v7865
    %v8253 = vpop.f32.mrf.mxu0
    %v8254 = vadd.f32 %v8240, %v8253
    %v8255 = vpop.f32.mrf.mxu0
    %v8256 = vadd.f32 %v8242, %v8255
    %8257 = vdwg.mxu0
    %8258 = vmatpush.bf16.msra.mxu0 %v4089
    %8259 = vmatpush.bf16.msra.mxu0 %v4073
    %8260 = vmatpush.bf16.msra.mxu0 %v4057
    %8261 = vmatpush.bf16.msra.mxu0 %v4041
    %8262 = vmatpush.bf16.msra.mxu0 %v4025
    %8263 = vmatpush.bf16.msra.mxu0 %v4009
    %8264 = vmatpush.bf16.msra.mxu0 %v3993
    %8265 = vmatpush.bf16.msra.mxu0 %v3977
    %8266 = vmatmul.bf16.gmra.mxu0 %v7862
    %v8267 = vpop.f32.mrf.mxu0
    %v8268 = vadd.f32 0.0, %v8267
    %v8269 = vpop.f32.mrf.mxu0
    %v8270 = vadd.f32 0.0, %v8269
    %8271 = vdwg.mxu0
    %8272 = vmatpush.bf16.msra.mxu0 %v4217
    %8273 = vmatpush.bf16.msra.mxu0 %v4201
    %8274 = vmatpush.bf16.msra.mxu0 %v4185
    %8275 = vmatpush.bf16.msra.mxu0 %v4169
    %8276 = vmatpush.bf16.msra.mxu0 %v4153
    %8277 = vmatpush.bf16.msra.mxu0 %v4137
    %8278 = vmatpush.bf16.msra.mxu0 %v4121
    %8279 = vmatpush.bf16.msra.mxu0 %v4105
    %8280 = vmatmul.bf16.gmra.mxu0 %v7863
    %v8281 = vpop.f32.mrf.mxu0
    %v8282 = vadd.f32 %v8268, %v8281
    %v8283 = vpop.f32.mrf.mxu0
    %v8284 = vadd.f32 %v8270, %v8283
    %8285 = vdwg.mxu0
    %8286 = vmatpush.bf16.msra.mxu0 %v4345
    %8287 = vmatpush.bf16.msra.mxu0 %v4329
    %8288 = vmatpush.bf16.msra.mxu0 %v4313
    %8289 = vmatpush.bf16.msra.mxu0 %v4297
    %8290 = vmatpush.bf16.msra.mxu0 %v4281
    %8291 = vmatpush.bf16.msra.mxu0 %v4265
    %8292 = vmatpush.bf16.msra.mxu0 %v4249
    %8293 = vmatpush.bf16.msra.mxu0 %v4233
    %8294 = vmatmul.bf16.gmra.mxu0 %v7864
    %v8295 = vpop.f32.mrf.mxu0
    %v8296 = vadd.f32 %v8282, %v8295
    %v8297 = vpop.f32.mrf.mxu0
    %v8298 = vadd.f32 %v8284, %v8297
    %8299 = vdwg.mxu0
    %8300 = vmatpush.bf16.msra.mxu0 %v4473
    %8301 = vmatpush.bf16.msra.mxu0 %v4457
    %8302 = vmatpush.bf16.msra.mxu0 %v4441
    %8303 = vmatpush.bf16.msra.mxu0 %v4425
    %8304 = vmatpush.bf16.msra.mxu0 %v4409
    %8305 = vmatpush.bf16.msra.mxu0 %v4393
    %8306 = vmatpush.bf16.msra.mxu0 %v4377
    %8307 = vmatpush.bf16.msra.mxu0 %v4361
    %8308 = vmatmul.bf16.gmra.mxu0 %v7865
    %v8309 = vpop.f32.mrf.mxu0
    %v8310 = vadd.f32 %v8296, %v8309
    %v8311 = vpop.f32.mrf.mxu0
    %v8312 = vadd.f32 %v8298, %v8311
    %8313 = vdwg.mxu0
    %8314 = vmatpush.bf16.msra.mxu0 %v4090
    %8315 = vmatpush.bf16.msra.mxu0 %v4074
    %8316 = vmatpush.bf16.msra.mxu0 %v4058
    %8317 = vmatpush.bf16.msra.mxu0 %v4042
    %8318 = vmatpush.bf16.msra.mxu0 %v4026
    %8319 = vmatpush.bf16.msra.mxu0 %v4010
    %8320 = vmatpush.bf16.msra.mxu0 %v3994
    %8321 = vmatpush.bf16.msra.mxu0 %v3978
    %8322 = vmatmul.bf16.gmra.mxu0 %v7862
    %v8323 = vpop.f32.mrf.mxu0
    %v8324 = vadd.f32 0.0, %v8323
    %v8325 = vpop.f32.mrf.mxu0
    %v8326 = vadd.f32 0.0, %v8325
    %8327 = vdwg.mxu0
    %8328 = vmatpush.bf16.msra.mxu0 %v4218
    %8329 = vmatpush.bf16.msra.mxu0 %v4202
    %8330 = vmatpush.bf16.msra.mxu0 %v4186
    %8331 = vmatpush.bf16.msra.mxu0 %v4170
    %8332 = vmatpush.bf16.msra.mxu0 %v4154
    %8333 = vmatpush.bf16.msra.mxu0 %v4138
    %8334 = vmatpush.bf16.msra.mxu0 %v4122
    %8335 = vmatpush.bf16.msra.mxu0 %v4106
    %8336 = vmatmul.bf16.gmra.mxu0 %v7863
    %v8337 = vpop.f32.mrf.mxu0
    %v8338 = vadd.f32 %v8324, %v8337
    %v8339 = vpop.f32.mrf.mxu0
    %v8340 = vadd.f32 %v8326, %v8339
    %8341 = vdwg.mxu0
    %8342 = vmatpush.bf16.msra.mxu0 %v4346
    %8343 = vmatpush.bf16.msra.mxu0 %v4330
    %8344 = vmatpush.bf16.msra.mxu0 %v4314
    %8345 = vmatpush.bf16.msra.mxu0 %v4298
    %8346 = vmatpush.bf16.msra.mxu0 %v4282
    %8347 = vmatpush.bf16.msra.mxu0 %v4266
    %8348 = vmatpush.bf16.msra.mxu0 %v4250
    %8349 = vmatpush.bf16.msra.mxu0 %v4234
    %8350 = vmatmul.bf16.gmra.mxu0 %v7864
    %v8351 = vpop.f32.mrf.mxu0
    %v8352 = vadd.f32 %v8338, %v8351
    %v8353 = vpop.f32.mrf.mxu0
    %v8354 = vadd.f32 %v8340, %v8353
    %8355 = vdwg.mxu0
    %8356 = vmatpush.bf16.msra.mxu0 %v4474
    %8357 = vmatpush.bf16.msra.mxu0 %v4458
    %8358 = vmatpush.bf16.msra.mxu0 %v4442
    %8359 = vmatpush.bf16.msra.mxu0 %v4426
    %8360 = vmatpush.bf16.msra.mxu0 %v4410
    %8361 = vmatpush.bf16.msra.mxu0 %v4394
    %8362 = vmatpush.bf16.msra.mxu0 %v4378
    %8363 = vmatpush.bf16.msra.mxu0 %v4362
    %8364 = vmatmul.bf16.gmra.mxu0 %v7865
    %v8365 = vpop.f32.mrf.mxu0
    %v8366 = vadd.f32 %v8352, %v8365
    %v8367 = vpop.f32.mrf.mxu0
    %v8368 = vadd.f32 %v8354, %v8367
    %8369 = vdwg.mxu0
    %8370 = vmatpush.bf16.msra.mxu0 %v4091
    %8371 = vmatpush.bf16.msra.mxu0 %v4075
    %8372 = vmatpush.bf16.msra.mxu0 %v4059
    %8373 = vmatpush.bf16.msra.mxu0 %v4043
    %8374 = vmatpush.bf16.msra.mxu0 %v4027
    %8375 = vmatpush.bf16.msra.mxu0 %v4011
    %8376 = vmatpush.bf16.msra.mxu0 %v3995
    %8377 = vmatpush.bf16.msra.mxu0 %v3979
    %8378 = vmatmul.bf16.gmra.mxu0 %v7862
    %v8379 = vpop.f32.mrf.mxu0
    %v8380 = vadd.f32 0.0, %v8379
    %v8381 = vpop.f32.mrf.mxu0
    %v8382 = vadd.f32 0.0, %v8381
    %8383 = vdwg.mxu0
    %8384 = vmatpush.bf16.msra.mxu0 %v4219
    %8385 = vmatpush.bf16.msra.mxu0 %v4203
    %8386 = vmatpush.bf16.msra.mxu0 %v4187
    %8387 = vmatpush.bf16.msra.mxu0 %v4171
    %8388 = vmatpush.bf16.msra.mxu0 %v4155
    %8389 = vmatpush.bf16.msra.mxu0 %v4139
    %8390 = vmatpush.bf16.msra.mxu0 %v4123
    %8391 = vmatpush.bf16.msra.mxu0 %v4107
    %8392 = vmatmul.bf16.gmra.mxu0 %v7863
    %v8393 = vpop.f32.mrf.mxu0
    %v8394 = vadd.f32 %v8380, %v8393
    %v8395 = vpop.f32.mrf.mxu0
    %v8396 = vadd.f32 %v8382, %v8395
    %8397 = vdwg.mxu0
    %8398 = vmatpush.bf16.msra.mxu0 %v4347
    %8399 = vmatpush.bf16.msra.mxu0 %v4331
    %8400 = vmatpush.bf16.msra.mxu0 %v4315
    %8401 = vmatpush.bf16.msra.mxu0 %v4299
    %8402 = vmatpush.bf16.msra.mxu0 %v4283
    %8403 = vmatpush.bf16.msra.mxu0 %v4267
    %8404 = vmatpush.bf16.msra.mxu0 %v4251
    %8405 = vmatpush.bf16.msra.mxu0 %v4235
    %8406 = vmatmul.bf16.gmra.mxu0 %v7864
    %v8407 = vpop.f32.mrf.mxu0
    %v8408 = vadd.f32 %v8394, %v8407
    %v8409 = vpop.f32.mrf.mxu0
    %v8410 = vadd.f32 %v8396, %v8409
    %8411 = vdwg.mxu0
    %8412 = vmatpush.bf16.msra.mxu0 %v4475
    %8413 = vmatpush.bf16.msra.mxu0 %v4459
    %8414 = vmatpush.bf16.msra.mxu0 %v4443
    %8415 = vmatpush.bf16.msra.mxu0 %v4427
    %8416 = vmatpush.bf16.msra.mxu0 %v4411
    %8417 = vmatpush.bf16.msra.mxu0 %v4395
    %8418 = vmatpush.bf16.msra.mxu0 %v4379
    %8419 = vmatpush.bf16.msra.mxu0 %v4363
    %8420 = vmatmul.bf16.gmra.mxu0 %v7865
    %v8421 = vpop.f32.mrf.mxu0
    %v8422 = vadd.f32 %v8408, %v8421
    %v8423 = vpop.f32.mrf.mxu0
    %v8424 = vadd.f32 %v8410, %v8423
    %8425 = vdwg.mxu0
    %8426 = vmatpush.bf16.msra.mxu0 %v4092
    %8427 = vmatpush.bf16.msra.mxu0 %v4076
    %8428 = vmatpush.bf16.msra.mxu0 %v4060
    %8429 = vmatpush.bf16.msra.mxu0 %v4044
    %8430 = vmatpush.bf16.msra.mxu0 %v4028
    %8431 = vmatpush.bf16.msra.mxu0 %v4012
    %8432 = vmatpush.bf16.msra.mxu0 %v3996
    %8433 = vmatpush.bf16.msra.mxu0 %v3980
    %8434 = vmatmul.bf16.gmra.mxu0 %v7862
    %v8435 = vpop.f32.mrf.mxu0
    %v8436 = vadd.f32 0.0, %v8435
    %v8437 = vpop.f32.mrf.mxu0
    %v8438 = vadd.f32 0.0, %v8437
    %8439 = vdwg.mxu0
    %8440 = vmatpush.bf16.msra.mxu0 %v4220
    %8441 = vmatpush.bf16.msra.mxu0 %v4204
    %8442 = vmatpush.bf16.msra.mxu0 %v4188
    %8443 = vmatpush.bf16.msra.mxu0 %v4172
    %8444 = vmatpush.bf16.msra.mxu0 %v4156
    %8445 = vmatpush.bf16.msra.mxu0 %v4140
    %8446 = vmatpush.bf16.msra.mxu0 %v4124
    %8447 = vmatpush.bf16.msra.mxu0 %v4108
    %8448 = vmatmul.bf16.gmra.mxu0 %v7863
    %v8449 = vpop.f32.mrf.mxu0
    %v8450 = vadd.f32 %v8436, %v8449
    %v8451 = vpop.f32.mrf.mxu0
    %v8452 = vadd.f32 %v8438, %v8451
    %8453 = vdwg.mxu0
    %8454 = vmatpush.bf16.msra.mxu0 %v4348
    %8455 = vmatpush.bf16.msra.mxu0 %v4332
    %8456 = vmatpush.bf16.msra.mxu0 %v4316
    %8457 = vmatpush.bf16.msra.mxu0 %v4300
    %8458 = vmatpush.bf16.msra.mxu0 %v4284
    %8459 = vmatpush.bf16.msra.mxu0 %v4268
    %8460 = vmatpush.bf16.msra.mxu0 %v4252
    %8461 = vmatpush.bf16.msra.mxu0 %v4236
    %8462 = vmatmul.bf16.gmra.mxu0 %v7864
    %v8463 = vpop.f32.mrf.mxu0
    %v8464 = vadd.f32 %v8450, %v8463
    %v8465 = vpop.f32.mrf.mxu0
    %v8466 = vadd.f32 %v8452, %v8465
    %8467 = vdwg.mxu0
    %8468 = vmatpush.bf16.msra.mxu0 %v4476
    %8469 = vmatpush.bf16.msra.mxu0 %v4460
    %8470 = vmatpush.bf16.msra.mxu0 %v4444
    %8471 = vmatpush.bf16.msra.mxu0 %v4428
    %8472 = vmatpush.bf16.msra.mxu0 %v4412
    %8473 = vmatpush.bf16.msra.mxu0 %v4396
    %8474 = vmatpush.bf16.msra.mxu0 %v4380
    %8475 = vmatpush.bf16.msra.mxu0 %v4364
    %8476 = vmatmul.bf16.gmra.mxu0 %v7865
    %v8477 = vpop.f32.mrf.mxu0
    %v8478 = vadd.f32 %v8464, %v8477
    %v8479 = vpop.f32.mrf.mxu0
    %v8480 = vadd.f32 %v8466, %v8479
    %8481 = vdwg.mxu0
    %8482 = vmatpush.bf16.msra.mxu0 %v4093
    %8483 = vmatpush.bf16.msra.mxu0 %v4077
    %8484 = vmatpush.bf16.msra.mxu0 %v4061
    %8485 = vmatpush.bf16.msra.mxu0 %v4045
    %8486 = vmatpush.bf16.msra.mxu0 %v4029
    %8487 = vmatpush.bf16.msra.mxu0 %v4013
    %8488 = vmatpush.bf16.msra.mxu0 %v3997
    %8489 = vmatpush.bf16.msra.mxu0 %v3981
    %8490 = vmatmul.bf16.gmra.mxu0 %v7862
    %v8491 = vpop.f32.mrf.mxu0
    %v8492 = vadd.f32 0.0, %v8491
    %v8493 = vpop.f32.mrf.mxu0
    %v8494 = vadd.f32 0.0, %v8493
    %8495 = vdwg.mxu0
    %8496 = vmatpush.bf16.msra.mxu0 %v4221
    %8497 = vmatpush.bf16.msra.mxu0 %v4205
    %8498 = vmatpush.bf16.msra.mxu0 %v4189
    %8499 = vmatpush.bf16.msra.mxu0 %v4173
    %8500 = vmatpush.bf16.msra.mxu0 %v4157
    %8501 = vmatpush.bf16.msra.mxu0 %v4141
    %8502 = vmatpush.bf16.msra.mxu0 %v4125
    %8503 = vmatpush.bf16.msra.mxu0 %v4109
    %8504 = vmatmul.bf16.gmra.mxu0 %v7863
    %v8505 = vpop.f32.mrf.mxu0
    %v8506 = vadd.f32 %v8492, %v8505
    %v8507 = vpop.f32.mrf.mxu0
    %v8508 = vadd.f32 %v8494, %v8507
    %8509 = vdwg.mxu0
    %8510 = vmatpush.bf16.msra.mxu0 %v4349
    %8511 = vmatpush.bf16.msra.mxu0 %v4333
    %8512 = vmatpush.bf16.msra.mxu0 %v4317
    %8513 = vmatpush.bf16.msra.mxu0 %v4301
    %8514 = vmatpush.bf16.msra.mxu0 %v4285
    %8515 = vmatpush.bf16.msra.mxu0 %v4269
    %8516 = vmatpush.bf16.msra.mxu0 %v4253
    %8517 = vmatpush.bf16.msra.mxu0 %v4237
    %8518 = vmatmul.bf16.gmra.mxu0 %v7864
    %v8519 = vpop.f32.mrf.mxu0
    %v8520 = vadd.f32 %v8506, %v8519
    %v8521 = vpop.f32.mrf.mxu0
    %v8522 = vadd.f32 %v8508, %v8521
    %8523 = vdwg.mxu0
    %8524 = vmatpush.bf16.msra.mxu0 %v4477
    %8525 = vmatpush.bf16.msra.mxu0 %v4461
    %8526 = vmatpush.bf16.msra.mxu0 %v4445
    %8527 = vmatpush.bf16.msra.mxu0 %v4429
    %8528 = vmatpush.bf16.msra.mxu0 %v4413
    %8529 = vmatpush.bf16.msra.mxu0 %v4397
    %8530 = vmatpush.bf16.msra.mxu0 %v4381
    %8531 = vmatpush.bf16.msra.mxu0 %v4365
    %8532 = vmatmul.bf16.gmra.mxu0 %v7865
    %v8533 = vpop.f32.mrf.mxu0
    %v8534 = vadd.f32 %v8520, %v8533
    %v8535 = vpop.f32.mrf.mxu0
    %v8536 = vadd.f32 %v8522, %v8535
    %8537 = vdwg.mxu0
    %8538 = vmatpush.bf16.msra.mxu0 %v4094
    %8539 = vmatpush.bf16.msra.mxu0 %v4078
    %8540 = vmatpush.bf16.msra.mxu0 %v4062
    %8541 = vmatpush.bf16.msra.mxu0 %v4046
    %8542 = vmatpush.bf16.msra.mxu0 %v4030
    %8543 = vmatpush.bf16.msra.mxu0 %v4014
    %8544 = vmatpush.bf16.msra.mxu0 %v3998
    %8545 = vmatpush.bf16.msra.mxu0 %v3982
    %8546 = vmatmul.bf16.gmra.mxu0 %v7862
    %v8547 = vpop.f32.mrf.mxu0
    %v8548 = vadd.f32 0.0, %v8547
    %v8549 = vpop.f32.mrf.mxu0
    %v8550 = vadd.f32 0.0, %v8549
    %8551 = vdwg.mxu0
    %8552 = vmatpush.bf16.msra.mxu0 %v4222
    %8553 = vmatpush.bf16.msra.mxu0 %v4206
    %8554 = vmatpush.bf16.msra.mxu0 %v4190
    %8555 = vmatpush.bf16.msra.mxu0 %v4174
    %8556 = vmatpush.bf16.msra.mxu0 %v4158
    %8557 = vmatpush.bf16.msra.mxu0 %v4142
    %8558 = vmatpush.bf16.msra.mxu0 %v4126
    %8559 = vmatpush.bf16.msra.mxu0 %v4110
    %8560 = vmatmul.bf16.gmra.mxu0 %v7863
    %v8561 = vpop.f32.mrf.mxu0
    %v8562 = vadd.f32 %v8548, %v8561
    %v8563 = vpop.f32.mrf.mxu0
    %v8564 = vadd.f32 %v8550, %v8563
    %8565 = vdwg.mxu0
    %8566 = vmatpush.bf16.msra.mxu0 %v4350
    %8567 = vmatpush.bf16.msra.mxu0 %v4334
    %8568 = vmatpush.bf16.msra.mxu0 %v4318
    %8569 = vmatpush.bf16.msra.mxu0 %v4302
    %8570 = vmatpush.bf16.msra.mxu0 %v4286
    %8571 = vmatpush.bf16.msra.mxu0 %v4270
    %8572 = vmatpush.bf16.msra.mxu0 %v4254
    %8573 = vmatpush.bf16.msra.mxu0 %v4238
    %8574 = vmatmul.bf16.gmra.mxu0 %v7864
    %v8575 = vpop.f32.mrf.mxu0
    %v8576 = vadd.f32 %v8562, %v8575
    %v8577 = vpop.f32.mrf.mxu0
    %v8578 = vadd.f32 %v8564, %v8577
    %8579 = vdwg.mxu0
    %8580 = vmatpush.bf16.msra.mxu0 %v4478
    %8581 = vmatpush.bf16.msra.mxu0 %v4462
    %8582 = vmatpush.bf16.msra.mxu0 %v4446
    %8583 = vmatpush.bf16.msra.mxu0 %v4430
    %8584 = vmatpush.bf16.msra.mxu0 %v4414
    %8585 = vmatpush.bf16.msra.mxu0 %v4398
    %8586 = vmatpush.bf16.msra.mxu0 %v4382
    %8587 = vmatpush.bf16.msra.mxu0 %v4366
    %8588 = vmatmul.bf16.gmra.mxu0 %v7865
    %v8589 = vpop.f32.mrf.mxu0
    %v8590 = vadd.f32 %v8576, %v8589
    %v8591 = vpop.f32.mrf.mxu0
    %v8592 = vadd.f32 %v8578, %v8591
    %8593 = vdwg.mxu0
    %8594 = vmatpush.bf16.msra.mxu0 %v4095
    %8595 = vmatpush.bf16.msra.mxu0 %v4079
    %8596 = vmatpush.bf16.msra.mxu0 %v4063
    %8597 = vmatpush.bf16.msra.mxu0 %v4047
    %8598 = vmatpush.bf16.msra.mxu0 %v4031
    %8599 = vmatpush.bf16.msra.mxu0 %v4015
    %8600 = vmatpush.bf16.msra.mxu0 %v3999
    %8601 = vmatpush.bf16.msra.mxu0 %v3983
    %8602 = vmatmul.bf16.gmra.mxu0 %v7862
    %v8603 = vpop.f32.mrf.mxu0
    %v8604 = vadd.f32 0.0, %v8603
    %v8605 = vpop.f32.mrf.mxu0
    %v8606 = vadd.f32 0.0, %v8605
    %8607 = vdwg.mxu0
    %8608 = vmatpush.bf16.msra.mxu0 %v4223
    %8609 = vmatpush.bf16.msra.mxu0 %v4207
    %8610 = vmatpush.bf16.msra.mxu0 %v4191
    %8611 = vmatpush.bf16.msra.mxu0 %v4175
    %8612 = vmatpush.bf16.msra.mxu0 %v4159
    %8613 = vmatpush.bf16.msra.mxu0 %v4143
    %8614 = vmatpush.bf16.msra.mxu0 %v4127
    %8615 = vmatpush.bf16.msra.mxu0 %v4111
    %8616 = vmatmul.bf16.gmra.mxu0 %v7863
    %v8617 = vpop.f32.mrf.mxu0
    %v8618 = vadd.f32 %v8604, %v8617
    %v8619 = vpop.f32.mrf.mxu0
    %v8620 = vadd.f32 %v8606, %v8619
    %8621 = vdwg.mxu0
    %8622 = vmatpush.bf16.msra.mxu0 %v4351
    %8623 = vmatpush.bf16.msra.mxu0 %v4335
    %8624 = vmatpush.bf16.msra.mxu0 %v4319
    %8625 = vmatpush.bf16.msra.mxu0 %v4303
    %8626 = vmatpush.bf16.msra.mxu0 %v4287
    %8627 = vmatpush.bf16.msra.mxu0 %v4271
    %8628 = vmatpush.bf16.msra.mxu0 %v4255
    %8629 = vmatpush.bf16.msra.mxu0 %v4239
    %8630 = vmatmul.bf16.gmra.mxu0 %v7864
    %v8631 = vpop.f32.mrf.mxu0
    %v8632 = vadd.f32 %v8618, %v8631
    %v8633 = vpop.f32.mrf.mxu0
    %v8634 = vadd.f32 %v8620, %v8633
    %8635 = vdwg.mxu0
    %8636 = vmatpush.bf16.msra.mxu0 %v4479
    %8637 = vmatpush.bf16.msra.mxu0 %v4463
    %8638 = vmatpush.bf16.msra.mxu0 %v4447
    %8639 = vmatpush.bf16.msra.mxu0 %v4431
    %8640 = vmatpush.bf16.msra.mxu0 %v4415
    %8641 = vmatpush.bf16.msra.mxu0 %v4399
    %8642 = vmatpush.bf16.msra.mxu0 %v4383
    %8643 = vmatpush.bf16.msra.mxu0 %v4367
    %8644 = vmatmul.bf16.gmra.mxu0 %v7865
    %v8645 = vpop.f32.mrf.mxu0
    %v8646 = vadd.f32 %v8632, %v8645
    %v8647 = vpop.f32.mrf.mxu0
    %v8648 = vadd.f32 %v8634, %v8647
    %8649 = vdwg.mxu0
    %8650 = vmatpush.bf16.msra.mxu0 %v4096
    %8651 = vmatpush.bf16.msra.mxu0 %v4080
    %8652 = vmatpush.bf16.msra.mxu0 %v4064
    %8653 = vmatpush.bf16.msra.mxu0 %v4048
    %8654 = vmatpush.bf16.msra.mxu0 %v4032
    %8655 = vmatpush.bf16.msra.mxu0 %v4016
    %8656 = vmatpush.bf16.msra.mxu0 %v4000
    %8657 = vmatpush.bf16.msra.mxu0 %v3984
    %8658 = vmatmul.bf16.gmra.mxu0 %v7862
    %v8659 = vpop.f32.mrf.mxu0
    %v8660 = vadd.f32 0.0, %v8659
    %v8661 = vpop.f32.mrf.mxu0
    %v8662 = vadd.f32 0.0, %v8661
    %8663 = vdwg.mxu0
    %8664 = vmatpush.bf16.msra.mxu0 %v4224
    %8665 = vmatpush.bf16.msra.mxu0 %v4208
    %8666 = vmatpush.bf16.msra.mxu0 %v4192
    %8667 = vmatpush.bf16.msra.mxu0 %v4176
    %8668 = vmatpush.bf16.msra.mxu0 %v4160
    %8669 = vmatpush.bf16.msra.mxu0 %v4144
    %8670 = vmatpush.bf16.msra.mxu0 %v4128
    %8671 = vmatpush.bf16.msra.mxu0 %v4112
    %8672 = vmatmul.bf16.gmra.mxu0 %v7863
    %v8673 = vpop.f32.mrf.mxu0
    %v8674 = vadd.f32 %v8660, %v8673
    %v8675 = vpop.f32.mrf.mxu0
    %v8676 = vadd.f32 %v8662, %v8675
    %8677 = vdwg.mxu0
    %8678 = vmatpush.bf16.msra.mxu0 %v4352
    %8679 = vmatpush.bf16.msra.mxu0 %v4336
    %8680 = vmatpush.bf16.msra.mxu0 %v4320
    %8681 = vmatpush.bf16.msra.mxu0 %v4304
    %8682 = vmatpush.bf16.msra.mxu0 %v4288
    %8683 = vmatpush.bf16.msra.mxu0 %v4272
    %8684 = vmatpush.bf16.msra.mxu0 %v4256
    %8685 = vmatpush.bf16.msra.mxu0 %v4240
    %8686 = vmatmul.bf16.gmra.mxu0 %v7864
    %v8687 = vpop.f32.mrf.mxu0
    %v8688 = vadd.f32 %v8674, %v8687
    %v8689 = vpop.f32.mrf.mxu0
    %v8690 = vadd.f32 %v8676, %v8689
    %8691 = vdwg.mxu0
    %8692 = vmatpush.bf16.msra.mxu0 %v4480
    %8693 = vmatpush.bf16.msra.mxu0 %v4464
    %8694 = vmatpush.bf16.msra.mxu0 %v4448
    %8695 = vmatpush.bf16.msra.mxu0 %v4432
    %8696 = vmatpush.bf16.msra.mxu0 %v4416
    %8697 = vmatpush.bf16.msra.mxu0 %v4400
    %8698 = vmatpush.bf16.msra.mxu0 %v4384
    %8699 = vmatpush.bf16.msra.mxu0 %v4368
    %8700 = vmatmul.bf16.gmra.mxu0 %v7865
    %v8701 = vpop.f32.mrf.mxu0
    %v8702 = vadd.f32 %v8688, %v8701
    %v8703 = vpop.f32.mrf.mxu0
    %v8704 = vadd.f32 %v8690, %v8703
    %8705 = vdwg.mxu0
    %8706 = vmatpush.bf16.msra.mxu0 %v4097
    %8707 = vmatpush.bf16.msra.mxu0 %v4081
    %8708 = vmatpush.bf16.msra.mxu0 %v4065
    %8709 = vmatpush.bf16.msra.mxu0 %v4049
    %8710 = vmatpush.bf16.msra.mxu0 %v4033
    %8711 = vmatpush.bf16.msra.mxu0 %v4017
    %8712 = vmatpush.bf16.msra.mxu0 %v4001
    %8713 = vmatpush.bf16.msra.mxu0 %v3985
    %8714 = vmatmul.bf16.gmra.mxu0 %v7862
    %v8715 = vpop.f32.mrf.mxu0
    %v8716 = vadd.f32 0.0, %v8715
    %v8717 = vpop.f32.mrf.mxu0
    %v8718 = vadd.f32 0.0, %v8717
    %8719 = vdwg.mxu0
    %8720 = vmatpush.bf16.msra.mxu0 %v4225
    %8721 = vmatpush.bf16.msra.mxu0 %v4209
    %8722 = vmatpush.bf16.msra.mxu0 %v4193
    %8723 = vmatpush.bf16.msra.mxu0 %v4177
    %8724 = vmatpush.bf16.msra.mxu0 %v4161
    %8725 = vmatpush.bf16.msra.mxu0 %v4145
    %8726 = vmatpush.bf16.msra.mxu0 %v4129
    %8727 = vmatpush.bf16.msra.mxu0 %v4113
    %8728 = vmatmul.bf16.gmra.mxu0 %v7863
    %v8729 = vpop.f32.mrf.mxu0
    %v8730 = vadd.f32 %v8716, %v8729
    %v8731 = vpop.f32.mrf.mxu0
    %v8732 = vadd.f32 %v8718, %v8731
    %8733 = vdwg.mxu0
    %8734 = vmatpush.bf16.msra.mxu0 %v4353
    %8735 = vmatpush.bf16.msra.mxu0 %v4337
    %8736 = vmatpush.bf16.msra.mxu0 %v4321
    %8737 = vmatpush.bf16.msra.mxu0 %v4305
    %8738 = vmatpush.bf16.msra.mxu0 %v4289
    %8739 = vmatpush.bf16.msra.mxu0 %v4273
    %8740 = vmatpush.bf16.msra.mxu0 %v4257
    %8741 = vmatpush.bf16.msra.mxu0 %v4241
    %8742 = vmatmul.bf16.gmra.mxu0 %v7864
    %v8743 = vpop.f32.mrf.mxu0
    %v8744 = vadd.f32 %v8730, %v8743
    %v8745 = vpop.f32.mrf.mxu0
    %v8746 = vadd.f32 %v8732, %v8745
    %8747 = vdwg.mxu0
    %8748 = vmatpush.bf16.msra.mxu0 %v4481
    %8749 = vmatpush.bf16.msra.mxu0 %v4465
    %8750 = vmatpush.bf16.msra.mxu0 %v4449
    %8751 = vmatpush.bf16.msra.mxu0 %v4433
    %8752 = vmatpush.bf16.msra.mxu0 %v4417
    %8753 = vmatpush.bf16.msra.mxu0 %v4401
    %8754 = vmatpush.bf16.msra.mxu0 %v4385
    %8755 = vmatpush.bf16.msra.mxu0 %v4369
    %8756 = vmatmul.bf16.gmra.mxu0 %v7865
    %v8757 = vpop.f32.mrf.mxu0
    %v8758 = vadd.f32 %v8744, %v8757
    %v8759 = vpop.f32.mrf.mxu0
    %v8760 = vadd.f32 %v8746, %v8759
    %8761 = vdwg.mxu0
    %v8762 = vadd.f32 %v975, %v7918
    %v8763 = vadd.f32 %v1004, %v7974
    %v8764 = vadd.f32 %v1033, %v8030
    %v8765 = vadd.f32 %v1062, %v8086
    %v8766 = vadd.f32 %v1091, %v8142
    %v8767 = vadd.f32 %v1120, %v8198
    %v8768 = vadd.f32 %v1149, %v8254
    %v8769 = vadd.f32 %v1178, %v8310
    %v8770 = vadd.f32 %v1207, %v8366
    %v8771 = vadd.f32 %v1236, %v8422
    %v8772 = vadd.f32 %v1265, %v8478
    %v8773 = vadd.f32 %v1294, %v8534
    %v8774 = vadd.f32 %v1323, %v8590
    %v8775 = vadd.f32 %v1352, %v8646
    %v8776 = vadd.f32 %v1381, %v8702
    %v8777 = vadd.f32 %v1410, %v8758
    %v8778 = vadd.f32 %v977, %v7920
    %v8779 = vadd.f32 %v1006, %v7976
    %v8780 = vadd.f32 %v1035, %v8032
    %v8781 = vadd.f32 %v1064, %v8088
    %v8782 = vadd.f32 %v1093, %v8144
    %v8783 = vadd.f32 %v1122, %v8200
    %v8784 = vadd.f32 %v1151, %v8256
    %v8785 = vadd.f32 %v1180, %v8312
    %v8786 = vadd.f32 %v1209, %v8368
    %v8787 = vadd.f32 %v1238, %v8424
    %v8788 = vadd.f32 %v1267, %v8480
    %v8789 = vadd.f32 %v1296, %v8536
    %v8790 = vadd.f32 %v1325, %v8592
    %v8791 = vadd.f32 %v1354, %v8648
    %v8792 = vadd.f32 %v1383, %v8704
    %v8793 = vadd.f32 %v1412, %v8760
    %v8794 = vxor.u32 %v8762, 2147483648
    %v8795 = vxor.u32 %v8763, 2147483648
    %v8796 = vxor.u32 %v8764, 2147483648
    %v8797 = vxor.u32 %v8765, 2147483648
    %v8798 = vxor.u32 %v8778, 2147483648
    %v8799 = vxor.u32 %v8779, 2147483648
    %v8800 = vxor.u32 %v8780, 2147483648
    %v8801 = vxor.u32 %v8781, 2147483648
    %v8802 = vmul.f32 %v8794, 1.442695
    %v8803 = vpow.pop %v8802
    %v8804 = vmul.f32 %v8795, 1.442695
    %v8805 = vpow.pop %v8804
    %v8806 = vmul.f32 %v8796, 1.442695
    %v8807 = vpow.pop %v8806
    %v8808 = vmul.f32 %v8797, 1.442695
    %v8809 = vpow.pop %v8808
    %v8810 = vmul.f32 %v8798, 1.442695
    %v8811 = vpow.pop %v8810
    %v8812 = vmul.f32 %v8799, 1.442695
    %v8813 = vpow.pop %v8812
    %v8814 = vmul.f32 %v8800, 1.442695
    %v8815 = vpow.pop %v8814
    %v8816 = vmul.f32 %v8801, 1.442695
    %v8817 = vpow.pop %v8816
    %v8818 = vadd.f32 %v8803, 1.0
    %v8819 = vadd.f32 %v8805, 1.0
    %v8820 = vadd.f32 %v8807, 1.0
    %v8821 = vadd.f32 %v8809, 1.0
    %v8822 = vadd.f32 %v8811, 1.0
    %v8823 = vadd.f32 %v8813, 1.0
    %v8824 = vadd.f32 %v8815, 1.0
    %v8825 = vadd.f32 %v8817, 1.0
    %v8826 = vrcp.pop %v8818
    %v8827 = vmul.f32 %v8818, %v8826
    %v8828 = vsub.f32 1.0, %v8827
    %v8829 = vmul.f32 %v8826, %v8828
    %v8830 = vadd.f32 %v8826, %v8829
    %vm8831 = vweird.f32 %v8818
    %vm8832 = vweird.f32 %v8826
    %vm8833 = vmor %vm8831, %vm8832
    %v8834 = vsel %vm8833, %v8826, %v8830
    %v8835 = vand.u32 2147483647, %v8818
    %vm8836 = vcmp.eq.f32.partialorder %v8835, 8.507059e+37
    %v8837 = vand.u32 %v8818, 2147483648
    %v8838 = vor.u32 1.1754944e-38, %v8837
    %v8839 = vsel %vm8836, %v8838, %v8834
    %v8840 = vmul.f32 1.0, %v8839
    %v8841 = vrcp.pop %v8819
    %v8842 = vmul.f32 %v8819, %v8841
    %v8843 = vsub.f32 1.0, %v8842
    %v8844 = vmul.f32 %v8841, %v8843
    %v8845 = vadd.f32 %v8841, %v8844
    %vm8846 = vweird.f32 %v8819
    %vm8847 = vweird.f32 %v8841
    %vm8848 = vmor %vm8846, %vm8847
    %v8849 = vsel %vm8848, %v8841, %v8845
    %v8850 = vand.u32 2147483647, %v8819
    %vm8851 = vcmp.eq.f32.partialorder %v8850, 8.507059e+37
    %v8852 = vand.u32 %v8819, 2147483648
    %v8853 = vor.u32 1.1754944e-38, %v8852
    %v8854 = vsel %vm8851, %v8853, %v8849
    %v8855 = vmul.f32 1.0, %v8854
    %v8856 = vrcp.pop %v8820
    %v8857 = vmul.f32 %v8820, %v8856
    %v8858 = vsub.f32 1.0, %v8857
    %v8859 = vmul.f32 %v8856, %v8858
    %v8860 = vadd.f32 %v8856, %v8859
    %vm8861 = vweird.f32 %v8820
    %vm8862 = vweird.f32 %v8856
    %vm8863 = vmor %vm8861, %vm8862
    %v8864 = vsel %vm8863, %v8856, %v8860
    %v8865 = vand.u32 2147483647, %v8820
    %vm8866 = vcmp.eq.f32.partialorder %v8865, 8.507059e+37
    %v8867 = vand.u32 %v8820, 2147483648
    %v8868 = vor.u32 1.1754944e-38, %v8867
    %v8869 = vsel %vm8866, %v8868, %v8864
    %v8870 = vmul.f32 1.0, %v8869
    %v8871 = vrcp.pop %v8821
    %v8872 = vmul.f32 %v8821, %v8871
    %v8873 = vsub.f32 1.0, %v8872
    %v8874 = vmul.f32 %v8871, %v8873
    %v8875 = vadd.f32 %v8871, %v8874
    %vm8876 = vweird.f32 %v8821
    %vm8877 = vweird.f32 %v8871
    %vm8878 = vmor %vm8876, %vm8877
    %v8879 = vsel %vm8878, %v8871, %v8875
    %v8880 = vand.u32 2147483647, %v8821
    %vm8881 = vcmp.eq.f32.partialorder %v8880, 8.507059e+37
    %v8882 = vand.u32 %v8821, 2147483648
    %v8883 = vor.u32 1.1754944e-38, %v8882
    %v8884 = vsel %vm8881, %v8883, %v8879
    %v8885 = vmul.f32 1.0, %v8884
    %v8886 = vrcp.pop %v8822
    %v8887 = vmul.f32 %v8822, %v8886
    %v8888 = vsub.f32 1.0, %v8887
    %v8889 = vmul.f32 %v8886, %v8888
    %v8890 = vadd.f32 %v8886, %v8889
    %vm8891 = vweird.f32 %v8822
    %vm8892 = vweird.f32 %v8886
    %vm8893 = vmor %vm8891, %vm8892
    %v8894 = vsel %vm8893, %v8886, %v8890
    %v8895 = vand.u32 2147483647, %v8822
    %vm8896 = vcmp.eq.f32.partialorder %v8895, 8.507059e+37
    %v8897 = vand.u32 %v8822, 2147483648
    %v8898 = vor.u32 1.1754944e-38, %v8897
    %v8899 = vsel %vm8896, %v8898, %v8894
    %v8900 = vmul.f32 1.0, %v8899
    %v8901 = vrcp.pop %v8823
    %v8902 = vmul.f32 %v8823, %v8901
    %v8903 = vsub.f32 1.0, %v8902
    %v8904 = vmul.f32 %v8901, %v8903
    %v8905 = vadd.f32 %v8901, %v8904
    %vm8906 = vweird.f32 %v8823
    %vm8907 = vweird.f32 %v8901
    %vm8908 = vmor %vm8906, %vm8907
    %v8909 = vsel %vm8908, %v8901, %v8905
    %v8910 = vand.u32 2147483647, %v8823
    %vm8911 = vcmp.eq.f32.partialorder %v8910, 8.507059e+37
    %v8912 = vand.u32 %v8823, 2147483648
    %v8913 = vor.u32 1.1754944e-38, %v8912
    %v8914 = vsel %vm8911, %v8913, %v8909
    %v8915 = vmul.f32 1.0, %v8914
    %v8916 = vrcp.pop %v8824
    %v8917 = vmul.f32 %v8824, %v8916
    %v8918 = vsub.f32 1.0, %v8917
    %v8919 = vmul.f32 %v8916, %v8918
    %v8920 = vadd.f32 %v8916, %v8919
    %vm8921 = vweird.f32 %v8824
    %vm8922 = vweird.f32 %v8916
    %vm8923 = vmor %vm8921, %vm8922
    %v8924 = vsel %vm8923, %v8916, %v8920
    %v8925 = vand.u32 2147483647, %v8824
    %vm8926 = vcmp.eq.f32.partialorder %v8925, 8.507059e+37
    %v8927 = vand.u32 %v8824, 2147483648
    %v8928 = vor.u32 1.1754944e-38, %v8927
    %v8929 = vsel %vm8926, %v8928, %v8924
    %v8930 = vmul.f32 1.0, %v8929
    %v8931 = vrcp.pop %v8825
    %v8932 = vmul.f32 %v8825, %v8931
    %v8933 = vsub.f32 1.0, %v8932
    %v8934 = vmul.f32 %v8931, %v8933
    %v8935 = vadd.f32 %v8931, %v8934
    %vm8936 = vweird.f32 %v8825
    %vm8937 = vweird.f32 %v8931
    %vm8938 = vmor %vm8936, %vm8937
    %v8939 = vsel %vm8938, %v8931, %v8935
    %v8940 = vand.u32 2147483647, %v8825
    %vm8941 = vcmp.eq.f32.partialorder %v8940, 8.507059e+37
    %v8942 = vand.u32 %v8825, 2147483648
    %v8943 = vor.u32 1.1754944e-38, %v8942
    %v8944 = vsel %vm8941, %v8943, %v8939
    %v8945 = vmul.f32 1.0, %v8944
    %v8946 = vxor.u32 %v8766, 2147483648
    %v8947 = vxor.u32 %v8767, 2147483648
    %v8948 = vxor.u32 %v8768, 2147483648
    %v8949 = vxor.u32 %v8769, 2147483648
    %v8950 = vxor.u32 %v8782, 2147483648
    %v8951 = vxor.u32 %v8783, 2147483648
    %v8952 = vxor.u32 %v8784, 2147483648
    %v8953 = vxor.u32 %v8785, 2147483648
    %v8954 = vmul.f32 %v8946, 1.442695
    %v8955 = vpow.pop %v8954
    %v8956 = vmul.f32 %v8947, 1.442695
    %v8957 = vpow.pop %v8956
    %v8958 = vmul.f32 %v8948, 1.442695
    %v8959 = vpow.pop %v8958
    %v8960 = vmul.f32 %v8949, 1.442695
    %v8961 = vpow.pop %v8960
    %v8962 = vmul.f32 %v8950, 1.442695
    %v8963 = vpow.pop %v8962
    %v8964 = vmul.f32 %v8951, 1.442695
    %v8965 = vpow.pop %v8964
    %v8966 = vmul.f32 %v8952, 1.442695
    %v8967 = vpow.pop %v8966
    %v8968 = vmul.f32 %v8953, 1.442695
    %v8969 = vpow.pop %v8968
    %v8970 = vadd.f32 %v8955, 1.0
    %v8971 = vadd.f32 %v8957, 1.0
    %v8972 = vadd.f32 %v8959, 1.0
    %v8973 = vadd.f32 %v8961, 1.0
    %v8974 = vadd.f32 %v8963, 1.0
    %v8975 = vadd.f32 %v8965, 1.0
    %v8976 = vadd.f32 %v8967, 1.0
    %v8977 = vadd.f32 %v8969, 1.0
    %v8978 = vrcp.pop %v8970
    %v8979 = vmul.f32 %v8970, %v8978
    %v8980 = vsub.f32 1.0, %v8979
    %v8981 = vmul.f32 %v8978, %v8980
    %v8982 = vadd.f32 %v8978, %v8981
    %vm8983 = vweird.f32 %v8970
    %vm8984 = vweird.f32 %v8978
    %vm8985 = vmor %vm8983, %vm8984
    %v8986 = vsel %vm8985, %v8978, %v8982
    %v8987 = vand.u32 2147483647, %v8970
    %vm8988 = vcmp.eq.f32.partialorder %v8987, 8.507059e+37
    %v8989 = vand.u32 %v8970, 2147483648
    %v8990 = vor.u32 1.1754944e-38, %v8989
    %v8991 = vsel %vm8988, %v8990, %v8986
    %v8992 = vmul.f32 1.0, %v8991
    %v8993 = vrcp.pop %v8971
    %v8994 = vmul.f32 %v8971, %v8993
    %v8995 = vsub.f32 1.0, %v8994
    %v8996 = vmul.f32 %v8993, %v8995
    %v8997 = vadd.f32 %v8993, %v8996
    %vm8998 = vweird.f32 %v8971
    %vm8999 = vweird.f32 %v8993
    %vm9000 = vmor %vm8998, %vm8999
    %v9001 = vsel %vm9000, %v8993, %v8997
    %v9002 = vand.u32 2147483647, %v8971
    %vm9003 = vcmp.eq.f32.partialorder %v9002, 8.507059e+37
    %v9004 = vand.u32 %v8971, 2147483648
    %v9005 = vor.u32 1.1754944e-38, %v9004
    %v9006 = vsel %vm9003, %v9005, %v9001
    %v9007 = vmul.f32 1.0, %v9006
    %v9008 = vrcp.pop %v8972
    %v9009 = vmul.f32 %v8972, %v9008
    %v9010 = vsub.f32 1.0, %v9009
    %v9011 = vmul.f32 %v9008, %v9010
    %v9012 = vadd.f32 %v9008, %v9011
    %vm9013 = vweird.f32 %v8972
    %vm9014 = vweird.f32 %v9008
    %vm9015 = vmor %vm9013, %vm9014
    %v9016 = vsel %vm9015, %v9008, %v9012
    %v9017 = vand.u32 2147483647, %v8972
    %vm9018 = vcmp.eq.f32.partialorder %v9017, 8.507059e+37
    %v9019 = vand.u32 %v8972, 2147483648
    %v9020 = vor.u32 1.1754944e-38, %v9019
    %v9021 = vsel %vm9018, %v9020, %v9016
    %v9022 = vmul.f32 1.0, %v9021
    %v9023 = vrcp.pop %v8973
    %v9024 = vmul.f32 %v8973, %v9023
    %v9025 = vsub.f32 1.0, %v9024
    %v9026 = vmul.f32 %v9023, %v9025
    %v9027 = vadd.f32 %v9023, %v9026
    %vm9028 = vweird.f32 %v8973
    %vm9029 = vweird.f32 %v9023
    %vm9030 = vmor %vm9028, %vm9029
    %v9031 = vsel %vm9030, %v9023, %v9027
    %v9032 = vand.u32 2147483647, %v8973
    %vm9033 = vcmp.eq.f32.partialorder %v9032, 8.507059e+37
    %v9034 = vand.u32 %v8973, 2147483648
    %v9035 = vor.u32 1.1754944e-38, %v9034
    %v9036 = vsel %vm9033, %v9035, %v9031
    %v9037 = vmul.f32 1.0, %v9036
    %v9038 = vrcp.pop %v8974
    %v9039 = vmul.f32 %v8974, %v9038
    %v9040 = vsub.f32 1.0, %v9039
    %v9041 = vmul.f32 %v9038, %v9040
    %v9042 = vadd.f32 %v9038, %v9041
    %vm9043 = vweird.f32 %v8974
    %vm9044 = vweird.f32 %v9038
    %vm9045 = vmor %vm9043, %vm9044
    %v9046 = vsel %vm9045, %v9038, %v9042
    %v9047 = vand.u32 2147483647, %v8974
    %vm9048 = vcmp.eq.f32.partialorder %v9047, 8.507059e+37
    %v9049 = vand.u32 %v8974, 2147483648
    %v9050 = vor.u32 1.1754944e-38, %v9049
    %v9051 = vsel %vm9048, %v9050, %v9046
    %v9052 = vmul.f32 1.0, %v9051
    %v9053 = vrcp.pop %v8975
    %v9054 = vmul.f32 %v8975, %v9053
    %v9055 = vsub.f32 1.0, %v9054
    %v9056 = vmul.f32 %v9053, %v9055
    %v9057 = vadd.f32 %v9053, %v9056
    %vm9058 = vweird.f32 %v8975
    %vm9059 = vweird.f32 %v9053
    %vm9060 = vmor %vm9058, %vm9059
    %v9061 = vsel %vm9060, %v9053, %v9057
    %v9062 = vand.u32 2147483647, %v8975
    %vm9063 = vcmp.eq.f32.partialorder %v9062, 8.507059e+37
    %v9064 = vand.u32 %v8975, 2147483648
    %v9065 = vor.u32 1.1754944e-38, %v9064
    %v9066 = vsel %vm9063, %v9065, %v9061
    %v9067 = vmul.f32 1.0, %v9066
    %v9068 = vrcp.pop %v8976
    %v9069 = vmul.f32 %v8976, %v9068
    %v9070 = vsub.f32 1.0, %v9069
    %v9071 = vmul.f32 %v9068, %v9070
    %v9072 = vadd.f32 %v9068, %v9071
    %vm9073 = vweird.f32 %v8976
    %vm9074 = vweird.f32 %v9068
    %vm9075 = vmor %vm9073, %vm9074
    %v9076 = vsel %vm9075, %v9068, %v9072
    %v9077 = vand.u32 2147483647, %v8976
    %vm9078 = vcmp.eq.f32.partialorder %v9077, 8.507059e+37
    %v9079 = vand.u32 %v8976, 2147483648
    %v9080 = vor.u32 1.1754944e-38, %v9079
    %v9081 = vsel %vm9078, %v9080, %v9076
    %v9082 = vmul.f32 1.0, %v9081
    %v9083 = vrcp.pop %v8977
    %v9084 = vmul.f32 %v8977, %v9083
    %v9085 = vsub.f32 1.0, %v9084
    %v9086 = vmul.f32 %v9083, %v9085
    %v9087 = vadd.f32 %v9083, %v9086
    %vm9088 = vweird.f32 %v8977
    %vm9089 = vweird.f32 %v9083
    %vm9090 = vmor %vm9088, %vm9089
    %v9091 = vsel %vm9090, %v9083, %v9087
    %v9092 = vand.u32 2147483647, %v8977
    %vm9093 = vcmp.eq.f32.partialorder %v9092, 8.507059e+37
    %v9094 = vand.u32 %v8977, 2147483648
    %v9095 = vor.u32 1.1754944e-38, %v9094
    %v9096 = vsel %vm9093, %v9095, %v9091
    %v9097 = vmul.f32 1.0, %v9096
    %v9098 = vtanh.pop %v8770
    %v9099 = vtanh.pop %v8771
    %v9100 = vtanh.pop %v8772
    %v9101 = vtanh.pop %v8773
    %v9102 = vtanh.pop %v8786
    %v9103 = vtanh.pop %v8787
    %v9104 = vtanh.pop %v8788
    %v9105 = vtanh.pop %v8789
    %v9106 = vxor.u32 %v8774, 2147483648
    %v9107 = vxor.u32 %v8775, 2147483648
    %v9108 = vxor.u32 %v8776, 2147483648
    %v9109 = vxor.u32 %v8777, 2147483648
    %v9110 = vxor.u32 %v8790, 2147483648
    %v9111 = vxor.u32 %v8791, 2147483648
    %v9112 = vxor.u32 %v8792, 2147483648
    %v9113 = vxor.u32 %v8793, 2147483648
    %v9114 = vmul.f32 %v9106, 1.442695
    %v9115 = vpow.pop %v9114
    %v9116 = vmul.f32 %v9107, 1.442695
    %v9117 = vpow.pop %v9116
    %v9118 = vmul.f32 %v9108, 1.442695
    %v9119 = vpow.pop %v9118
    %v9120 = vmul.f32 %v9109, 1.442695
    %v9121 = vpow.pop %v9120
    %v9122 = vmul.f32 %v9110, 1.442695
    %v9123 = vpow.pop %v9122
    %v9124 = vmul.f32 %v9111, 1.442695
    %v9125 = vpow.pop %v9124
    %v9126 = vmul.f32 %v9112, 1.442695
    %v9127 = vpow.pop %v9126
    %v9128 = vmul.f32 %v9113, 1.442695
    %v9129 = vpow.pop %v9128
    %v9130 = vadd.f32 %v9115, 1.0
    %v9131 = vadd.f32 %v9117, 1.0
    %v9132 = vadd.f32 %v9119, 1.0
    %v9133 = vadd.f32 %v9121, 1.0
    %v9134 = vadd.f32 %v9123, 1.0
    %v9135 = vadd.f32 %v9125, 1.0
    %v9136 = vadd.f32 %v9127, 1.0
    %v9137 = vadd.f32 %v9129, 1.0
    %v9138 = vrcp.pop %v9130
    %v9139 = vmul.f32 %v9130, %v9138
    %v9140 = vsub.f32 1.0, %v9139
    %v9141 = vmul.f32 %v9138, %v9140
    %v9142 = vadd.f32 %v9138, %v9141
    %vm9143 = vweird.f32 %v9130
    %vm9144 = vweird.f32 %v9138
    %vm9145 = vmor %vm9143, %vm9144
    %v9146 = vsel %vm9145, %v9138, %v9142
    %v9147 = vand.u32 2147483647, %v9130
    %vm9148 = vcmp.eq.f32.partialorder %v9147, 8.507059e+37
    %v9149 = vand.u32 %v9130, 2147483648
    %v9150 = vor.u32 1.1754944e-38, %v9149
    %v9151 = vsel %vm9148, %v9150, %v9146
    %v9152 = vmul.f32 1.0, %v9151
    %v9153 = vrcp.pop %v9131
    %v9154 = vmul.f32 %v9131, %v9153
    %v9155 = vsub.f32 1.0, %v9154
    %v9156 = vmul.f32 %v9153, %v9155
    %v9157 = vadd.f32 %v9153, %v9156
    %vm9158 = vweird.f32 %v9131
    %vm9159 = vweird.f32 %v9153
    %vm9160 = vmor %vm9158, %vm9159
    %v9161 = vsel %vm9160, %v9153, %v9157
    %v9162 = vand.u32 2147483647, %v9131
    %vm9163 = vcmp.eq.f32.partialorder %v9162, 8.507059e+37
    %v9164 = vand.u32 %v9131, 2147483648
    %v9165 = vor.u32 1.1754944e-38, %v9164
    %v9166 = vsel %vm9163, %v9165, %v9161
    %v9167 = vmul.f32 1.0, %v9166
    %v9168 = vrcp.pop %v9132
    %v9169 = vmul.f32 %v9132, %v9168
    %v9170 = vsub.f32 1.0, %v9169
    %v9171 = vmul.f32 %v9168, %v9170
    %v9172 = vadd.f32 %v9168, %v9171
    %vm9173 = vweird.f32 %v9132
    %vm9174 = vweird.f32 %v9168
    %vm9175 = vmor %vm9173, %vm9174
    %v9176 = vsel %vm9175, %v9168, %v9172
    %v9177 = vand.u32 2147483647, %v9132
    %vm9178 = vcmp.eq.f32.partialorder %v9177, 8.507059e+37
    %v9179 = vand.u32 %v9132, 2147483648
    %v9180 = vor.u32 1.1754944e-38, %v9179
    %v9181 = vsel %vm9178, %v9180, %v9176
    %v9182 = vmul.f32 1.0, %v9181
    %v9183 = vrcp.pop %v9133
    %v9184 = vmul.f32 %v9133, %v9183
    %v9185 = vsub.f32 1.0, %v9184
    %v9186 = vmul.f32 %v9183, %v9185
    %v9187 = vadd.f32 %v9183, %v9186
    %vm9188 = vweird.f32 %v9133
    %vm9189 = vweird.f32 %v9183
    %vm9190 = vmor %vm9188, %vm9189
    %v9191 = vsel %vm9190, %v9183, %v9187
    %v9192 = vand.u32 2147483647, %v9133
    %vm9193 = vcmp.eq.f32.partialorder %v9192, 8.507059e+37
    %v9194 = vand.u32 %v9133, 2147483648
    %v9195 = vor.u32 1.1754944e-38, %v9194
    %v9196 = vsel %vm9193, %v9195, %v9191
    %v9197 = vmul.f32 1.0, %v9196
    %v9198 = vrcp.pop %v9134
    %v9199 = vmul.f32 %v9134, %v9198
    %v9200 = vsub.f32 1.0, %v9199
    %v9201 = vmul.f32 %v9198, %v9200
    %v9202 = vadd.f32 %v9198, %v9201
    %vm9203 = vweird.f32 %v9134
    %vm9204 = vweird.f32 %v9198
    %vm9205 = vmor %vm9203, %vm9204
    %v9206 = vsel %vm9205, %v9198, %v9202
    %v9207 = vand.u32 2147483647, %v9134
    %vm9208 = vcmp.eq.f32.partialorder %v9207, 8.507059e+37
    %v9209 = vand.u32 %v9134, 2147483648
    %v9210 = vor.u32 1.1754944e-38, %v9209
    %v9211 = vsel %vm9208, %v9210, %v9206
    %v9212 = vmul.f32 1.0, %v9211
    %v9213 = vrcp.pop %v9135
    %v9214 = vmul.f32 %v9135, %v9213
    %v9215 = vsub.f32 1.0, %v9214
    %v9216 = vmul.f32 %v9213, %v9215
    %v9217 = vadd.f32 %v9213, %v9216
    %vm9218 = vweird.f32 %v9135
    %vm9219 = vweird.f32 %v9213
    %vm9220 = vmor %vm9218, %vm9219
    %v9221 = vsel %vm9220, %v9213, %v9217
    %v9222 = vand.u32 2147483647, %v9135
    %vm9223 = vcmp.eq.f32.partialorder %v9222, 8.507059e+37
    %v9224 = vand.u32 %v9135, 2147483648
    %v9225 = vor.u32 1.1754944e-38, %v9224
    %v9226 = vsel %vm9223, %v9225, %v9221
    %v9227 = vmul.f32 1.0, %v9226
    %v9228 = vrcp.pop %v9136
    %v9229 = vmul.f32 %v9136, %v9228
    %v9230 = vsub.f32 1.0, %v9229
    %v9231 = vmul.f32 %v9228, %v9230
    %v9232 = vadd.f32 %v9228, %v9231
    %vm9233 = vweird.f32 %v9136
    %vm9234 = vweird.f32 %v9228
    %vm9235 = vmor %vm9233, %vm9234
    %v9236 = vsel %vm9235, %v9228, %v9232
    %v9237 = vand.u32 2147483647, %v9136
    %vm9238 = vcmp.eq.f32.partialorder %v9237, 8.507059e+37
    %v9239 = vand.u32 %v9136, 2147483648
    %v9240 = vor.u32 1.1754944e-38, %v9239
    %v9241 = vsel %vm9238, %v9240, %v9236
    %v9242 = vmul.f32 1.0, %v9241
    %v9243 = vrcp.pop %v9137
    %v9244 = vmul.f32 %v9137, %v9243
    %v9245 = vsub.f32 1.0, %v9244
    %v9246 = vmul.f32 %v9243, %v9245
    %v9247 = vadd.f32 %v9243, %v9246
    %vm9248 = vweird.f32 %v9137
    %vm9249 = vweird.f32 %v9243
    %vm9250 = vmor %vm9248, %vm9249
    %v9251 = vsel %vm9250, %v9243, %v9247
    %v9252 = vand.u32 2147483647, %v9137
    %vm9253 = vcmp.eq.f32.partialorder %v9252, 8.507059e+37
    %v9254 = vand.u32 %v9137, 2147483648
    %v9255 = vor.u32 1.1754944e-38, %v9254
    %v9256 = vsel %vm9253, %v9255, %v9251
    %v9257 = vmul.f32 1.0, %v9256
    %v9258 = vmul.f32 %v8992, %v7838
    %v9259 = vmul.f32 %v9007, %v7839
    %v9260 = vmul.f32 %v9022, %v7840
    %v9261 = vmul.f32 %v9037, %v7841
    %v9262 = vmul.f32 %v9052, %v7842
    %v9263 = vmul.f32 %v9067, %v7843
    %v9264 = vmul.f32 %v9082, %v7844
    %v9265 = vmul.f32 %v9097, %v7845
    %v9266 = vmul.f32 %v8840, %v9098
    %v9267 = vmul.f32 %v8855, %v9099
    %v9268 = vmul.f32 %v8870, %v9100
    %v9269 = vmul.f32 %v8885, %v9101
    %v9270 = vmul.f32 %v8900, %v9102
    %v9271 = vmul.f32 %v8915, %v9103
    %v9272 = vmul.f32 %v8930, %v9104
    %v9273 = vmul.f32 %v8945, %v9105
    %v9274 = vadd.f32 %v9258, %v9266
    %v9275 = vadd.f32 %v9259, %v9267
    %v9276 = vadd.f32 %v9260, %v9268
    %v9277 = vadd.f32 %v9261, %v9269
    %v9278 = vadd.f32 %v9262, %v9270
    %v9279 = vadd.f32 %v9263, %v9271
    %v9280 = vadd.f32 %v9264, %v9272
    %v9281 = vadd.f32 %v9265, %v9273
    %v9282 = vtanh.pop %v9274
    %v9283 = vtanh.pop %v9275
    %v9284 = vtanh.pop %v9276
    %v9285 = vtanh.pop %v9277
    %v9286 = vtanh.pop %v9278
    %v9287 = vtanh.pop %v9279
    %v9288 = vtanh.pop %v9280
    %v9289 = vtanh.pop %v9281
    %v9290 = vmul.f32 %v9152, %v9282
    %v9291 = vmul.f32 %v9167, %v9283
    %v9292 = vmul.f32 %v9182, %v9284
    %v9293 = vmul.f32 %v9197, %v9285
    %v9294 = vmul.f32 %v9212, %v9286
    %v9295 = vmul.f32 %v9227, %v9287
    %v9296 = vmul.f32 %v9242, %v9288
    %v9297 = vmul.f32 %v9257, %v9289
    %v9298 = vld [vmem:[#allocation10] sm:$0xf]
    %v9299 = vld [vmem:[#allocation10 + $0x4] sm:$0xf]
    %v9300 = vld [vmem:[#allocation10 + $0x8] sm:$0xf]
    %v9301 = vld [vmem:[#allocation10 + $0xc] sm:$0xf]
    %v9302 = vld [vmem:[#allocation10 + $0x10] sm:$0xf]
    %v9303 = vld [vmem:[#allocation10 + $0x14] sm:$0xf]
    %v9304 = vld [vmem:[#allocation10 + $0x18] sm:$0xf]
    %v9305 = vld [vmem:[#allocation10 + $0x1c] sm:$0xf]
    %v9306 = vld [vmem:[#allocation10 + $0x20] sm:$0xf]
    %v9307 = vld [vmem:[#allocation10 + $0x24] sm:$0xf]
    %v9308 = vld [vmem:[#allocation10 + $0x28] sm:$0xf]
    %v9309 = vld [vmem:[#allocation10 + $0x2c] sm:$0xf]
    %v9310 = vld [vmem:[#allocation10 + $0x30] sm:$0xf]
    %v9311 = vld [vmem:[#allocation10 + $0x34] sm:$0xf]
    %v9312 = vld [vmem:[#allocation10 + $0x38] sm:$0xf]
    %v9313 = vld [vmem:[#allocation10 + $0x3c] sm:$0xf]
    %v9314 = vld [vmem:[#allocation10 + $0x40] sm:$0xf]
    %v9315 = vld [vmem:[#allocation10 + $0x44] sm:$0xf]
    %v9316 = vld [vmem:[#allocation10 + $0x48] sm:$0xf]
    %v9317 = vld [vmem:[#allocation10 + $0x4c] sm:$0xf]
    %v9318 = vld [vmem:[#allocation10 + $0x50] sm:$0xf]
    %v9319 = vld [vmem:[#allocation10 + $0x54] sm:$0xf]
    %v9320 = vld [vmem:[#allocation10 + $0x58] sm:$0xf]
    %v9321 = vld [vmem:[#allocation10 + $0x5c] sm:$0xf]
    %v9322 = vld [vmem:[#allocation10 + $0x60] sm:$0xf]
    %v9323 = vld [vmem:[#allocation10 + $0x64] sm:$0xf]
    %v9324 = vld [vmem:[#allocation10 + $0x68] sm:$0xf]
    %v9325 = vld [vmem:[#allocation10 + $0x6c] sm:$0xf]
    %v9326 = vld [vmem:[#allocation10 + $0x70] sm:$0xf]
    %v9327 = vld [vmem:[#allocation10 + $0x74] sm:$0xf]
    %v9328 = vld [vmem:[#allocation10 + $0x78] sm:$0xf]
    %v9329 = vld [vmem:[#allocation10 + $0x7c] sm:$0xf]
    %v9330 = vld [vmem:[#allocation10 + $0x80] sm:$0xf]
    %v9331 = vld [vmem:[#allocation10 + $0x84] sm:$0xf]
    %v9332 = vld [vmem:[#allocation10 + $0x88] sm:$0xf]
    %v9333 = vld [vmem:[#allocation10 + $0x8c] sm:$0xf]
    %v9334 = vld [vmem:[#allocation10 + $0x90] sm:$0xf]
    %v9335 = vld [vmem:[#allocation10 + $0x94] sm:$0xf]
    %v9336 = vld [vmem:[#allocation10 + $0x98] sm:$0xf]
    %v9337 = vld [vmem:[#allocation10 + $0x9c] sm:$0xf]
    %v9338 = vld [vmem:[#allocation10 + $0xa0] sm:$0xf]
    %v9339 = vld [vmem:[#allocation10 + $0xa4] sm:$0xf]
    %v9340 = vld [vmem:[#allocation10 + $0xa8] sm:$0xf]
    %v9341 = vld [vmem:[#allocation10 + $0xac] sm:$0xf]
    %v9342 = vld [vmem:[#allocation10 + $0xb0] sm:$0xf]
    %v9343 = vld [vmem:[#allocation10 + $0xb4] sm:$0xf]
    %v9344 = vld [vmem:[#allocation10 + $0xb8] sm:$0xf]
    %v9345 = vld [vmem:[#allocation10 + $0xbc] sm:$0xf]
    %v9346 = vld [vmem:[#allocation10 + $0xc0] sm:$0xf]
    %v9347 = vld [vmem:[#allocation10 + $0xc4] sm:$0xf]
    %v9348 = vld [vmem:[#allocation10 + $0xc8] sm:$0xf]
    %v9349 = vld [vmem:[#allocation10 + $0xcc] sm:$0xf]
    %v9350 = vld [vmem:[#allocation10 + $0xd0] sm:$0xf]
    %v9351 = vld [vmem:[#allocation10 + $0xd4] sm:$0xf]
    %v9352 = vld [vmem:[#allocation10 + $0xd8] sm:$0xf]
    %v9353 = vld [vmem:[#allocation10 + $0xdc] sm:$0xf]
    %v9354 = vld [vmem:[#allocation10 + $0xe0] sm:$0xf]
    %v9355 = vld [vmem:[#allocation10 + $0xe4] sm:$0xf]
    %v9356 = vld [vmem:[#allocation10 + $0xe8] sm:$0xf]
    %v9357 = vld [vmem:[#allocation10 + $0xec] sm:$0xf]
    %v9358 = vld [vmem:[#allocation10 + $0xf0] sm:$0xf]
    %v9359 = vld [vmem:[#allocation10 + $0xf4] sm:$0xf]
    %v9360 = vld [vmem:[#allocation10 + $0xf8] sm:$0xf]
    %v9361 = vld [vmem:[#allocation10 + $0xfc] sm:$0xf]
    %v9362 = vld [vmem:[#allocation10 + $0x100] sm:$0xf]
    %v9363 = vld [vmem:[#allocation10 + $0x104] sm:$0xf]
    %v9364 = vld [vmem:[#allocation10 + $0x108] sm:$0xf]
    %v9365 = vld [vmem:[#allocation10 + $0x10c] sm:$0xf]
    %v9366 = vld [vmem:[#allocation10 + $0x110] sm:$0xf]
    %v9367 = vld [vmem:[#allocation10 + $0x114] sm:$0xf]
    %v9368 = vld [vmem:[#allocation10 + $0x118] sm:$0xf]
    %v9369 = vld [vmem:[#allocation10 + $0x11c] sm:$0xf]
    %v9370 = vld [vmem:[#allocation10 + $0x120] sm:$0xf]
    %v9371 = vld [vmem:[#allocation10 + $0x124] sm:$0xf]
    %v9372 = vld [vmem:[#allocation10 + $0x128] sm:$0xf]
    %v9373 = vld [vmem:[#allocation10 + $0x12c] sm:$0xf]
    %v9374 = vld [vmem:[#allocation10 + $0x130] sm:$0xf]
    %v9375 = vld [vmem:[#allocation10 + $0x134] sm:$0xf]
    %v9376 = vld [vmem:[#allocation10 + $0x138] sm:$0xf]
    %v9377 = vld [vmem:[#allocation10 + $0x13c] sm:$0xf]
    %v9378 = vld [vmem:[#allocation10 + $0x140] sm:$0xf]
    %v9379 = vld [vmem:[#allocation10 + $0x144] sm:$0xf]
    %v9380 = vld [vmem:[#allocation10 + $0x148] sm:$0xf]
    %v9381 = vld [vmem:[#allocation10 + $0x14c] sm:$0xf]
    %v9382 = vld [vmem:[#allocation10 + $0x150] sm:$0xf]
    %v9383 = vld [vmem:[#allocation10 + $0x154] sm:$0xf]
    %v9384 = vld [vmem:[#allocation10 + $0x158] sm:$0xf]
    %v9385 = vld [vmem:[#allocation10 + $0x15c] sm:$0xf]
    %v9386 = vld [vmem:[#allocation10 + $0x160] sm:$0xf]
    %v9387 = vld [vmem:[#allocation10 + $0x164] sm:$0xf]
    %v9388 = vld [vmem:[#allocation10 + $0x168] sm:$0xf]
    %v9389 = vld [vmem:[#allocation10 + $0x16c] sm:$0xf]
    %v9390 = vld [vmem:[#allocation10 + $0x170] sm:$0xf]
    %v9391 = vld [vmem:[#allocation10 + $0x174] sm:$0xf]
    %v9392 = vld [vmem:[#allocation10 + $0x178] sm:$0xf]
    %v9393 = vld [vmem:[#allocation10 + $0x17c] sm:$0xf]
    %v9394 = vld [vmem:[#allocation10 + $0x180] sm:$0xf]
    %v9395 = vld [vmem:[#allocation10 + $0x184] sm:$0xf]
    %v9396 = vld [vmem:[#allocation10 + $0x188] sm:$0xf]
    %v9397 = vld [vmem:[#allocation10 + $0x18c] sm:$0xf]
    %v9398 = vld [vmem:[#allocation10 + $0x190] sm:$0xf]
    %v9399 = vld [vmem:[#allocation10 + $0x194] sm:$0xf]
    %v9400 = vld [vmem:[#allocation10 + $0x198] sm:$0xf]
    %v9401 = vld [vmem:[#allocation10 + $0x19c] sm:$0xf]
    %v9402 = vld [vmem:[#allocation10 + $0x1a0] sm:$0xf]
    %v9403 = vld [vmem:[#allocation10 + $0x1a4] sm:$0xf]
    %v9404 = vld [vmem:[#allocation10 + $0x1a8] sm:$0xf]
    %v9405 = vld [vmem:[#allocation10 + $0x1ac] sm:$0xf]
    %v9406 = vld [vmem:[#allocation10 + $0x1b0] sm:$0xf]
    %v9407 = vld [vmem:[#allocation10 + $0x1b4] sm:$0xf]
    %v9408 = vld [vmem:[#allocation10 + $0x1b8] sm:$0xf]
    %v9409 = vld [vmem:[#allocation10 + $0x1bc] sm:$0xf]
    %v9410 = vld [vmem:[#allocation10 + $0x1c0] sm:$0xf]
    %v9411 = vld [vmem:[#allocation10 + $0x1c4] sm:$0xf]
    %v9412 = vld [vmem:[#allocation10 + $0x1c8] sm:$0xf]
    %v9413 = vld [vmem:[#allocation10 + $0x1cc] sm:$0xf]
    %v9414 = vld [vmem:[#allocation10 + $0x1d0] sm:$0xf]
    %v9415 = vld [vmem:[#allocation10 + $0x1d4] sm:$0xf]
    %v9416 = vld [vmem:[#allocation10 + $0x1d8] sm:$0xf]
    %v9417 = vld [vmem:[#allocation10 + $0x1dc] sm:$0xf]
    %v9418 = vld [vmem:[#allocation10 + $0x1e0] sm:$0xf]
    %v9419 = vld [vmem:[#allocation10 + $0x1e4] sm:$0xf]
    %v9420 = vld [vmem:[#allocation10 + $0x1e8] sm:$0xf]
    %v9421 = vld [vmem:[#allocation10 + $0x1ec] sm:$0xf]
    %v9422 = vld [vmem:[#allocation10 + $0x1f0] sm:$0xf]
    %v9423 = vld [vmem:[#allocation10 + $0x1f4] sm:$0xf]
    %v9424 = vld [vmem:[#allocation10 + $0x1f8] sm:$0xf]
    %v9425 = vld [vmem:[#allocation10 + $0x1fc] sm:$0xf]
    %v9490 = vunpack.c.l.b16 %v9362
    %v9491 = vunpack.c.l.b16 %v9363
    %v9492 = vunpack.c.l.b16 %v9364
    %v9493 = vunpack.c.l.b16 %v9365
    %v9494 = vunpack.c.l.b16 %v9366
    %v9495 = vunpack.c.l.b16 %v9367
    %v9496 = vunpack.c.l.b16 %v9368
    %v9497 = vunpack.c.l.b16 %v9369
    %v9498 = vunpack.c.l.b16 %v9370
    %v9499 = vunpack.c.l.b16 %v9371
    %v9500 = vunpack.c.l.b16 %v9372
    %v9501 = vunpack.c.l.b16 %v9373
    %v9502 = vunpack.c.l.b16 %v9374
    %v9503 = vunpack.c.l.b16 %v9375
    %v9504 = vunpack.c.l.b16 %v9376
    %v9505 = vunpack.c.l.b16 %v9377
    %v9506 = vunpack.c.l.b16 %v9378
    %v9507 = vunpack.c.l.b16 %v9379
    %v9508 = vunpack.c.l.b16 %v9380
    %v9509 = vunpack.c.l.b16 %v9381
    %v9510 = vunpack.c.l.b16 %v9382
    %v9511 = vunpack.c.l.b16 %v9383
    %v9512 = vunpack.c.l.b16 %v9384
    %v9513 = vunpack.c.l.b16 %v9385
    %v9514 = vunpack.c.l.b16 %v9386
    %v9515 = vunpack.c.l.b16 %v9387
    %v9516 = vunpack.c.l.b16 %v9388
    %v9517 = vunpack.c.l.b16 %v9389
    %v9518 = vunpack.c.l.b16 %v9390
    %v9519 = vunpack.c.l.b16 %v9391
    %v9520 = vunpack.c.l.b16 %v9392
    %v9521 = vunpack.c.l.b16 %v9393
    %v9522 = vunpack.c.l.b16 %v9394
    %v9523 = vunpack.c.l.b16 %v9395
    %v9524 = vunpack.c.l.b16 %v9396
    %v9525 = vunpack.c.l.b16 %v9397
    %v9526 = vunpack.c.l.b16 %v9398
    %v9527 = vunpack.c.l.b16 %v9399
    %v9528 = vunpack.c.l.b16 %v9400
    %v9529 = vunpack.c.l.b16 %v9401
    %v9530 = vunpack.c.l.b16 %v9402
    %v9531 = vunpack.c.l.b16 %v9403
    %v9532 = vunpack.c.l.b16 %v9404
    %v9533 = vunpack.c.l.b16 %v9405
    %v9534 = vunpack.c.l.b16 %v9406
    %v9535 = vunpack.c.l.b16 %v9407
    %v9536 = vunpack.c.l.b16 %v9408
    %v9537 = vunpack.c.l.b16 %v9409
    %v9538 = vunpack.c.l.b16 %v9410
    %v9539 = vunpack.c.l.b16 %v9411
    %v9540 = vunpack.c.l.b16 %v9412
    %v9541 = vunpack.c.l.b16 %v9413
    %v9542 = vunpack.c.l.b16 %v9414
    %v9543 = vunpack.c.l.b16 %v9415
    %v9544 = vunpack.c.l.b16 %v9416
    %v9545 = vunpack.c.l.b16 %v9417
    %v9546 = vunpack.c.l.b16 %v9418
    %v9547 = vunpack.c.l.b16 %v9419
    %v9548 = vunpack.c.l.b16 %v9420
    %v9549 = vunpack.c.l.b16 %v9421
    %v9550 = vunpack.c.l.b16 %v9422
    %v9551 = vunpack.c.l.b16 %v9423
    %v9552 = vunpack.c.l.b16 %v9424
    %v9553 = vunpack.c.l.b16 %v9425
    %v9554 = vpack.c.b16 %v9491, %v9490
    %v9555 = vpack.c.b16 %v9493, %v9492
    %v9556 = vpack.c.b16 %v9495, %v9494
    %v9557 = vpack.c.b16 %v9497, %v9496
    %v9558 = vpack.c.b16 %v9499, %v9498
    %v9559 = vpack.c.b16 %v9501, %v9500
    %v9560 = vpack.c.b16 %v9503, %v9502
    %v9561 = vpack.c.b16 %v9505, %v9504
    %v9562 = vpack.c.b16 %v9507, %v9506
    %v9563 = vpack.c.b16 %v9509, %v9508
    %v9564 = vpack.c.b16 %v9511, %v9510
    %v9565 = vpack.c.b16 %v9513, %v9512
    %v9566 = vpack.c.b16 %v9515, %v9514
    %v9567 = vpack.c.b16 %v9517, %v9516
    %v9568 = vpack.c.b16 %v9519, %v9518
    %v9569 = vpack.c.b16 %v9521, %v9520
    %v9570 = vpack.c.b16 %v9523, %v9522
    %v9571 = vpack.c.b16 %v9525, %v9524
    %v9572 = vpack.c.b16 %v9527, %v9526
    %v9573 = vpack.c.b16 %v9529, %v9528
    %v9574 = vpack.c.b16 %v9531, %v9530
    %v9575 = vpack.c.b16 %v9533, %v9532
    %v9576 = vpack.c.b16 %v9535, %v9534
    %v9577 = vpack.c.b16 %v9537, %v9536
    %v9578 = vpack.c.b16 %v9539, %v9538
    %v9579 = vpack.c.b16 %v9541, %v9540
    %v9580 = vpack.c.b16 %v9543, %v9542
    %v9581 = vpack.c.b16 %v9545, %v9544
    %v9582 = vpack.c.b16 %v9547, %v9546
    %v9583 = vpack.c.b16 %v9549, %v9548
    %v9584 = vpack.c.b16 %v9551, %v9550
    %v9585 = vpack.c.b16 %v9553, %v9552
    %9618 = vmatpush.bf16.msra.mxu0 %v9561
    %9619 = vmatpush.bf16.msra.mxu0 %v9560
    %9620 = vmatpush.bf16.msra.mxu0 %v9559
    %9621 = vmatpush.bf16.msra.mxu0 %v9558
    %9622 = vmatpush.bf16.msra.mxu0 %v9557
    %9623 = vmatpush.bf16.msra.mxu0 %v9556
    %9624 = vmatpush.bf16.msra.mxu0 %v9555
    %9625 = vmatpush.bf16.msra.mxu0 %v9554
    %9626 = vmatmul.bf16.gmra.mxu0 %v6426
    %v9627 = vpop.f32.mrf.mxu0
    %v9628 = vadd.f32 0.0, %v9627
    %v9629 = vpop.f32.mrf.mxu0
    %v9630 = vadd.f32 0.0, %v9629
    %9631 = vdwg.mxu0
    %9632 = vmatpush.bf16.msra.mxu0 %v9569
    %9633 = vmatpush.bf16.msra.mxu0 %v9568
    %9634 = vmatpush.bf16.msra.mxu0 %v9567
    %9635 = vmatpush.bf16.msra.mxu0 %v9566
    %9636 = vmatpush.bf16.msra.mxu0 %v9565
    %9637 = vmatpush.bf16.msra.mxu0 %v9564
    %9638 = vmatpush.bf16.msra.mxu0 %v9563
    %9639 = vmatpush.bf16.msra.mxu0 %v9562
    %9640 = vmatmul.bf16.gmra.mxu0 %v6427
    %v9641 = vpop.f32.mrf.mxu0
    %v9642 = vadd.f32 %v9628, %v9641
    %v9643 = vpop.f32.mrf.mxu0
    %v9644 = vadd.f32 %v9630, %v9643
    %9645 = vdwg.mxu0
    %9646 = vmatpush.bf16.msra.mxu0 %v9577
    %9647 = vmatpush.bf16.msra.mxu0 %v9576
    %9648 = vmatpush.bf16.msra.mxu0 %v9575
    %9649 = vmatpush.bf16.msra.mxu0 %v9574
    %9650 = vmatpush.bf16.msra.mxu0 %v9573
    %9651 = vmatpush.bf16.msra.mxu0 %v9572
    %9652 = vmatpush.bf16.msra.mxu0 %v9571
    %9653 = vmatpush.bf16.msra.mxu0 %v9570
    %9654 = vmatmul.bf16.gmra.mxu0 %v6428
    %v9655 = vpop.f32.mrf.mxu0
    %v9656 = vadd.f32 %v9642, %v9655
    %v9657 = vpop.f32.mrf.mxu0
    %v9658 = vadd.f32 %v9644, %v9657
    %9659 = vdwg.mxu0
    %9660 = vmatpush.bf16.msra.mxu0 %v9585
    %9661 = vmatpush.bf16.msra.mxu0 %v9584
    %9662 = vmatpush.bf16.msra.mxu0 %v9583
    %9663 = vmatpush.bf16.msra.mxu0 %v9582
    %9664 = vmatpush.bf16.msra.mxu0 %v9581
    %9665 = vmatpush.bf16.msra.mxu0 %v9580
    %9666 = vmatpush.bf16.msra.mxu0 %v9579
    %9667 = vmatpush.bf16.msra.mxu0 %v9578
    %9668 = vmatmul.bf16.gmra.mxu0 %v6429
    %v9669 = vpop.f32.mrf.mxu0
    %v9670 = vadd.f32 %v9656, %v9669
    %v9671 = vpop.f32.mrf.mxu0
    %v9672 = vadd.f32 %v9658, %v9671
    %9673 = vdwg.mxu0
    %v9738 = vunpack.c.l.b16 %v9298
    %v9739 = vunpack.c.l.b16 %v9299
    %v9740 = vunpack.c.l.b16 %v9300
    %v9741 = vunpack.c.l.b16 %v9301
    %v9742 = vunpack.c.l.b16 %v9302
    %v9743 = vunpack.c.l.b16 %v9303
    %v9744 = vunpack.c.l.b16 %v9304
    %v9745 = vunpack.c.l.b16 %v9305
    %v9746 = vunpack.c.l.b16 %v9306
    %v9747 = vunpack.c.l.b16 %v9307
    %v9748 = vunpack.c.l.b16 %v9308
    %v9749 = vunpack.c.l.b16 %v9309
    %v9750 = vunpack.c.l.b16 %v9310
    %v9751 = vunpack.c.l.b16 %v9311
    %v9752 = vunpack.c.l.b16 %v9312
    %v9753 = vunpack.c.l.b16 %v9313
    %v9754 = vunpack.c.l.b16 %v9314
    %v9755 = vunpack.c.l.b16 %v9315
    %v9756 = vunpack.c.l.b16 %v9316
    %v9757 = vunpack.c.l.b16 %v9317
    %v9758 = vunpack.c.l.b16 %v9318
    %v9759 = vunpack.c.l.b16 %v9319
    %v9760 = vunpack.c.l.b16 %v9320
    %v9761 = vunpack.c.l.b16 %v9321
    %v9762 = vunpack.c.l.b16 %v9322
    %v9763 = vunpack.c.l.b16 %v9323
    %v9764 = vunpack.c.l.b16 %v9324
    %v9765 = vunpack.c.l.b16 %v9325
    %v9766 = vunpack.c.l.b16 %v9326
    %v9767 = vunpack.c.l.b16 %v9327
    %v9768 = vunpack.c.l.b16 %v9328
    %v9769 = vunpack.c.l.b16 %v9329
    %v9770 = vunpack.c.l.b16 %v9330
    %v9771 = vunpack.c.l.b16 %v9331
    %v9772 = vunpack.c.l.b16 %v9332
    %v9773 = vunpack.c.l.b16 %v9333
    %v9774 = vunpack.c.l.b16 %v9334
    %v9775 = vunpack.c.l.b16 %v9335
    %v9776 = vunpack.c.l.b16 %v9336
    %v9777 = vunpack.c.l.b16 %v9337
    %v9778 = vunpack.c.l.b16 %v9338
    %v9779 = vunpack.c.l.b16 %v9339
    %v9780 = vunpack.c.l.b16 %v9340
    %v9781 = vunpack.c.l.b16 %v9341
    %v9782 = vunpack.c.l.b16 %v9342
    %v9783 = vunpack.c.l.b16 %v9343
    %v9784 = vunpack.c.l.b16 %v9344
    %v9785 = vunpack.c.l.b16 %v9345
    %v9786 = vunpack.c.l.b16 %v9346
    %v9787 = vunpack.c.l.b16 %v9347
    %v9788 = vunpack.c.l.b16 %v9348
    %v9789 = vunpack.c.l.b16 %v9349
    %v9790 = vunpack.c.l.b16 %v9350
    %v9791 = vunpack.c.l.b16 %v9351
    %v9792 = vunpack.c.l.b16 %v9352
    %v9793 = vunpack.c.l.b16 %v9353
    %v9794 = vunpack.c.l.b16 %v9354
    %v9795 = vunpack.c.l.b16 %v9355
    %v9796 = vunpack.c.l.b16 %v9356
    %v9797 = vunpack.c.l.b16 %v9357
    %v9798 = vunpack.c.l.b16 %v9358
    %v9799 = vunpack.c.l.b16 %v9359
    %v9800 = vunpack.c.l.b16 %v9360
    %v9801 = vunpack.c.l.b16 %v9361
    %v9802 = vpack.c.b16 %v9739, %v9738
    %v9803 = vpack.c.b16 %v9741, %v9740
    %v9804 = vpack.c.b16 %v9743, %v9742
    %v9805 = vpack.c.b16 %v9745, %v9744
    %v9806 = vpack.c.b16 %v9747, %v9746
    %v9807 = vpack.c.b16 %v9749, %v9748
    %v9808 = vpack.c.b16 %v9751, %v9750
    %v9809 = vpack.c.b16 %v9753, %v9752
    %v9810 = vpack.c.b16 %v9755, %v9754
    %v9811 = vpack.c.b16 %v9757, %v9756
    %v9812 = vpack.c.b16 %v9759, %v9758
    %v9813 = vpack.c.b16 %v9761, %v9760
    %v9814 = vpack.c.b16 %v9763, %v9762
    %v9815 = vpack.c.b16 %v9765, %v9764
    %v9816 = vpack.c.b16 %v9767, %v9766
    %v9817 = vpack.c.b16 %v9769, %v9768
    %v9818 = vpack.c.b16 %v9771, %v9770
    %v9819 = vpack.c.b16 %v9773, %v9772
    %v9820 = vpack.c.b16 %v9775, %v9774
    %v9821 = vpack.c.b16 %v9777, %v9776
    %v9822 = vpack.c.b16 %v9779, %v9778
    %v9823 = vpack.c.b16 %v9781, %v9780
    %v9824 = vpack.c.b16 %v9783, %v9782
    %v9825 = vpack.c.b16 %v9785, %v9784
    %v9826 = vpack.c.b16 %v9787, %v9786
    %v9827 = vpack.c.b16 %v9789, %v9788
    %v9828 = vpack.c.b16 %v9791, %v9790
    %v9829 = vpack.c.b16 %v9793, %v9792
    %v9830 = vpack.c.b16 %v9795, %v9794
    %v9831 = vpack.c.b16 %v9797, %v9796
    %v9832 = vpack.c.b16 %v9799, %v9798
    %v9833 = vpack.c.b16 %v9801, %v9800
    %9866 = vmatpush.bf16.msra.mxu0 %v9809
    %9867 = vmatpush.bf16.msra.mxu0 %v9808
    %9868 = vmatpush.bf16.msra.mxu0 %v9807
    %9869 = vmatpush.bf16.msra.mxu0 %v9806
    %9870 = vmatpush.bf16.msra.mxu0 %v9805
    %9871 = vmatpush.bf16.msra.mxu0 %v9804
    %9872 = vmatpush.bf16.msra.mxu0 %v9803
    %9873 = vmatpush.bf16.msra.mxu0 %v9802
    %9874 = vmatmul.bf16.gmra.mxu0 %v1918
    %v9875 = vpop.f32.mrf.mxu0
    %v9876 = vadd.f32 %v9670, %v9875
    %v9877 = vpop.f32.mrf.mxu0
    %v9878 = vadd.f32 %v9672, %v9877
    %9879 = vdwg.mxu0
    %9880 = vmatpush.bf16.msra.mxu0 %v9817
    %9881 = vmatpush.bf16.msra.mxu0 %v9816
    %9882 = vmatpush.bf16.msra.mxu0 %v9815
    %9883 = vmatpush.bf16.msra.mxu0 %v9814
    %9884 = vmatpush.bf16.msra.mxu0 %v9813
    %9885 = vmatpush.bf16.msra.mxu0 %v9812
    %9886 = vmatpush.bf16.msra.mxu0 %v9811
    %9887 = vmatpush.bf16.msra.mxu0 %v9810
    %9888 = vmatmul.bf16.gmra.mxu0 %v1919
    %v9889 = vpop.f32.mrf.mxu0
    %v9890 = vadd.f32 %v9876, %v9889
    %v9891 = vpop.f32.mrf.mxu0
    %v9892 = vadd.f32 %v9878, %v9891
    %9893 = vdwg.mxu0
    %9894 = vmatpush.bf16.msra.mxu0 %v9825
    %9895 = vmatpush.bf16.msra.mxu0 %v9824
    %9896 = vmatpush.bf16.msra.mxu0 %v9823
    %9897 = vmatpush.bf16.msra.mxu0 %v9822
    %9898 = vmatpush.bf16.msra.mxu0 %v9821
    %9899 = vmatpush.bf16.msra.mxu0 %v9820
    %9900 = vmatpush.bf16.msra.mxu0 %v9819
    %9901 = vmatpush.bf16.msra.mxu0 %v9818
    %9902 = vmatmul.bf16.gmra.mxu0 %v1920
    %v9903 = vpop.f32.mrf.mxu0
    %v9904 = vadd.f32 %v9890, %v9903
    %v9905 = vpop.f32.mrf.mxu0
    %v9906 = vadd.f32 %v9892, %v9905
    %9907 = vdwg.mxu0
    %9908 = vmatpush.bf16.msra.mxu0 %v9833
    %9909 = vmatpush.bf16.msra.mxu0 %v9832
    %9910 = vmatpush.bf16.msra.mxu0 %v9831
    %9911 = vmatpush.bf16.msra.mxu0 %v9830
    %9912 = vmatpush.bf16.msra.mxu0 %v9829
    %9913 = vmatpush.bf16.msra.mxu0 %v9828
    %9914 = vmatpush.bf16.msra.mxu0 %v9827
    %9915 = vmatpush.bf16.msra.mxu0 %v9826
    %9916 = vmatmul.bf16.gmra.mxu0 %v1921
    %v9917 = vpop.f32.mrf.mxu0
    %v9918 = vadd.f32 %v9904, %v9917
    %v9919 = vpop.f32.mrf.mxu0
    %v9920 = vadd.f32 %v9906, %v9919
    %9921 = vdwg.mxu0
    %v9922 = vld [vmem:[#allocation10 + $0x200] sm:$0xf]
    %v9923 = vld [vmem:[#allocation10 + $0x204] sm:$0xf]
    %v9924 = vld [vmem:[#allocation10 + $0x208] sm:$0xf]
    %v9925 = vld [vmem:[#allocation10 + $0x20c] sm:$0xf]
    %v9926 = vld [vmem:[#allocation10 + $0x210] sm:$0xf]
    %v9927 = vld [vmem:[#allocation10 + $0x214] sm:$0xf]
    %v9928 = vld [vmem:[#allocation10 + $0x218] sm:$0xf]
    %v9929 = vld [vmem:[#allocation10 + $0x21c] sm:$0xf]
    %v9930 = vld [vmem:[#allocation10 + $0x220] sm:$0xf]
    %v9931 = vld [vmem:[#allocation10 + $0x224] sm:$0xf]
    %v9932 = vld [vmem:[#allocation10 + $0x228] sm:$0xf]
    %v9933 = vld [vmem:[#allocation10 + $0x22c] sm:$0xf]
    %v9934 = vld [vmem:[#allocation10 + $0x230] sm:$0xf]
    %v9935 = vld [vmem:[#allocation10 + $0x234] sm:$0xf]
    %v9936 = vld [vmem:[#allocation10 + $0x238] sm:$0xf]
    %v9937 = vld [vmem:[#allocation10 + $0x23c] sm:$0xf]
    %v9938 = vld [vmem:[#allocation10 + $0x240] sm:$0xf]
    %v9939 = vld [vmem:[#allocation10 + $0x244] sm:$0xf]
    %v9940 = vld [vmem:[#allocation10 + $0x248] sm:$0xf]
    %v9941 = vld [vmem:[#allocation10 + $0x24c] sm:$0xf]
    %v9942 = vld [vmem:[#allocation10 + $0x250] sm:$0xf]
    %v9943 = vld [vmem:[#allocation10 + $0x254] sm:$0xf]
    %v9944 = vld [vmem:[#allocation10 + $0x258] sm:$0xf]
    %v9945 = vld [vmem:[#allocation10 + $0x25c] sm:$0xf]
    %v9946 = vld [vmem:[#allocation10 + $0x260] sm:$0xf]
    %v9947 = vld [vmem:[#allocation10 + $0x264] sm:$0xf]
    %v9948 = vld [vmem:[#allocation10 + $0x268] sm:$0xf]
    %v9949 = vld [vmem:[#allocation10 + $0x26c] sm:$0xf]
    %v9950 = vld [vmem:[#allocation10 + $0x270] sm:$0xf]
    %v9951 = vld [vmem:[#allocation10 + $0x274] sm:$0xf]
    %v9952 = vld [vmem:[#allocation10 + $0x278] sm:$0xf]
    %v9953 = vld [vmem:[#allocation10 + $0x27c] sm:$0xf]
    %v9954 = vld [vmem:[#allocation10 + $0x280] sm:$0xf]
    %v9955 = vld [vmem:[#allocation10 + $0x284] sm:$0xf]
    %v9956 = vld [vmem:[#allocation10 + $0x288] sm:$0xf]
    %v9957 = vld [vmem:[#allocation10 + $0x28c] sm:$0xf]
    %v9958 = vld [vmem:[#allocation10 + $0x290] sm:$0xf]
    %v9959 = vld [vmem:[#allocation10 + $0x294] sm:$0xf]
    %v9960 = vld [vmem:[#allocation10 + $0x298] sm:$0xf]
    %v9961 = vld [vmem:[#allocation10 + $0x29c] sm:$0xf]
    %v9962 = vld [vmem:[#allocation10 + $0x2a0] sm:$0xf]
    %v9963 = vld [vmem:[#allocation10 + $0x2a4] sm:$0xf]
    %v9964 = vld [vmem:[#allocation10 + $0x2a8] sm:$0xf]
    %v9965 = vld [vmem:[#allocation10 + $0x2ac] sm:$0xf]
    %v9966 = vld [vmem:[#allocation10 + $0x2b0] sm:$0xf]
    %v9967 = vld [vmem:[#allocation10 + $0x2b4] sm:$0xf]
    %v9968 = vld [vmem:[#allocation10 + $0x2b8] sm:$0xf]
    %v9969 = vld [vmem:[#allocation10 + $0x2bc] sm:$0xf]
    %v9970 = vld [vmem:[#allocation10 + $0x2c0] sm:$0xf]
    %v9971 = vld [vmem:[#allocation10 + $0x2c4] sm:$0xf]
    %v9972 = vld [vmem:[#allocation10 + $0x2c8] sm:$0xf]
    %v9973 = vld [vmem:[#allocation10 + $0x2cc] sm:$0xf]
    %v9974 = vld [vmem:[#allocation10 + $0x2d0] sm:$0xf]
    %v9975 = vld [vmem:[#allocation10 + $0x2d4] sm:$0xf]
    %v9976 = vld [vmem:[#allocation10 + $0x2d8] sm:$0xf]
    %v9977 = vld [vmem:[#allocation10 + $0x2dc] sm:$0xf]
    %v9978 = vld [vmem:[#allocation10 + $0x2e0] sm:$0xf]
    %v9979 = vld [vmem:[#allocation10 + $0x2e4] sm:$0xf]
    %v9980 = vld [vmem:[#allocation10 + $0x2e8] sm:$0xf]
    %v9981 = vld [vmem:[#allocation10 + $0x2ec] sm:$0xf]
    %v9982 = vld [vmem:[#allocation10 + $0x2f0] sm:$0xf]
    %v9983 = vld [vmem:[#allocation10 + $0x2f4] sm:$0xf]
    %v9984 = vld [vmem:[#allocation10 + $0x2f8] sm:$0xf]
    %v9985 = vld [vmem:[#allocation10 + $0x2fc] sm:$0xf]
    %v10050 = vunpack.c.l.b16 %v9922
    %v10051 = vunpack.c.l.b16 %v9923
    %v10052 = vunpack.c.l.b16 %v9924
    %v10053 = vunpack.c.l.b16 %v9925
    %v10054 = vunpack.c.l.b16 %v9926
    %v10055 = vunpack.c.l.b16 %v9927
    %v10056 = vunpack.c.l.b16 %v9928
    %v10057 = vunpack.c.l.b16 %v9929
    %v10058 = vunpack.c.l.b16 %v9930
    %v10059 = vunpack.c.l.b16 %v9931
    %v10060 = vunpack.c.l.b16 %v9932
    %v10061 = vunpack.c.l.b16 %v9933
    %v10062 = vunpack.c.l.b16 %v9934
    %v10063 = vunpack.c.l.b16 %v9935
    %v10064 = vunpack.c.l.b16 %v9936
    %v10065 = vunpack.c.l.b16 %v9937
    %v10066 = vunpack.c.l.b16 %v9938
    %v10067 = vunpack.c.l.b16 %v9939
    %v10068 = vunpack.c.l.b16 %v9940
    %v10069 = vunpack.c.l.b16 %v9941
    %v10070 = vunpack.c.l.b16 %v9942
    %v10071 = vunpack.c.l.b16 %v9943
    %v10072 = vunpack.c.l.b16 %v9944
    %v10073 = vunpack.c.l.b16 %v9945
    %v10074 = vunpack.c.l.b16 %v9946
    %v10075 = vunpack.c.l.b16 %v9947
    %v10076 = vunpack.c.l.b16 %v9948
    %v10077 = vunpack.c.l.b16 %v9949
    %v10078 = vunpack.c.l.b16 %v9950
    %v10079 = vunpack.c.l.b16 %v9951
    %v10080 = vunpack.c.l.b16 %v9952
    %v10081 = vunpack.c.l.b16 %v9953
    %v10082 = vunpack.c.l.b16 %v9954
    %v10083 = vunpack.c.l.b16 %v9955
    %v10084 = vunpack.c.l.b16 %v9956
    %v10085 = vunpack.c.l.b16 %v9957
    %v10086 = vunpack.c.l.b16 %v9958
    %v10087 = vunpack.c.l.b16 %v9959
    %v10088 = vunpack.c.l.b16 %v9960
    %v10089 = vunpack.c.l.b16 %v9961
    %v10090 = vunpack.c.l.b16 %v9962
    %v10091 = vunpack.c.l.b16 %v9963
    %v10092 = vunpack.c.l.b16 %v9964
    %v10093 = vunpack.c.l.b16 %v9965
    %v10094 = vunpack.c.l.b16 %v9966
    %v10095 = vunpack.c.l.b16 %v9967
    %v10096 = vunpack.c.l.b16 %v9968
    %v10097 = vunpack.c.l.b16 %v9969
    %v10098 = vunpack.c.l.b16 %v9970
    %v10099 = vunpack.c.l.b16 %v9971
    %v10100 = vunpack.c.l.b16 %v9972
    %v10101 = vunpack.c.l.b16 %v9973
    %v10102 = vunpack.c.l.b16 %v9974
    %v10103 = vunpack.c.l.b16 %v9975
    %v10104 = vunpack.c.l.b16 %v9976
    %v10105 = vunpack.c.l.b16 %v9977
    %v10106 = vunpack.c.l.b16 %v9978
    %v10107 = vunpack.c.l.b16 %v9979
    %v10108 = vunpack.c.l.b16 %v9980
    %v10109 = vunpack.c.l.b16 %v9981
    %v10110 = vunpack.c.l.b16 %v9982
    %v10111 = vunpack.c.l.b16 %v9983
    %v10112 = vunpack.c.l.b16 %v9984
    %v10113 = vunpack.c.l.b16 %v9985
    %v10114 = vpack.c.b16 %v10051, %v10050
    %v10115 = vpack.c.b16 %v10053, %v10052
    %v10116 = vpack.c.b16 %v10055, %v10054
    %v10117 = vpack.c.b16 %v10057, %v10056
    %v10118 = vpack.c.b16 %v10059, %v10058
    %v10119 = vpack.c.b16 %v10061, %v10060
    %v10120 = vpack.c.b16 %v10063, %v10062
    %v10121 = vpack.c.b16 %v10065, %v10064
    %v10122 = vpack.c.b16 %v10067, %v10066
    %v10123 = vpack.c.b16 %v10069, %v10068
    %v10124 = vpack.c.b16 %v10071, %v10070
    %v10125 = vpack.c.b16 %v10073, %v10072
    %v10126 = vpack.c.b16 %v10075, %v10074
    %v10127 = vpack.c.b16 %v10077, %v10076
    %v10128 = vpack.c.b16 %v10079, %v10078
    %v10129 = vpack.c.b16 %v10081, %v10080
    %v10130 = vpack.c.b16 %v10083, %v10082
    %v10131 = vpack.c.b16 %v10085, %v10084
    %v10132 = vpack.c.b16 %v10087, %v10086
    %v10133 = vpack.c.b16 %v10089, %v10088
    %v10134 = vpack.c.b16 %v10091, %v10090
    %v10135 = vpack.c.b16 %v10093, %v10092
    %v10136 = vpack.c.b16 %v10095, %v10094
    %v10137 = vpack.c.b16 %v10097, %v10096
    %v10138 = vpack.c.b16 %v10099, %v10098
    %v10139 = vpack.c.b16 %v10101, %v10100
    %v10140 = vpack.c.b16 %v10103, %v10102
    %v10141 = vpack.c.b16 %v10105, %v10104
    %v10142 = vpack.c.b16 %v10107, %v10106
    %v10143 = vpack.c.b16 %v10109, %v10108
    %v10144 = vpack.c.b16 %v10111, %v10110
    %v10145 = vpack.c.b16 %v10113, %v10112
    %10178 = vmatpush.bf16.msra.mxu0 %v10121
    %10179 = vmatpush.bf16.msra.mxu0 %v10120
    %10180 = vmatpush.bf16.msra.mxu0 %v10119
    %10181 = vmatpush.bf16.msra.mxu0 %v10118
    %10182 = vmatpush.bf16.msra.mxu0 %v10117
    %10183 = vmatpush.bf16.msra.mxu0 %v10116
    %10184 = vmatpush.bf16.msra.mxu0 %v10115
    %10185 = vmatpush.bf16.msra.mxu0 %v10114
    %10186 = vmatmul.bf16.gmra.mxu0 %v7862
    %v10187 = vpop.f32.mrf.mxu0
    %v10188 = vadd.f32 0.0, %v10187
    %v10189 = vpop.f32.mrf.mxu0
    %v10190 = vadd.f32 0.0, %v10189
    %10191 = vdwg.mxu0
    %10192 = vmatpush.bf16.msra.mxu0 %v10129
    %10193 = vmatpush.bf16.msra.mxu0 %v10128
    %10194 = vmatpush.bf16.msra.mxu0 %v10127
    %10195 = vmatpush.bf16.msra.mxu0 %v10126
    %10196 = vmatpush.bf16.msra.mxu0 %v10125
    %10197 = vmatpush.bf16.msra.mxu0 %v10124
    %10198 = vmatpush.bf16.msra.mxu0 %v10123
    %10199 = vmatpush.bf16.msra.mxu0 %v10122
    %10200 = vmatmul.bf16.gmra.mxu0 %v7863
    %v10201 = vpop.f32.mrf.mxu0
    %v10202 = vadd.f32 %v10188, %v10201
    %v10203 = vpop.f32.mrf.mxu0
    %v10204 = vadd.f32 %v10190, %v10203
    %10205 = vdwg.mxu0
    %10206 = vmatpush.bf16.msra.mxu0 %v10137
    %10207 = vmatpush.bf16.msra.mxu0 %v10136
    %10208 = vmatpush.bf16.msra.mxu0 %v10135
    %10209 = vmatpush.bf16.msra.mxu0 %v10134
    %10210 = vmatpush.bf16.msra.mxu0 %v10133
    %10211 = vmatpush.bf16.msra.mxu0 %v10132
    %10212 = vmatpush.bf16.msra.mxu0 %v10131
    %10213 = vmatpush.bf16.msra.mxu0 %v10130
    %10214 = vmatmul.bf16.gmra.mxu0 %v7864
    %v10215 = vpop.f32.mrf.mxu0
    %v10216 = vadd.f32 %v10202, %v10215
    %v10217 = vpop.f32.mrf.mxu0
    %v10218 = vadd.f32 %v10204, %v10217
    %10219 = vdwg.mxu0
    %10220 = vmatpush.bf16.msra.mxu0 %v10145
    %10221 = vmatpush.bf16.msra.mxu0 %v10144
    %10222 = vmatpush.bf16.msra.mxu0 %v10143
    %10223 = vmatpush.bf16.msra.mxu0 %v10142
    %10224 = vmatpush.bf16.msra.mxu0 %v10141
    %10225 = vmatpush.bf16.msra.mxu0 %v10140
    %10226 = vmatpush.bf16.msra.mxu0 %v10139
    %10227 = vmatpush.bf16.msra.mxu0 %v10138
    %10228 = vmatmul.bf16.gmra.mxu0 %v7865
    %v10229 = vpop.f32.mrf.mxu0
    %v10230 = vadd.f32 %v10216, %v10229
    %v10231 = vpop.f32.mrf.mxu0
    %v10232 = vadd.f32 %v10218, %v10231
    %10233 = vdwg.mxu0
    %v10234 = vadd.f32 %v9918, %v10230
    %v10235 = vadd.f32 %v9920, %v10232
    %v10236 = vpack.c.bf16 %v9294, %v9290
    %v10237 = vpack.c.bf16 %v9295, %v9291
    %v10238 = vpack.c.bf16 %v9296, %v9292
    %v10239 = vpack.c.bf16 %v9297, %v9293
    %v10240 = vld [vmem:[#allocation10 + $0x300] sm:$0xf]
    %v10241 = vld [vmem:[#allocation10 + $0x304] sm:$0xf]
    %v10242 = vld [vmem:[#allocation10 + $0x308] sm:$0xf]
    %v10243 = vld [vmem:[#allocation10 + $0x30c] sm:$0xf]
    %v10244 = vld [vmem:[#allocation10 + $0x310] sm:$0xf]
    %v10245 = vld [vmem:[#allocation10 + $0x314] sm:$0xf]
    %v10246 = vld [vmem:[#allocation10 + $0x318] sm:$0xf]
    %v10247 = vld [vmem:[#allocation10 + $0x31c] sm:$0xf]
    %v10248 = vld [vmem:[#allocation10 + $0x320] sm:$0xf]
    %v10249 = vld [vmem:[#allocation10 + $0x324] sm:$0xf]
    %v10250 = vld [vmem:[#allocation10 + $0x328] sm:$0xf]
    %v10251 = vld [vmem:[#allocation10 + $0x32c] sm:$0xf]
    %v10252 = vld [vmem:[#allocation10 + $0x330] sm:$0xf]
    %v10253 = vld [vmem:[#allocation10 + $0x334] sm:$0xf]
    %v10254 = vld [vmem:[#allocation10 + $0x338] sm:$0xf]
    %v10255 = vld [vmem:[#allocation10 + $0x33c] sm:$0xf]
    %v10256 = vld [vmem:[#allocation10 + $0x340] sm:$0xf]
    %v10257 = vld [vmem:[#allocation10 + $0x344] sm:$0xf]
    %v10258 = vld [vmem:[#allocation10 + $0x348] sm:$0xf]
    %v10259 = vld [vmem:[#allocation10 + $0x34c] sm:$0xf]
    %v10260 = vld [vmem:[#allocation10 + $0x350] sm:$0xf]
    %v10261 = vld [vmem:[#allocation10 + $0x354] sm:$0xf]
    %v10262 = vld [vmem:[#allocation10 + $0x358] sm:$0xf]
    %v10263 = vld [vmem:[#allocation10 + $0x35c] sm:$0xf]
    %v10264 = vld [vmem:[#allocation10 + $0x360] sm:$0xf]
    %v10265 = vld [vmem:[#allocation10 + $0x364] sm:$0xf]
    %v10266 = vld [vmem:[#allocation10 + $0x368] sm:$0xf]
    %v10267 = vld [vmem:[#allocation10 + $0x36c] sm:$0xf]
    %v10268 = vld [vmem:[#allocation10 + $0x370] sm:$0xf]
    %v10269 = vld [vmem:[#allocation10 + $0x374] sm:$0xf]
    %v10270 = vld [vmem:[#allocation10 + $0x378] sm:$0xf]
    %v10271 = vld [vmem:[#allocation10 + $0x37c] sm:$0xf]
    %v10272 = vld [vmem:[#allocation10 + $0x380] sm:$0xf]
    %v10273 = vld [vmem:[#allocation10 + $0x384] sm:$0xf]
    %v10274 = vld [vmem:[#allocation10 + $0x388] sm:$0xf]
    %v10275 = vld [vmem:[#allocation10 + $0x38c] sm:$0xf]
    %v10276 = vld [vmem:[#allocation10 + $0x390] sm:$0xf]
    %v10277 = vld [vmem:[#allocation10 + $0x394] sm:$0xf]
    %v10278 = vld [vmem:[#allocation10 + $0x398] sm:$0xf]
    %v10279 = vld [vmem:[#allocation10 + $0x39c] sm:$0xf]
    %v10280 = vld [vmem:[#allocation10 + $0x3a0] sm:$0xf]
    %v10281 = vld [vmem:[#allocation10 + $0x3a4] sm:$0xf]
    %v10282 = vld [vmem:[#allocation10 + $0x3a8] sm:$0xf]
    %v10283 = vld [vmem:[#allocation10 + $0x3ac] sm:$0xf]
    %v10284 = vld [vmem:[#allocation10 + $0x3b0] sm:$0xf]
    %v10285 = vld [vmem:[#allocation10 + $0x3b4] sm:$0xf]
    %v10286 = vld [vmem:[#allocation10 + $0x3b8] sm:$0xf]
    %v10287 = vld [vmem:[#allocation10 + $0x3bc] sm:$0xf]
    %v10288 = vld [vmem:[#allocation10 + $0x3c0] sm:$0xf]
    %v10289 = vld [vmem:[#allocation10 + $0x3c4] sm:$0xf]
    %v10290 = vld [vmem:[#allocation10 + $0x3c8] sm:$0xf]
    %v10291 = vld [vmem:[#allocation10 + $0x3cc] sm:$0xf]
    %v10292 = vld [vmem:[#allocation10 + $0x3d0] sm:$0xf]
    %v10293 = vld [vmem:[#allocation10 + $0x3d4] sm:$0xf]
    %v10294 = vld [vmem:[#allocation10 + $0x3d8] sm:$0xf]
    %v10295 = vld [vmem:[#allocation10 + $0x3dc] sm:$0xf]
    %v10296 = vld [vmem:[#allocation10 + $0x3e0] sm:$0xf]
    %v10297 = vld [vmem:[#allocation10 + $0x3e4] sm:$0xf]
    %v10298 = vld [vmem:[#allocation10 + $0x3e8] sm:$0xf]
    %v10299 = vld [vmem:[#allocation10 + $0x3ec] sm:$0xf]
    %v10300 = vld [vmem:[#allocation10 + $0x3f0] sm:$0xf]
    %v10301 = vld [vmem:[#allocation10 + $0x3f4] sm:$0xf]
    %v10302 = vld [vmem:[#allocation10 + $0x3f8] sm:$0xf]
    %v10303 = vld [vmem:[#allocation10 + $0x3fc] sm:$0xf]
    %v10368 = vunpack.c.l.b16 %v10240
    %v10369 = vunpack.c.l.b16 %v10241
    %v10370 = vunpack.c.l.b16 %v10242
    %v10371 = vunpack.c.l.b16 %v10243
    %v10372 = vunpack.c.l.b16 %v10244
    %v10373 = vunpack.c.l.b16 %v10245
    %v10374 = vunpack.c.l.b16 %v10246
    %v10375 = vunpack.c.l.b16 %v10247
    %v10376 = vunpack.c.l.b16 %v10248
    %v10377 = vunpack.c.l.b16 %v10249
    %v10378 = vunpack.c.l.b16 %v10250
    %v10379 = vunpack.c.l.b16 %v10251
    %v10380 = vunpack.c.l.b16 %v10252
    %v10381 = vunpack.c.l.b16 %v10253
    %v10382 = vunpack.c.l.b16 %v10254
    %v10383 = vunpack.c.l.b16 %v10255
    %v10384 = vunpack.c.l.b16 %v10256
    %v10385 = vunpack.c.l.b16 %v10257
    %v10386 = vunpack.c.l.b16 %v10258
    %v10387 = vunpack.c.l.b16 %v10259
    %v10388 = vunpack.c.l.b16 %v10260
    %v10389 = vunpack.c.l.b16 %v10261
    %v10390 = vunpack.c.l.b16 %v10262
    %v10391 = vunpack.c.l.b16 %v10263
    %v10392 = vunpack.c.l.b16 %v10264
    %v10393 = vunpack.c.l.b16 %v10265
    %v10394 = vunpack.c.l.b16 %v10266
    %v10395 = vunpack.c.l.b16 %v10267
    %v10396 = vunpack.c.l.b16 %v10268
    %v10397 = vunpack.c.l.b16 %v10269
    %v10398 = vunpack.c.l.b16 %v10270
    %v10399 = vunpack.c.l.b16 %v10271
    %v10400 = vunpack.c.l.b16 %v10272
    %v10401 = vunpack.c.l.b16 %v10273
    %v10402 = vunpack.c.l.b16 %v10274
    %v10403 = vunpack.c.l.b16 %v10275
    %v10404 = vunpack.c.l.b16 %v10276
    %v10405 = vunpack.c.l.b16 %v10277
    %v10406 = vunpack.c.l.b16 %v10278
    %v10407 = vunpack.c.l.b16 %v10279
    %v10408 = vunpack.c.l.b16 %v10280
    %v10409 = vunpack.c.l.b16 %v10281
    %v10410 = vunpack.c.l.b16 %v10282
    %v10411 = vunpack.c.l.b16 %v10283
    %v10412 = vunpack.c.l.b16 %v10284
    %v10413 = vunpack.c.l.b16 %v10285
    %v10414 = vunpack.c.l.b16 %v10286
    %v10415 = vunpack.c.l.b16 %v10287
    %v10416 = vunpack.c.l.b16 %v10288
    %v10417 = vunpack.c.l.b16 %v10289
    %v10418 = vunpack.c.l.b16 %v10290
    %v10419 = vunpack.c.l.b16 %v10291
    %v10420 = vunpack.c.l.b16 %v10292
    %v10421 = vunpack.c.l.b16 %v10293
    %v10422 = vunpack.c.l.b16 %v10294
    %v10423 = vunpack.c.l.b16 %v10295
    %v10424 = vunpack.c.l.b16 %v10296
    %v10425 = vunpack.c.l.b16 %v10297
    %v10426 = vunpack.c.l.b16 %v10298
    %v10427 = vunpack.c.l.b16 %v10299
    %v10428 = vunpack.c.l.b16 %v10300
    %v10429 = vunpack.c.l.b16 %v10301
    %v10430 = vunpack.c.l.b16 %v10302
    %v10431 = vunpack.c.l.b16 %v10303
    %v10432 = vpack.c.b16 %v10369, %v10368
    %v10433 = vpack.c.b16 %v10371, %v10370
    %v10434 = vpack.c.b16 %v10373, %v10372
    %v10435 = vpack.c.b16 %v10375, %v10374
    %v10436 = vpack.c.b16 %v10377, %v10376
    %v10437 = vpack.c.b16 %v10379, %v10378
    %v10438 = vpack.c.b16 %v10381, %v10380
    %v10439 = vpack.c.b16 %v10383, %v10382
    %v10440 = vpack.c.b16 %v10385, %v10384
    %v10441 = vpack.c.b16 %v10387, %v10386
    %v10442 = vpack.c.b16 %v10389, %v10388
    %v10443 = vpack.c.b16 %v10391, %v10390
    %v10444 = vpack.c.b16 %v10393, %v10392
    %v10445 = vpack.c.b16 %v10395, %v10394
    %v10446 = vpack.c.b16 %v10397, %v10396
    %v10447 = vpack.c.b16 %v10399, %v10398
    %v10448 = vpack.c.b16 %v10401, %v10400
    %v10449 = vpack.c.b16 %v10403, %v10402
    %v10450 = vpack.c.b16 %v10405, %v10404
    %v10451 = vpack.c.b16 %v10407, %v10406
    %v10452 = vpack.c.b16 %v10409, %v10408
    %v10453 = vpack.c.b16 %v10411, %v10410
    %v10454 = vpack.c.b16 %v10413, %v10412
    %v10455 = vpack.c.b16 %v10415, %v10414
    %v10456 = vpack.c.b16 %v10417, %v10416
    %v10457 = vpack.c.b16 %v10419, %v10418
    %v10458 = vpack.c.b16 %v10421, %v10420
    %v10459 = vpack.c.b16 %v10423, %v10422
    %v10460 = vpack.c.b16 %v10425, %v10424
    %v10461 = vpack.c.b16 %v10427, %v10426
    %v10462 = vpack.c.b16 %v10429, %v10428
    %v10463 = vpack.c.b16 %v10431, %v10430
    %10496 = vmatpush.bf16.msra.mxu0 %v10439
    %10497 = vmatpush.bf16.msra.mxu0 %v10438
    %10498 = vmatpush.bf16.msra.mxu0 %v10437
    %10499 = vmatpush.bf16.msra.mxu0 %v10436
    %10500 = vmatpush.bf16.msra.mxu0 %v10435
    %10501 = vmatpush.bf16.msra.mxu0 %v10434
    %10502 = vmatpush.bf16.msra.mxu0 %v10433
    %10503 = vmatpush.bf16.msra.mxu0 %v10432
    %10504 = vmatmul.bf16.gmra.mxu0 %v10236
    %v10505 = vpop.f32.mrf.mxu0
    %v10506 = vadd.f32 0.0, %v10505
    %v10507 = vpop.f32.mrf.mxu0
    %v10508 = vadd.f32 0.0, %v10507
    %10509 = vdwg.mxu0
    %10510 = vmatpush.bf16.msra.mxu0 %v10447
    %10511 = vmatpush.bf16.msra.mxu0 %v10446
    %10512 = vmatpush.bf16.msra.mxu0 %v10445
    %10513 = vmatpush.bf16.msra.mxu0 %v10444
    %10514 = vmatpush.bf16.msra.mxu0 %v10443
    %10515 = vmatpush.bf16.msra.mxu0 %v10442
    %10516 = vmatpush.bf16.msra.mxu0 %v10441
    %10517 = vmatpush.bf16.msra.mxu0 %v10440
    %10518 = vmatmul.bf16.gmra.mxu0 %v10237
    %v10519 = vpop.f32.mrf.mxu0
    %v10520 = vadd.f32 %v10506, %v10519
    %v10521 = vpop.f32.mrf.mxu0
    %v10522 = vadd.f32 %v10508, %v10521
    %10523 = vdwg.mxu0
    %10524 = vmatpush.bf16.msra.mxu0 %v10455
    %10525 = vmatpush.bf16.msra.mxu0 %v10454
    %10526 = vmatpush.bf16.msra.mxu0 %v10453
    %10527 = vmatpush.bf16.msra.mxu0 %v10452
    %10528 = vmatpush.bf16.msra.mxu0 %v10451
    %10529 = vmatpush.bf16.msra.mxu0 %v10450
    %10530 = vmatpush.bf16.msra.mxu0 %v10449
    %10531 = vmatpush.bf16.msra.mxu0 %v10448
    %10532 = vmatmul.bf16.gmra.mxu0 %v10238
    %v10533 = vpop.f32.mrf.mxu0
    %v10534 = vadd.f32 %v10520, %v10533
    %v10535 = vpop.f32.mrf.mxu0
    %v10536 = vadd.f32 %v10522, %v10535
    %10537 = vdwg.mxu0
    %10538 = vmatpush.bf16.msra.mxu0 %v10463
    %10539 = vmatpush.bf16.msra.mxu0 %v10462
    %10540 = vmatpush.bf16.msra.mxu0 %v10461
    %10541 = vmatpush.bf16.msra.mxu0 %v10460
    %10542 = vmatpush.bf16.msra.mxu0 %v10459
    %10543 = vmatpush.bf16.msra.mxu0 %v10458
    %10544 = vmatpush.bf16.msra.mxu0 %v10457
    %10545 = vmatpush.bf16.msra.mxu0 %v10456
    %10546 = vmatmul.bf16.gmra.mxu0 %v10239
    %v10547 = vpop.f32.mrf.mxu0
    %v10548 = vadd.f32 %v10534, %v10547
    %v10549 = vpop.f32.mrf.mxu0
    %v10550 = vadd.f32 %v10536, %v10549
    %10551 = vdwg.mxu0
    %v10552 = vadd.f32 %v10234, %v10548
    %v10553 = vadd.f32 %v10235, %v10550
    %v10554 = vld [vmem:[#allocation11] sm:$0x1]
    %v10556 = vperm.slane %v10554, 0
    %v10558 = vadd.f32 %v10552, %v10556
    %v10559 = vadd.f32 %v10553, %v10556
    %10560 = vst [vmem:[#allocation13] sm:$0xff] %v10558
    %10561 = vst [vmem:[#allocation13 + $0x8] sm:$0xff] %v10559
    // Predicated region
    $region50: #{tpu_custom_call.1} parent=1 // pred_check
      _
    $region51: #{tpu_custom_call.1} parent=1 // pred_check_branch
      %10563 = sbr.rel (0) target = $region53
    $region52: #{tpu_custom_call.1} parent=1 // pred_region
      %10565 = vsyncadd [#allocation4], 0
      %s10566 = sshll.u32 [#allocation13], 4
      %s10567 = int_to_ptr.vmem [resolvable:$true] %s10566
      %s10568 = sshll.u32 %s6, 4
      %s10569 = int_to_ptr.hbm [resolvable:$true] %s10568
      %10574 = dma.vmem_to_hbm [thread:$0]  %s10567, 256, %s10569, [#allocation4], 128, 128, 8
    $region53: #{tpu_custom_call.1} parent=1 // pred_fallthru
      _
    // Predicated region
    $region54: #{tpu_custom_call.1} parent=1 // pred_check
      _
    $region55: #{tpu_custom_call.1} parent=1 // pred_check_branch
      %10576 = sbr.rel (0) target = $region57
    $region56: #{tpu_custom_call.1} parent=1 // pred_region
      %10578 = dma.done [#allocation4], 256
    $region57: #{tpu_custom_call.1} parent=1 // pred_fallthru
      _
    %10579 = vsyncpa [#allocation3], 1
    %10580 = vsyncpa [#allocation6], 1
    %10581 = vsyncpa [#allocation9], 1
    %10582 = vsyncpa [#allocation12], 1
    %10583 = vsyncpa [#allocation4], 1

</llo_original>
